<compile_context>
chip_gen: v7x
topology: tpu7x:2x2x1
jax: 0.10.0
libtpu: 0.0.40
codegen_flags: <defaults>
</compile_context>

<pallas_src>
import math
import functools
import numpy as np
import jax
import jax.numpy as jnp
from jax.experimental import pallas as pl
from jax.experimental.pallas import tpu as pltpu

D = 128            # model_dim
H_CODE = 4         # nhead of VisitTransformer
H_VISIT = 4        # num_heads of HITANet EncoderLayer
FFN_CODE = 2 * D   # dim_feedforward of VisitTransformer
FFN_VISIT = 1024   # ffn_dim of EncoderLayer
EPS = 1e-5
NEG = -1e30        # stands in for -inf in masked_fill (avoids NaN rows)

DPH_CODE = D // H_CODE
DPH_VISIT = D // H_VISIT
SCALE_CODE = 1.0 / math.sqrt(DPH_CODE)                  # nn.MultiheadAttention scaling
SCALE_VISIT = float((DPH_VISIT // H_VISIT) ** (-0.5))   # mirrors reference (key.size(-1)//num_heads)**-0.5

NT_DIMS = (((1,), (1,)), ((), ()))   # contract last dims of both operands (q @ k^T)


def _layer_norm(x, gamma, beta):
    mu = jnp.mean(x, axis=-1, keepdims=True)
    var = jnp.mean(jnp.square(x - mu), axis=-1, keepdims=True)
    return (x - mu) * jax.lax.rsqrt(var + EPS) * gamma + beta


# ----------------------------------------------------------------------------
# Kernel 1: code-level transformer encoder layer, G visits per grid step.
#   x block        : (G*C, D)      flattened code embeddings
#   addm block     : (G*C, G*C)    additive mask = block-diag(visits) + key padding
#   valid block    : (G, 1)        1.0 if the visit has >=1 real code
#   pool / sel     : (G, G*C) / (G*C, C) constant 0/1 matrices (visit pooling,
#                    code-slot selection) so pooling / importance stay matmuls.
# Outputs: per-visit embedding (G, D) and code importance (G, C).
# ----------------------------------------------------------------------------
def code_encoder_kernel(x_ref, am_ref, valid_ref, pool_ref, sel_ref,
                        wq, bq, wk, bk, wv, bv, wo, bo,
                        g1, be1, w1, bb1, w2, bb2, g2, be2,
                        emb_ref, imp_ref, *, inv_codes):
    bf16 = jnp.bfloat16
    x = x_ref[...]                                   # (G*C, D) f32
    xb = x.astype(bf16)
    addm = am_ref[...]                               # (G*C, G*C)

    q = jnp.dot(xb, wq[...], preferred_element_type=jnp.float32) + bq[...]
    k = jnp.dot(xb, wk[...], preferred_element_type=jnp.float32) + bk[...]
    v = jnp.dot(xb, wv[...], preferred_element_type=jnp.float32) + bv[...]
    qb, kb, vb = q.astype(bf16), k.astype(bf16), v.astype(bf16)

    rows = x.shape[0]
    attn_out = jnp.zeros((rows, D), jnp.float32)
    attn_avg = jnp.zeros((rows, rows), jnp.float32)
    for h in range(H_CODE):                          # static unroll over heads
        sl = slice(h * DPH_CODE, (h + 1) * DPH_CODE)
        s = jax.lax.dot_general(qb[:, sl], kb[:, sl], NT_DIMS,
                                preferred_element_type=jnp.float32)
        s = s * SCALE_CODE + addm
        m = jnp.max(s, axis=-1, keepdims=True)
        e = jnp.exp(s - m)
        p = e * pl.reciprocal(jnp.sum(e, axis=-1, keepdims=True), approx=True)
        attn_avg = attn_avg + p * (1.0 / H_CODE)
        ctx = jnp.dot(p.astype(bf16), vb[:, sl], preferred_element_type=jnp.float32)
        # fold the per-head context straight into the output projection -> no concat
        attn_out = attn_out + jnp.dot(ctx.astype(bf16), wo[sl, :],
                                      preferred_element_type=jnp.float32)
    attn_out = attn_out + bo[...]

    src = _layer_norm(x + attn_out, g1[...], be1[...])
    ff = jnp.maximum(jnp.dot(src.astype(bf16), w1[...],
                             preferred_element_type=jnp.float32) + bb1[...], 0.0)
    ff = jnp.dot(ff.astype(bf16), w2[...], preferred_element_type=jnp.float32) + bb2[...]
    out = _layer_norm(src + ff, g2[...], be2[...])

    valid = valid_ref[...]                           # (G, 1)
    pool = pool_ref[...]                             # (G, G*C) 0/1 visit membership
    # mean-pool over all C code slots (matches reference), zero fully-padded visits
    emb_ref[...] = jnp.dot(pool * inv_codes, out,
                           preferred_element_type=jnp.float32) * valid

    # code importance: sum head-averaged attention over the queries of the SAME
    # visit only, pick the own-visit key columns, normalise.
    t_mat = jnp.dot(pool, attn_avg, preferred_element_type=jnp.float32)   # (G, G*C)
    imp2d = jnp.dot(t_mat * pool, sel_ref[...],
                    preferred_element_type=jnp.float32)                   # (G, C)
    norm = jnp.sum(imp2d, axis=-1, keepdims=True)
    imp_ref[...] = imp2d * pl.reciprocal(norm, approx=True) * valid


def code_level_transformer(x2, addm, valid, pool01, sel_e, p, *, G, C, PV_pad):
    bf16 = jnp.bfloat16
    weights = [p['wq'].astype(bf16), p['bq'], p['wk'].astype(bf16), p['bk'],
               p['wv'].astype(bf16), p['bv'], p['wo'].astype(bf16), p['bo'],
               p['g1'], p['be1'], p['w1'].astype(bf16), p['bb1'],
               p['w2'].astype(bf16), p['bb2'], p['g2'], p['be2']]

    def const_spec(a):
        # constant block index -> fetched once, not re-DMA'd per grid step
        return pl.BlockSpec(a.shape, lambda i: (0,) * a.ndim)

    kernel = functools.partial(code_encoder_kernel, inv_codes=1.0 / C)
    emb, imp = pl.pallas_call(
        kernel,
        out_shape=(jax.ShapeDtypeStruct((PV_pad, D), jnp.float32),
                   jax.ShapeDtypeStruct((PV_pad, C), jnp.float32)),
        grid=(PV_pad // G,),
        in_specs=[pl.BlockSpec((G * C, D), lambda i: (i, 0)),
                  pl.BlockSpec((G * C, G * C), lambda i: (i, 0)),
                  pl.BlockSpec((G, 1), lambda i: (i, 0)),
                  const_spec(pool01), const_spec(sel_e)]
                 + [const_spec(a) for a in weights],
        out_specs=(pl.BlockSpec((G, D), lambda i: (i, 0)),
                   pl.BlockSpec((G, C), lambda i: (i, 0))),
        compiler_params=pltpu.CompilerParams(
            dimension_semantics=("parallel",)),     # independent visit tiles (v7x megacore)
    )(x2, addm, valid, pool01, sel_e, *weights)
    return emb, imp


# ----------------------------------------------------------------------------
# Kernel 2 (fused visit level): base embedding (+bias +time +pos), QKV
# projections, the HiTANet "fake batch" attention produced by the buggy
# (B,V,D).view(B*H,V,dph) split (valid here because V == H == 4: fake head h of
# patient b is visit h's 128-dim vector chunked into 4 x 32 lanes), final
# projection, layer norms and FFN.  Whole batch, single invocation.
# Also outputs per-row column sums of the attention probs for the visit-level
# importance score (finished with tiny jnp ops outside).
# TODO(synk): tile the rows (and the (BV,1024) FFN intermediate) over a grid for
# large B*V; at demo sizes everything fits VMEM comfortably.
# ----------------------------------------------------------------------------
def visit_fused_kernel(emb_ref, t_ref, pos_ref, madd_ref,
                       bias_ref, wsel, bsel, wtim, btim,
                       wq, bq, wk, bk, wv, bv, wf, bff,
                       g1, b1, w1, bb1, w2, bb2, g2, b2,
                       out_ref, psum_ref, *, num_visits):
    V = num_visits
    bf16 = jnp.bfloat16

    # time feature: Linear(1,64) -> 1 - tanh(x^2) -> Linear(64,D)
    t = t_ref[...] * (1.0 / 180.0)
    sel = t * wsel[...] + bsel[...]
    tfeat = 1.0 - jnp.tanh(jnp.square(sel))
    tfeat = jnp.dot(tfeat.astype(bf16), wtim[...],
                    preferred_element_type=jnp.float32) + btim[...]
    base = emb_ref[...] + bias_ref[...] + tfeat + pos_ref[...]     # (R, D)
    base_bf = base.astype(bf16)

    q = jnp.dot(base_bf, wq[...], preferred_element_type=jnp.float32) + bq[...]
    k = jnp.dot(base_bf, wk[...], preferred_element_type=jnp.float32) + bk[...]
    v = jnp.dot(base_bf, wv[...], preferred_element_type=jnp.float32) + bv[...]
    madd = madd_ref[...]                                           # (R, V*V) additive mask

    R = base.shape[0]
    attn_out = jnp.zeros((R, D), jnp.float32)
    p_sum = [jnp.zeros((R, 1), jnp.float32) for _ in range(V)]     # sum over fake queries
    for j1 in range(V):                            # fake query position = lane chunk j1
        sl1 = slice(j1 * DPH_VISIT, (j1 + 1) * DPH_VISIT)
        s_cols = []
        for j2 in range(V):                        # fake key position = lane chunk j2
            sl2 = slice(j2 * DPH_VISIT, (j2 + 1) * DPH_VISIT)
            s = jnp.sum(q[:, sl1] * k[:, sl2], axis=-1, keepdims=True) * SCALE_VISIT
            s_cols.append(s + madd[:, j1 * V + j2: j1 * V + j2 + 1])
        m = s_cols[0]
        for c in s_cols[1:]:
            m = jnp.maximum(m, c)
        e_cols = [jnp.exp(c - m) for c in s_cols]
        denom = e_cols[0]
        for c in e_cols[1:]:
            denom = denom + c
        inv = pl.reciprocal(denom, approx=True)
        ctx_sl = jnp.zeros((R, DPH_VISIT), jnp.float32)
        for j2 in range(V):
            pj = e_cols[j2] * inv
            p_sum[j2] = p_sum[j2] + pj
            ctx_sl = ctx_sl + pj * v[:, j2 * DPH_VISIT:(j2 + 1) * DPH_VISIT]
        # fold this output lane-chunk straight through linear_final
        attn_out = attn_out + jnp.dot(ctx_sl.astype(bf16), wf[sl1, :],
                                      preferred_element_type=jnp.float32)
    attn_out = attn_out + bff[...]

    x1 = _layer_norm(base + attn_out, g1[...], b1[...])
    h1 = jnp.maximum(jnp.dot(x1.astype(bf16), w1[...],
                             preferred_element_type=jnp.float32) + bb1[...], 0.0)
    h2 = jnp.dot(h1.astype(bf16), w2[...], preferred_element_type=jnp.float32) + bb2[...]
    out_ref[...] = _layer_norm(x1 + h2, g2[...], b2[...])
    for j2 in range(V):
        psum_ref[:, j2:j2 + 1] = p_sum[j2]


def visit_level_fused(visit_emb, time_flat, pos_flat, maskadd, p, *, V):
    PV = visit_emb.shape[0]
    bf16 = jnp.bfloat16
    kernel = functools.partial(visit_fused_kernel, num_visits=V)
    out, psum = pl.pallas_call(
        kernel,
        out_shape=(jax.ShapeDtypeStruct((PV, D), jnp.float32),
                   jax.ShapeDtypeStruct((PV, V), jnp.float32)),
    )(visit_emb, time_flat, pos_flat, maskadd,
      p['bias_emb'], p['wsel'], p['bsel'], p['wtim'].astype(bf16), p['btim'],
      p['wq'].astype(bf16), p['bq'], p['wk'].astype(bf16), p['bk'],
      p['wv'].astype(bf16), p['bv'], p['wf'].astype(bf16), p['bf'],
      p['g1'], p['b1'], p['w1'].astype(bf16), p['bb1'],
      p['w2'].astype(bf16), p['bb2'], p['g2'], p['b2'])
    return out, psum


# ----------------------------------------------------------------------------
# Full forward (mirrors EncoderHitanet_visit_level_attention.forward), one jit.
# ----------------------------------------------------------------------------
@jax.jit
def _encoder_hitanet_forward_jit(params, diagnosis_codes, seq_time_step, input_len):
    B, V, C, Dm = diagnosis_codes.shape
    assert Dm == D
    if V != H_VISIT:
        # TODO(synk): the fused visit kernel relies on V == num_heads (=4) so the
        # reference's buggy .view(B*H, V, dph) maps each fake head onto one visit's
        # lane chunks; generalize with the flat-chunk mapping for other V.
        raise NotImplementedError("fused visit-level kernel requires V == num_heads (4)")
    PV = B * V

    # ---- code-level transformer (get_visit_embedding_by_transformer) ----------
    G = 32 if PV >= 32 else 8                 # visits per grid step (keep G*C MXU-shaped)
    PV_pad = -(-PV // G) * G
    x2 = diagnosis_codes.reshape(PV * C, D).astype(jnp.float32)
    code_pad = jnp.all(diagnosis_codes == 0.0, axis=-1).reshape(PV, C)
    if PV_pad > PV:
        x2 = jnp.concatenate(
            [x2, jnp.zeros(((PV_pad - PV) * C, D), jnp.float32)], axis=0)
        code_pad = jnp.concatenate(
            [code_pad, jnp.ones((PV_pad - PV, C), bool)], axis=0)
    pad_flat = code_pad.reshape(PV_pad * C)
    valid = (~jnp.all(code_pad, axis=-1)).astype(jnp.float32)[:, None]   # (PV_pad, 1)

    # additive mask per query row: NEG unless the key is in the SAME visit and not padding
    r_idx = jnp.arange(PV_pad * C, dtype=jnp.int32)
    col = jnp.arange(G * C, dtype=jnp.int32)
    kglob = (r_idx // (G * C))[:, None] * (G * C) + col[None, :]
    same_visit = (r_idx // C)[:, None] == (kglob // C)
    addm = jnp.where(same_visit & (~pad_flat[kglob]), 0.0, NEG).astype(jnp.float32)

    pool01 = jnp.asarray(
        (np.arange(G * C) // C)[None, :] == np.arange(G)[:, None], jnp.float32)
    sel_e = jnp.asarray(
        (np.arange(G * C) % C)[:, None] == np.arange(C)[None, :], jnp.float32)

    emb_pad, imp_pad = code_level_transformer(
        x2, addm, valid, pool01, sel_e, params['code'], G=G, C=C, PV_pad=PV_pad)
    visit_emb = emb_pad[:PV]                                      # (PV, D)
    code_level_importance_score = imp_pad[:PV].reshape(B, V, C)

    # ---- positional encoding + padding mask (traced jnp, no host sync) ---------
    lens = input_len.astype(jnp.int32)                            # (B,)
    it = jax.lax.broadcasted_iota(jnp.int32, (B, V), 1)
    pos_idx = jnp.where(it < lens[:, None], it + 1, 0)            # (B, V), 0 = pad row
    pos_emb = params['pos_table'][pos_idx].reshape(PV, D)
    pad_vis = (pos_idx == 0)
    attn_mask = jnp.broadcast_to(pad_vis[:, None, :], (B, V, V)).astype(jnp.float32)
    # HiTANet bug: attn_mask.repeat(H,1,1) vs q.view(B*H,...) -> fake element i
    # (== flat visit row, since V == H) uses mask[i % B].
    rows = jnp.arange(PV) % B
    maskadd = (attn_mask * NEG)[rows].reshape(PV, V * V)

    # ---- fused visit-level kernel ----------------------------------------------
    out_flat, psum = visit_level_fused(
        visit_emb, seq_time_step.reshape(PV, 1).astype(jnp.float32),
        pos_emb, maskadd, params['visit'], V=V)

    # visit-level importance: head-mean, sum over queries, normalise.
    # Reference adds the normalised last-layer importance, re-adds it in the per-layer
    # loop, then divides by num_layers (=1)  ->  factor 2.
    li = psum.reshape(B, V, V).sum(axis=1) * (1.0 / H_VISIT)
    li = li / jnp.sum(li, axis=-1, keepdims=True)
    visit_level_importance_score = 2.0 * li

    output = out_flat.reshape(B, V, D)
    return output, code_level_importance_score, visit_level_importance_score


def encoder_hitanet_forward(params, diagnosis_codes, mask, mask_code,
                            seq_time_step, input_len):
    del mask, mask_code   # unused by the reference forward
    return _encoder_hitanet_forward_jit(params, diagnosis_codes, seq_time_step,
                                        jnp.asarray(input_len))


# ----------------------------------------------------------------------------
# Deterministic parameter initialization
# ----------------------------------------------------------------------------
def init_params(key, vocab_size=100, max_seq_len=8):
    ks = jax.random.split(key, 24)

    def w(k, shape, scale=0.05):
        return jax.random.normal(k, shape, jnp.float32) * scale

    code = dict(
        wq=w(ks[0], (D, D)), bq=w(ks[1], (1, D), 0.01),
        wk=w(ks[2], (D, D)), bk=w(ks[3], (1, D), 0.01),
        wv=w(ks[4], (D, D)), bv=w(ks[5], (1, D), 0.01),
        wo=w(ks[6], (D, D)), bo=w(ks[7], (1, D), 0.01),
        g1=jnp.ones((1, D), jnp.float32), be1=jnp.zeros((1, D), jnp.float32),
        w1=w(ks[8], (D, FFN_CODE)), bb1=jnp.zeros((1, FFN_CODE), jnp.float32),
        w2=w(ks[9], (FFN_CODE, D)), bb2=jnp.zeros((1, D), jnp.float32),
        g2=jnp.ones((1, D), jnp.float32), be2=jnp.zeros((1, D), jnp.float32),
    )
    bound = 1.0 / math.sqrt(vocab_size)
    visit = dict(
        bias_emb=jax.random.uniform(ks[10], (1, D), jnp.float32, -bound, bound),
        wsel=w(ks[11], (1, 64)), bsel=w(ks[12], (1, 64), 0.01),
        wtim=w(ks[13], (64, D)), btim=w(ks[14], (1, D), 0.01),
        wq=w(ks[15], (D, D)), bq=w(ks[16], (1, D), 0.01),
        wk=w(ks[17], (D, D)), bk=w(ks[18], (1, D), 0.01),
        wv=w(ks[19], (D, D)), bv=w(ks[20], (1, D), 0.01),
        wf=w(ks[21], (D, D)), bf=w(ks[22], (1, D), 0.01),
        g1=jnp.ones((1, D), jnp.float32), b1=jnp.zeros((1, D), jnp.float32),
        w1=w(ks[23], (D, FFN_VISIT)), bb1=jnp.zeros((1, FFN_VISIT), jnp.float32),
        w2=w(ks[0], (FFN_VISIT, D)), bb2=jnp.zeros((1, D), jnp.float32),
        g2=jnp.ones((1, D), jnp.float32), b2=jnp.zeros((1, D), jnp.float32),
    )
    # sinusoidal positional table (matches PositionalEncoding, row 0 is the pad row)
    pe = np.array([[pos / np.power(10000, 2.0 * (j // 2) / D) for j in range(D)]
                   for pos in range(max_seq_len)])
    pe[:, 0::2] = np.sin(pe[:, 0::2])
    pe[:, 1::2] = np.cos(pe[:, 1::2])
    pos_table = jnp.asarray(np.concatenate([np.zeros((1, D)), pe], axis=0), jnp.float32)
    return dict(code=code, visit=visit, pos_table=pos_table)


if __name__ == "__main__":
    key = jax.random.PRNGKey(0)
    B, V, C = 2, 4, 8
    k_codes, k_time, k_params = jax.random.split(key, 3)

    diagnosis_codes = jax.random.normal(k_codes, (B, V, C, D), jnp.float32)
    diagnosis_codes = diagnosis_codes.at[1, 3].set(0.0)       # fully padded visit
    diagnosis_codes = diagnosis_codes.at[0, 2, 5:].set(0.0)   # partially padded visit
    seq_time_step = jax.random.uniform(k_time, (B, V, 1), jnp.float32, 0.0, 365.0)
    input_len = np.array([V, V - 1], dtype=np.int64)
    mask = None
    mask_code = None

    params = init_params(k_params, vocab_size=100, max_seq_len=8)

    out, code_imp, visit_imp = encoder_hitanet_forward(
        params, diagnosis_codes, mask, mask_code, seq_time_step, input_len)
    jax.block_until_ready((out, code_imp, visit_imp))

    assert out.shape == (B, V, D)
    assert code_imp.shape == (B, V, C)
    assert visit_imp.shape == (B, V)
    assert not bool(jnp.any(jnp.isnan(out)))
    assert not bool(jnp.any(jnp.isnan(code_imp)))
    assert not bool(jnp.any(jnp.isnan(visit_imp)))
    print("KERNEL_OK")
</pallas_src>

<mosaic_0001>
module attributes {stable_mosaic.version = 11 : i64} {
  func.func @code_encoder_kernel(%arg0: i32, %arg1: memref<64x128xf32, #tpu.memory_space<vmem>>, %arg2: memref<64x64xf32, #tpu.memory_space<vmem>>, %arg3: memref<8x1xf32, #tpu.memory_space<vmem>>, %arg4: memref<8x64xf32, #tpu.memory_space<vmem>>, %arg5: memref<64x8xf32, #tpu.memory_space<vmem>>, %arg6: memref<128x128xbf16, #tpu.memory_space<vmem>>, %arg7: memref<1x128xf32, #tpu.memory_space<vmem>>, %arg8: memref<128x128xbf16, #tpu.memory_space<vmem>>, %arg9: memref<1x128xf32, #tpu.memory_space<vmem>>, %arg10: memref<128x128xbf16, #tpu.memory_space<vmem>>, %arg11: memref<1x128xf32, #tpu.memory_space<vmem>>, %arg12: memref<128x128xbf16, #tpu.memory_space<vmem>>, %arg13: memref<1x128xf32, #tpu.memory_space<vmem>>, %arg14: memref<1x128xf32, #tpu.memory_space<vmem>>, %arg15: memref<1x128xf32, #tpu.memory_space<vmem>>, %arg16: memref<128x256xbf16, #tpu.memory_space<vmem>>, %arg17: memref<1x256xf32, #tpu.memory_space<vmem>>, %arg18: memref<256x128xbf16, #tpu.memory_space<vmem>>, %arg19: memref<1x128xf32, #tpu.memory_space<vmem>>, %arg20: memref<1x128xf32, #tpu.memory_space<vmem>>, %arg21: memref<1x128xf32, #tpu.memory_space<vmem>>, %arg22: memref<8x128xf32, #tpu.memory_space<vmem>>, %arg23: memref<8x8xf32, #tpu.memory_space<vmem>>) attributes {dimension_semantics = [#tpu.dimension_semantics<parallel>], iteration_bounds = array<i64: 1>, scalar_prefetch = 0 : i64, scratch_operands = 0 : i64, tpu.core_type = #tpu.core_type<tc>, window_params = [{transform_indices = @transform_0, window_bounds = array<i64: 64, 128>}, {transform_indices = @transform_1, window_bounds = array<i64: 64, 64>}, {transform_indices = @transform_2, window_bounds = array<i64: 8, 1>}, {pipeline_mode = #tpu.pipeline_mode<synchronous>, transform_indices = @transform_3, window_bounds = array<i64: 8, 64>}, {pipeline_mode = #tpu.pipeline_mode<synchronous>, transform_indices = @transform_4, window_bounds = array<i64: 64, 8>}, {pipeline_mode = #tpu.pipeline_mode<synchronous>, transform_indices = @transform_5, window_bounds = array<i64: 128, 128>}, {pipeline_mode = #tpu.pipeline_mode<synchronous>, transform_indices = @transform_6, window_bounds = array<i64: 1, 128>}, {pipeline_mode = #tpu.pipeline_mode<synchronous>, transform_indices = @transform_7, window_bounds = array<i64: 128, 128>}, {pipeline_mode = #tpu.pipeline_mode<synchronous>, transform_indices = @transform_8, window_bounds = array<i64: 1, 128>}, {pipeline_mode = #tpu.pipeline_mode<synchronous>, transform_indices = @transform_9, window_bounds = array<i64: 128, 128>}, {pipeline_mode = #tpu.pipeline_mode<synchronous>, transform_indices = @transform_10, window_bounds = array<i64: 1, 128>}, {pipeline_mode = #tpu.pipeline_mode<synchronous>, transform_indices = @transform_11, window_bounds = array<i64: 128, 128>}, {pipeline_mode = #tpu.pipeline_mode<synchronous>, transform_indices = @transform_12, window_bounds = array<i64: 1, 128>}, {pipeline_mode = #tpu.pipeline_mode<synchronous>, transform_indices = @transform_13, window_bounds = array<i64: 1, 128>}, {pipeline_mode = #tpu.pipeline_mode<synchronous>, transform_indices = @transform_14, window_bounds = array<i64: 1, 128>}, {pipeline_mode = #tpu.pipeline_mode<synchronous>, transform_indices = @transform_15, window_bounds = array<i64: 128, 256>}, {pipeline_mode = #tpu.pipeline_mode<synchronous>, transform_indices = @transform_16, window_bounds = array<i64: 1, 256>}, {pipeline_mode = #tpu.pipeline_mode<synchronous>, transform_indices = @transform_17, window_bounds = array<i64: 256, 128>}, {pipeline_mode = #tpu.pipeline_mode<synchronous>, transform_indices = @transform_18, window_bounds = array<i64: 1, 128>}, {pipeline_mode = #tpu.pipeline_mode<synchronous>, transform_indices = @transform_19, window_bounds = array<i64: 1, 128>}, {pipeline_mode = #tpu.pipeline_mode<synchronous>, transform_indices = @transform_20, window_bounds = array<i64: 1, 128>}, {transform_indices = @transform_21, window_bounds = array<i64: 8, 128>}, {transform_indices = @transform_22, window_bounds = array<i64: 8, 8>}]} {
    %c0 = arith.constant 0 : index
    %c0_0 = arith.constant 0 : index
    %0 = vector.load %arg1[%c0, %c0_0] : memref<64x128xf32, #tpu.memory_space<vmem>>, vector<64x128xf32>
    %1 = arith.truncf %0 : vector<64x128xf32> to vector<64x128xbf16>
    %c0_1 = arith.constant 0 : index
    %c0_2 = arith.constant 0 : index
    %2 = vector.load %arg2[%c0_1, %c0_2] : memref<64x64xf32, #tpu.memory_space<vmem>>, vector<64x64xf32>
    %c0_3 = arith.constant 0 : index
    %c0_4 = arith.constant 0 : index
    %3 = vector.load %arg6[%c0_3, %c0_4] : memref<128x128xbf16, #tpu.memory_space<vmem>>, vector<128x128xbf16>
    %cst = arith.constant dense<0.000000e+00> : vector<64x128xf32>
    %4 = tpu.matmul %1, %3, %cst {dimension_numbers = #tpu.dot_dimension_numbers<[1], [0], [0], [1], [0, 0, 1, 1], [], []>} : vector<64x128xbf16>, vector<128x128xbf16>, vector<64x128xf32> -> vector<64x128xf32>
    %c0_5 = arith.constant 0 : index
    %c0_6 = arith.constant 0 : index
    %5 = vector.load %arg7[%c0_5, %c0_6] : memref<1x128xf32, #tpu.memory_space<vmem>>, vector<1x128xf32>
    %6 = vector.broadcast %5 : vector<1x128xf32> to vector<64x128xf32>
    %7 = arith.addf %4, %6 : vector<64x128xf32>
    %c0_7 = arith.constant 0 : index
    %c0_8 = arith.constant 0 : index
    %8 = vector.load %arg8[%c0_7, %c0_8] : memref<128x128xbf16, #tpu.memory_space<vmem>>, vector<128x128xbf16>
    %cst_9 = arith.constant dense<0.000000e+00> : vector<64x128xf32>
    %9 = tpu.matmul %1, %8, %cst_9 {dimension_numbers = #tpu.dot_dimension_numbers<[1], [0], [0], [1], [0, 0, 1, 1], [], []>} : vector<64x128xbf16>, vector<128x128xbf16>, vector<64x128xf32> -> vector<64x128xf32>
    %c0_10 = arith.constant 0 : index
    %c0_11 = arith.constant 0 : index
    %10 = vector.load %arg9[%c0_10, %c0_11] : memref<1x128xf32, #tpu.memory_space<vmem>>, vector<1x128xf32>
    %11 = vector.broadcast %10 : vector<1x128xf32> to vector<64x128xf32>
    %12 = arith.addf %9, %11 : vector<64x128xf32>
    %c0_12 = arith.constant 0 : index
    %c0_13 = arith.constant 0 : index
    %13 = vector.load %arg10[%c0_12, %c0_13] : memref<128x128xbf16, #tpu.memory_space<vmem>>, vector<128x128xbf16>
    %cst_14 = arith.constant dense<0.000000e+00> : vector<64x128xf32>
    %14 = tpu.matmul %1, %13, %cst_14 {dimension_numbers = #tpu.dot_dimension_numbers<[1], [0], [0], [1], [0, 0, 1, 1], [], []>} : vector<64x128xbf16>, vector<128x128xbf16>, vector<64x128xf32> -> vector<64x128xf32>
    %c0_15 = arith.constant 0 : index
    %c0_16 = arith.constant 0 : index
    %15 = vector.load %arg11[%c0_15, %c0_16] : memref<1x128xf32, #tpu.memory_space<vmem>>, vector<1x128xf32>
    %16 = vector.broadcast %15 : vector<1x128xf32> to vector<64x128xf32>
    %17 = arith.addf %14, %16 : vector<64x128xf32>
    %18 = arith.truncf %7 : vector<64x128xf32> to vector<64x128xbf16>
    %19 = arith.truncf %12 : vector<64x128xf32> to vector<64x128xbf16>
    %20 = arith.truncf %17 : vector<64x128xf32> to vector<64x128xbf16>
    %cst_17 = arith.constant 0.000000e+00 : f32
    %21 = vector.broadcast %cst_17 : f32 to vector<64x128xf32>
    %cst_18 = arith.constant 0.000000e+00 : f32
    %22 = vector.broadcast %cst_18 : f32 to vector<64x64xf32>
    %23 = vector.extract_strided_slice %18 {offsets = [0, 0], sizes = [64, 32], strides = [1, 1]} : vector<64x128xbf16> to vector<64x32xbf16>
    %24 = vector.extract_strided_slice %19 {offsets = [0, 0], sizes = [64, 32], strides = [1, 1]} : vector<64x128xbf16> to vector<64x32xbf16>
    %cst_19 = arith.constant dense<0.000000e+00> : vector<64x64xf32>
    %25 = tpu.matmul %23, %24, %cst_19 {dimension_numbers = #tpu.dot_dimension_numbers<[1], [1], [0], [0], [0, 0, 1, 0], [], []>} : vector<64x32xbf16>, vector<64x32xbf16>, vector<64x64xf32> -> vector<64x64xf32>
    %cst_20 = arith.constant 0.176776692 : f32
    %26 = vector.broadcast %cst_20 : f32 to vector<64x64xf32>
    %27 = arith.mulf %25, %26 : vector<64x64xf32>
    %28 = arith.addf %27, %2 : vector<64x64xf32>
    %cst_21 = arith.constant dense<0xFF800000> : vector<64xf32>
    %29 = vector.multi_reduction <maximumf>, %28, %cst_21 [1] : vector<64x64xf32> to vector<64xf32>
    %30 = vector.shape_cast %29 : vector<64xf32> to vector<64x1xf32>
    %31 = vector.broadcast %30 : vector<64x1xf32> to vector<64x64xf32>
    %32 = arith.subf %28, %31 : vector<64x64xf32>
    %33 = math.exp %32 : vector<64x64xf32>
    %cst_22 = arith.constant dense<0.000000e+00> : vector<64xf32>
    %34 = vector.multi_reduction <add>, %33, %cst_22 [1] : vector<64x64xf32> to vector<64xf32>
    %35 = vector.shape_cast %34 : vector<64xf32> to vector<64x1xf32>
    %36 = tpu.reciprocal %35 {approx = true} : vector<64x1xf32> -> vector<64x1xf32>
    %37 = vector.broadcast %36 : vector<64x1xf32> to vector<64x64xf32>
    %38 = arith.mulf %33, %37 : vector<64x64xf32>
    %cst_23 = arith.constant 2.500000e-01 : f32
    %39 = vector.broadcast %cst_23 : f32 to vector<64x64xf32>
    %40 = arith.mulf %38, %39 : vector<64x64xf32>
    %41 = arith.addf %22, %40 : vector<64x64xf32>
    %42 = arith.truncf %38 : vector<64x64xf32> to vector<64x64xbf16>
    %43 = vector.extract_strided_slice %20 {offsets = [0, 0], sizes = [64, 32], strides = [1, 1]} : vector<64x128xbf16> to vector<64x32xbf16>
    %cst_24 = arith.constant dense<0.000000e+00> : vector<64x32xf32>
    %44 = tpu.matmul %42, %43, %cst_24 {dimension_numbers = #tpu.dot_dimension_numbers<[1], [0], [0], [1], [0, 0, 1, 1], [], []>} : vector<64x64xbf16>, vector<64x32xbf16>, vector<64x32xf32> -> vector<64x32xf32>
    %45 = arith.truncf %44 : vector<64x32xf32> to vector<64x32xbf16>
    %c0_25 = arith.constant 0 : index
    %c0_26 = arith.constant 0 : index
    %46 = vector.load %arg12[%c0_25, %c0_26] : memref<128x128xbf16, #tpu.memory_space<vmem>>, vector<32x128xbf16>
    %cst_27 = arith.constant dense<0.000000e+00> : vector<64x128xf32>
    %47 = tpu.matmul %45, %46, %cst_27 {dimension_numbers = #tpu.dot_dimension_numbers<[1], [0], [0], [1], [0, 0, 1, 1], [], []>} : vector<64x32xbf16>, vector<32x128xbf16>, vector<64x128xf32> -> vector<64x128xf32>
    %48 = arith.addf %21, %47 : vector<64x128xf32>
    %49 = vector.extract_strided_slice %18 {offsets = [0, 32], sizes = [64, 32], strides = [1, 1]} : vector<64x128xbf16> to vector<64x32xbf16>
    %50 = vector.extract_strided_slice %19 {offsets = [0, 32], sizes = [64, 32], strides = [1, 1]} : vector<64x128xbf16> to vector<64x32xbf16>
    %cst_28 = arith.constant dense<0.000000e+00> : vector<64x64xf32>
    %51 = tpu.matmul %49, %50, %cst_28 {dimension_numbers = #tpu.dot_dimension_numbers<[1], [1], [0], [0], [0, 0, 1, 0], [], []>} : vector<64x32xbf16>, vector<64x32xbf16>, vector<64x64xf32> -> vector<64x64xf32>
    %cst_29 = arith.constant 0.176776692 : f32
    %52 = vector.broadcast %cst_29 : f32 to vector<64x64xf32>
    %53 = arith.mulf %51, %52 : vector<64x64xf32>
    %54 = arith.addf %53, %2 : vector<64x64xf32>
    %cst_30 = arith.constant dense<0xFF800000> : vector<64xf32>
    %55 = vector.multi_reduction <maximumf>, %54, %cst_30 [1] : vector<64x64xf32> to vector<64xf32>
    %56 = vector.shape_cast %55 : vector<64xf32> to vector<64x1xf32>
    %57 = vector.broadcast %56 : vector<64x1xf32> to vector<64x64xf32>
    %58 = arith.subf %54, %57 : vector<64x64xf32>
    %59 = math.exp %58 : vector<64x64xf32>
    %cst_31 = arith.constant dense<0.000000e+00> : vector<64xf32>
    %60 = vector.multi_reduction <add>, %59, %cst_31 [1] : vector<64x64xf32> to vector<64xf32>
    %61 = vector.shape_cast %60 : vector<64xf32> to vector<64x1xf32>
    %62 = tpu.reciprocal %61 {approx = true} : vector<64x1xf32> -> vector<64x1xf32>
    %63 = vector.broadcast %62 : vector<64x1xf32> to vector<64x64xf32>
    %64 = arith.mulf %59, %63 : vector<64x64xf32>
    %cst_32 = arith.constant 2.500000e-01 : f32
    %65 = vector.broadcast %cst_32 : f32 to vector<64x64xf32>
    %66 = arith.mulf %64, %65 : vector<64x64xf32>
    %67 = arith.addf %41, %66 : vector<64x64xf32>
    %68 = arith.truncf %64 : vector<64x64xf32> to vector<64x64xbf16>
    %69 = vector.extract_strided_slice %20 {offsets = [0, 32], sizes = [64, 32], strides = [1, 1]} : vector<64x128xbf16> to vector<64x32xbf16>
    %cst_33 = arith.constant dense<0.000000e+00> : vector<64x32xf32>
    %70 = tpu.matmul %68, %69, %cst_33 {dimension_numbers = #tpu.dot_dimension_numbers<[1], [0], [0], [1], [0, 0, 1, 1], [], []>} : vector<64x64xbf16>, vector<64x32xbf16>, vector<64x32xf32> -> vector<64x32xf32>
    %71 = arith.truncf %70 : vector<64x32xf32> to vector<64x32xbf16>
    %c32 = arith.constant 32 : index
    %c0_34 = arith.constant 0 : index
    %72 = vector.load %arg12[%c32, %c0_34] : memref<128x128xbf16, #tpu.memory_space<vmem>>, vector<32x128xbf16>
    %cst_35 = arith.constant dense<0.000000e+00> : vector<64x128xf32>
    %73 = tpu.matmul %71, %72, %cst_35 {dimension_numbers = #tpu.dot_dimension_numbers<[1], [0], [0], [1], [0, 0, 1, 1], [], []>} : vector<64x32xbf16>, vector<32x128xbf16>, vector<64x128xf32> -> vector<64x128xf32>
    %74 = arith.addf %48, %73 : vector<64x128xf32>
    %75 = vector.extract_strided_slice %18 {offsets = [0, 64], sizes = [64, 32], strides = [1, 1]} : vector<64x128xbf16> to vector<64x32xbf16>
    %76 = vector.extract_strided_slice %19 {offsets = [0, 64], sizes = [64, 32], strides = [1, 1]} : vector<64x128xbf16> to vector<64x32xbf16>
    %cst_36 = arith.constant dense<0.000000e+00> : vector<64x64xf32>
    %77 = tpu.matmul %75, %76, %cst_36 {dimension_numbers = #tpu.dot_dimension_numbers<[1], [1], [0], [0], [0, 0, 1, 0], [], []>} : vector<64x32xbf16>, vector<64x32xbf16>, vector<64x64xf32> -> vector<64x64xf32>
    %cst_37 = arith.constant 0.176776692 : f32
    %78 = vector.broadcast %cst_37 : f32 to vector<64x64xf32>
    %79 = arith.mulf %77, %78 : vector<64x64xf32>
    %80 = arith.addf %79, %2 : vector<64x64xf32>
    %cst_38 = arith.constant dense<0xFF800000> : vector<64xf32>
    %81 = vector.multi_reduction <maximumf>, %80, %cst_38 [1] : vector<64x64xf32> to vector<64xf32>
    %82 = vector.shape_cast %81 : vector<64xf32> to vector<64x1xf32>
    %83 = vector.broadcast %82 : vector<64x1xf32> to vector<64x64xf32>
    %84 = arith.subf %80, %83 : vector<64x64xf32>
    %85 = math.exp %84 : vector<64x64xf32>
    %cst_39 = arith.constant dense<0.000000e+00> : vector<64xf32>
    %86 = vector.multi_reduction <add>, %85, %cst_39 [1] : vector<64x64xf32> to vector<64xf32>
    %87 = vector.shape_cast %86 : vector<64xf32> to vector<64x1xf32>
    %88 = tpu.reciprocal %87 {approx = true} : vector<64x1xf32> -> vector<64x1xf32>
    %89 = vector.broadcast %88 : vector<64x1xf32> to vector<64x64xf32>
    %90 = arith.mulf %85, %89 : vector<64x64xf32>
    %cst_40 = arith.constant 2.500000e-01 : f32
    %91 = vector.broadcast %cst_40 : f32 to vector<64x64xf32>
    %92 = arith.mulf %90, %91 : vector<64x64xf32>
    %93 = arith.addf %67, %92 : vector<64x64xf32>
    %94 = arith.truncf %90 : vector<64x64xf32> to vector<64x64xbf16>
    %95 = vector.extract_strided_slice %20 {offsets = [0, 64], sizes = [64, 32], strides = [1, 1]} : vector<64x128xbf16> to vector<64x32xbf16>
    %cst_41 = arith.constant dense<0.000000e+00> : vector<64x32xf32>
    %96 = tpu.matmul %94, %95, %cst_41 {dimension_numbers = #tpu.dot_dimension_numbers<[1], [0], [0], [1], [0, 0, 1, 1], [], []>} : vector<64x64xbf16>, vector<64x32xbf16>, vector<64x32xf32> -> vector<64x32xf32>
    %97 = arith.truncf %96 : vector<64x32xf32> to vector<64x32xbf16>
    %c64 = arith.constant 64 : index
    %c0_42 = arith.constant 0 : index
    %98 = vector.load %arg12[%c64, %c0_42] : memref<128x128xbf16, #tpu.memory_space<vmem>>, vector<32x128xbf16>
    %cst_43 = arith.constant dense<0.000000e+00> : vector<64x128xf32>
    %99 = tpu.matmul %97, %98, %cst_43 {dimension_numbers = #tpu.dot_dimension_numbers<[1], [0], [0], [1], [0, 0, 1, 1], [], []>} : vector<64x32xbf16>, vector<32x128xbf16>, vector<64x128xf32> -> vector<64x128xf32>
    %100 = arith.addf %74, %99 : vector<64x128xf32>
    %101 = vector.extract_strided_slice %18 {offsets = [0, 96], sizes = [64, 32], strides = [1, 1]} : vector<64x128xbf16> to vector<64x32xbf16>
    %102 = vector.extract_strided_slice %19 {offsets = [0, 96], sizes = [64, 32], strides = [1, 1]} : vector<64x128xbf16> to vector<64x32xbf16>
    %cst_44 = arith.constant dense<0.000000e+00> : vector<64x64xf32>
    %103 = tpu.matmul %101, %102, %cst_44 {dimension_numbers = #tpu.dot_dimension_numbers<[1], [1], [0], [0], [0, 0, 1, 0], [], []>} : vector<64x32xbf16>, vector<64x32xbf16>, vector<64x64xf32> -> vector<64x64xf32>
    %cst_45 = arith.constant 0.176776692 : f32
    %104 = vector.broadcast %cst_45 : f32 to vector<64x64xf32>
    %105 = arith.mulf %103, %104 : vector<64x64xf32>
    %106 = arith.addf %105, %2 : vector<64x64xf32>
    %cst_46 = arith.constant dense<0xFF800000> : vector<64xf32>
    %107 = vector.multi_reduction <maximumf>, %106, %cst_46 [1] : vector<64x64xf32> to vector<64xf32>
    %108 = vector.shape_cast %107 : vector<64xf32> to vector<64x1xf32>
    %109 = vector.broadcast %108 : vector<64x1xf32> to vector<64x64xf32>
    %110 = arith.subf %106, %109 : vector<64x64xf32>
    %111 = math.exp %110 : vector<64x64xf32>
    %cst_47 = arith.constant dense<0.000000e+00> : vector<64xf32>
    %112 = vector.multi_reduction <add>, %111, %cst_47 [1] : vector<64x64xf32> to vector<64xf32>
    %113 = vector.shape_cast %112 : vector<64xf32> to vector<64x1xf32>
    %114 = tpu.reciprocal %113 {approx = true} : vector<64x1xf32> -> vector<64x1xf32>
    %115 = vector.broadcast %114 : vector<64x1xf32> to vector<64x64xf32>
    %116 = arith.mulf %111, %115 : vector<64x64xf32>
    %cst_48 = arith.constant 2.500000e-01 : f32
    %117 = vector.broadcast %cst_48 : f32 to vector<64x64xf32>
    %118 = arith.mulf %116, %117 : vector<64x64xf32>
    %119 = arith.addf %93, %118 : vector<64x64xf32>
    %120 = arith.truncf %116 : vector<64x64xf32> to vector<64x64xbf16>
    %121 = vector.extract_strided_slice %20 {offsets = [0, 96], sizes = [64, 32], strides = [1, 1]} : vector<64x128xbf16> to vector<64x32xbf16>
    %cst_49 = arith.constant dense<0.000000e+00> : vector<64x32xf32>
    %122 = tpu.matmul %120, %121, %cst_49 {dimension_numbers = #tpu.dot_dimension_numbers<[1], [0], [0], [1], [0, 0, 1, 1], [], []>} : vector<64x64xbf16>, vector<64x32xbf16>, vector<64x32xf32> -> vector<64x32xf32>
    %123 = arith.truncf %122 : vector<64x32xf32> to vector<64x32xbf16>
    %c96 = arith.constant 96 : index
    %c0_50 = arith.constant 0 : index
    %124 = vector.load %arg12[%c96, %c0_50] : memref<128x128xbf16, #tpu.memory_space<vmem>>, vector<32x128xbf16>
    %cst_51 = arith.constant dense<0.000000e+00> : vector<64x128xf32>
    %125 = tpu.matmul %123, %124, %cst_51 {dimension_numbers = #tpu.dot_dimension_numbers<[1], [0], [0], [1], [0, 0, 1, 1], [], []>} : vector<64x32xbf16>, vector<32x128xbf16>, vector<64x128xf32> -> vector<64x128xf32>
    %126 = arith.addf %100, %125 : vector<64x128xf32>
    %c0_52 = arith.constant 0 : index
    %c0_53 = arith.constant 0 : index
    %127 = vector.load %arg13[%c0_52, %c0_53] : memref<1x128xf32, #tpu.memory_space<vmem>>, vector<1x128xf32>
    %128 = vector.broadcast %127 : vector<1x128xf32> to vector<64x128xf32>
    %129 = arith.addf %126, %128 : vector<64x128xf32>
    %130 = arith.addf %0, %129 : vector<64x128xf32>
    %c0_54 = arith.constant 0 : index
    %c0_55 = arith.constant 0 : index
    %131 = vector.load %arg14[%c0_54, %c0_55] : memref<1x128xf32, #tpu.memory_space<vmem>>, vector<1x128xf32>
    %c0_56 = arith.constant 0 : index
    %c0_57 = arith.constant 0 : index
    %132 = vector.load %arg15[%c0_56, %c0_57] : memref<1x128xf32, #tpu.memory_space<vmem>>, vector<1x128xf32>
    %cst_58 = arith.constant dense<0.000000e+00> : vector<64xf32>
    %133 = vector.multi_reduction <add>, %130, %cst_58 [1] : vector<64x128xf32> to vector<64xf32>
    %134 = vector.shape_cast %133 : vector<64xf32> to vector<64x1xf32>
    %cst_59 = arith.constant 1.280000e+02 : f32
    %135 = vector.broadcast %cst_59 : f32 to vector<64x1xf32>
    %136 = arith.divf %134, %135 : vector<64x1xf32>
    %137 = vector.broadcast %136 : vector<64x1xf32> to vector<64x128xf32>
    %138 = arith.subf %130, %137 : vector<64x128xf32>
    %139 = arith.mulf %138, %138 : vector<64x128xf32>
    %cst_60 = arith.constant dense<0.000000e+00> : vector<64xf32>
    %140 = vector.multi_reduction <add>, %139, %cst_60 [1] : vector<64x128xf32> to vector<64xf32>
    %141 = vector.shape_cast %140 : vector<64xf32> to vector<64x1xf32>
    %cst_61 = arith.constant 1.280000e+02 : f32
    %142 = vector.broadcast %cst_61 : f32 to vector<64x1xf32>
    %143 = arith.divf %141, %142 : vector<64x1xf32>
    %144 = vector.broadcast %136 : vector<64x1xf32> to vector<64x128xf32>
    %145 = arith.subf %130, %144 : vector<64x128xf32>
    %cst_62 = arith.constant 9.99999974E-6 : f32
    %146 = vector.broadcast %cst_62 : f32 to vector<64x1xf32>
    %147 = arith.addf %143, %146 : vector<64x1xf32>
    %148 = math.rsqrt %147 : vector<64x1xf32>
    %149 = vector.broadcast %148 : vector<64x1xf32> to vector<64x128xf32>
    %150 = arith.mulf %145, %149 : vector<64x128xf32>
    %151 = vector.broadcast %131 : vector<1x128xf32> to vector<64x128xf32>
    %152 = arith.mulf %150, %151 : vector<64x128xf32>
    %153 = vector.broadcast %132 : vector<1x128xf32> to vector<64x128xf32>
    %154 = arith.addf %152, %153 : vector<64x128xf32>
    %155 = arith.truncf %154 : vector<64x128xf32> to vector<64x128xbf16>
    %c0_63 = arith.constant 0 : index
    %c0_64 = arith.constant 0 : index
    %156 = vector.load %arg16[%c0_63, %c0_64] : memref<128x256xbf16, #tpu.memory_space<vmem>>, vector<128x256xbf16>
    %cst_65 = arith.constant dense<0.000000e+00> : vector<64x256xf32>
    %157 = tpu.matmul %155, %156, %cst_65 {dimension_numbers = #tpu.dot_dimension_numbers<[1], [0], [0], [1], [0, 0, 1, 1], [], []>} : vector<64x128xbf16>, vector<128x256xbf16>, vector<64x256xf32> -> vector<64x256xf32>
    %c0_66 = arith.constant 0 : index
    %c0_67 = arith.constant 0 : index
    %158 = vector.load %arg17[%c0_66, %c0_67] : memref<1x256xf32, #tpu.memory_space<vmem>>, vector<1x256xf32>
    %159 = vector.broadcast %158 : vector<1x256xf32> to vector<64x256xf32>
    %160 = arith.addf %157, %159 : vector<64x256xf32>
    %cst_68 = arith.constant 0.000000e+00 : f32
    %161 = vector.broadcast %cst_68 : f32 to vector<64x256xf32>
    %162 = arith.maximumf %160, %161 : vector<64x256xf32>
    %163 = arith.truncf %162 : vector<64x256xf32> to vector<64x256xbf16>
    %c0_69 = arith.constant 0 : index
    %c0_70 = arith.constant 0 : index
    %164 = vector.load %arg18[%c0_69, %c0_70] : memref<256x128xbf16, #tpu.memory_space<vmem>>, vector<256x128xbf16>
    %cst_71 = arith.constant dense<0.000000e+00> : vector<64x128xf32>
    %165 = tpu.matmul %163, %164, %cst_71 {dimension_numbers = #tpu.dot_dimension_numbers<[1], [0], [0], [1], [0, 0, 1, 1], [], []>} : vector<64x256xbf16>, vector<256x128xbf16>, vector<64x128xf32> -> vector<64x128xf32>
    %c0_72 = arith.constant 0 : index
    %c0_73 = arith.constant 0 : index
    %166 = vector.load %arg19[%c0_72, %c0_73] : memref<1x128xf32, #tpu.memory_space<vmem>>, vector<1x128xf32>
    %167 = vector.broadcast %166 : vector<1x128xf32> to vector<64x128xf32>
    %168 = arith.addf %165, %167 : vector<64x128xf32>
    %169 = arith.addf %154, %168 : vector<64x128xf32>
    %c0_74 = arith.constant 0 : index
    %c0_75 = arith.constant 0 : index
    %170 = vector.load %arg20[%c0_74, %c0_75] : memref<1x128xf32, #tpu.memory_space<vmem>>, vector<1x128xf32>
    %c0_76 = arith.constant 0 : index
    %c0_77 = arith.constant 0 : index
    %171 = vector.load %arg21[%c0_76, %c0_77] : memref<1x128xf32, #tpu.memory_space<vmem>>, vector<1x128xf32>
    %cst_78 = arith.constant dense<0.000000e+00> : vector<64xf32>
    %172 = vector.multi_reduction <add>, %169, %cst_78 [1] : vector<64x128xf32> to vector<64xf32>
    %173 = vector.shape_cast %172 : vector<64xf32> to vector<64x1xf32>
    %cst_79 = arith.constant 1.280000e+02 : f32
    %174 = vector.broadcast %cst_79 : f32 to vector<64x1xf32>
    %175 = arith.divf %173, %174 : vector<64x1xf32>
    %176 = vector.broadcast %175 : vector<64x1xf32> to vector<64x128xf32>
    %177 = arith.subf %169, %176 : vector<64x128xf32>
    %178 = arith.mulf %177, %177 : vector<64x128xf32>
    %cst_80 = arith.constant dense<0.000000e+00> : vector<64xf32>
    %179 = vector.multi_reduction <add>, %178, %cst_80 [1] : vector<64x128xf32> to vector<64xf32>
    %180 = vector.shape_cast %179 : vector<64xf32> to vector<64x1xf32>
    %cst_81 = arith.constant 1.280000e+02 : f32
    %181 = vector.broadcast %cst_81 : f32 to vector<64x1xf32>
    %182 = arith.divf %180, %181 : vector<64x1xf32>
    %183 = vector.broadcast %175 : vector<64x1xf32> to vector<64x128xf32>
    %184 = arith.subf %169, %183 : vector<64x128xf32>
    %cst_82 = arith.constant 9.99999974E-6 : f32
    %185 = vector.broadcast %cst_82 : f32 to vector<64x1xf32>
    %186 = arith.addf %182, %185 : vector<64x1xf32>
    %187 = math.rsqrt %186 : vector<64x1xf32>
    %188 = vector.broadcast %187 : vector<64x1xf32> to vector<64x128xf32>
    %189 = arith.mulf %184, %188 : vector<64x128xf32>
    %190 = vector.broadcast %170 : vector<1x128xf32> to vector<64x128xf32>
    %191 = arith.mulf %189, %190 : vector<64x128xf32>
    %192 = vector.broadcast %171 : vector<1x128xf32> to vector<64x128xf32>
    %193 = arith.addf %191, %192 : vector<64x128xf32>
    %c0_83 = arith.constant 0 : index
    %c0_84 = arith.constant 0 : index
    %194 = vector.load %arg3[%c0_83, %c0_84] : memref<8x1xf32, #tpu.memory_space<vmem>>, vector<8x1xf32>
    %c0_85 = arith.constant 0 : index
    %c0_86 = arith.constant 0 : index
    %195 = vector.load %arg4[%c0_85, %c0_86] : memref<8x64xf32, #tpu.memory_space<vmem>>, vector<8x64xf32>
    %cst_87 = arith.constant 1.250000e-01 : f32
    %196 = vector.broadcast %cst_87 : f32 to vector<8x64xf32>
    %197 = arith.mulf %195, %196 : vector<8x64xf32>
    %cst_88 = arith.constant dense<0.000000e+00> : vector<8x128xf32>
    %198 = tpu.matmul %197, %193, %cst_88 {dimension_numbers = #tpu.dot_dimension_numbers<[1], [0], [0], [1], [0, 0, 1, 1], [], []>} : vector<8x64xf32>, vector<64x128xf32>, vector<8x128xf32> -> vector<8x128xf32>
    %199 = vector.broadcast %194 : vector<8x1xf32> to vector<8x128xf32>
    %200 = arith.mulf %198, %199 : vector<8x128xf32>
    %c0_89 = arith.constant 0 : index
    %c0_90 = arith.constant 0 : index
    %201 = vector.load %arg22[%c0_89, %c0_90] : memref<8x128xf32, #tpu.memory_space<vmem>>, vector<8x128xf32>
    tpu.vector_store %arg22[%c0_89, %c0_90], %200 {strides = array<i32>} : memref<8x128xf32, #tpu.memory_space<vmem>>, vector<8x128xf32>,
    %cst_91 = arith.constant dense<0.000000e+00> : vector<8x64xf32>
    %202 = tpu.matmul %195, %119, %cst_91 {dimension_numbers = #tpu.dot_dimension_numbers<[1], [0], [0], [1], [0, 0, 1, 1], [], []>} : vector<8x64xf32>, vector<64x64xf32>, vector<8x64xf32> -> vector<8x64xf32>
    %203 = arith.mulf %202, %195 : vector<8x64xf32>
    %c0_92 = arith.constant 0 : index
    %c0_93 = arith.constant 0 : index
    %204 = vector.load %arg5[%c0_92, %c0_93] : memref<64x8xf32, #tpu.memory_space<vmem>>, vector<64x8xf32>
    %cst_94 = arith.constant dense<0.000000e+00> : vector<8x8xf32>
    %205 = tpu.matmul %203, %204, %cst_94 {dimension_numbers = #tpu.dot_dimension_numbers<[1], [0], [0], [1], [0, 0, 1, 1], [], []>} : vector<8x64xf32>, vector<64x8xf32>, vector<8x8xf32> -> vector<8x8xf32>
    %cst_95 = arith.constant dense<0.000000e+00> : vector<8xf32>
    %206 = vector.multi_reduction <add>, %205, %cst_95 [1] : vector<8x8xf32> to vector<8xf32>
    %207 = vector.shape_cast %206 : vector<8xf32> to vector<8x1xf32>
    %208 = tpu.reciprocal %207 {approx = true} : vector<8x1xf32> -> vector<8x1xf32>
    %209 = vector.broadcast %208 : vector<8x1xf32> to vector<8x8xf32>
    %210 = arith.mulf %205, %209 : vector<8x8xf32>
    %211 = vector.broadcast %194 : vector<8x1xf32> to vector<8x8xf32>
    %212 = arith.mulf %210, %211 : vector<8x8xf32>
    %c0_96 = arith.constant 0 : index
    %c0_97 = arith.constant 0 : index
    %213 = vector.load %arg23[%c0_96, %c0_97] : memref<8x8xf32, #tpu.memory_space<vmem>>, vector<8x8xf32>
    tpu.vector_store %arg23[%c0_96, %c0_97], %212 {strides = array<i32>} : memref<8x8xf32, #tpu.memory_space<vmem>>, vector<8x8xf32>,
    return
  }
  func.func @transform_0(%arg0: i32) -> (i32, i32) {
    %c0_i32 = arith.constant 0 : i32
    %c0_i32_0 = arith.constant 0 : i32
    return %arg0, %c0_i32 : i32, i32
  }
  func.func @transform_1(%arg0: i32) -> (i32, i32) {
    %c0_i32 = arith.constant 0 : i32
    %c0_i32_0 = arith.constant 0 : i32
    return %arg0, %c0_i32 : i32, i32
  }
  func.func @transform_2(%arg0: i32) -> (i32, i32) {
    %c0_i32 = arith.constant 0 : i32
    %c0_i32_0 = arith.constant 0 : i32
    return %arg0, %c0_i32 : i32, i32
  }
  func.func @transform_3(%arg0: i32) -> (i32, i32) {
    %c0_i32 = arith.constant 0 : i32
    %c0_i32_0 = arith.constant 0 : i32
    %c0_i32_1 = arith.constant 0 : i32
    return %c0_i32, %c0_i32_0 : i32, i32
  }
  func.func @transform_4(%arg0: i32) -> (i32, i32) {
    %c0_i32 = arith.constant 0 : i32
    %c0_i32_0 = arith.constant 0 : i32
    %c0_i32_1 = arith.constant 0 : i32
    return %c0_i32, %c0_i32_0 : i32, i32
  }
  func.func @transform_5(%arg0: i32) -> (i32, i32) {
    %c0_i32 = arith.constant 0 : i32
    %c0_i32_0 = arith.constant 0 : i32
    %c0_i32_1 = arith.constant 0 : i32
    return %c0_i32, %c0_i32_0 : i32, i32
  }
  func.func @transform_6(%arg0: i32) -> (i32, i32) {
    %c0_i32 = arith.constant 0 : i32
    %c0_i32_0 = arith.constant 0 : i32
    %c0_i32_1 = arith.constant 0 : i32
    return %c0_i32, %c0_i32_0 : i32, i32
  }
  func.func @transform_7(%arg0: i32) -> (i32, i32) {
    %c0_i32 = arith.constant 0 : i32
    %c0_i32_0 = arith.constant 0 : i32
    %c0_i32_1 = arith.constant 0 : i32
    return %c0_i32, %c0_i32_0 : i32, i32
  }
  func.func @transform_8(%arg0: i32) -> (i32, i32) {
    %c0_i32 = arith.constant 0 : i32
    %c0_i32_0 = arith.constant 0 : i32
    %c0_i32_1 = arith.constant 0 : i32
    return %c0_i32, %c0_i32_0 : i32, i32
  }
  func.func @transform_9(%arg0: i32) -> (i32, i32) {
    %c0_i32 = arith.constant 0 : i32
    %c0_i32_0 = arith.constant 0 : i32
    %c0_i32_1 = arith.constant 0 : i32
    return %c0_i32, %c0_i32_0 : i32, i32
  }
  func.func @transform_10(%arg0: i32) -> (i32, i32) {
    %c0_i32 = arith.constant 0 : i32
    %c0_i32_0 = arith.constant 0 : i32
    %c0_i32_1 = arith.constant 0 : i32
    return %c0_i32, %c0_i32_0 : i32, i32
  }
  func.func @transform_11(%arg0: i32) -> (i32, i32) {
    %c0_i32 = arith.constant 0 : i32
    %c0_i32_0 = arith.constant 0 : i32
    %c0_i32_1 = arith.constant 0 : i32
    return %c0_i32, %c0_i32_0 : i32, i32
  }
  func.func @transform_12(%arg0: i32) -> (i32, i32) {
    %c0_i32 = arith.constant 0 : i32
    %c0_i32_0 = arith.constant 0 : i32
    %c0_i32_1 = arith.constant 0 : i32
    return %c0_i32, %c0_i32_0 : i32, i32
  }
  func.func @transform_13(%arg0: i32) -> (i32, i32) {
    %c0_i32 = arith.constant 0 : i32
    %c0_i32_0 = arith.constant 0 : i32
    %c0_i32_1 = arith.constant 0 : i32
    return %c0_i32, %c0_i32_0 : i32, i32
  }
  func.func @transform_14(%arg0: i32) -> (i32, i32) {
    %c0_i32 = arith.constant 0 : i32
    %c0_i32_0 = arith.constant 0 : i32
    %c0_i32_1 = arith.constant 0 : i32
    return %c0_i32, %c0_i32_0 : i32, i32
  }
  func.func @transform_15(%arg0: i32) -> (i32, i32) {
    %c0_i32 = arith.constant 0 : i32
    %c0_i32_0 = arith.constant 0 : i32
    %c0_i32_1 = arith.constant 0 : i32
    return %c0_i32, %c0_i32_0 : i32, i32
  }
  func.func @transform_16(%arg0: i32) -> (i32, i32) {
    %c0_i32 = arith.constant 0 : i32
    %c0_i32_0 = arith.constant 0 : i32
    %c0_i32_1 = arith.constant 0 : i32
    return %c0_i32, %c0_i32_0 : i32, i32
  }
  func.func @transform_17(%arg0: i32) -> (i32, i32) {
    %c0_i32 = arith.constant 0 : i32
    %c0_i32_0 = arith.constant 0 : i32
    %c0_i32_1 = arith.constant 0 : i32
    return %c0_i32, %c0_i32_0 : i32, i32
  }
  func.func @transform_18(%arg0: i32) -> (i32, i32) {
    %c0_i32 = arith.constant 0 : i32
    %c0_i32_0 = arith.constant 0 : i32
    %c0_i32_1 = arith.constant 0 : i32
    return %c0_i32, %c0_i32_0 : i32, i32
  }
  func.func @transform_19(%arg0: i32) -> (i32, i32) {
    %c0_i32 = arith.constant 0 : i32
    %c0_i32_0 = arith.constant 0 : i32
    %c0_i32_1 = arith.constant 0 : i32
    return %c0_i32, %c0_i32_0 : i32, i32
  }
  func.func @transform_20(%arg0: i32) -> (i32, i32) {
    %c0_i32 = arith.constant 0 : i32
    %c0_i32_0 = arith.constant 0 : i32
    %c0_i32_1 = arith.constant 0 : i32
    return %c0_i32, %c0_i32_0 : i32, i32
  }
  func.func @transform_21(%arg0: i32) -> (i32, i32) {
    %c0_i32 = arith.constant 0 : i32
    %c0_i32_0 = arith.constant 0 : i32
    return %arg0, %c0_i32 : i32, i32
  }
  func.func @transform_22(%arg0: i32) -> (i32, i32) {
    %c0_i32 = arith.constant 0 : i32
    %c0_i32_0 = arith.constant 0 : i32
    return %arg0, %c0_i32 : i32, i32
  }
}

module attributes {stable_mosaic.version = 11 : i64} {
  func.func @visit_fused_kernel(%arg0: memref<8x128xf32, #tpu.memory_space<vmem>>, %arg1: memref<8x1xf32, #tpu.memory_space<vmem>>, %arg2: memref<8x128xf32, #tpu.memory_space<vmem>>, %arg3: memref<8x16xf32, #tpu.memory_space<vmem>>, %arg4: memref<1x128xf32, #tpu.memory_space<vmem>>, %arg5: memref<1x64xf32, #tpu.memory_space<vmem>>, %arg6: memref<1x64xf32, #tpu.memory_space<vmem>>, %arg7: memref<64x128xbf16, #tpu.memory_space<vmem>>, %arg8: memref<1x128xf32, #tpu.memory_space<vmem>>, %arg9: memref<128x128xbf16, #tpu.memory_space<vmem>>, %arg10: memref<1x128xf32, #tpu.memory_space<vmem>>, %arg11: memref<128x128xbf16, #tpu.memory_space<vmem>>, %arg12: memref<1x128xf32, #tpu.memory_space<vmem>>, %arg13: memref<128x128xbf16, #tpu.memory_space<vmem>>, %arg14: memref<1x128xf32, #tpu.memory_space<vmem>>, %arg15: memref<128x128xbf16, #tpu.memory_space<vmem>>, %arg16: memref<1x128xf32, #tpu.memory_space<vmem>>, %arg17: memref<1x128xf32, #tpu.memory_space<vmem>>, %arg18: memref<1x128xf32, #tpu.memory_space<vmem>>, %arg19: memref<128x1024xbf16, #tpu.memory_space<vmem>>, %arg20: memref<1x1024xf32, #tpu.memory_space<vmem>>, %arg21: memref<1024x128xbf16, #tpu.memory_space<vmem>>, %arg22: memref<1x128xf32, #tpu.memory_space<vmem>>, %arg23: memref<1x128xf32, #tpu.memory_space<vmem>>, %arg24: memref<1x128xf32, #tpu.memory_space<vmem>>, %arg25: memref<8x128xf32, #tpu.memory_space<vmem>>, %arg26: memref<8x4xf32, #tpu.memory_space<vmem>>) attributes {dimension_semantics = [], scalar_prefetch = 0 : i64, scratch_operands = 0 : i64, tpu.core_type = #tpu.core_type<tc>} {
    %c0 = arith.constant 0 : index
    %c0_0 = arith.constant 0 : index
    %0 = vector.load %arg1[%c0, %c0_0] : memref<8x1xf32, #tpu.memory_space<vmem>>, vector<8x1xf32>
    %cst = arith.constant 0.00555555569 : f32
    %1 = vector.broadcast %cst : f32 to vector<8x1xf32>
    %2 = arith.mulf %0, %1 : vector<8x1xf32>
    %c0_1 = arith.constant 0 : index
    %c0_2 = arith.constant 0 : index
    %3 = vector.load %arg5[%c0_1, %c0_2] : memref<1x64xf32, #tpu.memory_space<vmem>>, vector<1x64xf32>
    %4 = vector.broadcast %2 : vector<8x1xf32> to vector<8x64xf32>
    %5 = vector.broadcast %3 : vector<1x64xf32> to vector<8x64xf32>
    %6 = arith.mulf %4, %5 : vector<8x64xf32>
    %c0_3 = arith.constant 0 : index
    %c0_4 = arith.constant 0 : index
    %7 = vector.load %arg6[%c0_3, %c0_4] : memref<1x64xf32, #tpu.memory_space<vmem>>, vector<1x64xf32>
    %8 = vector.broadcast %7 : vector<1x64xf32> to vector<8x64xf32>
    %9 = arith.addf %6, %8 : vector<8x64xf32>
    %10 = arith.mulf %9, %9 : vector<8x64xf32>
    %11 = math.tanh %10 : vector<8x64xf32>
    %cst_5 = arith.constant 1.000000e+00 : f32
    %12 = vector.broadcast %cst_5 : f32 to vector<8x64xf32>
    %13 = arith.subf %12, %11 : vector<8x64xf32>
    %14 = arith.truncf %13 : vector<8x64xf32> to vector<8x64xbf16>
    %c0_6 = arith.constant 0 : index
    %c0_7 = arith.constant 0 : index
    %15 = vector.load %arg7[%c0_6, %c0_7] : memref<64x128xbf16, #tpu.memory_space<vmem>>, vector<64x128xbf16>
    %cst_8 = arith.constant dense<0.000000e+00> : vector<8x128xf32>
    %16 = tpu.matmul %14, %15, %cst_8 {dimension_numbers = #tpu.dot_dimension_numbers<[1], [0], [0], [1], [0, 0, 1, 1], [], []>} : vector<8x64xbf16>, vector<64x128xbf16>, vector<8x128xf32> -> vector<8x128xf32>
    %c0_9 = arith.constant 0 : index
    %c0_10 = arith.constant 0 : index
    %17 = vector.load %arg8[%c0_9, %c0_10] : memref<1x128xf32, #tpu.memory_space<vmem>>, vector<1x128xf32>
    %18 = vector.broadcast %17 : vector<1x128xf32> to vector<8x128xf32>
    %19 = arith.addf %16, %18 : vector<8x128xf32>
    %c0_11 = arith.constant 0 : index
    %c0_12 = arith.constant 0 : index
    %20 = vector.load %arg0[%c0_11, %c0_12] : memref<8x128xf32, #tpu.memory_space<vmem>>, vector<8x128xf32>
    %c0_13 = arith.constant 0 : index
    %c0_14 = arith.constant 0 : index
    %21 = vector.load %arg4[%c0_13, %c0_14] : memref<1x128xf32, #tpu.memory_space<vmem>>, vector<1x128xf32>
    %22 = vector.broadcast %21 : vector<1x128xf32> to vector<8x128xf32>
    %23 = arith.addf %20, %22 : vector<8x128xf32>
    %24 = arith.addf %23, %19 : vector<8x128xf32>
    %c0_15 = arith.constant 0 : index
    %c0_16 = arith.constant 0 : index
    %25 = vector.load %arg2[%c0_15, %c0_16] : memref<8x128xf32, #tpu.memory_space<vmem>>, vector<8x128xf32>
    %26 = arith.addf %24, %25 : vector<8x128xf32>
    %27 = arith.truncf %26 : vector<8x128xf32> to vector<8x128xbf16>
    %c0_17 = arith.constant 0 : index
    %c0_18 = arith.constant 0 : index
    %28 = vector.load %arg9[%c0_17, %c0_18] : memref<128x128xbf16, #tpu.memory_space<vmem>>, vector<128x128xbf16>
    %cst_19 = arith.constant dense<0.000000e+00> : vector<8x128xf32>
    %29 = tpu.matmul %27, %28, %cst_19 {dimension_numbers = #tpu.dot_dimension_numbers<[1], [0], [0], [1], [0, 0, 1, 1], [], []>} : vector<8x128xbf16>, vector<128x128xbf16>, vector<8x128xf32> -> vector<8x128xf32>
    %c0_20 = arith.constant 0 : index
    %c0_21 = arith.constant 0 : index
    %30 = vector.load %arg10[%c0_20, %c0_21] : memref<1x128xf32, #tpu.memory_space<vmem>>, vector<1x128xf32>
    %31 = vector.broadcast %30 : vector<1x128xf32> to vector<8x128xf32>
    %32 = arith.addf %29, %31 : vector<8x128xf32>
    %c0_22 = arith.constant 0 : index
    %c0_23 = arith.constant 0 : index
    %33 = vector.load %arg11[%c0_22, %c0_23] : memref<128x128xbf16, #tpu.memory_space<vmem>>, vector<128x128xbf16>
    %cst_24 = arith.constant dense<0.000000e+00> : vector<8x128xf32>
    %34 = tpu.matmul %27, %33, %cst_24 {dimension_numbers = #tpu.dot_dimension_numbers<[1], [0], [0], [1], [0, 0, 1, 1], [], []>} : vector<8x128xbf16>, vector<128x128xbf16>, vector<8x128xf32> -> vector<8x128xf32>
    %c0_25 = arith.constant 0 : index
    %c0_26 = arith.constant 0 : index
    %35 = vector.load %arg12[%c0_25, %c0_26] : memref<1x128xf32, #tpu.memory_space<vmem>>, vector<1x128xf32>
    %36 = vector.broadcast %35 : vector<1x128xf32> to vector<8x128xf32>
    %37 = arith.addf %34, %36 : vector<8x128xf32>
    %c0_27 = arith.constant 0 : index
    %c0_28 = arith.constant 0 : index
    %38 = vector.load %arg13[%c0_27, %c0_28] : memref<128x128xbf16, #tpu.memory_space<vmem>>, vector<128x128xbf16>
    %cst_29 = arith.constant dense<0.000000e+00> : vector<8x128xf32>
    %39 = tpu.matmul %27, %38, %cst_29 {dimension_numbers = #tpu.dot_dimension_numbers<[1], [0], [0], [1], [0, 0, 1, 1], [], []>} : vector<8x128xbf16>, vector<128x128xbf16>, vector<8x128xf32> -> vector<8x128xf32>
    %c0_30 = arith.constant 0 : index
    %c0_31 = arith.constant 0 : index
    %40 = vector.load %arg14[%c0_30, %c0_31] : memref<1x128xf32, #tpu.memory_space<vmem>>, vector<1x128xf32>
    %41 = vector.broadcast %40 : vector<1x128xf32> to vector<8x128xf32>
    %42 = arith.addf %39, %41 : vector<8x128xf32>
    %c0_32 = arith.constant 0 : index
    %c0_33 = arith.constant 0 : index
    %43 = vector.load %arg3[%c0_32, %c0_33] : memref<8x16xf32, #tpu.memory_space<vmem>>, vector<8x16xf32>
    %cst_34 = arith.constant 0.000000e+00 : f32
    %44 = vector.broadcast %cst_34 : f32 to vector<8x128xf32>
    %cst_35 = arith.constant 0.000000e+00 : f32
    %45 = vector.broadcast %cst_35 : f32 to vector<8x1xf32>
    %cst_36 = arith.constant 0.000000e+00 : f32
    %46 = vector.broadcast %cst_36 : f32 to vector<8x1xf32>
    %cst_37 = arith.constant 0.000000e+00 : f32
    %47 = vector.broadcast %cst_37 : f32 to vector<8x1xf32>
    %cst_38 = arith.constant 0.000000e+00 : f32
    %48 = vector.broadcast %cst_38 : f32 to vector<8x1xf32>
    %49 = vector.extract_strided_slice %32 {offsets = [0, 0], sizes = [8, 32], strides = [1, 1]} : vector<8x128xf32> to vector<8x32xf32>
    %50 = vector.extract_strided_slice %37 {offsets = [0, 0], sizes = [8, 32], strides = [1, 1]} : vector<8x128xf32> to vector<8x32xf32>
    %51 = arith.mulf %49, %50 : vector<8x32xf32>
    %cst_39 = arith.constant dense<0.000000e+00> : vector<8xf32>
    %52 = vector.multi_reduction <add>, %51, %cst_39 [1] : vector<8x32xf32> to vector<8xf32>
    %53 = vector.shape_cast %52 : vector<8xf32> to vector<8x1xf32>
    %cst_40 = arith.constant 0.353553385 : f32
    %54 = vector.broadcast %cst_40 : f32 to vector<8x1xf32>
    %55 = arith.mulf %53, %54 : vector<8x1xf32>
    %56 = vector.extract_strided_slice %43 {offsets = [0, 0], sizes = [8, 1], strides = [1, 1]} : vector<8x16xf32> to vector<8x1xf32>
    %57 = arith.addf %55, %56 : vector<8x1xf32>
    %58 = vector.extract_strided_slice %32 {offsets = [0, 0], sizes = [8, 32], strides = [1, 1]} : vector<8x128xf32> to vector<8x32xf32>
    %59 = vector.extract_strided_slice %37 {offsets = [0, 32], sizes = [8, 32], strides = [1, 1]} : vector<8x128xf32> to vector<8x32xf32>
    %60 = arith.mulf %58, %59 : vector<8x32xf32>
    %cst_41 = arith.constant dense<0.000000e+00> : vector<8xf32>
    %61 = vector.multi_reduction <add>, %60, %cst_41 [1] : vector<8x32xf32> to vector<8xf32>
    %62 = vector.shape_cast %61 : vector<8xf32> to vector<8x1xf32>
    %cst_42 = arith.constant 0.353553385 : f32
    %63 = vector.broadcast %cst_42 : f32 to vector<8x1xf32>
    %64 = arith.mulf %62, %63 : vector<8x1xf32>
    %65 = vector.extract_strided_slice %43 {offsets = [0, 1], sizes = [8, 1], strides = [1, 1]} : vector<8x16xf32> to vector<8x1xf32>
    %66 = arith.addf %64, %65 : vector<8x1xf32>
    %67 = vector.extract_strided_slice %32 {offsets = [0, 0], sizes = [8, 32], strides = [1, 1]} : vector<8x128xf32> to vector<8x32xf32>
    %68 = vector.extract_strided_slice %37 {offsets = [0, 64], sizes = [8, 32], strides = [1, 1]} : vector<8x128xf32> to vector<8x32xf32>
    %69 = arith.mulf %67, %68 : vector<8x32xf32>
    %cst_43 = arith.constant dense<0.000000e+00> : vector<8xf32>
    %70 = vector.multi_reduction <add>, %69, %cst_43 [1] : vector<8x32xf32> to vector<8xf32>
    %71 = vector.shape_cast %70 : vector<8xf32> to vector<8x1xf32>
    %cst_44 = arith.constant 0.353553385 : f32
    %72 = vector.broadcast %cst_44 : f32 to vector<8x1xf32>
    %73 = arith.mulf %71, %72 : vector<8x1xf32>
    %74 = vector.extract_strided_slice %43 {offsets = [0, 2], sizes = [8, 1], strides = [1, 1]} : vector<8x16xf32> to vector<8x1xf32>
    %75 = arith.addf %73, %74 : vector<8x1xf32>
    %76 = vector.extract_strided_slice %32 {offsets = [0, 0], sizes = [8, 32], strides = [1, 1]} : vector<8x128xf32> to vector<8x32xf32>
    %77 = vector.extract_strided_slice %37 {offsets = [0, 96], sizes = [8, 32], strides = [1, 1]} : vector<8x128xf32> to vector<8x32xf32>
    %78 = arith.mulf %76, %77 : vector<8x32xf32>
    %cst_45 = arith.constant dense<0.000000e+00> : vector<8xf32>
    %79 = vector.multi_reduction <add>, %78, %cst_45 [1] : vector<8x32xf32> to vector<8xf32>
    %80 = vector.shape_cast %79 : vector<8xf32> to vector<8x1xf32>
    %cst_46 = arith.constant 0.353553385 : f32
    %81 = vector.broadcast %cst_46 : f32 to vector<8x1xf32>
    %82 = arith.mulf %80, %81 : vector<8x1xf32>
    %83 = vector.extract_strided_slice %43 {offsets = [0, 3], sizes = [8, 1], strides = [1, 1]} : vector<8x16xf32> to vector<8x1xf32>
    %84 = arith.addf %82, %83 : vector<8x1xf32>
    %85 = arith.maximumf %57, %66 : vector<8x1xf32>
    %86 = arith.maximumf %85, %75 : vector<8x1xf32>
    %87 = arith.maximumf %86, %84 : vector<8x1xf32>
    %88 = arith.subf %57, %87 : vector<8x1xf32>
    %89 = math.exp %88 : vector<8x1xf32>
    %90 = arith.subf %66, %87 : vector<8x1xf32>
    %91 = math.exp %90 : vector<8x1xf32>
    %92 = arith.subf %75, %87 : vector<8x1xf32>
    %93 = math.exp %92 : vector<8x1xf32>
    %94 = arith.subf %84, %87 : vector<8x1xf32>
    %95 = math.exp %94 : vector<8x1xf32>
    %96 = arith.addf %89, %91 : vector<8x1xf32>
    %97 = arith.addf %96, %93 : vector<8x1xf32>
    %98 = arith.addf %97, %95 : vector<8x1xf32>
    %99 = tpu.reciprocal %98 {approx = true} : vector<8x1xf32> -> vector<8x1xf32>
    %cst_47 = arith.constant 0.000000e+00 : f32
    %100 = vector.broadcast %cst_47 : f32 to vector<8x32xf32>
    %101 = arith.mulf %89, %99 : vector<8x1xf32>
    %102 = arith.addf %45, %101 : vector<8x1xf32>
    %103 = vector.extract_strided_slice %42 {offsets = [0, 0], sizes = [8, 32], strides = [1, 1]} : vector<8x128xf32> to vector<8x32xf32>
    %104 = vector.broadcast %101 : vector<8x1xf32> to vector<8x32xf32>
    %105 = arith.mulf %104, %103 : vector<8x32xf32>
    %106 = arith.addf %100, %105 : vector<8x32xf32>
    %107 = arith.mulf %91, %99 : vector<8x1xf32>
    %108 = arith.addf %46, %107 : vector<8x1xf32>
    %109 = vector.extract_strided_slice %42 {offsets = [0, 32], sizes = [8, 32], strides = [1, 1]} : vector<8x128xf32> to vector<8x32xf32>
    %110 = vector.broadcast %107 : vector<8x1xf32> to vector<8x32xf32>
    %111 = arith.mulf %110, %109 : vector<8x32xf32>
    %112 = arith.addf %106, %111 : vector<8x32xf32>
    %113 = arith.mulf %93, %99 : vector<8x1xf32>
    %114 = arith.addf %47, %113 : vector<8x1xf32>
    %115 = vector.extract_strided_slice %42 {offsets = [0, 64], sizes = [8, 32], strides = [1, 1]} : vector<8x128xf32> to vector<8x32xf32>
    %116 = vector.broadcast %113 : vector<8x1xf32> to vector<8x32xf32>
    %117 = arith.mulf %116, %115 : vector<8x32xf32>
    %118 = arith.addf %112, %117 : vector<8x32xf32>
    %119 = arith.mulf %95, %99 : vector<8x1xf32>
    %120 = arith.addf %48, %119 : vector<8x1xf32>
    %121 = vector.extract_strided_slice %42 {offsets = [0, 96], sizes = [8, 32], strides = [1, 1]} : vector<8x128xf32> to vector<8x32xf32>
    %122 = vector.broadcast %119 : vector<8x1xf32> to vector<8x32xf32>
    %123 = arith.mulf %122, %121 : vector<8x32xf32>
    %124 = arith.addf %118, %123 : vector<8x32xf32>
    %125 = arith.truncf %124 : vector<8x32xf32> to vector<8x32xbf16>
    %c0_48 = arith.constant 0 : index
    %c0_49 = arith.constant 0 : index
    %126 = vector.load %arg15[%c0_48, %c0_49] : memref<128x128xbf16, #tpu.memory_space<vmem>>, vector<32x128xbf16>
    %cst_50 = arith.constant dense<0.000000e+00> : vector<8x128xf32>
    %127 = tpu.matmul %125, %126, %cst_50 {dimension_numbers = #tpu.dot_dimension_numbers<[1], [0], [0], [1], [0, 0, 1, 1], [], []>} : vector<8x32xbf16>, vector<32x128xbf16>, vector<8x128xf32> -> vector<8x128xf32>
    %128 = arith.addf %44, %127 : vector<8x128xf32>
    %129 = vector.extract_strided_slice %32 {offsets = [0, 32], sizes = [8, 32], strides = [1, 1]} : vector<8x128xf32> to vector<8x32xf32>
    %130 = vector.extract_strided_slice %37 {offsets = [0, 0], sizes = [8, 32], strides = [1, 1]} : vector<8x128xf32> to vector<8x32xf32>
    %131 = arith.mulf %129, %130 : vector<8x32xf32>
    %cst_51 = arith.constant dense<0.000000e+00> : vector<8xf32>
    %132 = vector.multi_reduction <add>, %131, %cst_51 [1] : vector<8x32xf32> to vector<8xf32>
    %133 = vector.shape_cast %132 : vector<8xf32> to vector<8x1xf32>
    %cst_52 = arith.constant 0.353553385 : f32
    %134 = vector.broadcast %cst_52 : f32 to vector<8x1xf32>
    %135 = arith.mulf %133, %134 : vector<8x1xf32>
    %136 = vector.extract_strided_slice %43 {offsets = [0, 4], sizes = [8, 1], strides = [1, 1]} : vector<8x16xf32> to vector<8x1xf32>
    %137 = arith.addf %135, %136 : vector<8x1xf32>
    %138 = vector.extract_strided_slice %32 {offsets = [0, 32], sizes = [8, 32], strides = [1, 1]} : vector<8x128xf32> to vector<8x32xf32>
    %139 = vector.extract_strided_slice %37 {offsets = [0, 32], sizes = [8, 32], strides = [1, 1]} : vector<8x128xf32> to vector<8x32xf32>
    %140 = arith.mulf %138, %139 : vector<8x32xf32>
    %cst_53 = arith.constant dense<0.000000e+00> : vector<8xf32>
    %141 = vector.multi_reduction <add>, %140, %cst_53 [1] : vector<8x32xf32> to vector<8xf32>
    %142 = vector.shape_cast %141 : vector<8xf32> to vector<8x1xf32>
    %cst_54 = arith.constant 0.353553385 : f32
    %143 = vector.broadcast %cst_54 : f32 to vector<8x1xf32>
    %144 = arith.mulf %142, %143 : vector<8x1xf32>
    %145 = vector.extract_strided_slice %43 {offsets = [0, 5], sizes = [8, 1], strides = [1, 1]} : vector<8x16xf32> to vector<8x1xf32>
    %146 = arith.addf %144, %145 : vector<8x1xf32>
    %147 = vector.extract_strided_slice %32 {offsets = [0, 32], sizes = [8, 32], strides = [1, 1]} : vector<8x128xf32> to vector<8x32xf32>
    %148 = vector.extract_strided_slice %37 {offsets = [0, 64], sizes = [8, 32], strides = [1, 1]} : vector<8x128xf32> to vector<8x32xf32>
    %149 = arith.mulf %147, %148 : vector<8x32xf32>
    %cst_55 = arith.constant dense<0.000000e+00> : vector<8xf32>
    %150 = vector.multi_reduction <add>, %149, %cst_55 [1] : vector<8x32xf32> to vector<8xf32>
    %151 = vector.shape_cast %150 : vector<8xf32> to vector<8x1xf32>
    %cst_56 = arith.constant 0.353553385 : f32
    %152 = vector.broadcast %cst_56 : f32 to vector<8x1xf32>
    %153 = arith.mulf %151, %152 : vector<8x1xf32>
    %154 = vector.extract_strided_slice %43 {offsets = [0, 6], sizes = [8, 1], strides = [1, 1]} : vector<8x16xf32> to vector<8x1xf32>
    %155 = arith.addf %153, %154 : vector<8x1xf32>
    %156 = vector.extract_strided_slice %32 {offsets = [0, 32], sizes = [8, 32], strides = [1, 1]} : vector<8x128xf32> to vector<8x32xf32>
    %157 = vector.extract_strided_slice %37 {offsets = [0, 96], sizes = [8, 32], strides = [1, 1]} : vector<8x128xf32> to vector<8x32xf32>
    %158 = arith.mulf %156, %157 : vector<8x32xf32>
    %cst_57 = arith.constant dense<0.000000e+00> : vector<8xf32>
    %159 = vector.multi_reduction <add>, %158, %cst_57 [1] : vector<8x32xf32> to vector<8xf32>
    %160 = vector.shape_cast %159 : vector<8xf32> to vector<8x1xf32>
    %cst_58 = arith.constant 0.353553385 : f32
    %161 = vector.broadcast %cst_58 : f32 to vector<8x1xf32>
    %162 = arith.mulf %160, %161 : vector<8x1xf32>
    %163 = vector.extract_strided_slice %43 {offsets = [0, 7], sizes = [8, 1], strides = [1, 1]} : vector<8x16xf32> to vector<8x1xf32>
    %164 = arith.addf %162, %163 : vector<8x1xf32>
    %165 = arith.maximumf %137, %146 : vector<8x1xf32>
    %166 = arith.maximumf %165, %155 : vector<8x1xf32>
    %167 = arith.maximumf %166, %164 : vector<8x1xf32>
    %168 = arith.subf %137, %167 : vector<8x1xf32>
    %169 = math.exp %168 : vector<8x1xf32>
    %170 = arith.subf %146, %167 : vector<8x1xf32>
    %171 = math.exp %170 : vector<8x1xf32>
    %172 = arith.subf %155, %167 : vector<8x1xf32>
    %173 = math.exp %172 : vector<8x1xf32>
    %174 = arith.subf %164, %167 : vector<8x1xf32>
    %175 = math.exp %174 : vector<8x1xf32>
    %176 = arith.addf %169, %171 : vector<8x1xf32>
    %177 = arith.addf %176, %173 : vector<8x1xf32>
    %178 = arith.addf %177, %175 : vector<8x1xf32>
    %179 = tpu.reciprocal %178 {approx = true} : vector<8x1xf32> -> vector<8x1xf32>
    %cst_59 = arith.constant 0.000000e+00 : f32
    %180 = vector.broadcast %cst_59 : f32 to vector<8x32xf32>
    %181 = arith.mulf %169, %179 : vector<8x1xf32>
    %182 = arith.addf %102, %181 : vector<8x1xf32>
    %183 = vector.extract_strided_slice %42 {offsets = [0, 0], sizes = [8, 32], strides = [1, 1]} : vector<8x128xf32> to vector<8x32xf32>
    %184 = vector.broadcast %181 : vector<8x1xf32> to vector<8x32xf32>
    %185 = arith.mulf %184, %183 : vector<8x32xf32>
    %186 = arith.addf %180, %185 : vector<8x32xf32>
    %187 = arith.mulf %171, %179 : vector<8x1xf32>
    %188 = arith.addf %108, %187 : vector<8x1xf32>
    %189 = vector.extract_strided_slice %42 {offsets = [0, 32], sizes = [8, 32], strides = [1, 1]} : vector<8x128xf32> to vector<8x32xf32>
    %190 = vector.broadcast %187 : vector<8x1xf32> to vector<8x32xf32>
    %191 = arith.mulf %190, %189 : vector<8x32xf32>
    %192 = arith.addf %186, %191 : vector<8x32xf32>
    %193 = arith.mulf %173, %179 : vector<8x1xf32>
    %194 = arith.addf %114, %193 : vector<8x1xf32>
    %195 = vector.extract_strided_slice %42 {offsets = [0, 64], sizes = [8, 32], strides = [1, 1]} : vector<8x128xf32> to vector<8x32xf32>
    %196 = vector.broadcast %193 : vector<8x1xf32> to vector<8x32xf32>
    %197 = arith.mulf %196, %195 : vector<8x32xf32>
    %198 = arith.addf %192, %197 : vector<8x32xf32>
    %199 = arith.mulf %175, %179 : vector<8x1xf32>
    %200 = arith.addf %120, %199 : vector<8x1xf32>
    %201 = vector.extract_strided_slice %42 {offsets = [0, 96], sizes = [8, 32], strides = [1, 1]} : vector<8x128xf32> to vector<8x32xf32>
    %202 = vector.broadcast %199 : vector<8x1xf32> to vector<8x32xf32>
    %203 = arith.mulf %202, %201 : vector<8x32xf32>
    %204 = arith.addf %198, %203 : vector<8x32xf32>
    %205 = arith.truncf %204 : vector<8x32xf32> to vector<8x32xbf16>
    %c32 = arith.constant 32 : index
    %c0_60 = arith.constant 0 : index
    %206 = vector.load %arg15[%c32, %c0_60] : memref<128x128xbf16, #tpu.memory_space<vmem>>, vector<32x128xbf16>
    %cst_61 = arith.constant dense<0.000000e+00> : vector<8x128xf32>
    %207 = tpu.matmul %205, %206, %cst_61 {dimension_numbers = #tpu.dot_dimension_numbers<[1], [0], [0], [1], [0, 0, 1, 1], [], []>} : vector<8x32xbf16>, vector<32x128xbf16>, vector<8x128xf32> -> vector<8x128xf32>
    %208 = arith.addf %128, %207 : vector<8x128xf32>
    %209 = vector.extract_strided_slice %32 {offsets = [0, 64], sizes = [8, 32], strides = [1, 1]} : vector<8x128xf32> to vector<8x32xf32>
    %210 = vector.extract_strided_slice %37 {offsets = [0, 0], sizes = [8, 32], strides = [1, 1]} : vector<8x128xf32> to vector<8x32xf32>
    %211 = arith.mulf %209, %210 : vector<8x32xf32>
    %cst_62 = arith.constant dense<0.000000e+00> : vector<8xf32>
    %212 = vector.multi_reduction <add>, %211, %cst_62 [1] : vector<8x32xf32> to vector<8xf32>
    %213 = vector.shape_cast %212 : vector<8xf32> to vector<8x1xf32>
    %cst_63 = arith.constant 0.353553385 : f32
    %214 = vector.broadcast %cst_63 : f32 to vector<8x1xf32>
    %215 = arith.mulf %213, %214 : vector<8x1xf32>
    %216 = vector.extract_strided_slice %43 {offsets = [0, 8], sizes = [8, 1], strides = [1, 1]} : vector<8x16xf32> to vector<8x1xf32>
    %217 = arith.addf %215, %216 : vector<8x1xf32>
    %218 = vector.extract_strided_slice %32 {offsets = [0, 64], sizes = [8, 32], strides = [1, 1]} : vector<8x128xf32> to vector<8x32xf32>
    %219 = vector.extract_strided_slice %37 {offsets = [0, 32], sizes = [8, 32], strides = [1, 1]} : vector<8x128xf32> to vector<8x32xf32>
    %220 = arith.mulf %218, %219 : vector<8x32xf32>
    %cst_64 = arith.constant dense<0.000000e+00> : vector<8xf32>
    %221 = vector.multi_reduction <add>, %220, %cst_64 [1] : vector<8x32xf32> to vector<8xf32>
    %222 = vector.shape_cast %221 : vector<8xf32> to vector<8x1xf32>
    %cst_65 = arith.constant 0.353553385 : f32
    %223 = vector.broadcast %cst_65 : f32 to vector<8x1xf32>
    %224 = arith.mulf %222, %223 : vector<8x1xf32>
    %225 = vector.extract_strided_slice %43 {offsets = [0, 9], sizes = [8, 1], strides = [1, 1]} : vector<8x16xf32> to vector<8x1xf32>
    %226 = arith.addf %224, %225 : vector<8x1xf32>
    %227 = vector.extract_strided_slice %32 {offsets = [0, 64], sizes = [8, 32], strides = [1, 1]} : vector<8x128xf32> to vector<8x32xf32>
    %228 = vector.extract_strided_slice %37 {offsets = [0, 64], sizes = [8, 32], strides = [1, 1]} : vector<8x128xf32> to vector<8x32xf32>
    %229 = arith.mulf %227, %228 : vector<8x32xf32>
    %cst_66 = arith.constant dense<0.000000e+00> : vector<8xf32>
    %230 = vector.multi_reduction <add>, %229, %cst_66 [1] : vector<8x32xf32> to vector<8xf32>
    %231 = vector.shape_cast %230 : vector<8xf32> to vector<8x1xf32>
    %cst_67 = arith.constant 0.353553385 : f32
    %232 = vector.broadcast %cst_67 : f32 to vector<8x1xf32>
    %233 = arith.mulf %231, %232 : vector<8x1xf32>
    %234 = vector.extract_strided_slice %43 {offsets = [0, 10], sizes = [8, 1], strides = [1, 1]} : vector<8x16xf32> to vector<8x1xf32>
    %235 = arith.addf %233, %234 : vector<8x1xf32>
    %236 = vector.extract_strided_slice %32 {offsets = [0, 64], sizes = [8, 32], strides = [1, 1]} : vector<8x128xf32> to vector<8x32xf32>
    %237 = vector.extract_strided_slice %37 {offsets = [0, 96], sizes = [8, 32], strides = [1, 1]} : vector<8x128xf32> to vector<8x32xf32>
    %238 = arith.mulf %236, %237 : vector<8x32xf32>
    %cst_68 = arith.constant dense<0.000000e+00> : vector<8xf32>
    %239 = vector.multi_reduction <add>, %238, %cst_68 [1] : vector<8x32xf32> to vector<8xf32>
    %240 = vector.shape_cast %239 : vector<8xf32> to vector<8x1xf32>
    %cst_69 = arith.constant 0.353553385 : f32
    %241 = vector.broadcast %cst_69 : f32 to vector<8x1xf32>
    %242 = arith.mulf %240, %241 : vector<8x1xf32>
    %243 = vector.extract_strided_slice %43 {offsets = [0, 11], sizes = [8, 1], strides = [1, 1]} : vector<8x16xf32> to vector<8x1xf32>
    %244 = arith.addf %242, %243 : vector<8x1xf32>
    %245 = arith.maximumf %217, %226 : vector<8x1xf32>
    %246 = arith.maximumf %245, %235 : vector<8x1xf32>
    %247 = arith.maximumf %246, %244 : vector<8x1xf32>
    %248 = arith.subf %217, %247 : vector<8x1xf32>
    %249 = math.exp %248 : vector<8x1xf32>
    %250 = arith.subf %226, %247 : vector<8x1xf32>
    %251 = math.exp %250 : vector<8x1xf32>
    %252 = arith.subf %235, %247 : vector<8x1xf32>
    %253 = math.exp %252 : vector<8x1xf32>
    %254 = arith.subf %244, %247 : vector<8x1xf32>
    %255 = math.exp %254 : vector<8x1xf32>
    %256 = arith.addf %249, %251 : vector<8x1xf32>
    %257 = arith.addf %256, %253 : vector<8x1xf32>
    %258 = arith.addf %257, %255 : vector<8x1xf32>
    %259 = tpu.reciprocal %258 {approx = true} : vector<8x1xf32> -> vector<8x1xf32>
    %cst_70 = arith.constant 0.000000e+00 : f32
    %260 = vector.broadcast %cst_70 : f32 to vector<8x32xf32>
    %261 = arith.mulf %249, %259 : vector<8x1xf32>
    %262 = arith.addf %182, %261 : vector<8x1xf32>
    %263 = vector.extract_strided_slice %42 {offsets = [0, 0], sizes = [8, 32], strides = [1, 1]} : vector<8x128xf32> to vector<8x32xf32>
    %264 = vector.broadcast %261 : vector<8x1xf32> to vector<8x32xf32>
    %265 = arith.mulf %264, %263 : vector<8x32xf32>
    %266 = arith.addf %260, %265 : vector<8x32xf32>
    %267 = arith.mulf %251, %259 : vector<8x1xf32>
    %268 = arith.addf %188, %267 : vector<8x1xf32>
    %269 = vector.extract_strided_slice %42 {offsets = [0, 32], sizes = [8, 32], strides = [1, 1]} : vector<8x128xf32> to vector<8x32xf32>
    %270 = vector.broadcast %267 : vector<8x1xf32> to vector<8x32xf32>
    %271 = arith.mulf %270, %269 : vector<8x32xf32>
    %272 = arith.addf %266, %271 : vector<8x32xf32>
    %273 = arith.mulf %253, %259 : vector<8x1xf32>
    %274 = arith.addf %194, %273 : vector<8x1xf32>
    %275 = vector.extract_strided_slice %42 {offsets = [0, 64], sizes = [8, 32], strides = [1, 1]} : vector<8x128xf32> to vector<8x32xf32>
    %276 = vector.broadcast %273 : vector<8x1xf32> to vector<8x32xf32>
    %277 = arith.mulf %276, %275 : vector<8x32xf32>
    %278 = arith.addf %272, %277 : vector<8x32xf32>
    %279 = arith.mulf %255, %259 : vector<8x1xf32>
    %280 = arith.addf %200, %279 : vector<8x1xf32>
    %281 = vector.extract_strided_slice %42 {offsets = [0, 96], sizes = [8, 32], strides = [1, 1]} : vector<8x128xf32> to vector<8x32xf32>
    %282 = vector.broadcast %279 : vector<8x1xf32> to vector<8x32xf32>
    %283 = arith.mulf %282, %281 : vector<8x32xf32>
    %284 = arith.addf %278, %283 : vector<8x32xf32>
    %285 = arith.truncf %284 : vector<8x32xf32> to vector<8x32xbf16>
    %c64 = arith.constant 64 : index
    %c0_71 = arith.constant 0 : index
    %286 = vector.load %arg15[%c64, %c0_71] : memref<128x128xbf16, #tpu.memory_space<vmem>>, vector<32x128xbf16>
    %cst_72 = arith.constant dense<0.000000e+00> : vector<8x128xf32>
    %287 = tpu.matmul %285, %286, %cst_72 {dimension_numbers = #tpu.dot_dimension_numbers<[1], [0], [0], [1], [0, 0, 1, 1], [], []>} : vector<8x32xbf16>, vector<32x128xbf16>, vector<8x128xf32> -> vector<8x128xf32>
    %288 = arith.addf %208, %287 : vector<8x128xf32>
    %289 = vector.extract_strided_slice %32 {offsets = [0, 96], sizes = [8, 32], strides = [1, 1]} : vector<8x128xf32> to vector<8x32xf32>
    %290 = vector.extract_strided_slice %37 {offsets = [0, 0], sizes = [8, 32], strides = [1, 1]} : vector<8x128xf32> to vector<8x32xf32>
    %291 = arith.mulf %289, %290 : vector<8x32xf32>
    %cst_73 = arith.constant dense<0.000000e+00> : vector<8xf32>
    %292 = vector.multi_reduction <add>, %291, %cst_73 [1] : vector<8x32xf32> to vector<8xf32>
    %293 = vector.shape_cast %292 : vector<8xf32> to vector<8x1xf32>
    %cst_74 = arith.constant 0.353553385 : f32
    %294 = vector.broadcast %cst_74 : f32 to vector<8x1xf32>
    %295 = arith.mulf %293, %294 : vector<8x1xf32>
    %296 = vector.extract_strided_slice %43 {offsets = [0, 12], sizes = [8, 1], strides = [1, 1]} : vector<8x16xf32> to vector<8x1xf32>
    %297 = arith.addf %295, %296 : vector<8x1xf32>
    %298 = vector.extract_strided_slice %32 {offsets = [0, 96], sizes = [8, 32], strides = [1, 1]} : vector<8x128xf32> to vector<8x32xf32>
    %299 = vector.extract_strided_slice %37 {offsets = [0, 32], sizes = [8, 32], strides = [1, 1]} : vector<8x128xf32> to vector<8x32xf32>
    %300 = arith.mulf %298, %299 : vector<8x32xf32>
    %cst_75 = arith.constant dense<0.000000e+00> : vector<8xf32>
    %301 = vector.multi_reduction <add>, %300, %cst_75 [1] : vector<8x32xf32> to vector<8xf32>
    %302 = vector.shape_cast %301 : vector<8xf32> to vector<8x1xf32>
    %cst_76 = arith.constant 0.353553385 : f32
    %303 = vector.broadcast %cst_76 : f32 to vector<8x1xf32>
    %304 = arith.mulf %302, %303 : vector<8x1xf32>
    %305 = vector.extract_strided_slice %43 {offsets = [0, 13], sizes = [8, 1], strides = [1, 1]} : vector<8x16xf32> to vector<8x1xf32>
    %306 = arith.addf %304, %305 : vector<8x1xf32>
    %307 = vector.extract_strided_slice %32 {offsets = [0, 96], sizes = [8, 32], strides = [1, 1]} : vector<8x128xf32> to vector<8x32xf32>
    %308 = vector.extract_strided_slice %37 {offsets = [0, 64], sizes = [8, 32], strides = [1, 1]} : vector<8x128xf32> to vector<8x32xf32>
    %309 = arith.mulf %307, %308 : vector<8x32xf32>
    %cst_77 = arith.constant dense<0.000000e+00> : vector<8xf32>
    %310 = vector.multi_reduction <add>, %309, %cst_77 [1] : vector<8x32xf32> to vector<8xf32>
    %311 = vector.shape_cast %310 : vector<8xf32> to vector<8x1xf32>
    %cst_78 = arith.constant 0.353553385 : f32
    %312 = vector.broadcast %cst_78 : f32 to vector<8x1xf32>
    %313 = arith.mulf %311, %312 : vector<8x1xf32>
    %314 = vector.extract_strided_slice %43 {offsets = [0, 14], sizes = [8, 1], strides = [1, 1]} : vector<8x16xf32> to vector<8x1xf32>
    %315 = arith.addf %313, %314 : vector<8x1xf32>
    %316 = vector.extract_strided_slice %32 {offsets = [0, 96], sizes = [8, 32], strides = [1, 1]} : vector<8x128xf32> to vector<8x32xf32>
    %317 = vector.extract_strided_slice %37 {offsets = [0, 96], sizes = [8, 32], strides = [1, 1]} : vector<8x128xf32> to vector<8x32xf32>
    %318 = arith.mulf %316, %317 : vector<8x32xf32>
    %cst_79 = arith.constant dense<0.000000e+00> : vector<8xf32>
    %319 = vector.multi_reduction <add>, %318, %cst_79 [1] : vector<8x32xf32> to vector<8xf32>
    %320 = vector.shape_cast %319 : vector<8xf32> to vector<8x1xf32>
    %cst_80 = arith.constant 0.353553385 : f32
    %321 = vector.broadcast %cst_80 : f32 to vector<8x1xf32>
    %322 = arith.mulf %320, %321 : vector<8x1xf32>
    %323 = vector.extract_strided_slice %43 {offsets = [0, 15], sizes = [8, 1], strides = [1, 1]} : vector<8x16xf32> to vector<8x1xf32>
    %324 = arith.addf %322, %323 : vector<8x1xf32>
    %325 = arith.maximumf %297, %306 : vector<8x1xf32>
    %326 = arith.maximumf %325, %315 : vector<8x1xf32>
    %327 = arith.maximumf %326, %324 : vector<8x1xf32>
    %328 = arith.subf %297, %327 : vector<8x1xf32>
    %329 = math.exp %328 : vector<8x1xf32>
    %330 = arith.subf %306, %327 : vector<8x1xf32>
    %331 = math.exp %330 : vector<8x1xf32>
    %332 = arith.subf %315, %327 : vector<8x1xf32>
    %333 = math.exp %332 : vector<8x1xf32>
    %334 = arith.subf %324, %327 : vector<8x1xf32>
    %335 = math.exp %334 : vector<8x1xf32>
    %336 = arith.addf %329, %331 : vector<8x1xf32>
    %337 = arith.addf %336, %333 : vector<8x1xf32>
    %338 = arith.addf %337, %335 : vector<8x1xf32>
    %339 = tpu.reciprocal %338 {approx = true} : vector<8x1xf32> -> vector<8x1xf32>
    %cst_81 = arith.constant 0.000000e+00 : f32
    %340 = vector.broadcast %cst_81 : f32 to vector<8x32xf32>
    %341 = arith.mulf %329, %339 : vector<8x1xf32>
    %342 = arith.addf %262, %341 : vector<8x1xf32>
    %343 = vector.extract_strided_slice %42 {offsets = [0, 0], sizes = [8, 32], strides = [1, 1]} : vector<8x128xf32> to vector<8x32xf32>
    %344 = vector.broadcast %341 : vector<8x1xf32> to vector<8x32xf32>
    %345 = arith.mulf %344, %343 : vector<8x32xf32>
    %346 = arith.addf %340, %345 : vector<8x32xf32>
    %347 = arith.mulf %331, %339 : vector<8x1xf32>
    %348 = arith.addf %268, %347 : vector<8x1xf32>
    %349 = vector.extract_strided_slice %42 {offsets = [0, 32], sizes = [8, 32], strides = [1, 1]} : vector<8x128xf32> to vector<8x32xf32>
    %350 = vector.broadcast %347 : vector<8x1xf32> to vector<8x32xf32>
    %351 = arith.mulf %350, %349 : vector<8x32xf32>
    %352 = arith.addf %346, %351 : vector<8x32xf32>
    %353 = arith.mulf %333, %339 : vector<8x1xf32>
    %354 = arith.addf %274, %353 : vector<8x1xf32>
    %355 = vector.extract_strided_slice %42 {offsets = [0, 64], sizes = [8, 32], strides = [1, 1]} : vector<8x128xf32> to vector<8x32xf32>
    %356 = vector.broadcast %353 : vector<8x1xf32> to vector<8x32xf32>
    %357 = arith.mulf %356, %355 : vector<8x32xf32>
    %358 = arith.addf %352, %357 : vector<8x32xf32>
    %359 = arith.mulf %335, %339 : vector<8x1xf32>
    %360 = arith.addf %280, %359 : vector<8x1xf32>
    %361 = vector.extract_strided_slice %42 {offsets = [0, 96], sizes = [8, 32], strides = [1, 1]} : vector<8x128xf32> to vector<8x32xf32>
    %362 = vector.broadcast %359 : vector<8x1xf32> to vector<8x32xf32>
    %363 = arith.mulf %362, %361 : vector<8x32xf32>
    %364 = arith.addf %358, %363 : vector<8x32xf32>
    %365 = arith.truncf %364 : vector<8x32xf32> to vector<8x32xbf16>
    %c96 = arith.constant 96 : index
    %c0_82 = arith.constant 0 : index
    %366 = vector.load %arg15[%c96, %c0_82] : memref<128x128xbf16, #tpu.memory_space<vmem>>, vector<32x128xbf16>
    %cst_83 = arith.constant dense<0.000000e+00> : vector<8x128xf32>
    %367 = tpu.matmul %365, %366, %cst_83 {dimension_numbers = #tpu.dot_dimension_numbers<[1], [0], [0], [1], [0, 0, 1, 1], [], []>} : vector<8x32xbf16>, vector<32x128xbf16>, vector<8x128xf32> -> vector<8x128xf32>
    %368 = arith.addf %288, %367 : vector<8x128xf32>
    %c0_84 = arith.constant 0 : index
    %c0_85 = arith.constant 0 : index
    %369 = vector.load %arg16[%c0_84, %c0_85] : memref<1x128xf32, #tpu.memory_space<vmem>>, vector<1x128xf32>
    %370 = vector.broadcast %369 : vector<1x128xf32> to vector<8x128xf32>
    %371 = arith.addf %368, %370 : vector<8x128xf32>
    %372 = arith.addf %26, %371 : vector<8x128xf32>
    %c0_86 = arith.constant 0 : index
    %c0_87 = arith.constant 0 : index
    %373 = vector.load %arg17[%c0_86, %c0_87] : memref<1x128xf32, #tpu.memory_space<vmem>>, vector<1x128xf32>
    %c0_88 = arith.constant 0 : index
    %c0_89 = arith.constant 0 : index
    %374 = vector.load %arg18[%c0_88, %c0_89] : memref<1x128xf32, #tpu.memory_space<vmem>>, vector<1x128xf32>
    %cst_90 = arith.constant dense<0.000000e+00> : vector<8xf32>
    %375 = vector.multi_reduction <add>, %372, %cst_90 [1] : vector<8x128xf32> to vector<8xf32>
    %376 = vector.shape_cast %375 : vector<8xf32> to vector<8x1xf32>
    %cst_91 = arith.constant 1.280000e+02 : f32
    %377 = vector.broadcast %cst_91 : f32 to vector<8x1xf32>
    %378 = arith.divf %376, %377 : vector<8x1xf32>
    %379 = vector.broadcast %378 : vector<8x1xf32> to vector<8x128xf32>
    %380 = arith.subf %372, %379 : vector<8x128xf32>
    %381 = arith.mulf %380, %380 : vector<8x128xf32>
    %cst_92 = arith.constant dense<0.000000e+00> : vector<8xf32>
    %382 = vector.multi_reduction <add>, %381, %cst_92 [1] : vector<8x128xf32> to vector<8xf32>
    %383 = vector.shape_cast %382 : vector<8xf32> to vector<8x1xf32>
    %cst_93 = arith.constant 1.280000e+02 : f32
    %384 = vector.broadcast %cst_93 : f32 to vector<8x1xf32>
    %385 = arith.divf %383, %384 : vector<8x1xf32>
    %386 = vector.broadcast %378 : vector<8x1xf32> to vector<8x128xf32>
    %387 = arith.subf %372, %386 : vector<8x128xf32>
    %cst_94 = arith.constant 9.99999974E-6 : f32
    %388 = vector.broadcast %cst_94 : f32 to vector<8x1xf32>
    %389 = arith.addf %385, %388 : vector<8x1xf32>
    %390 = math.rsqrt %389 : vector<8x1xf32>
    %391 = vector.broadcast %390 : vector<8x1xf32> to vector<8x128xf32>
    %392 = arith.mulf %387, %391 : vector<8x128xf32>
    %393 = vector.broadcast %373 : vector<1x128xf32> to vector<8x128xf32>
    %394 = arith.mulf %392, %393 : vector<8x128xf32>
    %395 = vector.broadcast %374 : vector<1x128xf32> to vector<8x128xf32>
    %396 = arith.addf %394, %395 : vector<8x128xf32>
    %397 = arith.truncf %396 : vector<8x128xf32> to vector<8x128xbf16>
    %c0_95 = arith.constant 0 : index
    %c0_96 = arith.constant 0 : index
    %398 = vector.load %arg19[%c0_95, %c0_96] : memref<128x1024xbf16, #tpu.memory_space<vmem>>, vector<128x1024xbf16>
    %cst_97 = arith.constant dense<0.000000e+00> : vector<8x1024xf32>
    %399 = tpu.matmul %397, %398, %cst_97 {dimension_numbers = #tpu.dot_dimension_numbers<[1], [0], [0], [1], [0, 0, 1, 1], [], []>} : vector<8x128xbf16>, vector<128x1024xbf16>, vector<8x1024xf32> -> vector<8x1024xf32>
    %c0_98 = arith.constant 0 : index
    %c0_99 = arith.constant 0 : index
    %400 = vector.load %arg20[%c0_98, %c0_99] : memref<1x1024xf32, #tpu.memory_space<vmem>>, vector<1x1024xf32>
    %401 = vector.broadcast %400 : vector<1x1024xf32> to vector<8x1024xf32>
    %402 = arith.addf %399, %401 : vector<8x1024xf32>
    %cst_100 = arith.constant 0.000000e+00 : f32
    %403 = vector.broadcast %cst_100 : f32 to vector<8x1024xf32>
    %404 = arith.maximumf %402, %403 : vector<8x1024xf32>
    %405 = arith.truncf %404 : vector<8x1024xf32> to vector<8x1024xbf16>
    %c0_101 = arith.constant 0 : index
    %c0_102 = arith.constant 0 : index
    %406 = vector.load %arg21[%c0_101, %c0_102] : memref<1024x128xbf16, #tpu.memory_space<vmem>>, vector<1024x128xbf16>
    %cst_103 = arith.constant dense<0.000000e+00> : vector<8x128xf32>
    %407 = tpu.matmul %405, %406, %cst_103 {dimension_numbers = #tpu.dot_dimension_numbers<[1], [0], [0], [1], [0, 0, 1, 1], [], []>} : vector<8x1024xbf16>, vector<1024x128xbf16>, vector<8x128xf32> -> vector<8x128xf32>
    %c0_104 = arith.constant 0 : index
    %c0_105 = arith.constant 0 : index
    %408 = vector.load %arg22[%c0_104, %c0_105] : memref<1x128xf32, #tpu.memory_space<vmem>>, vector<1x128xf32>
    %409 = vector.broadcast %408 : vector<1x128xf32> to vector<8x128xf32>
    %410 = arith.addf %407, %409 : vector<8x128xf32>
    %411 = arith.addf %396, %410 : vector<8x128xf32>
    %c0_106 = arith.constant 0 : index
    %c0_107 = arith.constant 0 : index
    %412 = vector.load %arg23[%c0_106, %c0_107] : memref<1x128xf32, #tpu.memory_space<vmem>>, vector<1x128xf32>
    %c0_108 = arith.constant 0 : index
    %c0_109 = arith.constant 0 : index
    %413 = vector.load %arg24[%c0_108, %c0_109] : memref<1x128xf32, #tpu.memory_space<vmem>>, vector<1x128xf32>
    %cst_110 = arith.constant dense<0.000000e+00> : vector<8xf32>
    %414 = vector.multi_reduction <add>, %411, %cst_110 [1] : vector<8x128xf32> to vector<8xf32>
    %415 = vector.shape_cast %414 : vector<8xf32> to vector<8x1xf32>
    %cst_111 = arith.constant 1.280000e+02 : f32
    %416 = vector.broadcast %cst_111 : f32 to vector<8x1xf32>
    %417 = arith.divf %415, %416 : vector<8x1xf32>
    %418 = vector.broadcast %417 : vector<8x1xf32> to vector<8x128xf32>
    %419 = arith.subf %411, %418 : vector<8x128xf32>
    %420 = arith.mulf %419, %419 : vector<8x128xf32>
    %cst_112 = arith.constant dense<0.000000e+00> : vector<8xf32>
    %421 = vector.multi_reduction <add>, %420, %cst_112 [1] : vector<8x128xf32> to vector<8xf32>
    %422 = vector.shape_cast %421 : vector<8xf32> to vector<8x1xf32>
    %cst_113 = arith.constant 1.280000e+02 : f32
    %423 = vector.broadcast %cst_113 : f32 to vector<8x1xf32>
    %424 = arith.divf %422, %423 : vector<8x1xf32>
    %425 = vector.broadcast %417 : vector<8x1xf32> to vector<8x128xf32>
    %426 = arith.subf %411, %425 : vector<8x128xf32>
    %cst_114 = arith.constant 9.99999974E-6 : f32
    %427 = vector.broadcast %cst_114 : f32 to vector<8x1xf32>
    %428 = arith.addf %424, %427 : vector<8x1xf32>
    %429 = math.rsqrt %428 : vector<8x1xf32>
    %430 = vector.broadcast %429 : vector<8x1xf32> to vector<8x128xf32>
    %431 = arith.mulf %426, %430 : vector<8x128xf32>
    %432 = vector.broadcast %412 : vector<1x128xf32> to vector<8x128xf32>
    %433 = arith.mulf %431, %432 : vector<8x128xf32>
    %434 = vector.broadcast %413 : vector<1x128xf32> to vector<8x128xf32>
    %435 = arith.addf %433, %434 : vector<8x128xf32>
    %c0_115 = arith.constant 0 : index
    %c0_116 = arith.constant 0 : index
    %436 = vector.load %arg25[%c0_115, %c0_116] : memref<8x128xf32, #tpu.memory_space<vmem>>, vector<8x128xf32>
    tpu.vector_store %arg25[%c0_115, %c0_116], %435 {strides = array<i32>} : memref<8x128xf32, #tpu.memory_space<vmem>>, vector<8x128xf32>,
    %c0_117 = arith.constant 0 : index
    %c0_118 = arith.constant 0 : index
    %437 = vector.load %arg26[%c0_117, %c0_118] : memref<8x4xf32, #tpu.memory_space<vmem>>, vector<8x1xf32>
    tpu.vector_store %arg26[%c0_117, %c0_118], %342 {strides = array<i32>} : memref<8x4xf32, #tpu.memory_space<vmem>>, vector<8x1xf32>,
    %c0_119 = arith.constant 0 : index
    %c1 = arith.constant 1 : index
    %438 = vector.load %arg26[%c0_119, %c1] : memref<8x4xf32, #tpu.memory_space<vmem>>, vector<8x1xf32>
    tpu.vector_store %arg26[%c0_119, %c1], %348 {strides = array<i32>} : memref<8x4xf32, #tpu.memory_space<vmem>>, vector<8x1xf32>,
    %c0_120 = arith.constant 0 : index
    %c2 = arith.constant 2 : index
    %439 = vector.load %arg26[%c0_120, %c2] : memref<8x4xf32, #tpu.memory_space<vmem>>, vector<8x1xf32>
    tpu.vector_store %arg26[%c0_120, %c2], %354 {strides = array<i32>} : memref<8x4xf32, #tpu.memory_space<vmem>>, vector<8x1xf32>,
    %c0_121 = arith.constant 0 : index
    %c3 = arith.constant 3 : index
    %440 = vector.load %arg26[%c0_121, %c3] : memref<8x4xf32, #tpu.memory_space<vmem>>, vector<8x1xf32>
    tpu.vector_store %arg26[%c0_121, %c3], %360 {strides = array<i32>} : memref<8x4xf32, #tpu.memory_space<vmem>>, vector<8x1xf32>,
    return
  }
}

</mosaic_0001>

<llo_original>
// kernel: _encoder_hitanet_forward_jit.2
$region0: #{_encoder_hitanet_forward_jit.2}
  #allocation0 [shape = 'u32[]', space=smem, size = 0x4, offset = 0x4, fixed_abs, tag = 'smem constant byte address 0x4 - core index']
  #allocation1 [shape = 'u32[144,128]{1,0:T(1,128)}', space=vmem, size = 0x12000, scoped, tag = 'internal scratch']
  %s0 = inlined_call_operand.vmem [shape: f32[64,128], index: 0, kind: input, shape index: {}]
  %s1 = inlined_call_operand.vmem [shape: f32[64,64], index: 1, kind: input, shape index: {}]
  %s2 = inlined_call_operand.vmem [shape: f32[8,1], index: 2, kind: input, shape index: {}]
  %s3 = inlined_call_operand.vmem [shape: f32[8,64], index: 3, kind: input, shape index: {}]
  %s4 = inlined_call_operand.vmem [shape: f32[64,8], index: 4, kind: input, shape index: {}]
  %s5 = inlined_call_operand.vmem [shape: bf16[128,128], index: 5, kind: input, shape index: {}]
  %s6 = inlined_call_operand.vmem [shape: f32[1,128], index: 6, kind: input, shape index: {}]
  %s7 = inlined_call_operand.vmem [shape: bf16[128,128], index: 7, kind: input, shape index: {}]
  %s8 = inlined_call_operand.vmem [shape: f32[1,128], index: 8, kind: input, shape index: {}]
  %s9 = inlined_call_operand.vmem [shape: bf16[128,128], index: 9, kind: input, shape index: {}]
  %s10 = inlined_call_operand.vmem [shape: f32[1,128], index: 10, kind: input, shape index: {}]
  %s11 = inlined_call_operand.vmem [shape: bf16[128,128], index: 11, kind: input, shape index: {}]
  %s12 = inlined_call_operand.vmem [shape: f32[1,128], index: 12, kind: input, shape index: {}]
  %s13 = inlined_call_operand.vmem [shape: f32[1,128], index: 13, kind: input, shape index: {}]
  %s14 = inlined_call_operand.vmem [shape: f32[1,128], index: 14, kind: input, shape index: {}]
  %s15 = inlined_call_operand.vmem [shape: bf16[128,256], index: 15, kind: input, shape index: {}]
  %s16 = inlined_call_operand.vmem [shape: f32[1,256], index: 16, kind: input, shape index: {}]
  %s17 = inlined_call_operand.vmem [shape: bf16[256,128], index: 17, kind: input, shape index: {}]
  %s18 = inlined_call_operand.vmem [shape: f32[1,128], index: 18, kind: input, shape index: {}]
  %s19 = inlined_call_operand.vmem [shape: f32[1,128], index: 19, kind: input, shape index: {}]
  %s20 = inlined_call_operand.vmem [shape: f32[1,128], index: 20, kind: input, shape index: {}]
  %s21 = inlined_call_operand.vmem [shape: f32[8,128], index: 21, kind: output, shape index: {0}]
  %s22 = inlined_call_operand.hbm [shape: f32[8,8], index: 22, kind: output, shape index: {1}]
  %23 = xla_tuple %s21, %s22
  %s24 = sld [smem:[#allocation0]]
  $region102: #{_encoder_hitanet_forward_jit.2} parent=0
    _
  %s26 = ssub.s32 1, %s24
  %s27 = scalar_select 0, %s26, %s24
  $region1: #{_encoder_hitanet_forward_jit.2} parent=0
    #allocation2 [shape = 'u8[4096]{0}', space=vmem, size = 0x1000, scoped, tag = 'output window, operand 1, single buffered']
    #allocation3 [shape = 's32[1]{0}', space=sflag, size = 0x4, scoped, tag = 'scoped memory for _encoder_hitanet_forward_jit.2']
    %28 = vsyncpa [#allocation3], 0
    // Predicated region
    $region2: #{_encoder_hitanet_forward_jit.2} parent=1 // pred_check
      _
    $region3: #{_encoder_hitanet_forward_jit.2} parent=1 // pred_check_branch
      %30 = sbr.rel (0) target = $region5
    $region4: #{_encoder_hitanet_forward_jit.2} parent=1 // pred_region
      _
    $region5: #{_encoder_hitanet_forward_jit.2} parent=1 // pred_fallthru
      _
    // Predicated region
    $region6: #{_encoder_hitanet_forward_jit.2} parent=1 // pred_check
      _
    $region7: #{_encoder_hitanet_forward_jit.2} parent=1 // pred_check_branch
      %32 = sbr.rel (0) target = $region9
    $region8: #{_encoder_hitanet_forward_jit.2} parent=1 // pred_region
      _
    $region9: #{_encoder_hitanet_forward_jit.2} parent=1 // pred_fallthru
      _
    // Predicated region
    $region10: #{_encoder_hitanet_forward_jit.2} parent=1 // pred_check
      _
    $region11: #{_encoder_hitanet_forward_jit.2} parent=1 // pred_check_branch
      %34 = sbr.rel (0) target = $region13
    $region12: #{_encoder_hitanet_forward_jit.2} parent=1 // pred_region
      _
    $region13: #{_encoder_hitanet_forward_jit.2} parent=1 // pred_fallthru
      _
    // Predicated region
    $region14: #{_encoder_hitanet_forward_jit.2} parent=1 // pred_check
      _
    $region15: #{_encoder_hitanet_forward_jit.2} parent=1 // pred_check_branch
      %36 = sbr.rel (0) target = $region17
    $region16: #{_encoder_hitanet_forward_jit.2} parent=1 // pred_region
      _
    $region17: #{_encoder_hitanet_forward_jit.2} parent=1 // pred_fallthru
      _
    // Predicated region
    $region18: #{_encoder_hitanet_forward_jit.2} parent=1 // pred_check
      _
    $region19: #{_encoder_hitanet_forward_jit.2} parent=1 // pred_check_branch
      %38 = sbr.rel (0) target = $region21
    $region20: #{_encoder_hitanet_forward_jit.2} parent=1 // pred_region
      _
    $region21: #{_encoder_hitanet_forward_jit.2} parent=1 // pred_fallthru
      _
    // Predicated region
    $region22: #{_encoder_hitanet_forward_jit.2} parent=1 // pred_check
      _
    $region23: #{_encoder_hitanet_forward_jit.2} parent=1 // pred_check_branch
      %40 = sbr.rel (0) target = $region25
    $region24: #{_encoder_hitanet_forward_jit.2} parent=1 // pred_region
      _
    $region25: #{_encoder_hitanet_forward_jit.2} parent=1 // pred_fallthru
      _
    // Predicated region
    $region26: #{_encoder_hitanet_forward_jit.2} parent=1 // pred_check
      _
    $region27: #{_encoder_hitanet_forward_jit.2} parent=1 // pred_check_branch
      %42 = sbr.rel (0) target = $region29
    $region28: #{_encoder_hitanet_forward_jit.2} parent=1 // pred_region
      _
    $region29: #{_encoder_hitanet_forward_jit.2} parent=1 // pred_fallthru
      _
    // Predicated region
    $region30: #{_encoder_hitanet_forward_jit.2} parent=1 // pred_check
      _
    $region31: #{_encoder_hitanet_forward_jit.2} parent=1 // pred_check_branch
      %44 = sbr.rel (0) target = $region33
    $region32: #{_encoder_hitanet_forward_jit.2} parent=1 // pred_region
      _
    $region33: #{_encoder_hitanet_forward_jit.2} parent=1 // pred_fallthru
      _
    // Predicated region
    $region34: #{_encoder_hitanet_forward_jit.2} parent=1 // pred_check
      _
    $region35: #{_encoder_hitanet_forward_jit.2} parent=1 // pred_check_branch
      %46 = sbr.rel (0) target = $region37
    $region36: #{_encoder_hitanet_forward_jit.2} parent=1 // pred_region
      _
    $region37: #{_encoder_hitanet_forward_jit.2} parent=1 // pred_fallthru
      _
    // Predicated region
    $region38: #{_encoder_hitanet_forward_jit.2} parent=1 // pred_check
      _
    $region39: #{_encoder_hitanet_forward_jit.2} parent=1 // pred_check_branch
      %48 = sbr.rel (0) target = $region41
    $region40: #{_encoder_hitanet_forward_jit.2} parent=1 // pred_region
      _
    $region41: #{_encoder_hitanet_forward_jit.2} parent=1 // pred_fallthru
      _
    // Predicated region
    $region42: #{_encoder_hitanet_forward_jit.2} parent=1 // pred_check
      _
    $region43: #{_encoder_hitanet_forward_jit.2} parent=1 // pred_check_branch
      %50 = sbr.rel (0) target = $region45
    $region44: #{_encoder_hitanet_forward_jit.2} parent=1 // pred_region
      _
    $region45: #{_encoder_hitanet_forward_jit.2} parent=1 // pred_fallthru
      _
    // Predicated region
    $region46: #{_encoder_hitanet_forward_jit.2} parent=1 // pred_check
      _
    $region47: #{_encoder_hitanet_forward_jit.2} parent=1 // pred_check_branch
      %52 = sbr.rel (0) target = $region49
    $region48: #{_encoder_hitanet_forward_jit.2} parent=1 // pred_region
      _
    $region49: #{_encoder_hitanet_forward_jit.2} parent=1 // pred_fallthru
      _
    // Predicated region
    $region50: #{_encoder_hitanet_forward_jit.2} parent=1 // pred_check
      _
    $region51: #{_encoder_hitanet_forward_jit.2} parent=1 // pred_check_branch
      %54 = sbr.rel (0) target = $region53
    $region52: #{_encoder_hitanet_forward_jit.2} parent=1 // pred_region
      _
    $region53: #{_encoder_hitanet_forward_jit.2} parent=1 // pred_fallthru
      _
    // Predicated region
    $region54: #{_encoder_hitanet_forward_jit.2} parent=1 // pred_check
      _
    $region55: #{_encoder_hitanet_forward_jit.2} parent=1 // pred_check_branch
      %56 = sbr.rel (0) target = $region57
    $region56: #{_encoder_hitanet_forward_jit.2} parent=1 // pred_region
      _
    $region57: #{_encoder_hitanet_forward_jit.2} parent=1 // pred_fallthru
      _
    // Predicated region
    $region58: #{_encoder_hitanet_forward_jit.2} parent=1 // pred_check
      _
    $region59: #{_encoder_hitanet_forward_jit.2} parent=1 // pred_check_branch
      %58 = sbr.rel (0) target = $region61
    $region60: #{_encoder_hitanet_forward_jit.2} parent=1 // pred_region
      _
    $region61: #{_encoder_hitanet_forward_jit.2} parent=1 // pred_fallthru
      _
    // Predicated region
    $region62: #{_encoder_hitanet_forward_jit.2} parent=1 // pred_check
      _
    $region63: #{_encoder_hitanet_forward_jit.2} parent=1 // pred_check_branch
      %60 = sbr.rel (0) target = $region65
    $region64: #{_encoder_hitanet_forward_jit.2} parent=1 // pred_region
      _
    $region65: #{_encoder_hitanet_forward_jit.2} parent=1 // pred_fallthru
      _
    // Predicated region
    $region66: #{_encoder_hitanet_forward_jit.2} parent=1 // pred_check
      _
    $region67: #{_encoder_hitanet_forward_jit.2} parent=1 // pred_check_branch
      %62 = sbr.rel (0) target = $region69
    $region68: #{_encoder_hitanet_forward_jit.2} parent=1 // pred_region
      _
    $region69: #{_encoder_hitanet_forward_jit.2} parent=1 // pred_fallthru
      _
    // Predicated region
    $region70: #{_encoder_hitanet_forward_jit.2} parent=1 // pred_check
      _
    $region71: #{_encoder_hitanet_forward_jit.2} parent=1 // pred_check_branch
      %64 = sbr.rel (0) target = $region73
    $region72: #{_encoder_hitanet_forward_jit.2} parent=1 // pred_region
      _
    $region73: #{_encoder_hitanet_forward_jit.2} parent=1 // pred_fallthru
      _
    // Predicated region
    $region74: #{_encoder_hitanet_forward_jit.2} parent=1 // pred_check
      _
    $region75: #{_encoder_hitanet_forward_jit.2} parent=1 // pred_check_branch
      %66 = sbr.rel (0) target = $region77
    $region76: #{_encoder_hitanet_forward_jit.2} parent=1 // pred_region
      _
    $region77: #{_encoder_hitanet_forward_jit.2} parent=1 // pred_fallthru
      _
    // Predicated region
    $region78: #{_encoder_hitanet_forward_jit.2} parent=1 // pred_check
      _
    $region79: #{_encoder_hitanet_forward_jit.2} parent=1 // pred_check_branch
      %68 = sbr.rel (0) target = $region81
    $region80: #{_encoder_hitanet_forward_jit.2} parent=1 // pred_region
      _
    $region81: #{_encoder_hitanet_forward_jit.2} parent=1 // pred_fallthru
      _
    // Predicated region
    $region82: #{_encoder_hitanet_forward_jit.2} parent=1 // pred_check
      _
    $region83: #{_encoder_hitanet_forward_jit.2} parent=1 // pred_check_branch
      %70 = sbr.rel (0) target = $region85
    $region84: #{_encoder_hitanet_forward_jit.2} parent=1 // pred_region
      _
    $region85: #{_encoder_hitanet_forward_jit.2} parent=1 // pred_fallthru
      _
    %v72 = vld [vmem:[%s0] sm:$0xff]
    %v73 = vld [vmem:[%s0 + $0x8] sm:$0xff]
    %v74 = vld [vmem:[%s0 + $0x10] sm:$0xff]
    %v75 = vld [vmem:[%s0 + $0x18] sm:$0xff]
    %v76 = vld [vmem:[%s0 + $0x20] sm:$0xff]
    %v77 = vld [vmem:[%s0 + $0x28] sm:$0xff]
    %v78 = vld [vmem:[%s0 + $0x30] sm:$0xff]
    %v79 = vld [vmem:[%s0 + $0x38] sm:$0xff]
    %v80 = vpack.c.bf16 %v73, %v72
    %v81 = vpack.c.bf16 %v75, %v74
    %v82 = vpack.c.bf16 %v77, %v76
    %v83 = vpack.c.bf16 %v79, %v78
    %v84 = vld [vmem:[%s1] sm:$0xff]
    %v85 = vld [vmem:[%s1 + $0x8] sm:$0xff]
    %v86 = vld [vmem:[%s1 + $0x10] sm:$0xff]
    %v87 = vld [vmem:[%s1 + $0x18] sm:$0xff]
    %v88 = vld [vmem:[%s1 + $0x20] sm:$0xff]
    %v89 = vld [vmem:[%s1 + $0x28] sm:$0xff]
    %v90 = vld [vmem:[%s1 + $0x30] sm:$0xff]
    %v91 = vld [vmem:[%s1 + $0x38] sm:$0xff]
    %v92 = vld [vmem:[%s5] sm:$0xf]
    %v93 = vld [vmem:[%s5 + $0x4] sm:$0xf]
    %v94 = vld [vmem:[%s5 + $0x8] sm:$0xf]
    %v95 = vld [vmem:[%s5 + $0xc] sm:$0xf]
    %v96 = vld [vmem:[%s5 + $0x10] sm:$0xf]
    %v97 = vld [vmem:[%s5 + $0x14] sm:$0xf]
    %v98 = vld [vmem:[%s5 + $0x18] sm:$0xf]
    %v99 = vld [vmem:[%s5 + $0x1c] sm:$0xf]
    %v100 = vld [vmem:[%s5 + $0x20] sm:$0xf]
    %v101 = vld [vmem:[%s5 + $0x24] sm:$0xf]
    %v102 = vld [vmem:[%s5 + $0x28] sm:$0xf]
    %v103 = vld [vmem:[%s5 + $0x2c] sm:$0xf]
    %v104 = vld [vmem:[%s5 + $0x30] sm:$0xf]
    %v105 = vld [vmem:[%s5 + $0x34] sm:$0xf]
    %v106 = vld [vmem:[%s5 + $0x38] sm:$0xf]
    %v107 = vld [vmem:[%s5 + $0x3c] sm:$0xf]
    %v108 = vld [vmem:[%s6] sm:$0x1]
    %v110 = vlaneseq
    %v111 = vshrl.u32 %v110, 7
    %v112 = vsub.s32 0, %v111
    %v113 = vrot.slane %v108, %v112
    %v131 = vunpack.c.l.b16 %v92
    %v132 = vunpack.c.l.b16 %v93
    %v133 = vunpack.c.l.b16 %v94
    %v134 = vunpack.c.l.b16 %v95
    %v135 = vunpack.c.l.b16 %v96
    %v136 = vunpack.c.l.b16 %v97
    %v137 = vunpack.c.l.b16 %v98
    %v138 = vunpack.c.l.b16 %v99
    %v139 = vunpack.c.l.b16 %v100
    %v140 = vunpack.c.l.b16 %v101
    %v141 = vunpack.c.l.b16 %v102
    %v142 = vunpack.c.l.b16 %v103
    %v143 = vunpack.c.l.b16 %v104
    %v144 = vunpack.c.l.b16 %v105
    %v145 = vunpack.c.l.b16 %v106
    %v146 = vunpack.c.l.b16 %v107
    %v147 = vpack.c.b16 %v132, %v131
    %v148 = vpack.c.b16 %v134, %v133
    %v149 = vpack.c.b16 %v136, %v135
    %v150 = vpack.c.b16 %v138, %v137
    %v151 = vpack.c.b16 %v140, %v139
    %v152 = vpack.c.b16 %v142, %v141
    %v153 = vpack.c.b16 %v144, %v143
    %v154 = vpack.c.b16 %v146, %v145
    %163 = vmatprep.subr.bf16.mxu0 0
    %164 = vmatpush1.bf16.msra.mxu0 %v147
    %165 = vmatprep.subr.bf16.mxu0 0
    %166 = vmatpush1.bf16.msra.mxu0 %v148
    %167 = vmatprep.subr.bf16.mxu0 0
    %168 = vmatpush1.bf16.msra.mxu0 %v149
    %169 = vmatprep.subr.bf16.mxu0 0
    %170 = vmatpush1.bf16.msra.mxu0 %v150
    %171 = vmatprep.subr.bf16.mxu0 0
    %172 = vmatpush1.bf16.msra.mxu0 %v151
    %173 = vmatprep.subr.bf16.mxu0 0
    %174 = vmatpush1.bf16.msra.mxu0 %v152
    %175 = vmatprep.subr.bf16.mxu0 0
    %176 = vmatpush1.bf16.msra.mxu0 %v153
    %177 = vmatprep.subr.bf16.mxu0 0
    %178 = vmatpush1.bf16.msra.mxu0 %v154
    %179 = vmatprep.subr.bf16.mxu0 0
    %180 = vmatpush1.bf16.msra.mxu0 0
    %181 = vmatprep.subr.bf16.mxu0 0
    %182 = vmatpush1.bf16.msra.mxu0 0
    %183 = vmatprep.subr.bf16.mxu0 0
    %184 = vmatpush1.bf16.msra.mxu0 0
    %185 = vmatprep.subr.bf16.mxu0 0
    %186 = vmatpush1.bf16.msra.mxu0 0
    %187 = vmatprep.subr.bf16.mxu0 0
    %188 = vmatpush1.bf16.msra.mxu0 0
    %189 = vmatprep.subr.bf16.mxu0 0
    %190 = vmatpush1.bf16.msra.mxu0 0
    %191 = vmatprep.subr.bf16.mxu0 0
    %192 = vmatpush1.bf16.msra.mxu0 0
    %193 = vmatprep.subr.bf16.mxu0 0
    %194 = vmatpush1.bf16.msra.mxu0 0
    %195 = vmatprep.mubr.bf16.mxu0 0
    %196 = vmatmul.mubr.bf16.gmra.mrb[0].mxu0 %v80
    %v197 = vpop.f32.mrb[0].mxu0
    %v198 = vadd.f32 %v113, %v197
    %v199 = vpop.f32.mrb[0].mxu0
    %v200 = vpop.f32.mrb[0].mxu0
    %v201 = vadd.f32 %v113, %v200
    %v202 = vpop.f32.mrb[0].mxu0
    %203 = vmatprep.mubr.bf16.mxu0 0
    %204 = vmatmul.mubr.bf16.gmra.mrb[0].mxu0 %v81
    %v205 = vpop.f32.mrb[0].mxu0
    %v206 = vadd.f32 %v113, %v205
    %v207 = vpop.f32.mrb[0].mxu0
    %v208 = vpop.f32.mrb[0].mxu0
    %v209 = vadd.f32 %v113, %v208
    %v210 = vpop.f32.mrb[0].mxu0
    %211 = vmatprep.mubr.bf16.mxu0 0
    %212 = vmatmul.mubr.bf16.gmra.mrb[0].mxu0 %v82
    %v213 = vpop.f32.mrb[0].mxu0
    %v214 = vadd.f32 %v113, %v213
    %v215 = vpop.f32.mrb[0].mxu0
    %v216 = vpop.f32.mrb[0].mxu0
    %v217 = vadd.f32 %v113, %v216
    %v218 = vpop.f32.mrb[0].mxu0
    %219 = vmatprep.mubr.bf16.mxu0 0
    %220 = vmatmul.mubr.bf16.gmra.mrb[0].mxu0 %v83
    %v221 = vpop.f32.mrb[0].mxu0
    %v222 = vadd.f32 %v113, %v221
    %v223 = vpop.f32.mrb[0].mxu0
    %v224 = vpop.f32.mrb[0].mxu0
    %v225 = vadd.f32 %v113, %v224
    %v226 = vpop.f32.mrb[0].mxu0
    %227 = vdwg.mxu0
    %v228 = vld [vmem:[%s7] sm:$0xf]
    %v229 = vld [vmem:[%s7 + $0x4] sm:$0xf]
    %v230 = vld [vmem:[%s7 + $0x8] sm:$0xf]
    %v231 = vld [vmem:[%s7 + $0xc] sm:$0xf]
    %v232 = vld [vmem:[%s7 + $0x10] sm:$0xf]
    %v233 = vld [vmem:[%s7 + $0x14] sm:$0xf]
    %v234 = vld [vmem:[%s7 + $0x18] sm:$0xf]
    %v235 = vld [vmem:[%s7 + $0x1c] sm:$0xf]
    %v236 = vld [vmem:[%s7 + $0x20] sm:$0xf]
    %v237 = vld [vmem:[%s7 + $0x24] sm:$0xf]
    %v238 = vld [vmem:[%s7 + $0x28] sm:$0xf]
    %v239 = vld [vmem:[%s7 + $0x2c] sm:$0xf]
    %v240 = vld [vmem:[%s7 + $0x30] sm:$0xf]
    %v241 = vld [vmem:[%s7 + $0x34] sm:$0xf]
    %v242 = vld [vmem:[%s7 + $0x38] sm:$0xf]
    %v243 = vld [vmem:[%s7 + $0x3c] sm:$0xf]
    %v244 = vld [vmem:[%s8] sm:$0x1]
    %v246 = vlaneseq
    %v247 = vshrl.u32 %v246, 7
    %v248 = vsub.s32 0, %v247
    %v249 = vrot.slane %v244, %v248
    %v267 = vunpack.c.l.b16 %v228
    %v268 = vunpack.c.l.b16 %v229
    %v269 = vunpack.c.l.b16 %v230
    %v270 = vunpack.c.l.b16 %v231
    %v271 = vunpack.c.l.b16 %v232
    %v272 = vunpack.c.l.b16 %v233
    %v273 = vunpack.c.l.b16 %v234
    %v274 = vunpack.c.l.b16 %v235
    %v275 = vunpack.c.l.b16 %v236
    %v276 = vunpack.c.l.b16 %v237
    %v277 = vunpack.c.l.b16 %v238
    %v278 = vunpack.c.l.b16 %v239
    %v279 = vunpack.c.l.b16 %v240
    %v280 = vunpack.c.l.b16 %v241
    %v281 = vunpack.c.l.b16 %v242
    %v282 = vunpack.c.l.b16 %v243
    %v283 = vpack.c.b16 %v268, %v267
    %v284 = vpack.c.b16 %v270, %v269
    %v285 = vpack.c.b16 %v272, %v271
    %v286 = vpack.c.b16 %v274, %v273
    %v287 = vpack.c.b16 %v276, %v275
    %v288 = vpack.c.b16 %v278, %v277
    %v289 = vpack.c.b16 %v280, %v279
    %v290 = vpack.c.b16 %v282, %v281
    %299 = vmatprep.subr.bf16.mxu0 0
    %300 = vmatpush1.bf16.msra.mxu0 %v283
    %301 = vmatprep.subr.bf16.mxu0 0
    %302 = vmatpush1.bf16.msra.mxu0 %v284
    %303 = vmatprep.subr.bf16.mxu0 0
    %304 = vmatpush1.bf16.msra.mxu0 %v285
    %305 = vmatprep.subr.bf16.mxu0 0
    %306 = vmatpush1.bf16.msra.mxu0 %v286
    %307 = vmatprep.subr.bf16.mxu0 0
    %308 = vmatpush1.bf16.msra.mxu0 %v287
    %309 = vmatprep.subr.bf16.mxu0 0
    %310 = vmatpush1.bf16.msra.mxu0 %v288
    %311 = vmatprep.subr.bf16.mxu0 0
    %312 = vmatpush1.bf16.msra.mxu0 %v289
    %313 = vmatprep.subr.bf16.mxu0 0
    %314 = vmatpush1.bf16.msra.mxu0 %v290
    %315 = vmatprep.subr.bf16.mxu0 0
    %316 = vmatpush1.bf16.msra.mxu0 0
    %317 = vmatprep.subr.bf16.mxu0 0
    %318 = vmatpush1.bf16.msra.mxu0 0
    %319 = vmatprep.subr.bf16.mxu0 0
    %320 = vmatpush1.bf16.msra.mxu0 0
    %321 = vmatprep.subr.bf16.mxu0 0
    %322 = vmatpush1.bf16.msra.mxu0 0
    %323 = vmatprep.subr.bf16.mxu0 0
    %324 = vmatpush1.bf16.msra.mxu0 0
    %325 = vmatprep.subr.bf16.mxu0 0
    %326 = vmatpush1.bf16.msra.mxu0 0
    %327 = vmatprep.subr.bf16.mxu0 0
    %328 = vmatpush1.bf16.msra.mxu0 0
    %329 = vmatprep.subr.bf16.mxu0 0
    %330 = vmatpush1.bf16.msra.mxu0 0
    %331 = vmatprep.mubr.bf16.mxu0 0
    %332 = vmatmul.mubr.bf16.gmra.mrb[0].mxu0 %v80
    %v333 = vpop.f32.mrb[0].mxu0
    %v334 = vadd.f32 %v249, %v333
    %v335 = vpop.f32.mrb[0].mxu0
    %v336 = vpop.f32.mrb[0].mxu0
    %v337 = vadd.f32 %v249, %v336
    %v338 = vpop.f32.mrb[0].mxu0
    %339 = vmatprep.mubr.bf16.mxu0 0
    %340 = vmatmul.mubr.bf16.gmra.mrb[0].mxu0 %v81
    %v341 = vpop.f32.mrb[0].mxu0
    %v342 = vadd.f32 %v249, %v341
    %v343 = vpop.f32.mrb[0].mxu0
    %v344 = vpop.f32.mrb[0].mxu0
    %v345 = vadd.f32 %v249, %v344
    %v346 = vpop.f32.mrb[0].mxu0
    %347 = vmatprep.mubr.bf16.mxu0 0
    %348 = vmatmul.mubr.bf16.gmra.mrb[0].mxu0 %v82
    %v349 = vpop.f32.mrb[0].mxu0
    %v350 = vadd.f32 %v249, %v349
    %v351 = vpop.f32.mrb[0].mxu0
    %v352 = vpop.f32.mrb[0].mxu0
    %v353 = vadd.f32 %v249, %v352
    %v354 = vpop.f32.mrb[0].mxu0
    %355 = vmatprep.mubr.bf16.mxu0 0
    %356 = vmatmul.mubr.bf16.gmra.mrb[0].mxu0 %v83
    %v357 = vpop.f32.mrb[0].mxu0
    %v358 = vadd.f32 %v249, %v357
    %v359 = vpop.f32.mrb[0].mxu0
    %v360 = vpop.f32.mrb[0].mxu0
    %v361 = vadd.f32 %v249, %v360
    %v362 = vpop.f32.mrb[0].mxu0
    %363 = vdwg.mxu0
    %v364 = vld [vmem:[%s9] sm:$0xf]
    %v365 = vld [vmem:[%s9 + $0x4] sm:$0xf]
    %v366 = vld [vmem:[%s9 + $0x8] sm:$0xf]
    %v367 = vld [vmem:[%s9 + $0xc] sm:$0xf]
    %v368 = vld [vmem:[%s9 + $0x10] sm:$0xf]
    %v369 = vld [vmem:[%s9 + $0x14] sm:$0xf]
    %v370 = vld [vmem:[%s9 + $0x18] sm:$0xf]
    %v371 = vld [vmem:[%s9 + $0x1c] sm:$0xf]
    %v372 = vld [vmem:[%s9 + $0x20] sm:$0xf]
    %v373 = vld [vmem:[%s9 + $0x24] sm:$0xf]
    %v374 = vld [vmem:[%s9 + $0x28] sm:$0xf]
    %v375 = vld [vmem:[%s9 + $0x2c] sm:$0xf]
    %v376 = vld [vmem:[%s9 + $0x30] sm:$0xf]
    %v377 = vld [vmem:[%s9 + $0x34] sm:$0xf]
    %v378 = vld [vmem:[%s9 + $0x38] sm:$0xf]
    %v379 = vld [vmem:[%s9 + $0x3c] sm:$0xf]
    %v380 = vld [vmem:[%s10] sm:$0x1]
    %v382 = vlaneseq
    %v383 = vshrl.u32 %v382, 7
    %v384 = vsub.s32 0, %v383
    %v385 = vrot.slane %v380, %v384
    %v403 = vunpack.c.l.b16 %v364
    %v404 = vunpack.c.l.b16 %v365
    %v405 = vunpack.c.l.b16 %v366
    %v406 = vunpack.c.l.b16 %v367
    %v407 = vunpack.c.l.b16 %v368
    %v408 = vunpack.c.l.b16 %v369
    %v409 = vunpack.c.l.b16 %v370
    %v410 = vunpack.c.l.b16 %v371
    %v411 = vunpack.c.l.b16 %v372
    %v412 = vunpack.c.l.b16 %v373
    %v413 = vunpack.c.l.b16 %v374
    %v414 = vunpack.c.l.b16 %v375
    %v415 = vunpack.c.l.b16 %v376
    %v416 = vunpack.c.l.b16 %v377
    %v417 = vunpack.c.l.b16 %v378
    %v418 = vunpack.c.l.b16 %v379
    %v419 = vpack.c.b16 %v404, %v403
    %v420 = vpack.c.b16 %v406, %v405
    %v421 = vpack.c.b16 %v408, %v407
    %v422 = vpack.c.b16 %v410, %v409
    %v423 = vpack.c.b16 %v412, %v411
    %v424 = vpack.c.b16 %v414, %v413
    %v425 = vpack.c.b16 %v416, %v415
    %v426 = vpack.c.b16 %v418, %v417
    %435 = vmatprep.subr.bf16.mxu0 0
    %436 = vmatpush1.bf16.msra.mxu0 %v419
    %437 = vmatprep.subr.bf16.mxu0 0
    %438 = vmatpush1.bf16.msra.mxu0 %v420
    %439 = vmatprep.subr.bf16.mxu0 0
    %440 = vmatpush1.bf16.msra.mxu0 %v421
    %441 = vmatprep.subr.bf16.mxu0 0
    %442 = vmatpush1.bf16.msra.mxu0 %v422
    %443 = vmatprep.subr.bf16.mxu0 0
    %444 = vmatpush1.bf16.msra.mxu0 %v423
    %445 = vmatprep.subr.bf16.mxu0 0
    %446 = vmatpush1.bf16.msra.mxu0 %v424
    %447 = vmatprep.subr.bf16.mxu0 0
    %448 = vmatpush1.bf16.msra.mxu0 %v425
    %449 = vmatprep.subr.bf16.mxu0 0
    %450 = vmatpush1.bf16.msra.mxu0 %v426
    %451 = vmatprep.subr.bf16.mxu0 0
    %452 = vmatpush1.bf16.msra.mxu0 0
    %453 = vmatprep.subr.bf16.mxu0 0
    %454 = vmatpush1.bf16.msra.mxu0 0
    %455 = vmatprep.subr.bf16.mxu0 0
    %456 = vmatpush1.bf16.msra.mxu0 0
    %457 = vmatprep.subr.bf16.mxu0 0
    %458 = vmatpush1.bf16.msra.mxu0 0
    %459 = vmatprep.subr.bf16.mxu0 0
    %460 = vmatpush1.bf16.msra.mxu0 0
    %461 = vmatprep.subr.bf16.mxu0 0
    %462 = vmatpush1.bf16.msra.mxu0 0
    %463 = vmatprep.subr.bf16.mxu0 0
    %464 = vmatpush1.bf16.msra.mxu0 0
    %465 = vmatprep.subr.bf16.mxu0 0
    %466 = vmatpush1.bf16.msra.mxu0 0
    %467 = vmatprep.mubr.bf16.mxu0 0
    %468 = vmatmul.mubr.bf16.gmra.mrb[0].mxu0 %v80
    %v469 = vpop.f32.mrb[0].mxu0
    %v470 = vadd.f32 %v385, %v469
    %v471 = vpop.f32.mrb[0].mxu0
    %v472 = vpop.f32.mrb[0].mxu0
    %v473 = vadd.f32 %v385, %v472
    %v474 = vpop.f32.mrb[0].mxu0
    %475 = vmatprep.mubr.bf16.mxu0 0
    %476 = vmatmul.mubr.bf16.gmra.mrb[0].mxu0 %v81
    %v477 = vpop.f32.mrb[0].mxu0
    %v478 = vadd.f32 %v385, %v477
    %v479 = vpop.f32.mrb[0].mxu0
    %v480 = vpop.f32.mrb[0].mxu0
    %v481 = vadd.f32 %v385, %v480
    %v482 = vpop.f32.mrb[0].mxu0
    %483 = vmatprep.mubr.bf16.mxu0 0
    %484 = vmatmul.mubr.bf16.gmra.mrb[0].mxu0 %v82
    %v485 = vpop.f32.mrb[0].mxu0
    %v486 = vadd.f32 %v385, %v485
    %v487 = vpop.f32.mrb[0].mxu0
    %v488 = vpop.f32.mrb[0].mxu0
    %v489 = vadd.f32 %v385, %v488
    %v490 = vpop.f32.mrb[0].mxu0
    %491 = vmatprep.mubr.bf16.mxu0 0
    %492 = vmatmul.mubr.bf16.gmra.mrb[0].mxu0 %v83
    %v493 = vpop.f32.mrb[0].mxu0
    %v494 = vadd.f32 %v385, %v493
    %v495 = vpop.f32.mrb[0].mxu0
    %v496 = vpop.f32.mrb[0].mxu0
    %v497 = vadd.f32 %v385, %v496
    %v498 = vpop.f32.mrb[0].mxu0
    %499 = vdwg.mxu0
    %v500 = vpack.c.bf16 %v201, %v198
    %v501 = vpack.c.bf16 %v209, %v206
    %v502 = vpack.c.bf16 %v217, %v214
    %v503 = vpack.c.bf16 %v225, %v222
    %v504 = vpack.c.bf16 %v337, %v334
    %v505 = vpack.c.bf16 %v345, %v342
    %v506 = vpack.c.bf16 %v353, %v350
    %v507 = vpack.c.bf16 %v361, %v358
    %v508 = vpack.c.bf16 %v473, %v470
    %v509 = vpack.c.bf16 %v481, %v478
    %v510 = vpack.c.bf16 %v489, %v486
    %v511 = vpack.c.bf16 %v497, %v494
    %vm512 = vcmask 261120
    %v514 = vsel %vm512, %v500, 0
    %v517 = vsel %vm512, %v501, 0
    %v520 = vsel %vm512, %v502, 0
    %v523 = vsel %vm512, %v503, 0
    %v526 = vsel %vm512, %v504, 0
    %v529 = vsel %vm512, %v505, 0
    %v532 = vsel %vm512, %v506, 0
    %v535 = vsel %vm512, %v507, 0
    %537 = vmatprep.subr.bf16.mxu0 0
    %538 = vmatpush1.bf16.xpose.msra.mxu0 %v526
    %539 = vmatprep.subr.bf16.mxu0 0
    %540 = vmatpush1.bf16.xpose.msra.mxu0 %v529
    %541 = vmatprep.subr.bf16.mxu0 0
    %542 = vmatpush1.bf16.xpose.msra.mxu0 %v532
    %543 = vmatprep.subr.bf16.mxu0 0
    %544 = vmatpush1.bf16.xpose.msra.mxu0 %v535
    %545 = vmatprep.subr.bf16.mxu0 0
    %546 = vmatpush1.bf16.xpose.msra.mxu0 0
    %547 = vmatprep.subr.bf16.mxu0 0
    %548 = vmatpush1.bf16.xpose.msra.mxu0 0
    %549 = vmatprep.subr.bf16.mxu0 0
    %550 = vmatpush1.bf16.xpose.msra.mxu0 0
    %551 = vmatprep.subr.bf16.mxu0 0
    %552 = vmatpush1.bf16.xpose.msra.mxu0 0
    %553 = vmatprep.subr.bf16.mxu0 0
    %554 = vmatpush1.bf16.xpose.msra.mxu0 0
    %555 = vmatprep.subr.bf16.mxu0 0
    %556 = vmatpush1.bf16.xpose.msra.mxu0 0
    %557 = vmatprep.subr.bf16.mxu0 0
    %558 = vmatpush1.bf16.xpose.msra.mxu0 0
    %559 = vmatprep.subr.bf16.mxu0 0
    %560 = vmatpush1.bf16.xpose.msra.mxu0 0
    %561 = vmatprep.subr.bf16.mxu0 0
    %562 = vmatpush1.bf16.xpose.msra.mxu0 0
    %563 = vmatprep.subr.bf16.mxu0 0
    %564 = vmatpush1.bf16.xpose.msra.mxu0 0
    %565 = vmatprep.subr.bf16.mxu0 0
    %566 = vmatpush1.bf16.xpose.msra.mxu0 0
    %567 = vmatprep.subr.bf16.mxu0 0
    %568 = vmatpush1.bf16.xpose.msra.mxu0 0
    %569 = vmatprep.mubr.bf16.mxu0 0
    %570 = vmatmul.mubr.bf16.gmra.mrb[0].mxu0 %v514
    %v571 = vpop.f32.mrb[0].mxu0
    %v572 = vadd.f32 0.0, %v571
    %v573 = vpop.f32.mrb[0].mxu0
    %v574 = vpop.f32.mrb[0].mxu0
    %v575 = vadd.f32 0.0, %v574
    %v576 = vpop.f32.mrb[0].mxu0
    %577 = vmatprep.mubr.bf16.mxu0 0
    %578 = vmatmul.mubr.bf16.gmra.mrb[0].mxu0 %v517
    %v579 = vpop.f32.mrb[0].mxu0
    %v580 = vadd.f32 0.0, %v579
    %v581 = vpop.f32.mrb[0].mxu0
    %v582 = vpop.f32.mrb[0].mxu0
    %v583 = vadd.f32 0.0, %v582
    %v584 = vpop.f32.mrb[0].mxu0
    %585 = vmatprep.mubr.bf16.mxu0 0
    %586 = vmatmul.mubr.bf16.gmra.mrb[0].mxu0 %v520
    %v587 = vpop.f32.mrb[0].mxu0
    %v588 = vadd.f32 0.0, %v587
    %v589 = vpop.f32.mrb[0].mxu0
    %v590 = vpop.f32.mrb[0].mxu0
    %v591 = vadd.f32 0.0, %v590
    %v592 = vpop.f32.mrb[0].mxu0
    %593 = vmatprep.mubr.bf16.mxu0 0
    %594 = vmatmul.mubr.bf16.gmra.mrb[0].mxu0 %v523
    %v595 = vpop.f32.mrb[0].mxu0
    %v596 = vadd.f32 0.0, %v595
    %v597 = vpop.f32.mrb[0].mxu0
    %v598 = vpop.f32.mrb[0].mxu0
    %v599 = vadd.f32 0.0, %v598
    %v600 = vpop.f32.mrb[0].mxu0
    %601 = vdwg.mxu0
    %v602 = vmul.f32 %v572, 0.17677669
    %v603 = vmul.f32 %v575, 0.17677669
    %v604 = vmul.f32 %v580, 0.17677669
    %v605 = vmul.f32 %v583, 0.17677669
    %v606 = vmul.f32 %v588, 0.17677669
    %v607 = vmul.f32 %v591, 0.17677669
    %v608 = vmul.f32 %v596, 0.17677669
    %v609 = vmul.f32 %v599, 0.17677669
    %v610 = vadd.f32 %v602, %v84
    %v611 = vadd.f32 %v603, %v85
    %v612 = vadd.f32 %v604, %v86
    %v613 = vadd.f32 %v605, %v87
    %v614 = vadd.f32 %v606, %v88
    %v615 = vadd.f32 %v607, %v89
    %v616 = vadd.f32 %v608, %v90
    %v617 = vadd.f32 %v609, %v91
    %vm618 = vcmask 523264
    %v619 = vsel %vm618, %v610, -inf
    %620 = vmax.xlane.f32.xlu0 %v619
    %v621 = vpop.xlane.xlu0 %620
    %v622 = vsel %vm618, %v611, -inf
    %623 = vmax.xlane.f32.xlu0 %v622
    %v624 = vpop.xlane.xlu0 %623
    %v625 = vsel %vm618, %v612, -inf
    %626 = vmax.xlane.f32.xlu0 %v625
    %v627 = vpop.xlane.xlu0 %626
    %v628 = vsel %vm618, %v613, -inf
    %629 = vmax.xlane.f32.xlu0 %v628
    %v630 = vpop.xlane.xlu0 %629
    %v631 = vsel %vm618, %v614, -inf
    %632 = vmax.xlane.f32.xlu0 %v631
    %v633 = vpop.xlane.xlu0 %632
    %v634 = vsel %vm618, %v615, -inf
    %635 = vmax.xlane.f32.xlu0 %v634
    %v636 = vpop.xlane.xlu0 %635
    %v637 = vsel %vm618, %v616, -inf
    %638 = vmax.xlane.f32.xlu0 %v637
    %v639 = vpop.xlane.xlu0 %638
    %v640 = vsel %vm618, %v617, -inf
    %641 = vmax.xlane.f32.xlu0 %v640
    %v642 = vpop.xlane.xlu0 %641
    %v643 = vsub.f32 %v610, %v621
    %v644 = vsub.f32 %v611, %v624
    %v645 = vsub.f32 %v612, %v627
    %v646 = vsub.f32 %v613, %v630
    %v647 = vsub.f32 %v614, %v633
    %v648 = vsub.f32 %v615, %v636
    %v649 = vsub.f32 %v616, %v639
    %v650 = vsub.f32 %v617, %v642
    %v651 = vmul.f32 %v643, 1.442695
    %v652 = vpow.pop %v651
    %v653 = vmul.f32 %v644, 1.442695
    %v654 = vpow.pop %v653
    %v655 = vmul.f32 %v645, 1.442695
    %v656 = vpow.pop %v655
    %v657 = vmul.f32 %v646, 1.442695
    %v658 = vpow.pop %v657
    %v659 = vmul.f32 %v647, 1.442695
    %v660 = vpow.pop %v659
    %v661 = vmul.f32 %v648, 1.442695
    %v662 = vpow.pop %v661
    %v663 = vmul.f32 %v649, 1.442695
    %v664 = vpow.pop %v663
    %v665 = vmul.f32 %v650, 1.442695
    %v666 = vpow.pop %v665
    %v667 = vsel %vm618, %v652, 0.0
    %668 = vadd.xlane.f32.xlu0 %v667
    %v669 = vpop.xlane.xlu0 %668
    %v670 = vsel %vm618, %v654, 0.0
    %671 = vadd.xlane.f32.xlu0 %v670
    %v672 = vpop.xlane.xlu0 %671
    %v673 = vsel %vm618, %v656, 0.0
    %674 = vadd.xlane.f32.xlu0 %v673
    %v675 = vpop.xlane.xlu0 %674
    %v676 = vsel %vm618, %v658, 0.0
    %677 = vadd.xlane.f32.xlu0 %v676
    %v678 = vpop.xlane.xlu0 %677
    %v679 = vsel %vm618, %v660, 0.0
    %680 = vadd.xlane.f32.xlu0 %v679
    %v681 = vpop.xlane.xlu0 %680
    %v682 = vsel %vm618, %v662, 0.0
    %683 = vadd.xlane.f32.xlu0 %v682
    %v684 = vpop.xlane.xlu0 %683
    %v685 = vsel %vm618, %v664, 0.0
    %686 = vadd.xlane.f32.xlu0 %v685
    %v687 = vpop.xlane.xlu0 %686
    %v688 = vsel %vm618, %v666, 0.0
    %689 = vadd.xlane.f32.xlu0 %v688
    %v690 = vpop.xlane.xlu0 %689
    %v691 = vrcp.pop %v669
    %v692 = vrcp.pop %v672
    %v693 = vrcp.pop %v675
    %v694 = vrcp.pop %v678
    %v695 = vrcp.pop %v681
    %v696 = vrcp.pop %v684
    %v697 = vrcp.pop %v687
    %v698 = vrcp.pop %v690
    %v699 = vmul.f32 %v652, %v691
    %v700 = vmul.f32 %v654, %v692
    %v701 = vmul.f32 %v656, %v693
    %v702 = vmul.f32 %v658, %v694
    %v703 = vmul.f32 %v660, %v695
    %v704 = vmul.f32 %v662, %v696
    %v705 = vmul.f32 %v664, %v697
    %v706 = vmul.f32 %v666, %v698
    %v707 = vmul.f32 %v699, 0.25
    %v708 = vmul.f32 %v700, 0.25
    %v709 = vmul.f32 %v701, 0.25
    %v710 = vmul.f32 %v702, 0.25
    %v711 = vmul.f32 %v703, 0.25
    %v712 = vmul.f32 %v704, 0.25
    %v713 = vmul.f32 %v705, 0.25
    %v714 = vmul.f32 %v706, 0.25
    %v715 = vadd.f32 %v707, 0.0
    %v716 = vadd.f32 %v708, 0.0
    %v717 = vadd.f32 %v709, 0.0
    %v718 = vadd.f32 %v710, 0.0
    %v719 = vadd.f32 %v711, 0.0
    %v720 = vadd.f32 %v712, 0.0
    %v721 = vadd.f32 %v713, 0.0
    %v722 = vadd.f32 %v714, 0.0
    %v723 = vpack.c.bf16 %v700, %v699
    %v724 = vpack.c.bf16 %v702, %v701
    %v725 = vpack.c.bf16 %v704, %v703
    %v726 = vpack.c.bf16 %v706, %v705
    %v728 = vsel %vm618, %v723, 0
    %v731 = vsel %vm618, %v724, 0
    %v734 = vsel %vm618, %v725, 0
    %v737 = vsel %vm618, %v726, 0
    %739 = vmatprep.subr.bf16.mxu0 0
    %740 = vmatpush1.bf16.msra.mxu0 %v508
    %741 = vmatprep.subr.bf16.mxu0 0
    %742 = vmatpush1.bf16.msra.mxu0 %v509
    %743 = vmatprep.subr.bf16.mxu0 0
    %744 = vmatpush1.bf16.msra.mxu0 %v510
    %745 = vmatprep.subr.bf16.mxu0 0
    %746 = vmatpush1.bf16.msra.mxu0 %v511
    %747 = vmatprep.subr.bf16.mxu0 0
    %748 = vmatpush1.bf16.msra.mxu0 0
    %749 = vmatprep.subr.bf16.mxu0 0
    %750 = vmatpush1.bf16.msra.mxu0 0
    %751 = vmatprep.subr.bf16.mxu0 0
    %752 = vmatpush1.bf16.msra.mxu0 0
    %753 = vmatprep.subr.bf16.mxu0 0
    %754 = vmatpush1.bf16.msra.mxu0 0
    %755 = vmatprep.subr.bf16.mxu0 0
    %756 = vmatpush1.bf16.msra.mxu0 0
    %757 = vmatprep.subr.bf16.mxu0 0
    %758 = vmatpush1.bf16.msra.mxu0 0
    %759 = vmatprep.subr.bf16.mxu0 0
    %760 = vmatpush1.bf16.msra.mxu0 0
    %761 = vmatprep.subr.bf16.mxu0 0
    %762 = vmatpush1.bf16.msra.mxu0 0
    %763 = vmatprep.subr.bf16.mxu0 0
    %764 = vmatpush1.bf16.msra.mxu0 0
    %765 = vmatprep.subr.bf16.mxu0 0
    %766 = vmatpush1.bf16.msra.mxu0 0
    %767 = vmatprep.subr.bf16.mxu0 0
    %768 = vmatpush1.bf16.msra.mxu0 0
    %769 = vmatprep.subr.bf16.mxu0 0
    %770 = vmatpush1.bf16.msra.mxu0 0
    %771 = vmatprep.mubr.bf16.mxu0 0
    %772 = vmatmul.mubr.bf16.gmra.mrb[0].mxu0 %v728
    %v773 = vpop.f32.mrb[0].mxu0
    %v774 = vadd.f32 0.0, %v773
    %v775 = vpop.f32.mrb[0].mxu0
    %v776 = vpop.f32.mrb[0].mxu0
    %v777 = vadd.f32 0.0, %v776
    %v778 = vpop.f32.mrb[0].mxu0
    %779 = vmatprep.mubr.bf16.mxu0 0
    %780 = vmatmul.mubr.bf16.gmra.mrb[0].mxu0 %v731
    %v781 = vpop.f32.mrb[0].mxu0
    %v782 = vadd.f32 0.0, %v781
    %v783 = vpop.f32.mrb[0].mxu0
    %v784 = vpop.f32.mrb[0].mxu0
    %v785 = vadd.f32 0.0, %v784
    %v786 = vpop.f32.mrb[0].mxu0
    %787 = vmatprep.mubr.bf16.mxu0 0
    %788 = vmatmul.mubr.bf16.gmra.mrb[0].mxu0 %v734
    %v789 = vpop.f32.mrb[0].mxu0
    %v790 = vadd.f32 0.0, %v789
    %v791 = vpop.f32.mrb[0].mxu0
    %v792 = vpop.f32.mrb[0].mxu0
    %v793 = vadd.f32 0.0, %v792
    %v794 = vpop.f32.mrb[0].mxu0
    %795 = vmatprep.mubr.bf16.mxu0 0
    %796 = vmatmul.mubr.bf16.gmra.mrb[0].mxu0 %v737
    %v797 = vpop.f32.mrb[0].mxu0
    %v798 = vadd.f32 0.0, %v797
    %v799 = vpop.f32.mrb[0].mxu0
    %v800 = vpop.f32.mrb[0].mxu0
    %v801 = vadd.f32 0.0, %v800
    %v802 = vpop.f32.mrb[0].mxu0
    %803 = vdwg.mxu0
    %v804 = vpack.c.bf16 %v777, %v774
    %v805 = vpack.c.bf16 %v785, %v782
    %v806 = vpack.c.bf16 %v793, %v790
    %v807 = vpack.c.bf16 %v801, %v798
    %v808 = vld [vmem:[%s11] sm:$0xf]
    %v809 = vld [vmem:[%s11 + $0x4] sm:$0xf]
    %v810 = vld [vmem:[%s11 + $0x8] sm:$0xf]
    %v811 = vld [vmem:[%s11 + $0xc] sm:$0xf]
    %816 = vrot.lane.b32.xlu0 %v500, 96
    %v817 = vpop.permute.xlu0 %816
    %818 = vrot.lane.b32.xlu0 %v501, 96
    %v819 = vpop.permute.xlu0 %818
    %820 = vrot.lane.b32.xlu0 %v502, 96
    %v821 = vpop.permute.xlu0 %820
    %822 = vrot.lane.b32.xlu0 %v503, 96
    %v823 = vpop.permute.xlu0 %822
    %828 = vrot.lane.b32.xlu0 %v504, 96
    %v829 = vpop.permute.xlu0 %828
    %830 = vrot.lane.b32.xlu0 %v505, 96
    %v831 = vpop.permute.xlu0 %830
    %832 = vrot.lane.b32.xlu0 %v506, 96
    %v833 = vpop.permute.xlu0 %832
    %834 = vrot.lane.b32.xlu0 %v507, 96
    %v835 = vpop.permute.xlu0 %834
    %v837 = vsel %vm512, %v817, 0
    %v840 = vsel %vm512, %v819, 0
    %v843 = vsel %vm512, %v821, 0
    %v846 = vsel %vm512, %v823, 0
    %v849 = vsel %vm512, %v829, 0
    %v852 = vsel %vm512, %v831, 0
    %v855 = vsel %vm512, %v833, 0
    %v858 = vsel %vm512, %v835, 0
    %860 = vmatprep.subr.bf16.mxu0 0
    %861 = vmatpush1.bf16.xpose.msra.mxu0 %v849
    %862 = vmatprep.subr.bf16.mxu0 0
    %863 = vmatpush1.bf16.xpose.msra.mxu0 %v852
    %864 = vmatprep.subr.bf16.mxu0 0
    %865 = vmatpush1.bf16.xpose.msra.mxu0 %v855
    %866 = vmatprep.subr.bf16.mxu0 0
    %867 = vmatpush1.bf16.xpose.msra.mxu0 %v858
    %868 = vmatprep.subr.bf16.mxu0 0
    %869 = vmatpush1.bf16.xpose.msra.mxu0 0
    %870 = vmatprep.subr.bf16.mxu0 0
    %871 = vmatpush1.bf16.xpose.msra.mxu0 0
    %872 = vmatprep.subr.bf16.mxu0 0
    %873 = vmatpush1.bf16.xpose.msra.mxu0 0
    %874 = vmatprep.subr.bf16.mxu0 0
    %875 = vmatpush1.bf16.xpose.msra.mxu0 0
    %876 = vmatprep.subr.bf16.mxu0 0
    %877 = vmatpush1.bf16.xpose.msra.mxu0 0
    %878 = vmatprep.subr.bf16.mxu0 0
    %879 = vmatpush1.bf16.xpose.msra.mxu0 0
    %880 = vmatprep.subr.bf16.mxu0 0
    %881 = vmatpush1.bf16.xpose.msra.mxu0 0
    %882 = vmatprep.subr.bf16.mxu0 0
    %883 = vmatpush1.bf16.xpose.msra.mxu0 0
    %884 = vmatprep.subr.bf16.mxu0 0
    %885 = vmatpush1.bf16.xpose.msra.mxu0 0
    %886 = vmatprep.subr.bf16.mxu0 0
    %887 = vmatpush1.bf16.xpose.msra.mxu0 0
    %888 = vmatprep.subr.bf16.mxu0 0
    %889 = vmatpush1.bf16.xpose.msra.mxu0 0
    %890 = vmatprep.subr.bf16.mxu0 0
    %891 = vmatpush1.bf16.xpose.msra.mxu0 0
    %892 = vmatprep.mubr.bf16.mxu0 0
    %893 = vmatmul.mubr.bf16.gmra.mrb[0].mxu0 %v837
    %v894 = vpop.f32.mrb[0].mxu0
    %v895 = vadd.f32 0.0, %v894
    %v896 = vpop.f32.mrb[0].mxu0
    %v897 = vpop.f32.mrb[0].mxu0
    %v898 = vadd.f32 0.0, %v897
    %v899 = vpop.f32.mrb[0].mxu0
    %900 = vmatprep.mubr.bf16.mxu0 0
    %901 = vmatmul.mubr.bf16.gmra.mrb[0].mxu0 %v840
    %v902 = vpop.f32.mrb[0].mxu0
    %v903 = vadd.f32 0.0, %v902
    %v904 = vpop.f32.mrb[0].mxu0
    %v905 = vpop.f32.mrb[0].mxu0
    %v906 = vadd.f32 0.0, %v905
    %v907 = vpop.f32.mrb[0].mxu0
    %908 = vmatprep.mubr.bf16.mxu0 0
    %909 = vmatmul.mubr.bf16.gmra.mrb[0].mxu0 %v843
    %v910 = vpop.f32.mrb[0].mxu0
    %v911 = vadd.f32 0.0, %v910
    %v912 = vpop.f32.mrb[0].mxu0
    %v913 = vpop.f32.mrb[0].mxu0
    %v914 = vadd.f32 0.0, %v913
    %v915 = vpop.f32.mrb[0].mxu0
    %916 = vmatprep.mubr.bf16.mxu0 0
    %917 = vmatmul.mubr.bf16.gmra.mrb[0].mxu0 %v846
    %v918 = vpop.f32.mrb[0].mxu0
    %v919 = vadd.f32 0.0, %v918
    %v920 = vpop.f32.mrb[0].mxu0
    %v921 = vpop.f32.mrb[0].mxu0
    %v922 = vadd.f32 0.0, %v921
    %v923 = vpop.f32.mrb[0].mxu0
    %924 = vdwg.mxu0
    %v925 = vmul.f32 %v895, 0.17677669
    %v926 = vmul.f32 %v898, 0.17677669
    %v927 = vmul.f32 %v903, 0.17677669
    %v928 = vmul.f32 %v906, 0.17677669
    %v929 = vmul.f32 %v911, 0.17677669
    %v930 = vmul.f32 %v914, 0.17677669
    %v931 = vmul.f32 %v919, 0.17677669
    %v932 = vmul.f32 %v922, 0.17677669
    %v933 = vadd.f32 %v925, %v84
    %v934 = vadd.f32 %v926, %v85
    %v935 = vadd.f32 %v927, %v86
    %v936 = vadd.f32 %v928, %v87
    %v937 = vadd.f32 %v929, %v88
    %v938 = vadd.f32 %v930, %v89
    %v939 = vadd.f32 %v931, %v90
    %v940 = vadd.f32 %v932, %v91
    %v941 = vsel %vm618, %v933, -inf
    %942 = vmax.xlane.f32.xlu0 %v941
    %v943 = vpop.xlane.xlu0 %942
    %v944 = vsel %vm618, %v934, -inf
    %945 = vmax.xlane.f32.xlu0 %v944
    %v946 = vpop.xlane.xlu0 %945
    %v947 = vsel %vm618, %v935, -inf
    %948 = vmax.xlane.f32.xlu0 %v947
    %v949 = vpop.xlane.xlu0 %948
    %v950 = vsel %vm618, %v936, -inf
    %951 = vmax.xlane.f32.xlu0 %v950
    %v952 = vpop.xlane.xlu0 %951
    %v953 = vsel %vm618, %v937, -inf
    %954 = vmax.xlane.f32.xlu0 %v953
    %v955 = vpop.xlane.xlu0 %954
    %v956 = vsel %vm618, %v938, -inf
    %957 = vmax.xlane.f32.xlu0 %v956
    %v958 = vpop.xlane.xlu0 %957
    %v959 = vsel %vm618, %v939, -inf
    %960 = vmax.xlane.f32.xlu0 %v959
    %v961 = vpop.xlane.xlu0 %960
    %v962 = vsel %vm618, %v940, -inf
    %963 = vmax.xlane.f32.xlu0 %v962
    %v964 = vpop.xlane.xlu0 %963
    %v965 = vsub.f32 %v933, %v943
    %v966 = vsub.f32 %v934, %v946
    %v967 = vsub.f32 %v935, %v949
    %v968 = vsub.f32 %v936, %v952
    %v969 = vsub.f32 %v937, %v955
    %v970 = vsub.f32 %v938, %v958
    %v971 = vsub.f32 %v939, %v961
    %v972 = vsub.f32 %v940, %v964
    %v973 = vmul.f32 %v965, 1.442695
    %v974 = vpow.pop %v973
    %v975 = vmul.f32 %v966, 1.442695
    %v976 = vpow.pop %v975
    %v977 = vmul.f32 %v967, 1.442695
    %v978 = vpow.pop %v977
    %v979 = vmul.f32 %v968, 1.442695
    %v980 = vpow.pop %v979
    %v981 = vmul.f32 %v969, 1.442695
    %v982 = vpow.pop %v981
    %v983 = vmul.f32 %v970, 1.442695
    %v984 = vpow.pop %v983
    %v985 = vmul.f32 %v971, 1.442695
    %v986 = vpow.pop %v985
    %v987 = vmul.f32 %v972, 1.442695
    %v988 = vpow.pop %v987
    %v989 = vsel %vm618, %v974, 0.0
    %990 = vadd.xlane.f32.xlu0 %v989
    %v991 = vpop.xlane.xlu0 %990
    %v992 = vsel %vm618, %v976, 0.0
    %993 = vadd.xlane.f32.xlu0 %v992
    %v994 = vpop.xlane.xlu0 %993
    %v995 = vsel %vm618, %v978, 0.0
    %996 = vadd.xlane.f32.xlu0 %v995
    %v997 = vpop.xlane.xlu0 %996
    %v998 = vsel %vm618, %v980, 0.0
    %999 = vadd.xlane.f32.xlu0 %v998
    %v1000 = vpop.xlane.xlu0 %999
    %v1001 = vsel %vm618, %v982, 0.0
    %1002 = vadd.xlane.f32.xlu0 %v1001
    %v1003 = vpop.xlane.xlu0 %1002
    %v1004 = vsel %vm618, %v984, 0.0
    %1005 = vadd.xlane.f32.xlu0 %v1004
    %v1006 = vpop.xlane.xlu0 %1005
    %v1007 = vsel %vm618, %v986, 0.0
    %1008 = vadd.xlane.f32.xlu0 %v1007
    %v1009 = vpop.xlane.xlu0 %1008
    %v1010 = vsel %vm618, %v988, 0.0
    %1011 = vadd.xlane.f32.xlu0 %v1010
    %v1012 = vpop.xlane.xlu0 %1011
    %v1013 = vrcp.pop %v991
    %v1014 = vrcp.pop %v994
    %v1015 = vrcp.pop %v997
    %v1016 = vrcp.pop %v1000
    %v1017 = vrcp.pop %v1003
    %v1018 = vrcp.pop %v1006
    %v1019 = vrcp.pop %v1009
    %v1020 = vrcp.pop %v1012
    %v1021 = vmul.f32 %v974, %v1013
    %v1022 = vmul.f32 %v976, %v1014
    %v1023 = vmul.f32 %v978, %v1015
    %v1024 = vmul.f32 %v980, %v1016
    %v1025 = vmul.f32 %v982, %v1017
    %v1026 = vmul.f32 %v984, %v1018
    %v1027 = vmul.f32 %v986, %v1019
    %v1028 = vmul.f32 %v988, %v1020
    %v1029 = vmul.f32 %v1021, 0.25
    %v1030 = vmul.f32 %v1022, 0.25
    %v1031 = vmul.f32 %v1023, 0.25
    %v1032 = vmul.f32 %v1024, 0.25
    %v1033 = vmul.f32 %v1025, 0.25
    %v1034 = vmul.f32 %v1026, 0.25
    %v1035 = vmul.f32 %v1027, 0.25
    %v1036 = vmul.f32 %v1028, 0.25
    %v1037 = vadd.f32 %v715, %v1029
    %v1038 = vadd.f32 %v716, %v1030
    %v1039 = vadd.f32 %v717, %v1031
    %v1040 = vadd.f32 %v718, %v1032
    %v1041 = vadd.f32 %v719, %v1033
    %v1042 = vadd.f32 %v720, %v1034
    %v1043 = vadd.f32 %v721, %v1035
    %v1044 = vadd.f32 %v722, %v1036
    %v1045 = vpack.c.bf16 %v1022, %v1021
    %v1046 = vpack.c.bf16 %v1024, %v1023
    %v1047 = vpack.c.bf16 %v1026, %v1025
    %v1048 = vpack.c.bf16 %v1028, %v1027
    %1053 = vrot.lane.b32.xlu0 %v508, 96
    %v1054 = vpop.permute.xlu0 %1053
    %1055 = vrot.lane.b32.xlu0 %v509, 96
    %v1056 = vpop.permute.xlu0 %1055
    %1057 = vrot.lane.b32.xlu0 %v510, 96
    %v1058 = vpop.permute.xlu0 %1057
    %1059 = vrot.lane.b32.xlu0 %v511, 96
    %v1060 = vpop.permute.xlu0 %1059
    %v1066 = vsel %vm618, %v1045, 0
    %v1069 = vsel %vm618, %v1046, 0
    %v1072 = vsel %vm618, %v1047, 0
    %v1075 = vsel %vm618, %v1048, 0
    %1077 = vmatprep.subr.bf16.mxu0 0
    %1078 = vmatpush1.bf16.msra.mxu0 %v1054
    %1079 = vmatprep.subr.bf16.mxu0 0
    %1080 = vmatpush1.bf16.msra.mxu0 %v1056
    %1081 = vmatprep.subr.bf16.mxu0 0
    %1082 = vmatpush1.bf16.msra.mxu0 %v1058
    %1083 = vmatprep.subr.bf16.mxu0 0
    %1084 = vmatpush1.bf16.msra.mxu0 %v1060
    %1085 = vmatprep.subr.bf16.mxu0 0
    %1086 = vmatpush1.bf16.msra.mxu0 0
    %1087 = vmatprep.subr.bf16.mxu0 0
    %1088 = vmatpush1.bf16.msra.mxu0 0
    %1089 = vmatprep.subr.bf16.mxu0 0
    %1090 = vmatpush1.bf16.msra.mxu0 0
    %1091 = vmatprep.subr.bf16.mxu0 0
    %1092 = vmatpush1.bf16.msra.mxu0 0
    %1093 = vmatprep.subr.bf16.mxu0 0
    %1094 = vmatpush1.bf16.msra.mxu0 0
    %1095 = vmatprep.subr.bf16.mxu0 0
    %1096 = vmatpush1.bf16.msra.mxu0 0
    %1097 = vmatprep.subr.bf16.mxu0 0
    %1098 = vmatpush1.bf16.msra.mxu0 0
    %1099 = vmatprep.subr.bf16.mxu0 0
    %1100 = vmatpush1.bf16.msra.mxu0 0
    %1101 = vmatprep.subr.bf16.mxu0 0
    %1102 = vmatpush1.bf16.msra.mxu0 0
    %1103 = vmatprep.subr.bf16.mxu0 0
    %1104 = vmatpush1.bf16.msra.mxu0 0
    %1105 = vmatprep.subr.bf16.mxu0 0
    %1106 = vmatpush1.bf16.msra.mxu0 0
    %1107 = vmatprep.subr.bf16.mxu0 0
    %1108 = vmatpush1.bf16.msra.mxu0 0
    %1109 = vmatprep.mubr.bf16.mxu0 0
    %1110 = vmatmul.mubr.bf16.gmra.mrb[0].mxu0 %v1066
    %v1111 = vpop.f32.mrb[0].mxu0
    %v1112 = vadd.f32 0.0, %v1111
    %v1113 = vpop.f32.mrb[0].mxu0
    %v1114 = vpop.f32.mrb[0].mxu0
    %v1115 = vadd.f32 0.0, %v1114
    %v1116 = vpop.f32.mrb[0].mxu0
    %1117 = vmatprep.mubr.bf16.mxu0 0
    %1118 = vmatmul.mubr.bf16.gmra.mrb[0].mxu0 %v1069
    %v1119 = vpop.f32.mrb[0].mxu0
    %v1120 = vadd.f32 0.0, %v1119
    %v1121 = vpop.f32.mrb[0].mxu0
    %v1122 = vpop.f32.mrb[0].mxu0
    %v1123 = vadd.f32 0.0, %v1122
    %v1124 = vpop.f32.mrb[0].mxu0
    %1125 = vmatprep.mubr.bf16.mxu0 0
    %1126 = vmatmul.mubr.bf16.gmra.mrb[0].mxu0 %v1072
    %v1127 = vpop.f32.mrb[0].mxu0
    %v1128 = vadd.f32 0.0, %v1127
    %v1129 = vpop.f32.mrb[0].mxu0
    %v1130 = vpop.f32.mrb[0].mxu0
    %v1131 = vadd.f32 0.0, %v1130
    %v1132 = vpop.f32.mrb[0].mxu0
    %1133 = vmatprep.mubr.bf16.mxu0 0
    %1134 = vmatmul.mubr.bf16.gmra.mrb[0].mxu0 %v1075
    %v1135 = vpop.f32.mrb[0].mxu0
    %v1136 = vadd.f32 0.0, %v1135
    %v1137 = vpop.f32.mrb[0].mxu0
    %v1138 = vpop.f32.mrb[0].mxu0
    %v1139 = vadd.f32 0.0, %v1138
    %v1140 = vpop.f32.mrb[0].mxu0
    %1141 = vdwg.mxu0
    %v1142 = vpack.c.bf16 %v1115, %v1112
    %v1143 = vpack.c.bf16 %v1123, %v1120
    %v1144 = vpack.c.bf16 %v1131, %v1128
    %v1145 = vpack.c.bf16 %v1139, %v1136
    %v1146 = vld [vmem:[%s11 + $0x10] sm:$0xf]
    %v1147 = vld [vmem:[%s11 + $0x14] sm:$0xf]
    %v1148 = vld [vmem:[%s11 + $0x18] sm:$0xf]
    %v1149 = vld [vmem:[%s11 + $0x1c] sm:$0xf]
    %v1154 = vunpack.c.l.b16 %v1146
    %v1155 = vunpack.c.l.b16 %v1147
    %v1156 = vunpack.c.l.b16 %v1148
    %v1157 = vunpack.c.l.b16 %v1149
    %v1158 = vpack.c.b16 %v1155, %v1154
    %v1159 = vpack.c.b16 %v1157, %v1156
    %v1163 = vsel %vm512, %v1142, 0
    %v1166 = vsel %vm512, %v1143, 0
    %v1169 = vsel %vm512, %v1144, 0
    %v1172 = vsel %vm512, %v1145, 0
    %1174 = vmatprep.subr.bf16.mxu0 0
    %1175 = vmatpush1.bf16.msra.mxu0 %v1158
    %1176 = vmatprep.subr.bf16.mxu0 0
    %1177 = vmatpush1.bf16.msra.mxu0 %v1159
    %1178 = vmatprep.subr.bf16.mxu0 0
    %1179 = vmatpush1.bf16.msra.mxu0 0
    %1180 = vmatprep.subr.bf16.mxu0 0
    %1181 = vmatpush1.bf16.msra.mxu0 0
    %1182 = vmatprep.subr.bf16.mxu0 0
    %1183 = vmatpush1.bf16.msra.mxu0 0
    %1184 = vmatprep.subr.bf16.mxu0 0
    %1185 = vmatpush1.bf16.msra.mxu0 0
    %1186 = vmatprep.subr.bf16.mxu0 0
    %1187 = vmatpush1.bf16.msra.mxu0 0
    %1188 = vmatprep.subr.bf16.mxu0 0
    %1189 = vmatpush1.bf16.msra.mxu0 0
    %1190 = vmatprep.subr.bf16.mxu0 0
    %1191 = vmatpush1.bf16.msra.mxu0 0
    %1192 = vmatprep.subr.bf16.mxu0 0
    %1193 = vmatpush1.bf16.msra.mxu0 0
    %1194 = vmatprep.subr.bf16.mxu0 0
    %1195 = vmatpush1.bf16.msra.mxu0 0
    %1196 = vmatprep.subr.bf16.mxu0 0
    %1197 = vmatpush1.bf16.msra.mxu0 0
    %1198 = vmatprep.subr.bf16.mxu0 0
    %1199 = vmatpush1.bf16.msra.mxu0 0
    %1200 = vmatprep.subr.bf16.mxu0 0
    %1201 = vmatpush1.bf16.msra.mxu0 0
    %1202 = vmatprep.subr.bf16.mxu0 0
    %1203 = vmatpush1.bf16.msra.mxu0 0
    %1204 = vmatprep.subr.bf16.mxu0 0
    %1205 = vmatpush1.bf16.msra.mxu0 0
    %1206 = vmatprep.mubr.bf16.mxu0 0
    %1207 = vmatmul.mubr.bf16.gmra.mrb[0].mxu0 %v1163
    %v1208 = vpop.f32.mrb[0].mxu0
    %v1209 = vadd.f32 0.0, %v1208
    %v1210 = vpop.f32.mrb[0].mxu0
    %v1211 = vpop.f32.mrb[0].mxu0
    %v1212 = vadd.f32 0.0, %v1211
    %v1213 = vpop.f32.mrb[0].mxu0
    %1214 = vmatprep.mubr.bf16.mxu0 0
    %1215 = vmatmul.mubr.bf16.gmra.mrb[0].mxu0 %v1166
    %v1216 = vpop.f32.mrb[0].mxu0
    %v1217 = vadd.f32 0.0, %v1216
    %v1218 = vpop.f32.mrb[0].mxu0
    %v1219 = vpop.f32.mrb[0].mxu0
    %v1220 = vadd.f32 0.0, %v1219
    %v1221 = vpop.f32.mrb[0].mxu0
    %1222 = vmatprep.mubr.bf16.mxu0 0
    %1223 = vmatmul.mubr.bf16.gmra.mrb[0].mxu0 %v1169
    %v1224 = vpop.f32.mrb[0].mxu0
    %v1225 = vadd.f32 0.0, %v1224
    %v1226 = vpop.f32.mrb[0].mxu0
    %v1227 = vpop.f32.mrb[0].mxu0
    %v1228 = vadd.f32 0.0, %v1227
    %v1229 = vpop.f32.mrb[0].mxu0
    %1230 = vmatprep.mubr.bf16.mxu0 0
    %1231 = vmatmul.mubr.bf16.gmra.mrb[0].mxu0 %v1172
    %v1232 = vpop.f32.mrb[0].mxu0
    %v1233 = vadd.f32 0.0, %v1232
    %v1234 = vpop.f32.mrb[0].mxu0
    %v1235 = vpop.f32.mrb[0].mxu0
    %v1236 = vadd.f32 0.0, %v1235
    %v1237 = vpop.f32.mrb[0].mxu0
    %1238 = vdwg.mxu0
    %v1243 = vunpack.c.l.b16 %v808
    %v1244 = vunpack.c.l.b16 %v809
    %v1245 = vunpack.c.l.b16 %v810
    %v1246 = vunpack.c.l.b16 %v811
    %v1247 = vpack.c.b16 %v1244, %v1243
    %v1248 = vpack.c.b16 %v1246, %v1245
    %v1252 = vsel %vm512, %v804, 0
    %v1255 = vsel %vm512, %v805, 0
    %v1258 = vsel %vm512, %v806, 0
    %v1261 = vsel %vm512, %v807, 0
    %1263 = vmatprep.subr.bf16.mxu0 0
    %1264 = vmatpush1.bf16.msra.mxu0 %v1247
    %1265 = vmatprep.subr.bf16.mxu0 0
    %1266 = vmatpush1.bf16.msra.mxu0 %v1248
    %1267 = vmatprep.subr.bf16.mxu0 0
    %1268 = vmatpush1.bf16.msra.mxu0 0
    %1269 = vmatprep.subr.bf16.mxu0 0
    %1270 = vmatpush1.bf16.msra.mxu0 0
    %1271 = vmatprep.subr.bf16.mxu0 0
    %1272 = vmatpush1.bf16.msra.mxu0 0
    %1273 = vmatprep.subr.bf16.mxu0 0
    %1274 = vmatpush1.bf16.msra.mxu0 0
    %1275 = vmatprep.subr.bf16.mxu0 0
    %1276 = vmatpush1.bf16.msra.mxu0 0
    %1277 = vmatprep.subr.bf16.mxu0 0
    %1278 = vmatpush1.bf16.msra.mxu0 0
    %1279 = vmatprep.subr.bf16.mxu0 0
    %1280 = vmatpush1.bf16.msra.mxu0 0
    %1281 = vmatprep.subr.bf16.mxu0 0
    %1282 = vmatpush1.bf16.msra.mxu0 0
    %1283 = vmatprep.subr.bf16.mxu0 0
    %1284 = vmatpush1.bf16.msra.mxu0 0
    %1285 = vmatprep.subr.bf16.mxu0 0
    %1286 = vmatpush1.bf16.msra.mxu0 0
    %1287 = vmatprep.subr.bf16.mxu0 0
    %1288 = vmatpush1.bf16.msra.mxu0 0
    %1289 = vmatprep.subr.bf16.mxu0 0
    %1290 = vmatpush1.bf16.msra.mxu0 0
    %1291 = vmatprep.subr.bf16.mxu0 0
    %1292 = vmatpush1.bf16.msra.mxu0 0
    %1293 = vmatprep.subr.bf16.mxu0 0
    %1294 = vmatpush1.bf16.msra.mxu0 0
    %1295 = vmatprep.mubr.bf16.mxu0 0
    %1296 = vmatmul.mubr.bf16.gmra.mrb[0].mxu0 %v1252
    %v1297 = vpop.f32.mrb[0].mxu0
    %v1298 = vadd.f32 %v1209, %v1297
    %v1299 = vpop.f32.mrb[0].mxu0
    %v1300 = vpop.f32.mrb[0].mxu0
    %v1301 = vadd.f32 %v1212, %v1300
    %v1302 = vpop.f32.mrb[0].mxu0
    %1303 = vmatprep.mubr.bf16.mxu0 0
    %1304 = vmatmul.mubr.bf16.gmra.mrb[0].mxu0 %v1255
    %v1305 = vpop.f32.mrb[0].mxu0
    %v1306 = vadd.f32 %v1217, %v1305
    %v1307 = vpop.f32.mrb[0].mxu0
    %v1308 = vpop.f32.mrb[0].mxu0
    %v1309 = vadd.f32 %v1220, %v1308
    %v1310 = vpop.f32.mrb[0].mxu0
    %1311 = vmatprep.mubr.bf16.mxu0 0
    %1312 = vmatmul.mubr.bf16.gmra.mrb[0].mxu0 %v1258
    %v1313 = vpop.f32.mrb[0].mxu0
    %v1314 = vadd.f32 %v1225, %v1313
    %v1315 = vpop.f32.mrb[0].mxu0
    %v1316 = vpop.f32.mrb[0].mxu0
    %v1317 = vadd.f32 %v1228, %v1316
    %v1318 = vpop.f32.mrb[0].mxu0
    %1319 = vmatprep.mubr.bf16.mxu0 0
    %1320 = vmatmul.mubr.bf16.gmra.mrb[0].mxu0 %v1261
    %v1321 = vpop.f32.mrb[0].mxu0
    %v1322 = vadd.f32 %v1233, %v1321
    %v1323 = vpop.f32.mrb[0].mxu0
    %v1324 = vpop.f32.mrb[0].mxu0
    %v1325 = vadd.f32 %v1236, %v1324
    %v1326 = vpop.f32.mrb[0].mxu0
    %1327 = vdwg.mxu0
    %1328 = vrot.lane.b32.xlu0 %v500, 64
    %v1329 = vpop.permute.xlu0 %1328
    %1330 = vrot.lane.b32.xlu0 %v501, 64
    %v1331 = vpop.permute.xlu0 %1330
    %1332 = vrot.lane.b32.xlu0 %v502, 64
    %v1333 = vpop.permute.xlu0 %1332
    %1334 = vrot.lane.b32.xlu0 %v503, 64
    %v1335 = vpop.permute.xlu0 %1334
    %1336 = vrot.lane.b32.xlu0 %v504, 64
    %v1337 = vpop.permute.xlu0 %1336
    %1338 = vrot.lane.b32.xlu0 %v505, 64
    %v1339 = vpop.permute.xlu0 %1338
    %1340 = vrot.lane.b32.xlu0 %v506, 64
    %v1341 = vpop.permute.xlu0 %1340
    %1342 = vrot.lane.b32.xlu0 %v507, 64
    %v1343 = vpop.permute.xlu0 %1342
    %v1345 = vsel %vm512, %v1329, 0
    %v1348 = vsel %vm512, %v1331, 0
    %v1351 = vsel %vm512, %v1333, 0
    %v1354 = vsel %vm512, %v1335, 0
    %v1357 = vsel %vm512, %v1337, 0
    %v1360 = vsel %vm512, %v1339, 0
    %v1363 = vsel %vm512, %v1341, 0
    %v1366 = vsel %vm512, %v1343, 0
    %1368 = vmatprep.subr.bf16.mxu0 0
    %1369 = vmatpush1.bf16.xpose.msra.mxu0 %v1357
    %1370 = vmatprep.subr.bf16.mxu0 0
    %1371 = vmatpush1.bf16.xpose.msra.mxu0 %v1360
    %1372 = vmatprep.subr.bf16.mxu0 0
    %1373 = vmatpush1.bf16.xpose.msra.mxu0 %v1363
    %1374 = vmatprep.subr.bf16.mxu0 0
    %1375 = vmatpush1.bf16.xpose.msra.mxu0 %v1366
    %1376 = vmatprep.subr.bf16.mxu0 0
    %1377 = vmatpush1.bf16.xpose.msra.mxu0 0
    %1378 = vmatprep.subr.bf16.mxu0 0
    %1379 = vmatpush1.bf16.xpose.msra.mxu0 0
    %1380 = vmatprep.subr.bf16.mxu0 0
    %1381 = vmatpush1.bf16.xpose.msra.mxu0 0
    %1382 = vmatprep.subr.bf16.mxu0 0
    %1383 = vmatpush1.bf16.xpose.msra.mxu0 0
    %1384 = vmatprep.subr.bf16.mxu0 0
    %1385 = vmatpush1.bf16.xpose.msra.mxu0 0
    %1386 = vmatprep.subr.bf16.mxu0 0
    %1387 = vmatpush1.bf16.xpose.msra.mxu0 0
    %1388 = vmatprep.subr.bf16.mxu0 0
    %1389 = vmatpush1.bf16.xpose.msra.mxu0 0
    %1390 = vmatprep.subr.bf16.mxu0 0
    %1391 = vmatpush1.bf16.xpose.msra.mxu0 0
    %1392 = vmatprep.subr.bf16.mxu0 0
    %1393 = vmatpush1.bf16.xpose.msra.mxu0 0
    %1394 = vmatprep.subr.bf16.mxu0 0
    %1395 = vmatpush1.bf16.xpose.msra.mxu0 0
    %1396 = vmatprep.subr.bf16.mxu0 0
    %1397 = vmatpush1.bf16.xpose.msra.mxu0 0
    %1398 = vmatprep.subr.bf16.mxu0 0
    %1399 = vmatpush1.bf16.xpose.msra.mxu0 0
    %1400 = vmatprep.mubr.bf16.mxu0 0
    %1401 = vmatmul.mubr.bf16.gmra.mrb[0].mxu0 %v1345
    %v1402 = vpop.f32.mrb[0].mxu0
    %v1403 = vadd.f32 0.0, %v1402
    %v1404 = vpop.f32.mrb[0].mxu0
    %v1405 = vpop.f32.mrb[0].mxu0
    %v1406 = vadd.f32 0.0, %v1405
    %v1407 = vpop.f32.mrb[0].mxu0
    %1408 = vmatprep.mubr.bf16.mxu0 0
    %1409 = vmatmul.mubr.bf16.gmra.mrb[0].mxu0 %v1348
    %v1410 = vpop.f32.mrb[0].mxu0
    %v1411 = vadd.f32 0.0, %v1410
    %v1412 = vpop.f32.mrb[0].mxu0
    %v1413 = vpop.f32.mrb[0].mxu0
    %v1414 = vadd.f32 0.0, %v1413
    %v1415 = vpop.f32.mrb[0].mxu0
    %1416 = vmatprep.mubr.bf16.mxu0 0
    %1417 = vmatmul.mubr.bf16.gmra.mrb[0].mxu0 %v1351
    %v1418 = vpop.f32.mrb[0].mxu0
    %v1419 = vadd.f32 0.0, %v1418
    %v1420 = vpop.f32.mrb[0].mxu0
    %v1421 = vpop.f32.mrb[0].mxu0
    %v1422 = vadd.f32 0.0, %v1421
    %v1423 = vpop.f32.mrb[0].mxu0
    %1424 = vmatprep.mubr.bf16.mxu0 0
    %1425 = vmatmul.mubr.bf16.gmra.mrb[0].mxu0 %v1354
    %v1426 = vpop.f32.mrb[0].mxu0
    %v1427 = vadd.f32 0.0, %v1426
    %v1428 = vpop.f32.mrb[0].mxu0
    %v1429 = vpop.f32.mrb[0].mxu0
    %v1430 = vadd.f32 0.0, %v1429
    %v1431 = vpop.f32.mrb[0].mxu0
    %1432 = vdwg.mxu0
    %v1433 = vmul.f32 %v1403, 0.17677669
    %v1434 = vmul.f32 %v1406, 0.17677669
    %v1435 = vmul.f32 %v1411, 0.17677669
    %v1436 = vmul.f32 %v1414, 0.17677669
    %v1437 = vmul.f32 %v1419, 0.17677669
    %v1438 = vmul.f32 %v1422, 0.17677669
    %v1439 = vmul.f32 %v1427, 0.17677669
    %v1440 = vmul.f32 %v1430, 0.17677669
    %v1441 = vadd.f32 %v1433, %v84
    %v1442 = vadd.f32 %v1434, %v85
    %v1443 = vadd.f32 %v1435, %v86
    %v1444 = vadd.f32 %v1436, %v87
    %v1445 = vadd.f32 %v1437, %v88
    %v1446 = vadd.f32 %v1438, %v89
    %v1447 = vadd.f32 %v1439, %v90
    %v1448 = vadd.f32 %v1440, %v91
    %v1449 = vsel %vm618, %v1441, -inf
    %1450 = vmax.xlane.f32.xlu0 %v1449
    %v1451 = vpop.xlane.xlu0 %1450
    %v1452 = vsel %vm618, %v1442, -inf
    %1453 = vmax.xlane.f32.xlu0 %v1452
    %v1454 = vpop.xlane.xlu0 %1453
    %v1455 = vsel %vm618, %v1443, -inf
    %1456 = vmax.xlane.f32.xlu0 %v1455
    %v1457 = vpop.xlane.xlu0 %1456
    %v1458 = vsel %vm618, %v1444, -inf
    %1459 = vmax.xlane.f32.xlu0 %v1458
    %v1460 = vpop.xlane.xlu0 %1459
    %v1461 = vsel %vm618, %v1445, -inf
    %1462 = vmax.xlane.f32.xlu0 %v1461
    %v1463 = vpop.xlane.xlu0 %1462
    %v1464 = vsel %vm618, %v1446, -inf
    %1465 = vmax.xlane.f32.xlu0 %v1464
    %v1466 = vpop.xlane.xlu0 %1465
    %v1467 = vsel %vm618, %v1447, -inf
    %1468 = vmax.xlane.f32.xlu0 %v1467
    %v1469 = vpop.xlane.xlu0 %1468
    %v1470 = vsel %vm618, %v1448, -inf
    %1471 = vmax.xlane.f32.xlu0 %v1470
    %v1472 = vpop.xlane.xlu0 %1471
    %v1473 = vsub.f32 %v1441, %v1451
    %v1474 = vsub.f32 %v1442, %v1454
    %v1475 = vsub.f32 %v1443, %v1457
    %v1476 = vsub.f32 %v1444, %v1460
    %v1477 = vsub.f32 %v1445, %v1463
    %v1478 = vsub.f32 %v1446, %v1466
    %v1479 = vsub.f32 %v1447, %v1469
    %v1480 = vsub.f32 %v1448, %v1472
    %v1481 = vmul.f32 %v1473, 1.442695
    %v1482 = vpow.pop %v1481
    %v1483 = vmul.f32 %v1474, 1.442695
    %v1484 = vpow.pop %v1483
    %v1485 = vmul.f32 %v1475, 1.442695
    %v1486 = vpow.pop %v1485
    %v1487 = vmul.f32 %v1476, 1.442695
    %v1488 = vpow.pop %v1487
    %v1489 = vmul.f32 %v1477, 1.442695
    %v1490 = vpow.pop %v1489
    %v1491 = vmul.f32 %v1478, 1.442695
    %v1492 = vpow.pop %v1491
    %v1493 = vmul.f32 %v1479, 1.442695
    %v1494 = vpow.pop %v1493
    %v1495 = vmul.f32 %v1480, 1.442695
    %v1496 = vpow.pop %v1495
    %v1497 = vsel %vm618, %v1482, 0.0
    %1498 = vadd.xlane.f32.xlu0 %v1497
    %v1499 = vpop.xlane.xlu0 %1498
    %v1500 = vsel %vm618, %v1484, 0.0
    %1501 = vadd.xlane.f32.xlu0 %v1500
    %v1502 = vpop.xlane.xlu0 %1501
    %v1503 = vsel %vm618, %v1486, 0.0
    %1504 = vadd.xlane.f32.xlu0 %v1503
    %v1505 = vpop.xlane.xlu0 %1504
    %v1506 = vsel %vm618, %v1488, 0.0
    %1507 = vadd.xlane.f32.xlu0 %v1506
    %v1508 = vpop.xlane.xlu0 %1507
    %v1509 = vsel %vm618, %v1490, 0.0
    %1510 = vadd.xlane.f32.xlu0 %v1509
    %v1511 = vpop.xlane.xlu0 %1510
    %v1512 = vsel %vm618, %v1492, 0.0
    %1513 = vadd.xlane.f32.xlu0 %v1512
    %v1514 = vpop.xlane.xlu0 %1513
    %v1515 = vsel %vm618, %v1494, 0.0
    %1516 = vadd.xlane.f32.xlu0 %v1515
    %v1517 = vpop.xlane.xlu0 %1516
    %v1518 = vsel %vm618, %v1496, 0.0
    %1519 = vadd.xlane.f32.xlu0 %v1518
    %v1520 = vpop.xlane.xlu0 %1519
    %v1521 = vrcp.pop %v1499
    %v1522 = vrcp.pop %v1502
    %v1523 = vrcp.pop %v1505
    %v1524 = vrcp.pop %v1508
    %v1525 = vrcp.pop %v1511
    %v1526 = vrcp.pop %v1514
    %v1527 = vrcp.pop %v1517
    %v1528 = vrcp.pop %v1520
    %v1529 = vmul.f32 %v1482, %v1521
    %v1530 = vmul.f32 %v1484, %v1522
    %v1531 = vmul.f32 %v1486, %v1523
    %v1532 = vmul.f32 %v1488, %v1524
    %v1533 = vmul.f32 %v1490, %v1525
    %v1534 = vmul.f32 %v1492, %v1526
    %v1535 = vmul.f32 %v1494, %v1527
    %v1536 = vmul.f32 %v1496, %v1528
    %v1537 = vmul.f32 %v1529, 0.25
    %v1538 = vmul.f32 %v1530, 0.25
    %v1539 = vmul.f32 %v1531, 0.25
    %v1540 = vmul.f32 %v1532, 0.25
    %v1541 = vmul.f32 %v1533, 0.25
    %v1542 = vmul.f32 %v1534, 0.25
    %v1543 = vmul.f32 %v1535, 0.25
    %v1544 = vmul.f32 %v1536, 0.25
    %v1545 = vadd.f32 %v1037, %v1537
    %v1546 = vadd.f32 %v1038, %v1538
    %v1547 = vadd.f32 %v1039, %v1539
    %v1548 = vadd.f32 %v1040, %v1540
    %v1549 = vadd.f32 %v1041, %v1541
    %v1550 = vadd.f32 %v1042, %v1542
    %v1551 = vadd.f32 %v1043, %v1543
    %v1552 = vadd.f32 %v1044, %v1544
    %v1553 = vpack.c.bf16 %v1530, %v1529
    %v1554 = vpack.c.bf16 %v1532, %v1531
    %v1555 = vpack.c.bf16 %v1534, %v1533
    %v1556 = vpack.c.bf16 %v1536, %v1535
    %1557 = vrot.lane.b32.xlu0 %v508, 64
    %v1558 = vpop.permute.xlu0 %1557
    %1559 = vrot.lane.b32.xlu0 %v509, 64
    %v1560 = vpop.permute.xlu0 %1559
    %1561 = vrot.lane.b32.xlu0 %v510, 64
    %v1562 = vpop.permute.xlu0 %1561
    %1563 = vrot.lane.b32.xlu0 %v511, 64
    %v1564 = vpop.permute.xlu0 %1563
    %v1570 = vsel %vm618, %v1553, 0
    %v1573 = vsel %vm618, %v1554, 0
    %v1576 = vsel %vm618, %v1555, 0
    %v1579 = vsel %vm618, %v1556, 0
    %1581 = vmatprep.subr.bf16.mxu0 0
    %1582 = vmatpush1.bf16.msra.mxu0 %v1558
    %1583 = vmatprep.subr.bf16.mxu0 0
    %1584 = vmatpush1.bf16.msra.mxu0 %v1560
    %1585 = vmatprep.subr.bf16.mxu0 0
    %1586 = vmatpush1.bf16.msra.mxu0 %v1562
    %1587 = vmatprep.subr.bf16.mxu0 0
    %1588 = vmatpush1.bf16.msra.mxu0 %v1564
    %1589 = vmatprep.subr.bf16.mxu0 0
    %1590 = vmatpush1.bf16.msra.mxu0 0
    %1591 = vmatprep.subr.bf16.mxu0 0
    %1592 = vmatpush1.bf16.msra.mxu0 0
    %1593 = vmatprep.subr.bf16.mxu0 0
    %1594 = vmatpush1.bf16.msra.mxu0 0
    %1595 = vmatprep.subr.bf16.mxu0 0
    %1596 = vmatpush1.bf16.msra.mxu0 0
    %1597 = vmatprep.subr.bf16.mxu0 0
    %1598 = vmatpush1.bf16.msra.mxu0 0
    %1599 = vmatprep.subr.bf16.mxu0 0
    %1600 = vmatpush1.bf16.msra.mxu0 0
    %1601 = vmatprep.subr.bf16.mxu0 0
    %1602 = vmatpush1.bf16.msra.mxu0 0
    %1603 = vmatprep.subr.bf16.mxu0 0
    %1604 = vmatpush1.bf16.msra.mxu0 0
    %1605 = vmatprep.subr.bf16.mxu0 0
    %1606 = vmatpush1.bf16.msra.mxu0 0
    %1607 = vmatprep.subr.bf16.mxu0 0
    %1608 = vmatpush1.bf16.msra.mxu0 0
    %1609 = vmatprep.subr.bf16.mxu0 0
    %1610 = vmatpush1.bf16.msra.mxu0 0
    %1611 = vmatprep.subr.bf16.mxu0 0
    %1612 = vmatpush1.bf16.msra.mxu0 0
    %1613 = vmatprep.mubr.bf16.mxu0 0
    %1614 = vmatmul.mubr.bf16.gmra.mrb[0].mxu0 %v1570
    %v1615 = vpop.f32.mrb[0].mxu0
    %v1616 = vadd.f32 0.0, %v1615
    %v1617 = vpop.f32.mrb[0].mxu0
    %v1618 = vpop.f32.mrb[0].mxu0
    %v1619 = vadd.f32 0.0, %v1618
    %v1620 = vpop.f32.mrb[0].mxu0
    %1621 = vmatprep.mubr.bf16.mxu0 0
    %1622 = vmatmul.mubr.bf16.gmra.mrb[0].mxu0 %v1573
    %v1623 = vpop.f32.mrb[0].mxu0
    %v1624 = vadd.f32 0.0, %v1623
    %v1625 = vpop.f32.mrb[0].mxu0
    %v1626 = vpop.f32.mrb[0].mxu0
    %v1627 = vadd.f32 0.0, %v1626
    %v1628 = vpop.f32.mrb[0].mxu0
    %1629 = vmatprep.mubr.bf16.mxu0 0
    %1630 = vmatmul.mubr.bf16.gmra.mrb[0].mxu0 %v1576
    %v1631 = vpop.f32.mrb[0].mxu0
    %v1632 = vadd.f32 0.0, %v1631
    %v1633 = vpop.f32.mrb[0].mxu0
    %v1634 = vpop.f32.mrb[0].mxu0
    %v1635 = vadd.f32 0.0, %v1634
    %v1636 = vpop.f32.mrb[0].mxu0
    %1637 = vmatprep.mubr.bf16.mxu0 0
    %1638 = vmatmul.mubr.bf16.gmra.mrb[0].mxu0 %v1579
    %v1639 = vpop.f32.mrb[0].mxu0
    %v1640 = vadd.f32 0.0, %v1639
    %v1641 = vpop.f32.mrb[0].mxu0
    %v1642 = vpop.f32.mrb[0].mxu0
    %v1643 = vadd.f32 0.0, %v1642
    %v1644 = vpop.f32.mrb[0].mxu0
    %1645 = vdwg.mxu0
    %v1646 = vpack.c.bf16 %v1619, %v1616
    %v1647 = vpack.c.bf16 %v1627, %v1624
    %v1648 = vpack.c.bf16 %v1635, %v1632
    %v1649 = vpack.c.bf16 %v1643, %v1640
    %v1650 = vld [vmem:[%s11 + $0x20] sm:$0xf]
    %v1651 = vld [vmem:[%s11 + $0x24] sm:$0xf]
    %v1652 = vld [vmem:[%s11 + $0x28] sm:$0xf]
    %v1653 = vld [vmem:[%s11 + $0x2c] sm:$0xf]
    %v1658 = vunpack.c.l.b16 %v1650
    %v1659 = vunpack.c.l.b16 %v1651
    %v1660 = vunpack.c.l.b16 %v1652
    %v1661 = vunpack.c.l.b16 %v1653
    %v1662 = vpack.c.b16 %v1659, %v1658
    %v1663 = vpack.c.b16 %v1661, %v1660
    %v1667 = vsel %vm512, %v1646, 0
    %v1670 = vsel %vm512, %v1647, 0
    %v1673 = vsel %vm512, %v1648, 0
    %v1676 = vsel %vm512, %v1649, 0
    %1678 = vmatprep.subr.bf16.mxu0 0
    %1679 = vmatpush1.bf16.msra.mxu0 %v1662
    %1680 = vmatprep.subr.bf16.mxu0 0
    %1681 = vmatpush1.bf16.msra.mxu0 %v1663
    %1682 = vmatprep.subr.bf16.mxu0 0
    %1683 = vmatpush1.bf16.msra.mxu0 0
    %1684 = vmatprep.subr.bf16.mxu0 0
    %1685 = vmatpush1.bf16.msra.mxu0 0
    %1686 = vmatprep.subr.bf16.mxu0 0
    %1687 = vmatpush1.bf16.msra.mxu0 0
    %1688 = vmatprep.subr.bf16.mxu0 0
    %1689 = vmatpush1.bf16.msra.mxu0 0
    %1690 = vmatprep.subr.bf16.mxu0 0
    %1691 = vmatpush1.bf16.msra.mxu0 0
    %1692 = vmatprep.subr.bf16.mxu0 0
    %1693 = vmatpush1.bf16.msra.mxu0 0
    %1694 = vmatprep.subr.bf16.mxu0 0
    %1695 = vmatpush1.bf16.msra.mxu0 0
    %1696 = vmatprep.subr.bf16.mxu0 0
    %1697 = vmatpush1.bf16.msra.mxu0 0
    %1698 = vmatprep.subr.bf16.mxu0 0
    %1699 = vmatpush1.bf16.msra.mxu0 0
    %1700 = vmatprep.subr.bf16.mxu0 0
    %1701 = vmatpush1.bf16.msra.mxu0 0
    %1702 = vmatprep.subr.bf16.mxu0 0
    %1703 = vmatpush1.bf16.msra.mxu0 0
    %1704 = vmatprep.subr.bf16.mxu0 0
    %1705 = vmatpush1.bf16.msra.mxu0 0
    %1706 = vmatprep.subr.bf16.mxu0 0
    %1707 = vmatpush1.bf16.msra.mxu0 0
    %1708 = vmatprep.subr.bf16.mxu0 0
    %1709 = vmatpush1.bf16.msra.mxu0 0
    %1710 = vmatprep.mubr.bf16.mxu0 0
    %1711 = vmatmul.mubr.bf16.gmra.mrb[0].mxu0 %v1667
    %v1712 = vpop.f32.mrb[0].mxu0
    %v1713 = vadd.f32 0.0, %v1712
    %v1714 = vpop.f32.mrb[0].mxu0
    %v1715 = vpop.f32.mrb[0].mxu0
    %v1716 = vadd.f32 0.0, %v1715
    %v1717 = vpop.f32.mrb[0].mxu0
    %1718 = vmatprep.mubr.bf16.mxu0 0
    %1719 = vmatmul.mubr.bf16.gmra.mrb[0].mxu0 %v1670
    %v1720 = vpop.f32.mrb[0].mxu0
    %v1721 = vadd.f32 0.0, %v1720
    %v1722 = vpop.f32.mrb[0].mxu0
    %v1723 = vpop.f32.mrb[0].mxu0
    %v1724 = vadd.f32 0.0, %v1723
    %v1725 = vpop.f32.mrb[0].mxu0
    %1726 = vmatprep.mubr.bf16.mxu0 0
    %1727 = vmatmul.mubr.bf16.gmra.mrb[0].mxu0 %v1673
    %v1728 = vpop.f32.mrb[0].mxu0
    %v1729 = vadd.f32 0.0, %v1728
    %v1730 = vpop.f32.mrb[0].mxu0
    %v1731 = vpop.f32.mrb[0].mxu0
    %v1732 = vadd.f32 0.0, %v1731
    %v1733 = vpop.f32.mrb[0].mxu0
    %1734 = vmatprep.mubr.bf16.mxu0 0
    %1735 = vmatmul.mubr.bf16.gmra.mrb[0].mxu0 %v1676
    %v1736 = vpop.f32.mrb[0].mxu0
    %v1737 = vadd.f32 0.0, %v1736
    %v1738 = vpop.f32.mrb[0].mxu0
    %v1739 = vpop.f32.mrb[0].mxu0
    %v1740 = vadd.f32 0.0, %v1739
    %v1741 = vpop.f32.mrb[0].mxu0
    %1742 = vdwg.mxu0
    %v1743 = vadd.f32 %v1298, %v1713
    %v1744 = vadd.f32 %v1301, %v1716
    %v1745 = vadd.f32 %v1306, %v1721
    %v1746 = vadd.f32 %v1309, %v1724
    %v1747 = vadd.f32 %v1314, %v1729
    %v1748 = vadd.f32 %v1317, %v1732
    %v1749 = vadd.f32 %v1322, %v1737
    %v1750 = vadd.f32 %v1325, %v1740
    %1751 = vrot.lane.b32.xlu0 %v500, 32
    %v1752 = vpop.permute.xlu0 %1751
    %1753 = vrot.lane.b32.xlu0 %v501, 32
    %v1754 = vpop.permute.xlu0 %1753
    %1755 = vrot.lane.b32.xlu0 %v502, 32
    %v1756 = vpop.permute.xlu0 %1755
    %1757 = vrot.lane.b32.xlu0 %v503, 32
    %v1758 = vpop.permute.xlu0 %1757
    %1759 = vrot.lane.b32.xlu0 %v504, 32
    %v1760 = vpop.permute.xlu0 %1759
    %1761 = vrot.lane.b32.xlu0 %v505, 32
    %v1762 = vpop.permute.xlu0 %1761
    %1763 = vrot.lane.b32.xlu0 %v506, 32
    %v1764 = vpop.permute.xlu0 %1763
    %1765 = vrot.lane.b32.xlu0 %v507, 32
    %v1766 = vpop.permute.xlu0 %1765
    %v1768 = vsel %vm512, %v1752, 0
    %v1771 = vsel %vm512, %v1754, 0
    %v1774 = vsel %vm512, %v1756, 0
    %v1777 = vsel %vm512, %v1758, 0
    %v1780 = vsel %vm512, %v1760, 0
    %v1783 = vsel %vm512, %v1762, 0
    %v1786 = vsel %vm512, %v1764, 0
    %v1789 = vsel %vm512, %v1766, 0
    %1791 = vmatprep.subr.bf16.mxu0 0
    %1792 = vmatpush1.bf16.xpose.msra.mxu0 %v1780
    %1793 = vmatprep.subr.bf16.mxu0 0
    %1794 = vmatpush1.bf16.xpose.msra.mxu0 %v1783
    %1795 = vmatprep.subr.bf16.mxu0 0
    %1796 = vmatpush1.bf16.xpose.msra.mxu0 %v1786
    %1797 = vmatprep.subr.bf16.mxu0 0
    %1798 = vmatpush1.bf16.xpose.msra.mxu0 %v1789
    %1799 = vmatprep.subr.bf16.mxu0 0
    %1800 = vmatpush1.bf16.xpose.msra.mxu0 0
    %1801 = vmatprep.subr.bf16.mxu0 0
    %1802 = vmatpush1.bf16.xpose.msra.mxu0 0
    %1803 = vmatprep.subr.bf16.mxu0 0
    %1804 = vmatpush1.bf16.xpose.msra.mxu0 0
    %1805 = vmatprep.subr.bf16.mxu0 0
    %1806 = vmatpush1.bf16.xpose.msra.mxu0 0
    %1807 = vmatprep.subr.bf16.mxu0 0
    %1808 = vmatpush1.bf16.xpose.msra.mxu0 0
    %1809 = vmatprep.subr.bf16.mxu0 0
    %1810 = vmatpush1.bf16.xpose.msra.mxu0 0
    %1811 = vmatprep.subr.bf16.mxu0 0
    %1812 = vmatpush1.bf16.xpose.msra.mxu0 0
    %1813 = vmatprep.subr.bf16.mxu0 0
    %1814 = vmatpush1.bf16.xpose.msra.mxu0 0
    %1815 = vmatprep.subr.bf16.mxu0 0
    %1816 = vmatpush1.bf16.xpose.msra.mxu0 0
    %1817 = vmatprep.subr.bf16.mxu0 0
    %1818 = vmatpush1.bf16.xpose.msra.mxu0 0
    %1819 = vmatprep.subr.bf16.mxu0 0
    %1820 = vmatpush1.bf16.xpose.msra.mxu0 0
    %1821 = vmatprep.subr.bf16.mxu0 0
    %1822 = vmatpush1.bf16.xpose.msra.mxu0 0
    %1823 = vmatprep.mubr.bf16.mxu0 0
    %1824 = vmatmul.mubr.bf16.gmra.mrb[0].mxu0 %v1768
    %v1825 = vpop.f32.mrb[0].mxu0
    %v1826 = vadd.f32 0.0, %v1825
    %v1827 = vpop.f32.mrb[0].mxu0
    %v1828 = vpop.f32.mrb[0].mxu0
    %v1829 = vadd.f32 0.0, %v1828
    %v1830 = vpop.f32.mrb[0].mxu0
    %1831 = vmatprep.mubr.bf16.mxu0 0
    %1832 = vmatmul.mubr.bf16.gmra.mrb[0].mxu0 %v1771
    %v1833 = vpop.f32.mrb[0].mxu0
    %v1834 = vadd.f32 0.0, %v1833
    %v1835 = vpop.f32.mrb[0].mxu0
    %v1836 = vpop.f32.mrb[0].mxu0
    %v1837 = vadd.f32 0.0, %v1836
    %v1838 = vpop.f32.mrb[0].mxu0
    %1839 = vmatprep.mubr.bf16.mxu0 0
    %1840 = vmatmul.mubr.bf16.gmra.mrb[0].mxu0 %v1774
    %v1841 = vpop.f32.mrb[0].mxu0
    %v1842 = vadd.f32 0.0, %v1841
    %v1843 = vpop.f32.mrb[0].mxu0
    %v1844 = vpop.f32.mrb[0].mxu0
    %v1845 = vadd.f32 0.0, %v1844
    %v1846 = vpop.f32.mrb[0].mxu0
    %1847 = vmatprep.mubr.bf16.mxu0 0
    %1848 = vmatmul.mubr.bf16.gmra.mrb[0].mxu0 %v1777
    %v1849 = vpop.f32.mrb[0].mxu0
    %v1850 = vadd.f32 0.0, %v1849
    %v1851 = vpop.f32.mrb[0].mxu0
    %v1852 = vpop.f32.mrb[0].mxu0
    %v1853 = vadd.f32 0.0, %v1852
    %v1854 = vpop.f32.mrb[0].mxu0
    %1855 = vdwg.mxu0
    %v1856 = vmul.f32 %v1826, 0.17677669
    %v1857 = vmul.f32 %v1829, 0.17677669
    %v1858 = vmul.f32 %v1834, 0.17677669
    %v1859 = vmul.f32 %v1837, 0.17677669
    %v1860 = vmul.f32 %v1842, 0.17677669
    %v1861 = vmul.f32 %v1845, 0.17677669
    %v1862 = vmul.f32 %v1850, 0.17677669
    %v1863 = vmul.f32 %v1853, 0.17677669
    %v1864 = vadd.f32 %v1856, %v84
    %v1865 = vadd.f32 %v1857, %v85
    %v1866 = vadd.f32 %v1858, %v86
    %v1867 = vadd.f32 %v1859, %v87
    %v1868 = vadd.f32 %v1860, %v88
    %v1869 = vadd.f32 %v1861, %v89
    %v1870 = vadd.f32 %v1862, %v90
    %v1871 = vadd.f32 %v1863, %v91
    %v1872 = vsel %vm618, %v1864, -inf
    %1873 = vmax.xlane.f32.xlu0 %v1872
    %v1874 = vpop.xlane.xlu0 %1873
    %v1875 = vsel %vm618, %v1865, -inf
    %1876 = vmax.xlane.f32.xlu0 %v1875
    %v1877 = vpop.xlane.xlu0 %1876
    %v1878 = vsel %vm618, %v1866, -inf
    %1879 = vmax.xlane.f32.xlu0 %v1878
    %v1880 = vpop.xlane.xlu0 %1879
    %v1881 = vsel %vm618, %v1867, -inf
    %1882 = vmax.xlane.f32.xlu0 %v1881
    %v1883 = vpop.xlane.xlu0 %1882
    %v1884 = vsel %vm618, %v1868, -inf
    %1885 = vmax.xlane.f32.xlu0 %v1884
    %v1886 = vpop.xlane.xlu0 %1885
    %v1887 = vsel %vm618, %v1869, -inf
    %1888 = vmax.xlane.f32.xlu0 %v1887
    %v1889 = vpop.xlane.xlu0 %1888
    %v1890 = vsel %vm618, %v1870, -inf
    %1891 = vmax.xlane.f32.xlu0 %v1890
    %v1892 = vpop.xlane.xlu0 %1891
    %v1893 = vsel %vm618, %v1871, -inf
    %1894 = vmax.xlane.f32.xlu0 %v1893
    %v1895 = vpop.xlane.xlu0 %1894
    %v1896 = vsub.f32 %v1864, %v1874
    %v1897 = vsub.f32 %v1865, %v1877
    %v1898 = vsub.f32 %v1866, %v1880
    %v1899 = vsub.f32 %v1867, %v1883
    %v1900 = vsub.f32 %v1868, %v1886
    %v1901 = vsub.f32 %v1869, %v1889
    %v1902 = vsub.f32 %v1870, %v1892
    %v1903 = vsub.f32 %v1871, %v1895
    %v1904 = vmul.f32 %v1896, 1.442695
    %v1905 = vpow.pop %v1904
    %v1906 = vmul.f32 %v1897, 1.442695
    %v1907 = vpow.pop %v1906
    %v1908 = vmul.f32 %v1898, 1.442695
    %v1909 = vpow.pop %v1908
    %v1910 = vmul.f32 %v1899, 1.442695
    %v1911 = vpow.pop %v1910
    %v1912 = vmul.f32 %v1900, 1.442695
    %v1913 = vpow.pop %v1912
    %v1914 = vmul.f32 %v1901, 1.442695
    %v1915 = vpow.pop %v1914
    %v1916 = vmul.f32 %v1902, 1.442695
    %v1917 = vpow.pop %v1916
    %v1918 = vmul.f32 %v1903, 1.442695
    %v1919 = vpow.pop %v1918
    %v1920 = vsel %vm618, %v1905, 0.0
    %1921 = vadd.xlane.f32.xlu0 %v1920
    %v1922 = vpop.xlane.xlu0 %1921
    %v1923 = vsel %vm618, %v1907, 0.0
    %1924 = vadd.xlane.f32.xlu0 %v1923
    %v1925 = vpop.xlane.xlu0 %1924
    %v1926 = vsel %vm618, %v1909, 0.0
    %1927 = vadd.xlane.f32.xlu0 %v1926
    %v1928 = vpop.xlane.xlu0 %1927
    %v1929 = vsel %vm618, %v1911, 0.0
    %1930 = vadd.xlane.f32.xlu0 %v1929
    %v1931 = vpop.xlane.xlu0 %1930
    %v1932 = vsel %vm618, %v1913, 0.0
    %1933 = vadd.xlane.f32.xlu0 %v1932
    %v1934 = vpop.xlane.xlu0 %1933
    %v1935 = vsel %vm618, %v1915, 0.0
    %1936 = vadd.xlane.f32.xlu0 %v1935
    %v1937 = vpop.xlane.xlu0 %1936
    %v1938 = vsel %vm618, %v1917, 0.0
    %1939 = vadd.xlane.f32.xlu0 %v1938
    %v1940 = vpop.xlane.xlu0 %1939
    %v1941 = vsel %vm618, %v1919, 0.0
    %1942 = vadd.xlane.f32.xlu0 %v1941
    %v1943 = vpop.xlane.xlu0 %1942
    %v1944 = vrcp.pop %v1922
    %v1945 = vrcp.pop %v1925
    %v1946 = vrcp.pop %v1928
    %v1947 = vrcp.pop %v1931
    %v1948 = vrcp.pop %v1934
    %v1949 = vrcp.pop %v1937
    %v1950 = vrcp.pop %v1940
    %v1951 = vrcp.pop %v1943
    %v1952 = vmul.f32 %v1905, %v1944
    %v1953 = vmul.f32 %v1907, %v1945
    %v1954 = vmul.f32 %v1909, %v1946
    %v1955 = vmul.f32 %v1911, %v1947
    %v1956 = vmul.f32 %v1913, %v1948
    %v1957 = vmul.f32 %v1915, %v1949
    %v1958 = vmul.f32 %v1917, %v1950
    %v1959 = vmul.f32 %v1919, %v1951
    %v1960 = vmul.f32 %v1952, 0.25
    %v1961 = vmul.f32 %v1953, 0.25
    %v1962 = vmul.f32 %v1954, 0.25
    %v1963 = vmul.f32 %v1955, 0.25
    %v1964 = vmul.f32 %v1956, 0.25
    %v1965 = vmul.f32 %v1957, 0.25
    %v1966 = vmul.f32 %v1958, 0.25
    %v1967 = vmul.f32 %v1959, 0.25
    %v1968 = vadd.f32 %v1545, %v1960
    %v1969 = vadd.f32 %v1546, %v1961
    %v1970 = vadd.f32 %v1547, %v1962
    %v1971 = vadd.f32 %v1548, %v1963
    %v1972 = vadd.f32 %v1549, %v1964
    %v1973 = vadd.f32 %v1550, %v1965
    %v1974 = vadd.f32 %v1551, %v1966
    %v1975 = vadd.f32 %v1552, %v1967
    %v1976 = vpack.c.bf16 %v1953, %v1952
    %v1977 = vpack.c.bf16 %v1955, %v1954
    %v1978 = vpack.c.bf16 %v1957, %v1956
    %v1979 = vpack.c.bf16 %v1959, %v1958
    %1980 = vrot.lane.b32.xlu0 %v508, 32
    %v1981 = vpop.permute.xlu0 %1980
    %1982 = vrot.lane.b32.xlu0 %v509, 32
    %v1983 = vpop.permute.xlu0 %1982
    %1984 = vrot.lane.b32.xlu0 %v510, 32
    %v1985 = vpop.permute.xlu0 %1984
    %1986 = vrot.lane.b32.xlu0 %v511, 32
    %v1987 = vpop.permute.xlu0 %1986
    %v1993 = vsel %vm618, %v1976, 0
    %v1996 = vsel %vm618, %v1977, 0
    %v1999 = vsel %vm618, %v1978, 0
    %v2002 = vsel %vm618, %v1979, 0
    %2004 = vmatprep.subr.bf16.mxu0 0
    %2005 = vmatpush1.bf16.msra.mxu0 %v1981
    %2006 = vmatprep.subr.bf16.mxu0 0
    %2007 = vmatpush1.bf16.msra.mxu0 %v1983
    %2008 = vmatprep.subr.bf16.mxu0 0
    %2009 = vmatpush1.bf16.msra.mxu0 %v1985
    %2010 = vmatprep.subr.bf16.mxu0 0
    %2011 = vmatpush1.bf16.msra.mxu0 %v1987
    %2012 = vmatprep.subr.bf16.mxu0 0
    %2013 = vmatpush1.bf16.msra.mxu0 0
    %2014 = vmatprep.subr.bf16.mxu0 0
    %2015 = vmatpush1.bf16.msra.mxu0 0
    %2016 = vmatprep.subr.bf16.mxu0 0
    %2017 = vmatpush1.bf16.msra.mxu0 0
    %2018 = vmatprep.subr.bf16.mxu0 0
    %2019 = vmatpush1.bf16.msra.mxu0 0
    %2020 = vmatprep.subr.bf16.mxu0 0
    %2021 = vmatpush1.bf16.msra.mxu0 0
    %2022 = vmatprep.subr.bf16.mxu0 0
    %2023 = vmatpush1.bf16.msra.mxu0 0
    %2024 = vmatprep.subr.bf16.mxu0 0
    %2025 = vmatpush1.bf16.msra.mxu0 0
    %2026 = vmatprep.subr.bf16.mxu0 0
    %2027 = vmatpush1.bf16.msra.mxu0 0
    %2028 = vmatprep.subr.bf16.mxu0 0
    %2029 = vmatpush1.bf16.msra.mxu0 0
    %2030 = vmatprep.subr.bf16.mxu0 0
    %2031 = vmatpush1.bf16.msra.mxu0 0
    %2032 = vmatprep.subr.bf16.mxu0 0
    %2033 = vmatpush1.bf16.msra.mxu0 0
    %2034 = vmatprep.subr.bf16.mxu0 0
    %2035 = vmatpush1.bf16.msra.mxu0 0
    %2036 = vmatprep.mubr.bf16.mxu0 0
    %2037 = vmatmul.mubr.bf16.gmra.mrb[0].mxu0 %v1993
    %v2038 = vpop.f32.mrb[0].mxu0
    %v2039 = vadd.f32 0.0, %v2038
    %v2040 = vpop.f32.mrb[0].mxu0
    %v2041 = vpop.f32.mrb[0].mxu0
    %v2042 = vadd.f32 0.0, %v2041
    %v2043 = vpop.f32.mrb[0].mxu0
    %2044 = vmatprep.mubr.bf16.mxu0 0
    %2045 = vmatmul.mubr.bf16.gmra.mrb[0].mxu0 %v1996
    %v2046 = vpop.f32.mrb[0].mxu0
    %v2047 = vadd.f32 0.0, %v2046
    %v2048 = vpop.f32.mrb[0].mxu0
    %v2049 = vpop.f32.mrb[0].mxu0
    %v2050 = vadd.f32 0.0, %v2049
    %v2051 = vpop.f32.mrb[0].mxu0
    %2052 = vmatprep.mubr.bf16.mxu0 0
    %2053 = vmatmul.mubr.bf16.gmra.mrb[0].mxu0 %v1999
    %v2054 = vpop.f32.mrb[0].mxu0
    %v2055 = vadd.f32 0.0, %v2054
    %v2056 = vpop.f32.mrb[0].mxu0
    %v2057 = vpop.f32.mrb[0].mxu0
    %v2058 = vadd.f32 0.0, %v2057
    %v2059 = vpop.f32.mrb[0].mxu0
    %2060 = vmatprep.mubr.bf16.mxu0 0
    %2061 = vmatmul.mubr.bf16.gmra.mrb[0].mxu0 %v2002
    %v2062 = vpop.f32.mrb[0].mxu0
    %v2063 = vadd.f32 0.0, %v2062
    %v2064 = vpop.f32.mrb[0].mxu0
    %v2065 = vpop.f32.mrb[0].mxu0
    %v2066 = vadd.f32 0.0, %v2065
    %v2067 = vpop.f32.mrb[0].mxu0
    %2068 = vdwg.mxu0
    %v2069 = vpack.c.bf16 %v2042, %v2039
    %v2070 = vpack.c.bf16 %v2050, %v2047
    %v2071 = vpack.c.bf16 %v2058, %v2055
    %v2072 = vpack.c.bf16 %v2066, %v2063
    %v2073 = vld [vmem:[%s11 + $0x30] sm:$0xf]
    %v2074 = vld [vmem:[%s11 + $0x34] sm:$0xf]
    %v2075 = vld [vmem:[%s11 + $0x38] sm:$0xf]
    %v2076 = vld [vmem:[%s11 + $0x3c] sm:$0xf]
    %v2081 = vunpack.c.l.b16 %v2073
    %v2082 = vunpack.c.l.b16 %v2074
    %v2083 = vunpack.c.l.b16 %v2075
    %v2084 = vunpack.c.l.b16 %v2076
    %v2085 = vpack.c.b16 %v2082, %v2081
    %v2086 = vpack.c.b16 %v2084, %v2083
    %v2090 = vsel %vm512, %v2069, 0
    %v2093 = vsel %vm512, %v2070, 0
    %v2096 = vsel %vm512, %v2071, 0
    %v2099 = vsel %vm512, %v2072, 0
    %2101 = vmatprep.subr.bf16.mxu0 0
    %2102 = vmatpush1.bf16.msra.mxu0 %v2085
    %2103 = vmatprep.subr.bf16.mxu0 0
    %2104 = vmatpush1.bf16.msra.mxu0 %v2086
    %2105 = vmatprep.subr.bf16.mxu0 0
    %2106 = vmatpush1.bf16.msra.mxu0 0
    %2107 = vmatprep.subr.bf16.mxu0 0
    %2108 = vmatpush1.bf16.msra.mxu0 0
    %2109 = vmatprep.subr.bf16.mxu0 0
    %2110 = vmatpush1.bf16.msra.mxu0 0
    %2111 = vmatprep.subr.bf16.mxu0 0
    %2112 = vmatpush1.bf16.msra.mxu0 0
    %2113 = vmatprep.subr.bf16.mxu0 0
    %2114 = vmatpush1.bf16.msra.mxu0 0
    %2115 = vmatprep.subr.bf16.mxu0 0
    %2116 = vmatpush1.bf16.msra.mxu0 0
    %2117 = vmatprep.subr.bf16.mxu0 0
    %2118 = vmatpush1.bf16.msra.mxu0 0
    %2119 = vmatprep.subr.bf16.mxu0 0
    %2120 = vmatpush1.bf16.msra.mxu0 0
    %2121 = vmatprep.subr.bf16.mxu0 0
    %2122 = vmatpush1.bf16.msra.mxu0 0
    %2123 = vmatprep.subr.bf16.mxu0 0
    %2124 = vmatpush1.bf16.msra.mxu0 0
    %2125 = vmatprep.subr.bf16.mxu0 0
    %2126 = vmatpush1.bf16.msra.mxu0 0
    %2127 = vmatprep.subr.bf16.mxu0 0
    %2128 = vmatpush1.bf16.msra.mxu0 0
    %2129 = vmatprep.subr.bf16.mxu0 0
    %2130 = vmatpush1.bf16.msra.mxu0 0
    %2131 = vmatprep.subr.bf16.mxu0 0
    %2132 = vmatpush1.bf16.msra.mxu0 0
    %2133 = vmatprep.mubr.bf16.mxu0 0
    %2134 = vmatmul.mubr.bf16.gmra.mrb[0].mxu0 %v2090
    %v2135 = vpop.f32.mrb[0].mxu0
    %v2136 = vadd.f32 0.0, %v2135
    %v2137 = vpop.f32.mrb[0].mxu0
    %v2138 = vpop.f32.mrb[0].mxu0
    %v2139 = vadd.f32 0.0, %v2138
    %v2140 = vpop.f32.mrb[0].mxu0
    %2141 = vmatprep.mubr.bf16.mxu0 0
    %2142 = vmatmul.mubr.bf16.gmra.mrb[0].mxu0 %v2093
    %v2143 = vpop.f32.mrb[0].mxu0
    %v2144 = vadd.f32 0.0, %v2143
    %v2145 = vpop.f32.mrb[0].mxu0
    %v2146 = vpop.f32.mrb[0].mxu0
    %v2147 = vadd.f32 0.0, %v2146
    %v2148 = vpop.f32.mrb[0].mxu0
    %2149 = vmatprep.mubr.bf16.mxu0 0
    %2150 = vmatmul.mubr.bf16.gmra.mrb[0].mxu0 %v2096
    %v2151 = vpop.f32.mrb[0].mxu0
    %v2152 = vadd.f32 0.0, %v2151
    %v2153 = vpop.f32.mrb[0].mxu0
    %v2154 = vpop.f32.mrb[0].mxu0
    %v2155 = vadd.f32 0.0, %v2154
    %v2156 = vpop.f32.mrb[0].mxu0
    %2157 = vmatprep.mubr.bf16.mxu0 0
    %2158 = vmatmul.mubr.bf16.gmra.mrb[0].mxu0 %v2099
    %v2159 = vpop.f32.mrb[0].mxu0
    %v2160 = vadd.f32 0.0, %v2159
    %v2161 = vpop.f32.mrb[0].mxu0
    %v2162 = vpop.f32.mrb[0].mxu0
    %v2163 = vadd.f32 0.0, %v2162
    %v2164 = vpop.f32.mrb[0].mxu0
    %2165 = vdwg.mxu0
    %v2166 = vadd.f32 %v1743, %v2136
    %v2167 = vadd.f32 %v1744, %v2139
    %v2168 = vadd.f32 %v1745, %v2144
    %v2169 = vadd.f32 %v1746, %v2147
    %v2170 = vadd.f32 %v1747, %v2152
    %v2171 = vadd.f32 %v1748, %v2155
    %v2172 = vadd.f32 %v1749, %v2160
    %v2173 = vadd.f32 %v1750, %v2163
    %v2174 = vld [vmem:[%s12] sm:$0x1]
    %v2176 = vlaneseq
    %v2177 = vshrl.u32 %v2176, 7
    %v2178 = vsub.s32 0, %v2177
    %v2179 = vrot.slane %v2174, %v2178
    %v2181 = vadd.f32 %v2166, %v2179
    %v2182 = vadd.f32 %v2167, %v2179
    %v2183 = vadd.f32 %v2168, %v2179
    %v2184 = vadd.f32 %v2169, %v2179
    %v2185 = vadd.f32 %v2170, %v2179
    %v2186 = vadd.f32 %v2171, %v2179
    %v2187 = vadd.f32 %v2172, %v2179
    %v2188 = vadd.f32 %v2173, %v2179
    %v2189 = vadd.f32 %v72, %v2181
    %v2190 = vadd.f32 %v73, %v2182
    %v2191 = vadd.f32 %v74, %v2183
    %v2192 = vadd.f32 %v75, %v2184
    %v2193 = vadd.f32 %v76, %v2185
    %v2194 = vadd.f32 %v77, %v2186
    %v2195 = vadd.f32 %v78, %v2187
    %v2196 = vadd.f32 %v79, %v2188
    %v2197 = vld [vmem:[%s13] sm:$0x1]
    %v2198 = vld [vmem:[%s14] sm:$0x1]
    %2199 = vadd.xlane.f32.xlu0 %v2189
    %v2200 = vpop.xlane.xlu0 %2199
    %2201 = vadd.xlane.f32.xlu0 %v2190
    %v2202 = vpop.xlane.xlu0 %2201
    %2203 = vadd.xlane.f32.xlu0 %v2191
    %v2204 = vpop.xlane.xlu0 %2203
    %2205 = vadd.xlane.f32.xlu0 %v2192
    %v2206 = vpop.xlane.xlu0 %2205
    %2207 = vadd.xlane.f32.xlu0 %v2193
    %v2208 = vpop.xlane.xlu0 %2207
    %2209 = vadd.xlane.f32.xlu0 %v2194
    %v2210 = vpop.xlane.xlu0 %2209
    %2211 = vadd.xlane.f32.xlu0 %v2195
    %v2212 = vpop.xlane.xlu0 %2211
    %2213 = vadd.xlane.f32.xlu0 %v2196
    %v2214 = vpop.xlane.xlu0 %2213
    %v2215 = vrcp.pop 128.0
    %v2216 = vmul.f32 %v2200, %v2215
    %v2217 = vmul.f32 %v2202, %v2215
    %v2218 = vmul.f32 %v2204, %v2215
    %v2219 = vmul.f32 %v2206, %v2215
    %v2220 = vmul.f32 %v2208, %v2215
    %v2221 = vmul.f32 %v2210, %v2215
    %v2222 = vmul.f32 %v2212, %v2215
    %v2223 = vmul.f32 %v2214, %v2215
    %v2224 = vsub.f32 %v2189, %v2216
    %v2225 = vsub.f32 %v2190, %v2217
    %v2226 = vsub.f32 %v2191, %v2218
    %v2227 = vsub.f32 %v2192, %v2219
    %v2228 = vsub.f32 %v2193, %v2220
    %v2229 = vsub.f32 %v2194, %v2221
    %v2230 = vsub.f32 %v2195, %v2222
    %v2231 = vsub.f32 %v2196, %v2223
    %v2232 = vmul.f32 %v2224, %v2224
    %v2233 = vmul.f32 %v2225, %v2225
    %v2234 = vmul.f32 %v2226, %v2226
    %v2235 = vmul.f32 %v2227, %v2227
    %v2236 = vmul.f32 %v2228, %v2228
    %v2237 = vmul.f32 %v2229, %v2229
    %v2238 = vmul.f32 %v2230, %v2230
    %v2239 = vmul.f32 %v2231, %v2231
    %2240 = vadd.xlane.f32.xlu0 %v2232
    %v2241 = vpop.xlane.xlu0 %2240
    %2242 = vadd.xlane.f32.xlu0 %v2233
    %v2243 = vpop.xlane.xlu0 %2242
    %2244 = vadd.xlane.f32.xlu0 %v2234
    %v2245 = vpop.xlane.xlu0 %2244
    %2246 = vadd.xlane.f32.xlu0 %v2235
    %v2247 = vpop.xlane.xlu0 %2246
    %2248 = vadd.xlane.f32.xlu0 %v2236
    %v2249 = vpop.xlane.xlu0 %2248
    %2250 = vadd.xlane.f32.xlu0 %v2237
    %v2251 = vpop.xlane.xlu0 %2250
    %2252 = vadd.xlane.f32.xlu0 %v2238
    %v2253 = vpop.xlane.xlu0 %2252
    %2254 = vadd.xlane.f32.xlu0 %v2239
    %v2255 = vpop.xlane.xlu0 %2254
    %v2256 = vmul.f32 %v2241, %v2215
    %v2257 = vmul.f32 %v2243, %v2215
    %v2258 = vmul.f32 %v2245, %v2215
    %v2259 = vmul.f32 %v2247, %v2215
    %v2260 = vmul.f32 %v2249, %v2215
    %v2261 = vmul.f32 %v2251, %v2215
    %v2262 = vmul.f32 %v2253, %v2215
    %v2263 = vmul.f32 %v2255, %v2215
    %v2264 = vadd.f32 %v2256, 1e-05
    %v2265 = vadd.f32 %v2257, 1e-05
    %v2266 = vadd.f32 %v2258, 1e-05
    %v2267 = vadd.f32 %v2259, 1e-05
    %v2268 = vadd.f32 %v2260, 1e-05
    %v2269 = vadd.f32 %v2261, 1e-05
    %v2270 = vadd.f32 %v2262, 1e-05
    %v2271 = vadd.f32 %v2263, 1e-05
    %v2272 = vrsqrt.pop %v2264
    %v2273 = vrsqrt.pop %v2265
    %v2274 = vrsqrt.pop %v2266
    %v2275 = vrsqrt.pop %v2267
    %v2276 = vrsqrt.pop %v2268
    %v2277 = vrsqrt.pop %v2269
    %v2278 = vrsqrt.pop %v2270
    %v2279 = vrsqrt.pop %v2271
    %v2280 = vmul.f32 %v2224, %v2272
    %v2281 = vmul.f32 %v2225, %v2273
    %v2282 = vmul.f32 %v2226, %v2274
    %v2283 = vmul.f32 %v2227, %v2275
    %v2284 = vmul.f32 %v2228, %v2276
    %v2285 = vmul.f32 %v2229, %v2277
    %v2286 = vmul.f32 %v2230, %v2278
    %v2287 = vmul.f32 %v2231, %v2279
    %v2289 = vlaneseq
    %v2290 = vshrl.u32 %v2289, 7
    %v2291 = vsub.s32 0, %v2290
    %v2292 = vrot.slane %v2197, %v2291
    %v2294 = vmul.f32 %v2280, %v2292
    %v2295 = vmul.f32 %v2281, %v2292
    %v2296 = vmul.f32 %v2282, %v2292
    %v2297 = vmul.f32 %v2283, %v2292
    %v2298 = vmul.f32 %v2284, %v2292
    %v2299 = vmul.f32 %v2285, %v2292
    %v2300 = vmul.f32 %v2286, %v2292
    %v2301 = vmul.f32 %v2287, %v2292
    %v2303 = vlaneseq
    %v2304 = vshrl.u32 %v2303, 7
    %v2305 = vsub.s32 0, %v2304
    %v2306 = vrot.slane %v2198, %v2305
    %v2308 = vadd.f32 %v2294, %v2306
    %v2309 = vadd.f32 %v2295, %v2306
    %v2310 = vadd.f32 %v2296, %v2306
    %v2311 = vadd.f32 %v2297, %v2306
    %v2312 = vadd.f32 %v2298, %v2306
    %v2313 = vadd.f32 %v2299, %v2306
    %v2314 = vadd.f32 %v2300, %v2306
    %v2315 = vadd.f32 %v2301, %v2306
    %v2316 = vpack.c.bf16 %v2309, %v2308
    %v2317 = vpack.c.bf16 %v2311, %v2310
    %v2318 = vpack.c.bf16 %v2313, %v2312
    %v2319 = vpack.c.bf16 %v2315, %v2314
    %v2320 = vld [vmem:[%s15] sm:$0xff]
    %v2321 = vld [vmem:[%s15 + $0x8] sm:$0xff]
    %v2322 = vld [vmem:[%s15 + $0x10] sm:$0xff]
    %v2323 = vld [vmem:[%s15 + $0x18] sm:$0xff]
    %v2324 = vld [vmem:[%s15 + $0x20] sm:$0xff]
    %v2325 = vld [vmem:[%s15 + $0x28] sm:$0xff]
    %v2326 = vld [vmem:[%s15 + $0x30] sm:$0xff]
    %v2327 = vld [vmem:[%s15 + $0x38] sm:$0xff]
    %v2328 = vld [vmem:[%s15 + $0x40] sm:$0xff]
    %v2329 = vld [vmem:[%s15 + $0x48] sm:$0xff]
    %v2330 = vld [vmem:[%s15 + $0x50] sm:$0xff]
    %v2331 = vld [vmem:[%s15 + $0x58] sm:$0xff]
    %v2332 = vld [vmem:[%s15 + $0x60] sm:$0xff]
    %v2333 = vld [vmem:[%s15 + $0x68] sm:$0xff]
    %v2334 = vld [vmem:[%s15 + $0x70] sm:$0xff]
    %v2335 = vld [vmem:[%s15 + $0x78] sm:$0xff]
    %v2336 = vld [vmem:[%s16] sm:$0x3]
    %v2338 = vlaneseq
    %v2339 = vshrl.u32 %v2338, 7
    %v2340 = vsub.s32 0, %v2339
    %v2341 = vrot.slane %v2336, %v2340
    %v2342 = vlaneseq
    %v2343 = vshrl.u32 %v2342, 7
    %v2344 = vsub.s32 1, %v2343
    %v2345 = vrot.slane %v2336, %v2344
    %v2364 = vunpack.c.l.b16 %v2320
    %v2365 = vunpack.c.h.b16 %v2320
    %v2366 = vunpack.c.l.b16 %v2321
    %v2367 = vunpack.c.h.b16 %v2321
    %v2368 = vunpack.c.l.b16 %v2322
    %v2369 = vunpack.c.h.b16 %v2322
    %v2370 = vunpack.c.l.b16 %v2323
    %v2371 = vunpack.c.h.b16 %v2323
    %v2372 = vunpack.c.l.b16 %v2324
    %v2373 = vunpack.c.h.b16 %v2324
    %v2374 = vunpack.c.l.b16 %v2325
    %v2375 = vunpack.c.h.b16 %v2325
    %v2376 = vunpack.c.l.b16 %v2326
    %v2377 = vunpack.c.h.b16 %v2326
    %v2378 = vunpack.c.l.b16 %v2327
    %v2379 = vunpack.c.h.b16 %v2327
    %v2380 = vunpack.c.l.b16 %v2328
    %v2381 = vunpack.c.h.b16 %v2328
    %v2382 = vunpack.c.l.b16 %v2329
    %v2383 = vunpack.c.h.b16 %v2329
    %v2384 = vunpack.c.l.b16 %v2330
    %v2385 = vunpack.c.h.b16 %v2330
    %v2386 = vunpack.c.l.b16 %v2331
    %v2387 = vunpack.c.h.b16 %v2331
    %v2388 = vunpack.c.l.b16 %v2332
    %v2389 = vunpack.c.h.b16 %v2332
    %v2390 = vunpack.c.l.b16 %v2333
    %v2391 = vunpack.c.h.b16 %v2333
    %v2392 = vunpack.c.l.b16 %v2334
    %v2393 = vunpack.c.h.b16 %v2334
    %v2394 = vunpack.c.l.b16 %v2335
    %v2395 = vunpack.c.h.b16 %v2335
    %v2396 = vpack.c.b16 %v2366, %v2364
    %v2397 = vpack.c.b16 %v2367, %v2365
    %v2398 = vpack.c.b16 %v2370, %v2368
    %v2399 = vpack.c.b16 %v2371, %v2369
    %v2400 = vpack.c.b16 %v2374, %v2372
    %v2401 = vpack.c.b16 %v2375, %v2373
    %v2402 = vpack.c.b16 %v2378, %v2376
    %v2403 = vpack.c.b16 %v2379, %v2377
    %v2404 = vpack.c.b16 %v2382, %v2380
    %v2405 = vpack.c.b16 %v2383, %v2381
    %v2406 = vpack.c.b16 %v2386, %v2384
    %v2407 = vpack.c.b16 %v2387, %v2385
    %v2408 = vpack.c.b16 %v2390, %v2388
    %v2409 = vpack.c.b16 %v2391, %v2389
    %v2410 = vpack.c.b16 %v2394, %v2392
    %v2411 = vpack.c.b16 %v2395, %v2393
    %2428 = vmatprep.subr.bf16.mxu0 %v2397
    %2429 = vmatpush1.bf16.msra.mxu0 %v2396
    %2430 = vmatprep.subr.bf16.mxu0 %v2399
    %2431 = vmatpush1.bf16.msra.mxu0 %v2398
    %2432 = vmatprep.subr.bf16.mxu0 %v2401
    %2433 = vmatpush1.bf16.msra.mxu0 %v2400
    %2434 = vmatprep.subr.bf16.mxu0 %v2403
    %2435 = vmatpush1.bf16.msra.mxu0 %v2402
    %2436 = vmatprep.subr.bf16.mxu0 %v2405
    %2437 = vmatpush1.bf16.msra.mxu0 %v2404
    %2438 = vmatprep.subr.bf16.mxu0 %v2407
    %2439 = vmatpush1.bf16.msra.mxu0 %v2406
    %2440 = vmatprep.subr.bf16.mxu0 %v2409
    %2441 = vmatpush1.bf16.msra.mxu0 %v2408
    %2442 = vmatprep.subr.bf16.mxu0 %v2411
    %2443 = vmatpush1.bf16.msra.mxu0 %v2410
    %2444 = vmatprep.subr.bf16.mxu0 0
    %2445 = vmatpush1.bf16.msra.mxu0 0
    %2446 = vmatprep.subr.bf16.mxu0 0
    %2447 = vmatpush1.bf16.msra.mxu0 0
    %2448 = vmatprep.subr.bf16.mxu0 0
    %2449 = vmatpush1.bf16.msra.mxu0 0
    %2450 = vmatprep.subr.bf16.mxu0 0
    %2451 = vmatpush1.bf16.msra.mxu0 0
    %2452 = vmatprep.subr.bf16.mxu0 0
    %2453 = vmatpush1.bf16.msra.mxu0 0
    %2454 = vmatprep.subr.bf16.mxu0 0
    %2455 = vmatpush1.bf16.msra.mxu0 0
    %2456 = vmatprep.subr.bf16.mxu0 0
    %2457 = vmatpush1.bf16.msra.mxu0 0
    %2458 = vmatprep.subr.bf16.mxu0 0
    %2459 = vmatpush1.bf16.msra.mxu0 0
    %2460 = vmatprep.mubr.bf16.mxu0 0
    %2461 = vmatmul.mubr.bf16.gmra.mrb[0].mxu0 %v2316
    %v2462 = vpop.f32.mrb[0].mxu0
    %v2463 = vadd.f32 %v2341, %v2462
    %v2464 = vpop.f32.mrb[0].mxu0
    %v2465 = vadd.f32 %v2345, %v2464
    %v2466 = vpop.f32.mrb[0].mxu0
    %v2467 = vadd.f32 %v2341, %v2466
    %v2468 = vpop.f32.mrb[0].mxu0
    %v2469 = vadd.f32 %v2345, %v2468
    %2470 = vmatprep.mubr.bf16.mxu0 0
    %2471 = vmatmul.mubr.bf16.gmra.mrb[0].mxu0 %v2317
    %v2472 = vpop.f32.mrb[0].mxu0
    %v2473 = vadd.f32 %v2341, %v2472
    %v2474 = vpop.f32.mrb[0].mxu0
    %v2475 = vadd.f32 %v2345, %v2474
    %v2476 = vpop.f32.mrb[0].mxu0
    %v2477 = vadd.f32 %v2341, %v2476
    %v2478 = vpop.f32.mrb[0].mxu0
    %v2479 = vadd.f32 %v2345, %v2478
    %2480 = vmatprep.mubr.bf16.mxu0 0
    %2481 = vmatmul.mubr.bf16.gmra.mrb[0].mxu0 %v2318
    %v2482 = vpop.f32.mrb[0].mxu0
    %v2483 = vadd.f32 %v2341, %v2482
    %v2484 = vpop.f32.mrb[0].mxu0
    %v2485 = vadd.f32 %v2345, %v2484
    %v2486 = vpop.f32.mrb[0].mxu0
    %v2487 = vadd.f32 %v2341, %v2486
    %v2488 = vpop.f32.mrb[0].mxu0
    %v2489 = vadd.f32 %v2345, %v2488
    %2490 = vmatprep.mubr.bf16.mxu0 0
    %2491 = vmatmul.mubr.bf16.gmra.mrb[0].mxu0 %v2319
    %v2492 = vpop.f32.mrb[0].mxu0
    %v2493 = vadd.f32 %v2341, %v2492
    %v2494 = vpop.f32.mrb[0].mxu0
    %v2495 = vadd.f32 %v2345, %v2494
    %v2496 = vpop.f32.mrb[0].mxu0
    %v2497 = vadd.f32 %v2341, %v2496
    %v2498 = vpop.f32.mrb[0].mxu0
    %v2499 = vadd.f32 %v2345, %v2498
    %2500 = vdwg.mxu0
    %v2501 = vmax.f32 %v2463, 0.0
    %v2502 = vmax.f32 %v2465, 0.0
    %v2503 = vmax.f32 %v2467, 0.0
    %v2504 = vmax.f32 %v2469, 0.0
    %v2505 = vmax.f32 %v2473, 0.0
    %v2506 = vmax.f32 %v2475, 0.0
    %v2507 = vmax.f32 %v2477, 0.0
    %v2508 = vmax.f32 %v2479, 0.0
    %v2509 = vmax.f32 %v2483, 0.0
    %v2510 = vmax.f32 %v2485, 0.0
    %v2511 = vmax.f32 %v2487, 0.0
    %v2512 = vmax.f32 %v2489, 0.0
    %v2513 = vmax.f32 %v2493, 0.0
    %v2514 = vmax.f32 %v2495, 0.0
    %v2515 = vmax.f32 %v2497, 0.0
    %v2516 = vmax.f32 %v2499, 0.0
    %v2517 = vpack.c.bf16 %v2503, %v2501
    %v2518 = vpack.c.bf16 %v2504, %v2502
    %v2519 = vpack.c.bf16 %v2507, %v2505
    %v2520 = vpack.c.bf16 %v2508, %v2506
    %v2521 = vpack.c.bf16 %v2511, %v2509
    %v2522 = vpack.c.bf16 %v2512, %v2510
    %v2523 = vpack.c.bf16 %v2515, %v2513
    %v2524 = vpack.c.bf16 %v2516, %v2514
    %v2525 = vld [vmem:[%s17] sm:$0xf]
    %v2526 = vld [vmem:[%s17 + $0x4] sm:$0xf]
    %v2527 = vld [vmem:[%s17 + $0x8] sm:$0xf]
    %v2528 = vld [vmem:[%s17 + $0xc] sm:$0xf]
    %v2529 = vld [vmem:[%s17 + $0x10] sm:$0xf]
    %v2530 = vld [vmem:[%s17 + $0x14] sm:$0xf]
    %v2531 = vld [vmem:[%s17 + $0x18] sm:$0xf]
    %v2532 = vld [vmem:[%s17 + $0x1c] sm:$0xf]
    %v2533 = vld [vmem:[%s17 + $0x20] sm:$0xf]
    %v2534 = vld [vmem:[%s17 + $0x24] sm:$0xf]
    %v2535 = vld [vmem:[%s17 + $0x28] sm:$0xf]
    %v2536 = vld [vmem:[%s17 + $0x2c] sm:$0xf]
    %v2537 = vld [vmem:[%s17 + $0x30] sm:$0xf]
    %v2538 = vld [vmem:[%s17 + $0x34] sm:$0xf]
    %v2539 = vld [vmem:[%s17 + $0x38] sm:$0xf]
    %v2540 = vld [vmem:[%s17 + $0x3c] sm:$0xf]
    %v2541 = vld [vmem:[%s17 + $0x40] sm:$0xf]
    %v2542 = vld [vmem:[%s17 + $0x44] sm:$0xf]
    %v2543 = vld [vmem:[%s17 + $0x48] sm:$0xf]
    %v2544 = vld [vmem:[%s17 + $0x4c] sm:$0xf]
    %v2545 = vld [vmem:[%s17 + $0x50] sm:$0xf]
    %v2546 = vld [vmem:[%s17 + $0x54] sm:$0xf]
    %v2547 = vld [vmem:[%s17 + $0x58] sm:$0xf]
    %v2548 = vld [vmem:[%s17 + $0x5c] sm:$0xf]
    %v2549 = vld [vmem:[%s17 + $0x60] sm:$0xf]
    %v2550 = vld [vmem:[%s17 + $0x64] sm:$0xf]
    %v2551 = vld [vmem:[%s17 + $0x68] sm:$0xf]
    %v2552 = vld [vmem:[%s17 + $0x6c] sm:$0xf]
    %v2553 = vld [vmem:[%s17 + $0x70] sm:$0xf]
    %v2554 = vld [vmem:[%s17 + $0x74] sm:$0xf]
    %v2555 = vld [vmem:[%s17 + $0x78] sm:$0xf]
    %v2556 = vld [vmem:[%s17 + $0x7c] sm:$0xf]
    %v2557 = vld [vmem:[%s18] sm:$0x1]
    %v2559 = vlaneseq
    %v2560 = vshrl.u32 %v2559, 7
    %v2561 = vsub.s32 0, %v2560
    %v2562 = vrot.slane %v2557, %v2561
    %v2596 = vunpack.c.l.b16 %v2525
    %v2597 = vunpack.c.l.b16 %v2526
    %v2598 = vunpack.c.l.b16 %v2527
    %v2599 = vunpack.c.l.b16 %v2528
    %v2600 = vunpack.c.l.b16 %v2529
    %v2601 = vunpack.c.l.b16 %v2530
    %v2602 = vunpack.c.l.b16 %v2531
    %v2603 = vunpack.c.l.b16 %v2532
    %v2604 = vunpack.c.l.b16 %v2533
    %v2605 = vunpack.c.l.b16 %v2534
    %v2606 = vunpack.c.l.b16 %v2535
    %v2607 = vunpack.c.l.b16 %v2536
    %v2608 = vunpack.c.l.b16 %v2537
    %v2609 = vunpack.c.l.b16 %v2538
    %v2610 = vunpack.c.l.b16 %v2539
    %v2611 = vunpack.c.l.b16 %v2540
    %v2612 = vunpack.c.l.b16 %v2541
    %v2613 = vunpack.c.l.b16 %v2542
    %v2614 = vunpack.c.l.b16 %v2543
    %v2615 = vunpack.c.l.b16 %v2544
    %v2616 = vunpack.c.l.b16 %v2545
    %v2617 = vunpack.c.l.b16 %v2546
    %v2618 = vunpack.c.l.b16 %v2547
    %v2619 = vunpack.c.l.b16 %v2548
    %v2620 = vunpack.c.l.b16 %v2549
    %v2621 = vunpack.c.l.b16 %v2550
    %v2622 = vunpack.c.l.b16 %v2551
    %v2623 = vunpack.c.l.b16 %v2552
    %v2624 = vunpack.c.l.b16 %v2553
    %v2625 = vunpack.c.l.b16 %v2554
    %v2626 = vunpack.c.l.b16 %v2555
    %v2627 = vunpack.c.l.b16 %v2556
    %v2628 = vpack.c.b16 %v2597, %v2596
    %v2629 = vpack.c.b16 %v2599, %v2598
    %v2630 = vpack.c.b16 %v2601, %v2600
    %v2631 = vpack.c.b16 %v2603, %v2602
    %v2632 = vpack.c.b16 %v2605, %v2604
    %v2633 = vpack.c.b16 %v2607, %v2606
    %v2634 = vpack.c.b16 %v2609, %v2608
    %v2635 = vpack.c.b16 %v2611, %v2610
    %v2636 = vpack.c.b16 %v2613, %v2612
    %v2637 = vpack.c.b16 %v2615, %v2614
    %v2638 = vpack.c.b16 %v2617, %v2616
    %v2639 = vpack.c.b16 %v2619, %v2618
    %v2640 = vpack.c.b16 %v2621, %v2620
    %v2641 = vpack.c.b16 %v2623, %v2622
    %v2642 = vpack.c.b16 %v2625, %v2624
    %v2643 = vpack.c.b16 %v2627, %v2626
    %2660 = vmatprep.subr.bf16.mxu0 0
    %2661 = vmatpush1.bf16.msra.mxu0 %v2628
    %2662 = vmatprep.subr.bf16.mxu0 0
    %2663 = vmatpush1.bf16.msra.mxu0 %v2629
    %2664 = vmatprep.subr.bf16.mxu0 0
    %2665 = vmatpush1.bf16.msra.mxu0 %v2630
    %2666 = vmatprep.subr.bf16.mxu0 0
    %2667 = vmatpush1.bf16.msra.mxu0 %v2631
    %2668 = vmatprep.subr.bf16.mxu0 0
    %2669 = vmatpush1.bf16.msra.mxu0 %v2632
    %2670 = vmatprep.subr.bf16.mxu0 0
    %2671 = vmatpush1.bf16.msra.mxu0 %v2633
    %2672 = vmatprep.subr.bf16.mxu0 0
    %2673 = vmatpush1.bf16.msra.mxu0 %v2634
    %2674 = vmatprep.subr.bf16.mxu0 0
    %2675 = vmatpush1.bf16.msra.mxu0 %v2635
    %2676 = vmatprep.subr.bf16.mxu0 0
    %2677 = vmatpush1.bf16.msra.mxu0 %v2636
    %2678 = vmatprep.subr.bf16.mxu0 0
    %2679 = vmatpush1.bf16.msra.mxu0 %v2637
    %2680 = vmatprep.subr.bf16.mxu0 0
    %2681 = vmatpush1.bf16.msra.mxu0 %v2638
    %2682 = vmatprep.subr.bf16.mxu0 0
    %2683 = vmatpush1.bf16.msra.mxu0 %v2639
    %2684 = vmatprep.subr.bf16.mxu0 0
    %2685 = vmatpush1.bf16.msra.mxu0 %v2640
    %2686 = vmatprep.subr.bf16.mxu0 0
    %2687 = vmatpush1.bf16.msra.mxu0 %v2641
    %2688 = vmatprep.subr.bf16.mxu0 0
    %2689 = vmatpush1.bf16.msra.mxu0 %v2642
    %2690 = vmatprep.subr.bf16.mxu0 0
    %2691 = vmatpush1.bf16.msra.mxu0 %v2643
    %2692 = vmatprep.mubr.bf16.mxu0 %v2518
    %2693 = vmatmul.mubr.bf16.gmra.mrb[0].mxu0 %v2517
    %v2694 = vpop.f32.mrb[0].mxu0
    %v2695 = vadd.f32 %v2562, %v2694
    %v2696 = vpop.f32.mrb[0].mxu0
    %v2697 = vpop.f32.mrb[0].mxu0
    %v2698 = vadd.f32 %v2562, %v2697
    %v2699 = vpop.f32.mrb[0].mxu0
    %2700 = vmatprep.mubr.bf16.mxu0 %v2520
    %2701 = vmatmul.mubr.bf16.gmra.mrb[0].mxu0 %v2519
    %v2702 = vpop.f32.mrb[0].mxu0
    %v2703 = vadd.f32 %v2562, %v2702
    %v2704 = vpop.f32.mrb[0].mxu0
    %v2705 = vpop.f32.mrb[0].mxu0
    %v2706 = vadd.f32 %v2562, %v2705
    %v2707 = vpop.f32.mrb[0].mxu0
    %2708 = vmatprep.mubr.bf16.mxu0 %v2522
    %2709 = vmatmul.mubr.bf16.gmra.mrb[0].mxu0 %v2521
    %v2710 = vpop.f32.mrb[0].mxu0
    %v2711 = vadd.f32 %v2562, %v2710
    %v2712 = vpop.f32.mrb[0].mxu0
    %v2713 = vpop.f32.mrb[0].mxu0
    %v2714 = vadd.f32 %v2562, %v2713
    %v2715 = vpop.f32.mrb[0].mxu0
    %2716 = vmatprep.mubr.bf16.mxu0 %v2524
    %2717 = vmatmul.mubr.bf16.gmra.mrb[0].mxu0 %v2523
    %v2718 = vpop.f32.mrb[0].mxu0
    %v2719 = vadd.f32 %v2562, %v2718
    %v2720 = vpop.f32.mrb[0].mxu0
    %v2721 = vpop.f32.mrb[0].mxu0
    %v2722 = vadd.f32 %v2562, %v2721
    %v2723 = vpop.f32.mrb[0].mxu0
    %2724 = vdwg.mxu0
    %v2725 = vadd.f32 %v2308, %v2695
    %v2726 = vadd.f32 %v2309, %v2698
    %v2727 = vadd.f32 %v2310, %v2703
    %v2728 = vadd.f32 %v2311, %v2706
    %v2729 = vadd.f32 %v2312, %v2711
    %v2730 = vadd.f32 %v2313, %v2714
    %v2731 = vadd.f32 %v2314, %v2719
    %v2732 = vadd.f32 %v2315, %v2722
    %v2733 = vld [vmem:[%s19] sm:$0x1]
    %v2734 = vld [vmem:[%s20] sm:$0x1]
    %2735 = vadd.xlane.f32.xlu0 %v2725
    %v2736 = vpop.xlane.xlu0 %2735
    %2737 = vadd.xlane.f32.xlu0 %v2726
    %v2738 = vpop.xlane.xlu0 %2737
    %2739 = vadd.xlane.f32.xlu0 %v2727
    %v2740 = vpop.xlane.xlu0 %2739
    %2741 = vadd.xlane.f32.xlu0 %v2728
    %v2742 = vpop.xlane.xlu0 %2741
    %2743 = vadd.xlane.f32.xlu0 %v2729
    %v2744 = vpop.xlane.xlu0 %2743
    %2745 = vadd.xlane.f32.xlu0 %v2730
    %v2746 = vpop.xlane.xlu0 %2745
    %2747 = vadd.xlane.f32.xlu0 %v2731
    %v2748 = vpop.xlane.xlu0 %2747
    %2749 = vadd.xlane.f32.xlu0 %v2732
    %v2750 = vpop.xlane.xlu0 %2749
    %v2751 = vmul.f32 %v2736, %v2215
    %v2752 = vmul.f32 %v2738, %v2215
    %v2753 = vmul.f32 %v2740, %v2215
    %v2754 = vmul.f32 %v2742, %v2215
    %v2755 = vmul.f32 %v2744, %v2215
    %v2756 = vmul.f32 %v2746, %v2215
    %v2757 = vmul.f32 %v2748, %v2215
    %v2758 = vmul.f32 %v2750, %v2215
    %v2759 = vsub.f32 %v2725, %v2751
    %v2760 = vsub.f32 %v2726, %v2752
    %v2761 = vsub.f32 %v2727, %v2753
    %v2762 = vsub.f32 %v2728, %v2754
    %v2763 = vsub.f32 %v2729, %v2755
    %v2764 = vsub.f32 %v2730, %v2756
    %v2765 = vsub.f32 %v2731, %v2757
    %v2766 = vsub.f32 %v2732, %v2758
    %v2767 = vmul.f32 %v2759, %v2759
    %v2768 = vmul.f32 %v2760, %v2760
    %v2769 = vmul.f32 %v2761, %v2761
    %v2770 = vmul.f32 %v2762, %v2762
    %v2771 = vmul.f32 %v2763, %v2763
    %v2772 = vmul.f32 %v2764, %v2764
    %v2773 = vmul.f32 %v2765, %v2765
    %v2774 = vmul.f32 %v2766, %v2766
    %2775 = vadd.xlane.f32.xlu0 %v2767
    %v2776 = vpop.xlane.xlu0 %2775
    %2777 = vadd.xlane.f32.xlu0 %v2768
    %v2778 = vpop.xlane.xlu0 %2777
    %2779 = vadd.xlane.f32.xlu0 %v2769
    %v2780 = vpop.xlane.xlu0 %2779
    %2781 = vadd.xlane.f32.xlu0 %v2770
    %v2782 = vpop.xlane.xlu0 %2781
    %2783 = vadd.xlane.f32.xlu0 %v2771
    %v2784 = vpop.xlane.xlu0 %2783
    %2785 = vadd.xlane.f32.xlu0 %v2772
    %v2786 = vpop.xlane.xlu0 %2785
    %2787 = vadd.xlane.f32.xlu0 %v2773
    %v2788 = vpop.xlane.xlu0 %2787
    %2789 = vadd.xlane.f32.xlu0 %v2774
    %v2790 = vpop.xlane.xlu0 %2789
    %v2791 = vmul.f32 %v2776, %v2215
    %v2792 = vmul.f32 %v2778, %v2215
    %v2793 = vmul.f32 %v2780, %v2215
    %v2794 = vmul.f32 %v2782, %v2215
    %v2795 = vmul.f32 %v2784, %v2215
    %v2796 = vmul.f32 %v2786, %v2215
    %v2797 = vmul.f32 %v2788, %v2215
    %v2798 = vmul.f32 %v2790, %v2215
    %v2799 = vadd.f32 %v2791, 1e-05
    %v2800 = vadd.f32 %v2792, 1e-05
    %v2801 = vadd.f32 %v2793, 1e-05
    %v2802 = vadd.f32 %v2794, 1e-05
    %v2803 = vadd.f32 %v2795, 1e-05
    %v2804 = vadd.f32 %v2796, 1e-05
    %v2805 = vadd.f32 %v2797, 1e-05
    %v2806 = vadd.f32 %v2798, 1e-05
    %v2807 = vrsqrt.pop %v2799
    %v2808 = vrsqrt.pop %v2800
    %v2809 = vrsqrt.pop %v2801
    %v2810 = vrsqrt.pop %v2802
    %v2811 = vrsqrt.pop %v2803
    %v2812 = vrsqrt.pop %v2804
    %v2813 = vrsqrt.pop %v2805
    %v2814 = vrsqrt.pop %v2806
    %v2815 = vmul.f32 %v2759, %v2807
    %v2816 = vmul.f32 %v2760, %v2808
    %v2817 = vmul.f32 %v2761, %v2809
    %v2818 = vmul.f32 %v2762, %v2810
    %v2819 = vmul.f32 %v2763, %v2811
    %v2820 = vmul.f32 %v2764, %v2812
    %v2821 = vmul.f32 %v2765, %v2813
    %v2822 = vmul.f32 %v2766, %v2814
    %v2824 = vlaneseq
    %v2825 = vshrl.u32 %v2824, 7
    %v2826 = vsub.s32 0, %v2825
    %v2827 = vrot.slane %v2733, %v2826
    %v2829 = vmul.f32 %v2815, %v2827
    %v2830 = vmul.f32 %v2816, %v2827
    %v2831 = vmul.f32 %v2817, %v2827
    %v2832 = vmul.f32 %v2818, %v2827
    %v2833 = vmul.f32 %v2819, %v2827
    %v2834 = vmul.f32 %v2820, %v2827
    %v2835 = vmul.f32 %v2821, %v2827
    %v2836 = vmul.f32 %v2822, %v2827
    %v2838 = vlaneseq
    %v2839 = vshrl.u32 %v2838, 7
    %v2840 = vsub.s32 0, %v2839
    %v2841 = vrot.slane %v2734, %v2840
    %v2843 = vadd.f32 %v2829, %v2841
    %v2844 = vadd.f32 %v2830, %v2841
    %v2845 = vadd.f32 %v2831, %v2841
    %v2846 = vadd.f32 %v2832, %v2841
    %v2847 = vadd.f32 %v2833, %v2841
    %v2848 = vadd.f32 %v2834, %v2841
    %v2849 = vadd.f32 %v2835, %v2841
    %v2850 = vadd.f32 %v2836, %v2841
    %v2851 = vld [vmem:[%s2] sm:$0xff]
    %v2852 = vld [vmem:[%s3] sm:$0xff]
    %v2853 = vmul.f32 %v2852, 0.125
    %v2855 = vsel %vm618, %v2853, 0
    %2857 = vmatprep.subr.mxu0 0.0
    %2858 = vmatpush1.msra.mxu0 %v2843
    %2859 = vmatprep.subr.mxu0 0.0
    %2860 = vmatpush1.msra.mxu0 %v2844
    %2861 = vmatprep.subr.mxu0 0.0
    %2862 = vmatpush1.msra.mxu0 %v2845
    %2863 = vmatprep.subr.mxu0 0.0
    %2864 = vmatpush1.msra.mxu0 %v2846
    %2865 = vmatprep.subr.mxu0 0.0
    %2866 = vmatpush1.msra.mxu0 %v2847
    %2867 = vmatprep.subr.mxu0 0.0
    %2868 = vmatpush1.msra.mxu0 %v2848
    %2869 = vmatprep.subr.mxu0 0.0
    %2870 = vmatpush1.msra.mxu0 %v2849
    %2871 = vmatprep.subr.mxu0 0.0
    %2872 = vmatpush1.msra.mxu0 %v2850
    %2873 = vmatprep.subr.mxu0 0.0
    %2874 = vmatpush1.msra.mxu0 0.0
    %2875 = vmatprep.subr.mxu0 0.0
    %2876 = vmatpush1.msra.mxu0 0.0
    %2877 = vmatprep.subr.mxu0 0.0
    %2878 = vmatpush1.msra.mxu0 0.0
    %2879 = vmatprep.subr.mxu0 0.0
    %2880 = vmatpush1.msra.mxu0 0.0
    %2881 = vmatprep.subr.mxu0 0.0
    %2882 = vmatpush1.msra.mxu0 0.0
    %2883 = vmatprep.subr.mxu0 0.0
    %2884 = vmatpush1.msra.mxu0 0.0
    %2885 = vmatprep.subr.mxu0 0.0
    %2886 = vmatpush1.msra.mxu0 0.0
    %2887 = vmatprep.subr.mxu0 0.0
    %2888 = vmatpush1.msra.mxu0 0.0
    %2889 = vmatprep.subr.mxu0 0.0
    %2890 = vmatpush1.msra.mxu0 0.0
    %2891 = vmatprep.subr.mxu0 0.0
    %2892 = vmatpush1.msra.mxu0 0.0
    %2893 = vmatprep.subr.mxu0 0.0
    %2894 = vmatpush1.msra.mxu0 0.0
    %2895 = vmatprep.subr.mxu0 0.0
    %2896 = vmatpush1.msra.mxu0 0.0
    %2897 = vmatprep.subr.mxu0 0.0
    %2898 = vmatpush1.msra.mxu0 0.0
    %2899 = vmatprep.subr.mxu0 0.0
    %2900 = vmatpush1.msra.mxu0 0.0
    %2901 = vmatprep.subr.mxu0 0.0
    %2902 = vmatpush1.msra.mxu0 0.0
    %2903 = vmatprep.subr.mxu0 0.0
    %2904 = vmatpush1.msra.mxu0 0.0
    %2905 = vmatprep.subr.mxu0 0.0
    %2906 = vmatpush1.msra.mxu0 0.0
    %2907 = vmatprep.subr.mxu0 0.0
    %2908 = vmatpush1.msra.mxu0 0.0
    %2909 = vmatprep.subr.mxu0 0.0
    %2910 = vmatpush1.msra.mxu0 0.0
    %2911 = vmatprep.subr.mxu0 0.0
    %2912 = vmatpush1.msra.mxu0 0.0
    %2913 = vmatprep.subr.mxu0 0.0
    %2914 = vmatpush1.msra.mxu0 0.0
    %2915 = vmatprep.subr.mxu0 0.0
    %2916 = vmatpush1.msra.mxu0 0.0
    %2917 = vmatprep.subr.mxu0 0.0
    %2918 = vmatpush1.msra.mxu0 0.0
    %2919 = vmatprep.subr.mxu0 0.0
    %2920 = vmatpush1.msra.mxu0 0.0
    %2921 = vmatprep.mubr.f32.mxu0 0.0
    %2922 = vmatmul.mubr.f32.gmra.mrb[0].mxu0 %v2855
    %v2923 = vpop.f32.mrb[0].mxu0
    %v2924 = vadd.f32 0.0, %v2923
    %v2925 = vpop.f32.mrb[0].mxu0
    %2926 = vdwg.mxu0
    %2928 = vset.pattern.permute.xlu0 0
    %2929 = vperm.xlu0 %2928, %v2851
    %v2930 = vpop.permute.xlu0 %2929
    %v2932 = vmul.f32 %v2924, %v2930
    %2933 = vst [vmem:[%s21] sm:$0xff] %v2932
    %v2935 = vsel %vm618, %v2852, 0
    %2937 = vmatprep.subr.mxu0 0.0
    %2938 = vmatpush1.msra.mxu0 %v1968
    %2939 = vmatprep.subr.mxu0 0.0
    %2940 = vmatpush1.msra.mxu0 %v1969
    %2941 = vmatprep.subr.mxu0 0.0
    %2942 = vmatpush1.msra.mxu0 %v1970
    %2943 = vmatprep.subr.mxu0 0.0
    %2944 = vmatpush1.msra.mxu0 %v1971
    %2945 = vmatprep.subr.mxu0 0.0
    %2946 = vmatpush1.msra.mxu0 %v1972
    %2947 = vmatprep.subr.mxu0 0.0
    %2948 = vmatpush1.msra.mxu0 %v1973
    %2949 = vmatprep.subr.mxu0 0.0
    %2950 = vmatpush1.msra.mxu0 %v1974
    %2951 = vmatprep.subr.mxu0 0.0
    %2952 = vmatpush1.msra.mxu0 %v1975
    %2953 = vmatprep.subr.mxu0 0.0
    %2954 = vmatpush1.msra.mxu0 0.0
    %2955 = vmatprep.subr.mxu0 0.0
    %2956 = vmatpush1.msra.mxu0 0.0
    %2957 = vmatprep.subr.mxu0 0.0
    %2958 = vmatpush1.msra.mxu0 0.0
    %2959 = vmatprep.subr.mxu0 0.0
    %2960 = vmatpush1.msra.mxu0 0.0
    %2961 = vmatprep.subr.mxu0 0.0
    %2962 = vmatpush1.msra.mxu0 0.0
    %2963 = vmatprep.subr.mxu0 0.0
    %2964 = vmatpush1.msra.mxu0 0.0
    %2965 = vmatprep.subr.mxu0 0.0
    %2966 = vmatpush1.msra.mxu0 0.0
    %2967 = vmatprep.subr.mxu0 0.0
    %2968 = vmatpush1.msra.mxu0 0.0
    %2969 = vmatprep.subr.mxu0 0.0
    %2970 = vmatpush1.msra.mxu0 0.0
    %2971 = vmatprep.subr.mxu0 0.0
    %2972 = vmatpush1.msra.mxu0 0.0
    %2973 = vmatprep.subr.mxu0 0.0
    %2974 = vmatpush1.msra.mxu0 0.0
    %2975 = vmatprep.subr.mxu0 0.0
    %2976 = vmatpush1.msra.mxu0 0.0
    %2977 = vmatprep.subr.mxu0 0.0
    %2978 = vmatpush1.msra.mxu0 0.0
    %2979 = vmatprep.subr.mxu0 0.0
    %2980 = vmatpush1.msra.mxu0 0.0
    %2981 = vmatprep.subr.mxu0 0.0
    %2982 = vmatpush1.msra.mxu0 0.0
    %2983 = vmatprep.subr.mxu0 0.0
    %2984 = vmatpush1.msra.mxu0 0.0
    %2985 = vmatprep.subr.mxu0 0.0
    %2986 = vmatpush1.msra.mxu0 0.0
    %2987 = vmatprep.subr.mxu0 0.0
    %2988 = vmatpush1.msra.mxu0 0.0
    %2989 = vmatprep.subr.mxu0 0.0
    %2990 = vmatpush1.msra.mxu0 0.0
    %2991 = vmatprep.subr.mxu0 0.0
    %2992 = vmatpush1.msra.mxu0 0.0
    %2993 = vmatprep.subr.mxu0 0.0
    %2994 = vmatpush1.msra.mxu0 0.0
    %2995 = vmatprep.subr.mxu0 0.0
    %2996 = vmatpush1.msra.mxu0 0.0
    %2997 = vmatprep.subr.mxu0 0.0
    %2998 = vmatpush1.msra.mxu0 0.0
    %2999 = vmatprep.subr.mxu0 0.0
    %3000 = vmatpush1.msra.mxu0 0.0
    %3001 = vmatprep.mubr.f32.mxu0 0.0
    %3002 = vmatmul.mubr.f32.gmra.mrb[0].mxu0 %v2935
    %v3003 = vpop.f32.mrb[0].mxu0
    %v3004 = vadd.f32 0.0, %v3003
    %v3005 = vpop.f32.mrb[0].mxu0
    %3006 = vdwg.mxu0
    %v3007 = vmul.f32 %v3004, %v2852
    %v3008 = vld [vmem:[%s4] sm:$0xff]
    %v3009 = vld [vmem:[%s4 + $0x8] sm:$0xff]
    %v3010 = vld [vmem:[%s4 + $0x10] sm:$0xff]
    %v3011 = vld [vmem:[%s4 + $0x18] sm:$0xff]
    %v3012 = vld [vmem:[%s4 + $0x20] sm:$0xff]
    %v3013 = vld [vmem:[%s4 + $0x28] sm:$0xff]
    %v3014 = vld [vmem:[%s4 + $0x30] sm:$0xff]
    %v3015 = vld [vmem:[%s4 + $0x38] sm:$0xff]
    %v3017 = vsel %vm618, %v3007, 0
    %3019 = vmatprep.subr.mxu0 0.0
    %3020 = vmatpush1.msra.mxu0 %v3008
    %3021 = vmatprep.subr.mxu0 0.0
    %3022 = vmatpush1.msra.mxu0 %v3009
    %3023 = vmatprep.subr.mxu0 0.0
    %3024 = vmatpush1.msra.mxu0 %v3010
    %3025 = vmatprep.subr.mxu0 0.0
    %3026 = vmatpush1.msra.mxu0 %v3011
    %3027 = vmatprep.subr.mxu0 0.0
    %3028 = vmatpush1.msra.mxu0 %v3012
    %3029 = vmatprep.subr.mxu0 0.0
    %3030 = vmatpush1.msra.mxu0 %v3013
    %3031 = vmatprep.subr.mxu0 0.0
    %3032 = vmatpush1.msra.mxu0 %v3014
    %3033 = vmatprep.subr.mxu0 0.0
    %3034 = vmatpush1.msra.mxu0 %v3015
    %3035 = vmatprep.subr.mxu0 0.0
    %3036 = vmatpush1.msra.mxu0 0.0
    %3037 = vmatprep.subr.mxu0 0.0
    %3038 = vmatpush1.msra.mxu0 0.0
    %3039 = vmatprep.subr.mxu0 0.0
    %3040 = vmatpush1.msra.mxu0 0.0
    %3041 = vmatprep.subr.mxu0 0.0
    %3042 = vmatpush1.msra.mxu0 0.0
    %3043 = vmatprep.subr.mxu0 0.0
    %3044 = vmatpush1.msra.mxu0 0.0
    %3045 = vmatprep.subr.mxu0 0.0
    %3046 = vmatpush1.msra.mxu0 0.0
    %3047 = vmatprep.subr.mxu0 0.0
    %3048 = vmatpush1.msra.mxu0 0.0
    %3049 = vmatprep.subr.mxu0 0.0
    %3050 = vmatpush1.msra.mxu0 0.0
    %3051 = vmatprep.subr.mxu0 0.0
    %3052 = vmatpush1.msra.mxu0 0.0
    %3053 = vmatprep.subr.mxu0 0.0
    %3054 = vmatpush1.msra.mxu0 0.0
    %3055 = vmatprep.subr.mxu0 0.0
    %3056 = vmatpush1.msra.mxu0 0.0
    %3057 = vmatprep.subr.mxu0 0.0
    %3058 = vmatpush1.msra.mxu0 0.0
    %3059 = vmatprep.subr.mxu0 0.0
    %3060 = vmatpush1.msra.mxu0 0.0
    %3061 = vmatprep.subr.mxu0 0.0
    %3062 = vmatpush1.msra.mxu0 0.0
    %3063 = vmatprep.subr.mxu0 0.0
    %3064 = vmatpush1.msra.mxu0 0.0
    %3065 = vmatprep.subr.mxu0 0.0
    %3066 = vmatpush1.msra.mxu0 0.0
    %3067 = vmatprep.subr.mxu0 0.0
    %3068 = vmatpush1.msra.mxu0 0.0
    %3069 = vmatprep.subr.mxu0 0.0
    %3070 = vmatpush1.msra.mxu0 0.0
    %3071 = vmatprep.subr.mxu0 0.0
    %3072 = vmatpush1.msra.mxu0 0.0
    %3073 = vmatprep.subr.mxu0 0.0
    %3074 = vmatpush1.msra.mxu0 0.0
    %3075 = vmatprep.subr.mxu0 0.0
    %3076 = vmatpush1.msra.mxu0 0.0
    %3077 = vmatprep.subr.mxu0 0.0
    %3078 = vmatpush1.msra.mxu0 0.0
    %3079 = vmatprep.subr.mxu0 0.0
    %3080 = vmatpush1.msra.mxu0 0.0
    %3081 = vmatprep.subr.mxu0 0.0
    %3082 = vmatpush1.msra.mxu0 0.0
    %3083 = vmatprep.mubr.f32.mxu0 0.0
    %3084 = vmatmul.mubr.f32.gmra.mrb[0].mxu0 %v3017
    %v3085 = vpop.f32.mrb[0].mxu0
    %v3086 = vadd.f32 0.0, %v3085
    %v3087 = vpop.f32.mrb[0].mxu0
    %3088 = vdwg.mxu0
    %vm3089 = vcmask 64512
    %v3090 = vsel %vm3089, %v3086, 0.0
    %3091 = vadd.xlane.f32.xlu0 %v3090
    %v3092 = vpop.xlane.xlu0 %3091
    %v3093 = vrcp.pop %v3092
    %v3094 = vmul.f32 %v3086, %v3093
    %v3095 = vmul.f32 %v3094, %v2930
    %3096 = vst.msk [vmem:[#allocation2] sm:$0xff] %vm3089, %v3095
    // Predicated region
    $region86: #{_encoder_hitanet_forward_jit.2} parent=1 // pred_check
      _
    $region87: #{_encoder_hitanet_forward_jit.2} parent=1 // pred_check_branch
      %3098 = sbr.rel (0) target = $region89
    $region88: #{_encoder_hitanet_forward_jit.2} parent=1 // pred_region
      _
    $region89: #{_encoder_hitanet_forward_jit.2} parent=1 // pred_fallthru
      _
    // Predicated region
    $region90: #{_encoder_hitanet_forward_jit.2} parent=1 // pred_check
      _
    $region91: #{_encoder_hitanet_forward_jit.2} parent=1 // pred_check_branch
      %3100 = sbr.rel (0) target = $region93
    $region92: #{_encoder_hitanet_forward_jit.2} parent=1 // pred_region
      %s3102 = ssub.s32 128, 128
      %3103 = vsyncadd [#allocation3], %s3102
      %s3105 = sshll.u32 [#allocation2], 4
      %s3106 = int_to_ptr.vmem [resolvable:$true] %s3105
      %3108 = dma.vmem_to_hbm [thread:$0]  %s3106, 128, %s22, [#allocation3]
    $region93: #{_encoder_hitanet_forward_jit.2} parent=1 // pred_fallthru
      _
    // Predicated region
    $region94: #{_encoder_hitanet_forward_jit.2} parent=1 // pred_check
      _
    $region95: #{_encoder_hitanet_forward_jit.2} parent=1 // pred_check_branch
      %3110 = sbr.rel (0) target = $region97
    $region96: #{_encoder_hitanet_forward_jit.2} parent=1 // pred_region
      _
    $region97: #{_encoder_hitanet_forward_jit.2} parent=1 // pred_fallthru
      _
    // Predicated region
    $region98: #{_encoder_hitanet_forward_jit.2} parent=1 // pred_check
      _
    $region99: #{_encoder_hitanet_forward_jit.2} parent=1 // pred_check_branch
      %3112 = sbr.rel (0) target = $region101
    $region100: #{_encoder_hitanet_forward_jit.2} parent=1 // pred_region
      %3113 = dma.done [#allocation3], 128
    $region101: #{_encoder_hitanet_forward_jit.2} parent=1 // pred_fallthru
      _
    %3114 = vsyncpa [#allocation3], 1

// kernel: _encoder_hitanet_forward_jit.3
$region0: #{_encoder_hitanet_forward_jit.3}
  #allocation0 [shape = 'u32[]', space=smem, size = 0x4, offset = 0x4, fixed_abs, tag = 'smem constant byte address 0x4 - core index']
  #allocation1 [shape = 'u32[144,128]{1,0:T(1,128)}', space=vmem, size = 0x12000, scoped, tag = 'internal scratch']
  %s0 = inlined_call_operand.vmem [shape: f32[8,128], index: 0, kind: input, shape index: {}]
  %s1 = inlined_call_operand.vmem [shape: f32[8,1], index: 1, kind: input, shape index: {}]
  %s2 = inlined_call_operand.vmem [shape: f32[8,128], index: 2, kind: input, shape index: {}]
  %s3 = inlined_call_operand.vmem [shape: f32[8,16], index: 3, kind: input, shape index: {}]
  %s4 = inlined_call_operand.vmem [shape: f32[1,128], index: 4, kind: input, shape index: {}]
  %s5 = inlined_call_operand.vmem [shape: f32[1,64], index: 5, kind: input, shape index: {}]
  %s6 = inlined_call_operand.vmem [shape: f32[1,64], index: 6, kind: input, shape index: {}]
  %s7 = inlined_call_operand.vmem [shape: bf16[64,128], index: 7, kind: input, shape index: {}]
  %s8 = inlined_call_operand.vmem [shape: f32[1,128], index: 8, kind: input, shape index: {}]
  %s9 = inlined_call_operand.vmem [shape: bf16[128,128], index: 9, kind: input, shape index: {}]
  %s10 = inlined_call_operand.vmem [shape: f32[1,128], index: 10, kind: input, shape index: {}]
  %s11 = inlined_call_operand.vmem [shape: bf16[128,128], index: 11, kind: input, shape index: {}]
  %s12 = inlined_call_operand.vmem [shape: f32[1,128], index: 12, kind: input, shape index: {}]
  %s13 = inlined_call_operand.vmem [shape: bf16[128,128], index: 13, kind: input, shape index: {}]
  %s14 = inlined_call_operand.vmem [shape: f32[1,128], index: 14, kind: input, shape index: {}]
  %s15 = inlined_call_operand.vmem [shape: bf16[128,128], index: 15, kind: input, shape index: {}]
  %s16 = inlined_call_operand.vmem [shape: f32[1,128], index: 16, kind: input, shape index: {}]
  %s17 = inlined_call_operand.vmem [shape: f32[1,128], index: 17, kind: input, shape index: {}]
  %s18 = inlined_call_operand.vmem [shape: f32[1,128], index: 18, kind: input, shape index: {}]
  %s19 = inlined_call_operand.vmem [shape: bf16[128,1024], index: 19, kind: input, shape index: {}]
  %s20 = inlined_call_operand.vmem [shape: f32[1,1024], index: 20, kind: input, shape index: {}]
  %s21 = inlined_call_operand.vmem [shape: bf16[1024,128], index: 21, kind: input, shape index: {}]
  %s22 = inlined_call_operand.vmem [shape: f32[1,128], index: 22, kind: input, shape index: {}]
  %s23 = inlined_call_operand.vmem [shape: f32[1,128], index: 23, kind: input, shape index: {}]
  %s24 = inlined_call_operand.vmem [shape: f32[1,128], index: 24, kind: input, shape index: {}]
  %s25 = inlined_call_operand.hbm [shape: f32[8,128], index: 25, kind: output, shape index: {0}]
  %s26 = inlined_call_operand.vmem [shape: f32[8,4], index: 26, kind: output, shape index: {1}]
  %27 = xla_tuple %s25, %s26
  %s28 = sld [smem:[#allocation0]]
  $region118: #{_encoder_hitanet_forward_jit.3} parent=0
    _
  %s30 = ssub.s32 1, %s28
  %s31 = scalar_select 0, %s30, %s28
  $region1: #{_encoder_hitanet_forward_jit.3} parent=0
    #allocation2 [shape = 'u8[4096]{0}', space=vmem, size = 0x1000, scoped, tag = 'output window, operand 0, single buffered']
    #allocation3 [shape = 's32[1]{0}', space=sflag, size = 0x4, scoped, tag = 'scoped memory for _encoder_hitanet_forward_jit.3']
    %32 = vsyncpa [#allocation3], 0
    // Predicated region
    $region2: #{_encoder_hitanet_forward_jit.3} parent=1 // pred_check
      _
    $region3: #{_encoder_hitanet_forward_jit.3} parent=1 // pred_check_branch
      %34 = sbr.rel (0) target = $region5
    $region4: #{_encoder_hitanet_forward_jit.3} parent=1 // pred_region
      _
    $region5: #{_encoder_hitanet_forward_jit.3} parent=1 // pred_fallthru
      _
    // Predicated region
    $region6: #{_encoder_hitanet_forward_jit.3} parent=1 // pred_check
      _
    $region7: #{_encoder_hitanet_forward_jit.3} parent=1 // pred_check_branch
      %36 = sbr.rel (0) target = $region9
    $region8: #{_encoder_hitanet_forward_jit.3} parent=1 // pred_region
      _
    $region9: #{_encoder_hitanet_forward_jit.3} parent=1 // pred_fallthru
      _
    // Predicated region
    $region10: #{_encoder_hitanet_forward_jit.3} parent=1 // pred_check
      _
    $region11: #{_encoder_hitanet_forward_jit.3} parent=1 // pred_check_branch
      %38 = sbr.rel (0) target = $region13
    $region12: #{_encoder_hitanet_forward_jit.3} parent=1 // pred_region
      _
    $region13: #{_encoder_hitanet_forward_jit.3} parent=1 // pred_fallthru
      _
    // Predicated region
    $region14: #{_encoder_hitanet_forward_jit.3} parent=1 // pred_check
      _
    $region15: #{_encoder_hitanet_forward_jit.3} parent=1 // pred_check_branch
      %40 = sbr.rel (0) target = $region17
    $region16: #{_encoder_hitanet_forward_jit.3} parent=1 // pred_region
      _
    $region17: #{_encoder_hitanet_forward_jit.3} parent=1 // pred_fallthru
      _
    // Predicated region
    $region18: #{_encoder_hitanet_forward_jit.3} parent=1 // pred_check
      _
    $region19: #{_encoder_hitanet_forward_jit.3} parent=1 // pred_check_branch
      %42 = sbr.rel (0) target = $region21
    $region20: #{_encoder_hitanet_forward_jit.3} parent=1 // pred_region
      _
    $region21: #{_encoder_hitanet_forward_jit.3} parent=1 // pred_fallthru
      _
    // Predicated region
    $region22: #{_encoder_hitanet_forward_jit.3} parent=1 // pred_check
      _
    $region23: #{_encoder_hitanet_forward_jit.3} parent=1 // pred_check_branch
      %44 = sbr.rel (0) target = $region25
    $region24: #{_encoder_hitanet_forward_jit.3} parent=1 // pred_region
      _
    $region25: #{_encoder_hitanet_forward_jit.3} parent=1 // pred_fallthru
      _
    // Predicated region
    $region26: #{_encoder_hitanet_forward_jit.3} parent=1 // pred_check
      _
    $region27: #{_encoder_hitanet_forward_jit.3} parent=1 // pred_check_branch
      %46 = sbr.rel (0) target = $region29
    $region28: #{_encoder_hitanet_forward_jit.3} parent=1 // pred_region
      _
    $region29: #{_encoder_hitanet_forward_jit.3} parent=1 // pred_fallthru
      _
    // Predicated region
    $region30: #{_encoder_hitanet_forward_jit.3} parent=1 // pred_check
      _
    $region31: #{_encoder_hitanet_forward_jit.3} parent=1 // pred_check_branch
      %48 = sbr.rel (0) target = $region33
    $region32: #{_encoder_hitanet_forward_jit.3} parent=1 // pred_region
      _
    $region33: #{_encoder_hitanet_forward_jit.3} parent=1 // pred_fallthru
      _
    // Predicated region
    $region34: #{_encoder_hitanet_forward_jit.3} parent=1 // pred_check
      _
    $region35: #{_encoder_hitanet_forward_jit.3} parent=1 // pred_check_branch
      %50 = sbr.rel (0) target = $region37
    $region36: #{_encoder_hitanet_forward_jit.3} parent=1 // pred_region
      _
    $region37: #{_encoder_hitanet_forward_jit.3} parent=1 // pred_fallthru
      _
    // Predicated region
    $region38: #{_encoder_hitanet_forward_jit.3} parent=1 // pred_check
      _
    $region39: #{_encoder_hitanet_forward_jit.3} parent=1 // pred_check_branch
      %52 = sbr.rel (0) target = $region41
    $region40: #{_encoder_hitanet_forward_jit.3} parent=1 // pred_region
      _
    $region41: #{_encoder_hitanet_forward_jit.3} parent=1 // pred_fallthru
      _
    // Predicated region
    $region42: #{_encoder_hitanet_forward_jit.3} parent=1 // pred_check
      _
    $region43: #{_encoder_hitanet_forward_jit.3} parent=1 // pred_check_branch
      %54 = sbr.rel (0) target = $region45
    $region44: #{_encoder_hitanet_forward_jit.3} parent=1 // pred_region
      _
    $region45: #{_encoder_hitanet_forward_jit.3} parent=1 // pred_fallthru
      _
    // Predicated region
    $region46: #{_encoder_hitanet_forward_jit.3} parent=1 // pred_check
      _
    $region47: #{_encoder_hitanet_forward_jit.3} parent=1 // pred_check_branch
      %56 = sbr.rel (0) target = $region49
    $region48: #{_encoder_hitanet_forward_jit.3} parent=1 // pred_region
      _
    $region49: #{_encoder_hitanet_forward_jit.3} parent=1 // pred_fallthru
      _
    // Predicated region
    $region50: #{_encoder_hitanet_forward_jit.3} parent=1 // pred_check
      _
    $region51: #{_encoder_hitanet_forward_jit.3} parent=1 // pred_check_branch
      %58 = sbr.rel (0) target = $region53
    $region52: #{_encoder_hitanet_forward_jit.3} parent=1 // pred_region
      _
    $region53: #{_encoder_hitanet_forward_jit.3} parent=1 // pred_fallthru
      _
    // Predicated region
    $region54: #{_encoder_hitanet_forward_jit.3} parent=1 // pred_check
      _
    $region55: #{_encoder_hitanet_forward_jit.3} parent=1 // pred_check_branch
      %60 = sbr.rel (0) target = $region57
    $region56: #{_encoder_hitanet_forward_jit.3} parent=1 // pred_region
      _
    $region57: #{_encoder_hitanet_forward_jit.3} parent=1 // pred_fallthru
      _
    // Predicated region
    $region58: #{_encoder_hitanet_forward_jit.3} parent=1 // pred_check
      _
    $region59: #{_encoder_hitanet_forward_jit.3} parent=1 // pred_check_branch
      %62 = sbr.rel (0) target = $region61
    $region60: #{_encoder_hitanet_forward_jit.3} parent=1 // pred_region
      _
    $region61: #{_encoder_hitanet_forward_jit.3} parent=1 // pred_fallthru
      _
    // Predicated region
    $region62: #{_encoder_hitanet_forward_jit.3} parent=1 // pred_check
      _
    $region63: #{_encoder_hitanet_forward_jit.3} parent=1 // pred_check_branch
      %64 = sbr.rel (0) target = $region65
    $region64: #{_encoder_hitanet_forward_jit.3} parent=1 // pred_region
      _
    $region65: #{_encoder_hitanet_forward_jit.3} parent=1 // pred_fallthru
      _
    // Predicated region
    $region66: #{_encoder_hitanet_forward_jit.3} parent=1 // pred_check
      _
    $region67: #{_encoder_hitanet_forward_jit.3} parent=1 // pred_check_branch
      %66 = sbr.rel (0) target = $region69
    $region68: #{_encoder_hitanet_forward_jit.3} parent=1 // pred_region
      _
    $region69: #{_encoder_hitanet_forward_jit.3} parent=1 // pred_fallthru
      _
    // Predicated region
    $region70: #{_encoder_hitanet_forward_jit.3} parent=1 // pred_check
      _
    $region71: #{_encoder_hitanet_forward_jit.3} parent=1 // pred_check_branch
      %68 = sbr.rel (0) target = $region73
    $region72: #{_encoder_hitanet_forward_jit.3} parent=1 // pred_region
      _
    $region73: #{_encoder_hitanet_forward_jit.3} parent=1 // pred_fallthru
      _
    // Predicated region
    $region74: #{_encoder_hitanet_forward_jit.3} parent=1 // pred_check
      _
    $region75: #{_encoder_hitanet_forward_jit.3} parent=1 // pred_check_branch
      %70 = sbr.rel (0) target = $region77
    $region76: #{_encoder_hitanet_forward_jit.3} parent=1 // pred_region
      _
    $region77: #{_encoder_hitanet_forward_jit.3} parent=1 // pred_fallthru
      _
    // Predicated region
    $region78: #{_encoder_hitanet_forward_jit.3} parent=1 // pred_check
      _
    $region79: #{_encoder_hitanet_forward_jit.3} parent=1 // pred_check_branch
      %72 = sbr.rel (0) target = $region81
    $region80: #{_encoder_hitanet_forward_jit.3} parent=1 // pred_region
      _
    $region81: #{_encoder_hitanet_forward_jit.3} parent=1 // pred_fallthru
      _
    // Predicated region
    $region82: #{_encoder_hitanet_forward_jit.3} parent=1 // pred_check
      _
    $region83: #{_encoder_hitanet_forward_jit.3} parent=1 // pred_check_branch
      %74 = sbr.rel (0) target = $region85
    $region84: #{_encoder_hitanet_forward_jit.3} parent=1 // pred_region
      _
    $region85: #{_encoder_hitanet_forward_jit.3} parent=1 // pred_fallthru
      _
    // Predicated region
    $region86: #{_encoder_hitanet_forward_jit.3} parent=1 // pred_check
      _
    $region87: #{_encoder_hitanet_forward_jit.3} parent=1 // pred_check_branch
      %76 = sbr.rel (0) target = $region89
    $region88: #{_encoder_hitanet_forward_jit.3} parent=1 // pred_region
      _
    $region89: #{_encoder_hitanet_forward_jit.3} parent=1 // pred_fallthru
      _
    // Predicated region
    $region90: #{_encoder_hitanet_forward_jit.3} parent=1 // pred_check
      _
    $region91: #{_encoder_hitanet_forward_jit.3} parent=1 // pred_check_branch
      %78 = sbr.rel (0) target = $region93
    $region92: #{_encoder_hitanet_forward_jit.3} parent=1 // pred_region
      _
    $region93: #{_encoder_hitanet_forward_jit.3} parent=1 // pred_fallthru
      _
    // Predicated region
    $region94: #{_encoder_hitanet_forward_jit.3} parent=1 // pred_check
      _
    $region95: #{_encoder_hitanet_forward_jit.3} parent=1 // pred_check_branch
      %80 = sbr.rel (0) target = $region97
    $region96: #{_encoder_hitanet_forward_jit.3} parent=1 // pred_region
      _
    $region97: #{_encoder_hitanet_forward_jit.3} parent=1 // pred_fallthru
      _
    // Predicated region
    $region98: #{_encoder_hitanet_forward_jit.3} parent=1 // pred_check
      _
    $region99: #{_encoder_hitanet_forward_jit.3} parent=1 // pred_check_branch
      %82 = sbr.rel (0) target = $region101
    $region100: #{_encoder_hitanet_forward_jit.3} parent=1 // pred_region
      _
    $region101: #{_encoder_hitanet_forward_jit.3} parent=1 // pred_fallthru
      _
    %v84 = vld [vmem:[%s1] sm:$0xff]
    %v85 = vmul.f32 %v84, 0.0055555557
    %v86 = vld [vmem:[%s5] sm:$0x1]
    %88 = vset.pattern.permute.xlu0 0
    %89 = vperm.xlu0 %88, %v85
    %v90 = vpop.permute.xlu0 %89
    %v93 = vlaneseq
    %v94 = vshrl.u32 %v93, 7
    %v95 = vsub.s32 0, %v94
    %v96 = vrot.slane %v86, %v95
    %v98 = vmul.f32 %v90, %v96
    %v99 = vld [vmem:[%s6] sm:$0x1]
    %v101 = vlaneseq
    %v102 = vshrl.u32 %v101, 7
    %v103 = vsub.s32 0, %v102
    %v104 = vrot.slane %v99, %v103
    %v106 = vadd.f32 %v98, %v104
    %v107 = vmul.f32 %v106, %v106
    %v108 = vtanh.pop %v107
    %v109 = vsub.f32 1.0, %v108
    %v110 = vpack.c.bf16 %v109, %v109
    %v111 = vld [vmem:[%s7] sm:$0xf]
    %v112 = vld [vmem:[%s7 + $0x4] sm:$0xf]
    %v113 = vld [vmem:[%s7 + $0x8] sm:$0xf]
    %v114 = vld [vmem:[%s7 + $0xc] sm:$0xf]
    %v115 = vld [vmem:[%s7 + $0x10] sm:$0xf]
    %v116 = vld [vmem:[%s7 + $0x14] sm:$0xf]
    %v117 = vld [vmem:[%s7 + $0x18] sm:$0xf]
    %v118 = vld [vmem:[%s7 + $0x1c] sm:$0xf]
    %v119 = vld [vmem:[%s8] sm:$0x1]
    %v121 = vlaneseq
    %v122 = vshrl.u32 %v121, 7
    %v123 = vsub.s32 0, %v122
    %v124 = vrot.slane %v119, %v123
    %v134 = vunpack.c.l.b16 %v111
    %v135 = vunpack.c.l.b16 %v112
    %v136 = vunpack.c.l.b16 %v113
    %v137 = vunpack.c.l.b16 %v114
    %v138 = vunpack.c.l.b16 %v115
    %v139 = vunpack.c.l.b16 %v116
    %v140 = vunpack.c.l.b16 %v117
    %v141 = vunpack.c.l.b16 %v118
    %v142 = vpack.c.b16 %v135, %v134
    %v143 = vpack.c.b16 %v137, %v136
    %v144 = vpack.c.b16 %v139, %v138
    %v145 = vpack.c.b16 %v141, %v140
    %vm150 = vcmask 523264
    %v152 = vsel %vm150, %v110, 0
    %154 = vmatprep.subr.bf16.mxu0 0
    %155 = vmatpush1.bf16.msra.mxu0 %v142
    %156 = vmatprep.subr.bf16.mxu0 0
    %157 = vmatpush1.bf16.msra.mxu0 %v143
    %158 = vmatprep.subr.bf16.mxu0 0
    %159 = vmatpush1.bf16.msra.mxu0 %v144
    %160 = vmatprep.subr.bf16.mxu0 0
    %161 = vmatpush1.bf16.msra.mxu0 %v145
    %162 = vmatprep.subr.bf16.mxu0 0
    %163 = vmatpush1.bf16.msra.mxu0 0
    %164 = vmatprep.subr.bf16.mxu0 0
    %165 = vmatpush1.bf16.msra.mxu0 0
    %166 = vmatprep.subr.bf16.mxu0 0
    %167 = vmatpush1.bf16.msra.mxu0 0
    %168 = vmatprep.subr.bf16.mxu0 0
    %169 = vmatpush1.bf16.msra.mxu0 0
    %170 = vmatprep.subr.bf16.mxu0 0
    %171 = vmatpush1.bf16.msra.mxu0 0
    %172 = vmatprep.subr.bf16.mxu0 0
    %173 = vmatpush1.bf16.msra.mxu0 0
    %174 = vmatprep.subr.bf16.mxu0 0
    %175 = vmatpush1.bf16.msra.mxu0 0
    %176 = vmatprep.subr.bf16.mxu0 0
    %177 = vmatpush1.bf16.msra.mxu0 0
    %178 = vmatprep.subr.bf16.mxu0 0
    %179 = vmatpush1.bf16.msra.mxu0 0
    %180 = vmatprep.subr.bf16.mxu0 0
    %181 = vmatpush1.bf16.msra.mxu0 0
    %182 = vmatprep.subr.bf16.mxu0 0
    %183 = vmatpush1.bf16.msra.mxu0 0
    %184 = vmatprep.subr.bf16.mxu0 0
    %185 = vmatpush1.bf16.msra.mxu0 0
    %186 = vmatprep.mubr.bf16.mxu0 0
    %187 = vmatmul.mubr.bf16.gmra.mrb[0].mxu0 %v152
    %v188 = vpop.f32.mrb[0].mxu0
    %v189 = vadd.f32 %v124, %v188
    %v190 = vpop.f32.mrb[0].mxu0
    %v191 = vpop.f32.mrb[0].mxu0
    %v192 = vpop.f32.mrb[0].mxu0
    %193 = vdwg.mxu0
    %v194 = vld [vmem:[%s0] sm:$0xff]
    %v195 = vld [vmem:[%s4] sm:$0x1]
    %v197 = vlaneseq
    %v198 = vshrl.u32 %v197, 7
    %v199 = vsub.s32 0, %v198
    %v200 = vrot.slane %v195, %v199
    %v202 = vadd.f32 %v194, %v200
    %v203 = vadd.f32 %v202, %v189
    %v204 = vld [vmem:[%s2] sm:$0xff]
    %v205 = vadd.f32 %v203, %v204
    %v206 = vpack.c.bf16 %v205, %v205
    %v207 = vld [vmem:[%s9] sm:$0xf]
    %v208 = vld [vmem:[%s9 + $0x4] sm:$0xf]
    %v209 = vld [vmem:[%s9 + $0x8] sm:$0xf]
    %v210 = vld [vmem:[%s9 + $0xc] sm:$0xf]
    %v211 = vld [vmem:[%s9 + $0x10] sm:$0xf]
    %v212 = vld [vmem:[%s9 + $0x14] sm:$0xf]
    %v213 = vld [vmem:[%s9 + $0x18] sm:$0xf]
    %v214 = vld [vmem:[%s9 + $0x1c] sm:$0xf]
    %v215 = vld [vmem:[%s9 + $0x20] sm:$0xf]
    %v216 = vld [vmem:[%s9 + $0x24] sm:$0xf]
    %v217 = vld [vmem:[%s9 + $0x28] sm:$0xf]
    %v218 = vld [vmem:[%s9 + $0x2c] sm:$0xf]
    %v219 = vld [vmem:[%s9 + $0x30] sm:$0xf]
    %v220 = vld [vmem:[%s9 + $0x34] sm:$0xf]
    %v221 = vld [vmem:[%s9 + $0x38] sm:$0xf]
    %v222 = vld [vmem:[%s9 + $0x3c] sm:$0xf]
    %v223 = vld [vmem:[%s10] sm:$0x1]
    %v225 = vlaneseq
    %v226 = vshrl.u32 %v225, 7
    %v227 = vsub.s32 0, %v226
    %v228 = vrot.slane %v223, %v227
    %v246 = vunpack.c.l.b16 %v207
    %v247 = vunpack.c.l.b16 %v208
    %v248 = vunpack.c.l.b16 %v209
    %v249 = vunpack.c.l.b16 %v210
    %v250 = vunpack.c.l.b16 %v211
    %v251 = vunpack.c.l.b16 %v212
    %v252 = vunpack.c.l.b16 %v213
    %v253 = vunpack.c.l.b16 %v214
    %v254 = vunpack.c.l.b16 %v215
    %v255 = vunpack.c.l.b16 %v216
    %v256 = vunpack.c.l.b16 %v217
    %v257 = vunpack.c.l.b16 %v218
    %v258 = vunpack.c.l.b16 %v219
    %v259 = vunpack.c.l.b16 %v220
    %v260 = vunpack.c.l.b16 %v221
    %v261 = vunpack.c.l.b16 %v222
    %v262 = vpack.c.b16 %v247, %v246
    %v263 = vpack.c.b16 %v249, %v248
    %v264 = vpack.c.b16 %v251, %v250
    %v265 = vpack.c.b16 %v253, %v252
    %v266 = vpack.c.b16 %v255, %v254
    %v267 = vpack.c.b16 %v257, %v256
    %v268 = vpack.c.b16 %v259, %v258
    %v269 = vpack.c.b16 %v261, %v260
    %278 = vmatprep.subr.bf16.mxu0 0
    %279 = vmatpush1.bf16.msra.mxu0 %v262
    %280 = vmatprep.subr.bf16.mxu0 0
    %281 = vmatpush1.bf16.msra.mxu0 %v263
    %282 = vmatprep.subr.bf16.mxu0 0
    %283 = vmatpush1.bf16.msra.mxu0 %v264
    %284 = vmatprep.subr.bf16.mxu0 0
    %285 = vmatpush1.bf16.msra.mxu0 %v265
    %286 = vmatprep.subr.bf16.mxu0 0
    %287 = vmatpush1.bf16.msra.mxu0 %v266
    %288 = vmatprep.subr.bf16.mxu0 0
    %289 = vmatpush1.bf16.msra.mxu0 %v267
    %290 = vmatprep.subr.bf16.mxu0 0
    %291 = vmatpush1.bf16.msra.mxu0 %v268
    %292 = vmatprep.subr.bf16.mxu0 0
    %293 = vmatpush1.bf16.msra.mxu0 %v269
    %294 = vmatprep.subr.bf16.mxu0 0
    %295 = vmatpush1.bf16.msra.mxu0 0
    %296 = vmatprep.subr.bf16.mxu0 0
    %297 = vmatpush1.bf16.msra.mxu0 0
    %298 = vmatprep.subr.bf16.mxu0 0
    %299 = vmatpush1.bf16.msra.mxu0 0
    %300 = vmatprep.subr.bf16.mxu0 0
    %301 = vmatpush1.bf16.msra.mxu0 0
    %302 = vmatprep.subr.bf16.mxu0 0
    %303 = vmatpush1.bf16.msra.mxu0 0
    %304 = vmatprep.subr.bf16.mxu0 0
    %305 = vmatpush1.bf16.msra.mxu0 0
    %306 = vmatprep.subr.bf16.mxu0 0
    %307 = vmatpush1.bf16.msra.mxu0 0
    %308 = vmatprep.subr.bf16.mxu0 0
    %309 = vmatpush1.bf16.msra.mxu0 0
    %310 = vmatprep.mubr.bf16.mxu0 0
    %311 = vmatmul.mubr.bf16.gmra.mrb[0].mxu0 %v206
    %v312 = vpop.f32.mrb[0].mxu0
    %v313 = vadd.f32 %v228, %v312
    %v314 = vpop.f32.mrb[0].mxu0
    %v315 = vpop.f32.mrb[0].mxu0
    %v316 = vpop.f32.mrb[0].mxu0
    %317 = vdwg.mxu0
    %v318 = vld [vmem:[%s11] sm:$0xf]
    %v319 = vld [vmem:[%s11 + $0x4] sm:$0xf]
    %v320 = vld [vmem:[%s11 + $0x8] sm:$0xf]
    %v321 = vld [vmem:[%s11 + $0xc] sm:$0xf]
    %v322 = vld [vmem:[%s11 + $0x10] sm:$0xf]
    %v323 = vld [vmem:[%s11 + $0x14] sm:$0xf]
    %v324 = vld [vmem:[%s11 + $0x18] sm:$0xf]
    %v325 = vld [vmem:[%s11 + $0x1c] sm:$0xf]
    %v326 = vld [vmem:[%s11 + $0x20] sm:$0xf]
    %v327 = vld [vmem:[%s11 + $0x24] sm:$0xf]
    %v328 = vld [vmem:[%s11 + $0x28] sm:$0xf]
    %v329 = vld [vmem:[%s11 + $0x2c] sm:$0xf]
    %v330 = vld [vmem:[%s11 + $0x30] sm:$0xf]
    %v331 = vld [vmem:[%s11 + $0x34] sm:$0xf]
    %v332 = vld [vmem:[%s11 + $0x38] sm:$0xf]
    %v333 = vld [vmem:[%s11 + $0x3c] sm:$0xf]
    %v334 = vld [vmem:[%s12] sm:$0x1]
    %v336 = vlaneseq
    %v337 = vshrl.u32 %v336, 7
    %v338 = vsub.s32 0, %v337
    %v339 = vrot.slane %v334, %v338
    %v357 = vunpack.c.l.b16 %v318
    %v358 = vunpack.c.l.b16 %v319
    %v359 = vunpack.c.l.b16 %v320
    %v360 = vunpack.c.l.b16 %v321
    %v361 = vunpack.c.l.b16 %v322
    %v362 = vunpack.c.l.b16 %v323
    %v363 = vunpack.c.l.b16 %v324
    %v364 = vunpack.c.l.b16 %v325
    %v365 = vunpack.c.l.b16 %v326
    %v366 = vunpack.c.l.b16 %v327
    %v367 = vunpack.c.l.b16 %v328
    %v368 = vunpack.c.l.b16 %v329
    %v369 = vunpack.c.l.b16 %v330
    %v370 = vunpack.c.l.b16 %v331
    %v371 = vunpack.c.l.b16 %v332
    %v372 = vunpack.c.l.b16 %v333
    %v373 = vpack.c.b16 %v358, %v357
    %v374 = vpack.c.b16 %v360, %v359
    %v375 = vpack.c.b16 %v362, %v361
    %v376 = vpack.c.b16 %v364, %v363
    %v377 = vpack.c.b16 %v366, %v365
    %v378 = vpack.c.b16 %v368, %v367
    %v379 = vpack.c.b16 %v370, %v369
    %v380 = vpack.c.b16 %v372, %v371
    %389 = vmatprep.subr.bf16.mxu0 0
    %390 = vmatpush1.bf16.msra.mxu0 %v373
    %391 = vmatprep.subr.bf16.mxu0 0
    %392 = vmatpush1.bf16.msra.mxu0 %v374
    %393 = vmatprep.subr.bf16.mxu0 0
    %394 = vmatpush1.bf16.msra.mxu0 %v375
    %395 = vmatprep.subr.bf16.mxu0 0
    %396 = vmatpush1.bf16.msra.mxu0 %v376
    %397 = vmatprep.subr.bf16.mxu0 0
    %398 = vmatpush1.bf16.msra.mxu0 %v377
    %399 = vmatprep.subr.bf16.mxu0 0
    %400 = vmatpush1.bf16.msra.mxu0 %v378
    %401 = vmatprep.subr.bf16.mxu0 0
    %402 = vmatpush1.bf16.msra.mxu0 %v379
    %403 = vmatprep.subr.bf16.mxu0 0
    %404 = vmatpush1.bf16.msra.mxu0 %v380
    %405 = vmatprep.subr.bf16.mxu0 0
    %406 = vmatpush1.bf16.msra.mxu0 0
    %407 = vmatprep.subr.bf16.mxu0 0
    %408 = vmatpush1.bf16.msra.mxu0 0
    %409 = vmatprep.subr.bf16.mxu0 0
    %410 = vmatpush1.bf16.msra.mxu0 0
    %411 = vmatprep.subr.bf16.mxu0 0
    %412 = vmatpush1.bf16.msra.mxu0 0
    %413 = vmatprep.subr.bf16.mxu0 0
    %414 = vmatpush1.bf16.msra.mxu0 0
    %415 = vmatprep.subr.bf16.mxu0 0
    %416 = vmatpush1.bf16.msra.mxu0 0
    %417 = vmatprep.subr.bf16.mxu0 0
    %418 = vmatpush1.bf16.msra.mxu0 0
    %419 = vmatprep.subr.bf16.mxu0 0
    %420 = vmatpush1.bf16.msra.mxu0 0
    %421 = vmatprep.mubr.bf16.mxu0 0
    %422 = vmatmul.mubr.bf16.gmra.mrb[0].mxu0 %v206
    %v423 = vpop.f32.mrb[0].mxu0
    %v424 = vadd.f32 %v339, %v423
    %v425 = vpop.f32.mrb[0].mxu0
    %v426 = vpop.f32.mrb[0].mxu0
    %v427 = vpop.f32.mrb[0].mxu0
    %428 = vdwg.mxu0
    %v429 = vld [vmem:[%s13] sm:$0xf]
    %v430 = vld [vmem:[%s13 + $0x4] sm:$0xf]
    %v431 = vld [vmem:[%s13 + $0x8] sm:$0xf]
    %v432 = vld [vmem:[%s13 + $0xc] sm:$0xf]
    %v433 = vld [vmem:[%s13 + $0x10] sm:$0xf]
    %v434 = vld [vmem:[%s13 + $0x14] sm:$0xf]
    %v435 = vld [vmem:[%s13 + $0x18] sm:$0xf]
    %v436 = vld [vmem:[%s13 + $0x1c] sm:$0xf]
    %v437 = vld [vmem:[%s13 + $0x20] sm:$0xf]
    %v438 = vld [vmem:[%s13 + $0x24] sm:$0xf]
    %v439 = vld [vmem:[%s13 + $0x28] sm:$0xf]
    %v440 = vld [vmem:[%s13 + $0x2c] sm:$0xf]
    %v441 = vld [vmem:[%s13 + $0x30] sm:$0xf]
    %v442 = vld [vmem:[%s13 + $0x34] sm:$0xf]
    %v443 = vld [vmem:[%s13 + $0x38] sm:$0xf]
    %v444 = vld [vmem:[%s13 + $0x3c] sm:$0xf]
    %v445 = vld [vmem:[%s14] sm:$0x1]
    %v447 = vlaneseq
    %v448 = vshrl.u32 %v447, 7
    %v449 = vsub.s32 0, %v448
    %v450 = vrot.slane %v445, %v449
    %v468 = vunpack.c.l.b16 %v429
    %v469 = vunpack.c.l.b16 %v430
    %v470 = vunpack.c.l.b16 %v431
    %v471 = vunpack.c.l.b16 %v432
    %v472 = vunpack.c.l.b16 %v433
    %v473 = vunpack.c.l.b16 %v434
    %v474 = vunpack.c.l.b16 %v435
    %v475 = vunpack.c.l.b16 %v436
    %v476 = vunpack.c.l.b16 %v437
    %v477 = vunpack.c.l.b16 %v438
    %v478 = vunpack.c.l.b16 %v439
    %v479 = vunpack.c.l.b16 %v440
    %v480 = vunpack.c.l.b16 %v441
    %v481 = vunpack.c.l.b16 %v442
    %v482 = vunpack.c.l.b16 %v443
    %v483 = vunpack.c.l.b16 %v444
    %v484 = vpack.c.b16 %v469, %v468
    %v485 = vpack.c.b16 %v471, %v470
    %v486 = vpack.c.b16 %v473, %v472
    %v487 = vpack.c.b16 %v475, %v474
    %v488 = vpack.c.b16 %v477, %v476
    %v489 = vpack.c.b16 %v479, %v478
    %v490 = vpack.c.b16 %v481, %v480
    %v491 = vpack.c.b16 %v483, %v482
    %500 = vmatprep.subr.bf16.mxu0 0
    %501 = vmatpush1.bf16.msra.mxu0 %v484
    %502 = vmatprep.subr.bf16.mxu0 0
    %503 = vmatpush1.bf16.msra.mxu0 %v485
    %504 = vmatprep.subr.bf16.mxu0 0
    %505 = vmatpush1.bf16.msra.mxu0 %v486
    %506 = vmatprep.subr.bf16.mxu0 0
    %507 = vmatpush1.bf16.msra.mxu0 %v487
    %508 = vmatprep.subr.bf16.mxu0 0
    %509 = vmatpush1.bf16.msra.mxu0 %v488
    %510 = vmatprep.subr.bf16.mxu0 0
    %511 = vmatpush1.bf16.msra.mxu0 %v489
    %512 = vmatprep.subr.bf16.mxu0 0
    %513 = vmatpush1.bf16.msra.mxu0 %v490
    %514 = vmatprep.subr.bf16.mxu0 0
    %515 = vmatpush1.bf16.msra.mxu0 %v491
    %516 = vmatprep.subr.bf16.mxu0 0
    %517 = vmatpush1.bf16.msra.mxu0 0
    %518 = vmatprep.subr.bf16.mxu0 0
    %519 = vmatpush1.bf16.msra.mxu0 0
    %520 = vmatprep.subr.bf16.mxu0 0
    %521 = vmatpush1.bf16.msra.mxu0 0
    %522 = vmatprep.subr.bf16.mxu0 0
    %523 = vmatpush1.bf16.msra.mxu0 0
    %524 = vmatprep.subr.bf16.mxu0 0
    %525 = vmatpush1.bf16.msra.mxu0 0
    %526 = vmatprep.subr.bf16.mxu0 0
    %527 = vmatpush1.bf16.msra.mxu0 0
    %528 = vmatprep.subr.bf16.mxu0 0
    %529 = vmatpush1.bf16.msra.mxu0 0
    %530 = vmatprep.subr.bf16.mxu0 0
    %531 = vmatpush1.bf16.msra.mxu0 0
    %532 = vmatprep.mubr.bf16.mxu0 0
    %533 = vmatmul.mubr.bf16.gmra.mrb[0].mxu0 %v206
    %v534 = vpop.f32.mrb[0].mxu0
    %v535 = vadd.f32 %v450, %v534
    %v536 = vpop.f32.mrb[0].mxu0
    %v537 = vpop.f32.mrb[0].mxu0
    %v538 = vpop.f32.mrb[0].mxu0
    %539 = vdwg.mxu0
    %v540 = vld [vmem:[%s3] sm:$0xff]
    %v541 = vmul.f32 %v313, %v424
    %vm542 = vcmask 261120
    %v543 = vsel %vm542, %v541, 0.0
    %544 = vadd.xlane.f32.xlu0 %v543
    %v545 = vpop.xlane.xlu0 %544
    %v546 = vmul.f32 %v545, 0.35355338
    %v547 = vadd.f32 %v546, %v540
    %549 = vrot.lane.b32.xlu0 %v424, 96
    %v550 = vpop.permute.xlu0 %549
    %v552 = vmul.f32 %v313, %v550
    %v553 = vsel %vm542, %v552, 0.0
    %554 = vadd.xlane.f32.xlu0 %v553
    %v555 = vpop.xlane.xlu0 %554
    %v556 = vmul.f32 %v555, 0.35355338
    %v557 = vadd.f32 %v556, %v540
    %558 = vrot.lane.b32.xlu0 %v424, 64
    %v559 = vpop.permute.xlu0 %558
    %v561 = vmul.f32 %v313, %v559
    %v562 = vsel %vm542, %v561, 0.0
    %563 = vadd.xlane.f32.xlu0 %v562
    %v564 = vpop.xlane.xlu0 %563
    %v565 = vmul.f32 %v564, 0.35355338
    %v566 = vadd.f32 %v565, %v540
    %567 = vrot.lane.b32.xlu0 %v424, 32
    %v568 = vpop.permute.xlu0 %567
    %v570 = vmul.f32 %v313, %v568
    %v571 = vsel %vm542, %v570, 0.0
    %572 = vadd.xlane.f32.xlu0 %v571
    %v573 = vpop.xlane.xlu0 %572
    %v574 = vmul.f32 %v573, 0.35355338
    %v575 = vadd.f32 %v574, %v540
    %577 = vrot.lane.b32.xlu0 %v557, 127
    %v578 = vpop.permute.xlu0 %577
    %v580 = vmax.f32 %v547, %v578
    %582 = vrot.lane.b32.xlu0 %v566, 126
    %v583 = vpop.permute.xlu0 %582
    %v585 = vmax.f32 %v580, %v583
    %587 = vrot.lane.b32.xlu0 %v575, 125
    %v588 = vpop.permute.xlu0 %587
    %v590 = vmax.f32 %v585, %v588
    %v591 = vsub.f32 %v547, %v590
    %v592 = vmul.f32 %v591, 1.442695
    %v593 = vpow.pop %v592
    %595 = vrot.lane.b32.xlu0 %v590, 1
    %v596 = vpop.permute.xlu0 %595
    %v598 = vsub.f32 %v557, %v596
    %v599 = vmul.f32 %v598, 1.442695
    %v600 = vpow.pop %v599
    %601 = vrot.lane.b32.xlu0 %v590, 2
    %v602 = vpop.permute.xlu0 %601
    %v604 = vsub.f32 %v566, %v602
    %v605 = vmul.f32 %v604, 1.442695
    %v606 = vpow.pop %v605
    %607 = vrot.lane.b32.xlu0 %v590, 3
    %v608 = vpop.permute.xlu0 %607
    %v610 = vsub.f32 %v575, %v608
    %v611 = vmul.f32 %v610, 1.442695
    %v612 = vpow.pop %v611
    %614 = vrot.lane.b32.xlu0 %v600, 127
    %v615 = vpop.permute.xlu0 %614
    %v617 = vadd.f32 %v593, %v615
    %619 = vrot.lane.b32.xlu0 %v606, 126
    %v620 = vpop.permute.xlu0 %619
    %v622 = vadd.f32 %v617, %v620
    %624 = vrot.lane.b32.xlu0 %v612, 125
    %v625 = vpop.permute.xlu0 %624
    %v627 = vadd.f32 %v622, %v625
    %v628 = vrcp.pop %v627
    %v629 = vmul.f32 %v593, %v628
    %v630 = vadd.f32 %v629, 0.0
    %632 = vset.pattern.permute.xlu0 0
    %633 = vperm.xlu0 %632, %v629
    %v634 = vpop.permute.xlu0 %633
    %v636 = vmul.f32 %v634, %v535
    %v637 = vadd.f32 %v636, 0.0
    %639 = vrot.lane.b32.xlu0 %v628, 1
    %v640 = vpop.permute.xlu0 %639
    %v642 = vmul.f32 %v600, %v640
    %v643 = vadd.f32 %v642, 0.0
    %645 = vset.pattern.permute.xlu0 1
    %646 = vperm.xlu0 %645, %v642
    %v647 = vpop.permute.xlu0 %646
    %v649 = vmul.f32 %v647, %v535
    %651 = vrot.lane.b32.xlu0 %v649, 96
    %v652 = vpop.permute.xlu0 %651
    %v654 = vadd.f32 %v637, %v652
    %655 = vrot.lane.b32.xlu0 %v628, 2
    %v656 = vpop.permute.xlu0 %655
    %v658 = vmul.f32 %v606, %v656
    %v659 = vadd.f32 %v658, 0.0
    %661 = vset.pattern.permute.xlu0 2
    %662 = vperm.xlu0 %661, %v658
    %v663 = vpop.permute.xlu0 %662
    %v665 = vmul.f32 %v663, %v535
    %667 = vrot.lane.b32.xlu0 %v665, 64
    %v668 = vpop.permute.xlu0 %667
    %v670 = vadd.f32 %v654, %v668
    %671 = vrot.lane.b32.xlu0 %v628, 3
    %v672 = vpop.permute.xlu0 %671
    %v674 = vmul.f32 %v612, %v672
    %v675 = vadd.f32 %v674, 0.0
    %677 = vset.pattern.permute.xlu0 3
    %678 = vperm.xlu0 %677, %v674
    %v679 = vpop.permute.xlu0 %678
    %v681 = vmul.f32 %v679, %v535
    %683 = vrot.lane.b32.xlu0 %v681, 32
    %v684 = vpop.permute.xlu0 %683
    %v686 = vadd.f32 %v670, %v684
    %v687 = vpack.c.bf16 %v686, %v686
    %v688 = vld [vmem:[%s15] sm:$0xf]
    %v689 = vld [vmem:[%s15 + $0x4] sm:$0xf]
    %v690 = vld [vmem:[%s15 + $0x8] sm:$0xf]
    %v691 = vld [vmem:[%s15 + $0xc] sm:$0xf]
    %693 = vrot.lane.b32.xlu0 %v570, 96
    %v694 = vpop.permute.xlu0 %693
    %v696 = vsel %vm542, %v694, 0.0
    %697 = vadd.xlane.f32.xlu0 %v696
    %v698 = vpop.xlane.xlu0 %697
    %v699 = vmul.f32 %v698, 0.35355338
    %v700 = vadd.f32 %v699, %v540
    %702 = vrot.lane.b32.xlu0 %v541, 96
    %v703 = vpop.permute.xlu0 %702
    %v705 = vsel %vm542, %v703, 0.0
    %706 = vadd.xlane.f32.xlu0 %v705
    %v707 = vpop.xlane.xlu0 %706
    %v708 = vmul.f32 %v707, 0.35355338
    %v709 = vadd.f32 %v708, %v540
    %711 = vrot.lane.b32.xlu0 %v552, 96
    %v712 = vpop.permute.xlu0 %711
    %v714 = vsel %vm542, %v712, 0.0
    %715 = vadd.xlane.f32.xlu0 %v714
    %v716 = vpop.xlane.xlu0 %715
    %v717 = vmul.f32 %v716, 0.35355338
    %v718 = vadd.f32 %v717, %v540
    %720 = vrot.lane.b32.xlu0 %v561, 96
    %v721 = vpop.permute.xlu0 %720
    %v723 = vsel %vm542, %v721, 0.0
    %724 = vadd.xlane.f32.xlu0 %v723
    %v725 = vpop.xlane.xlu0 %724
    %v726 = vmul.f32 %v725, 0.35355338
    %v727 = vadd.f32 %v726, %v540
    %729 = vrot.lane.b32.xlu0 %v709, 127
    %v730 = vpop.permute.xlu0 %729
    %v732 = vmax.f32 %v700, %v730
    %734 = vrot.lane.b32.xlu0 %v718, 126
    %v735 = vpop.permute.xlu0 %734
    %v737 = vmax.f32 %v732, %v735
    %739 = vrot.lane.b32.xlu0 %v727, 125
    %v740 = vpop.permute.xlu0 %739
    %v742 = vmax.f32 %v737, %v740
    %v743 = vsub.f32 %v700, %v742
    %v744 = vmul.f32 %v743, 1.442695
    %v745 = vpow.pop %v744
    %747 = vrot.lane.b32.xlu0 %v742, 1
    %v748 = vpop.permute.xlu0 %747
    %v750 = vsub.f32 %v709, %v748
    %v751 = vmul.f32 %v750, 1.442695
    %v752 = vpow.pop %v751
    %753 = vrot.lane.b32.xlu0 %v742, 2
    %v754 = vpop.permute.xlu0 %753
    %v756 = vsub.f32 %v718, %v754
    %v757 = vmul.f32 %v756, 1.442695
    %v758 = vpow.pop %v757
    %759 = vrot.lane.b32.xlu0 %v742, 3
    %v760 = vpop.permute.xlu0 %759
    %v762 = vsub.f32 %v727, %v760
    %v763 = vmul.f32 %v762, 1.442695
    %v764 = vpow.pop %v763
    %766 = vrot.lane.b32.xlu0 %v752, 127
    %v767 = vpop.permute.xlu0 %766
    %v769 = vadd.f32 %v745, %v767
    %771 = vrot.lane.b32.xlu0 %v758, 126
    %v772 = vpop.permute.xlu0 %771
    %v774 = vadd.f32 %v769, %v772
    %776 = vrot.lane.b32.xlu0 %v764, 125
    %v777 = vpop.permute.xlu0 %776
    %v779 = vadd.f32 %v774, %v777
    %v780 = vrcp.pop %v779
    %v781 = vmul.f32 %v745, %v780
    %783 = vrot.lane.b32.xlu0 %v781, 124
    %v784 = vpop.permute.xlu0 %783
    %v786 = vadd.f32 %v630, %v784
    %787 = vset.pattern.permute.xlu0 4
    %788 = vperm.xlu0 %787, %v781
    %v789 = vpop.permute.xlu0 %788
    %v791 = vmul.f32 %v789, %v535
    %v792 = vadd.f32 %v791, 0.0
    %794 = vrot.lane.b32.xlu0 %v780, 1
    %v795 = vpop.permute.xlu0 %794
    %v797 = vmul.f32 %v752, %v795
    %799 = vrot.lane.b32.xlu0 %v797, 124
    %v800 = vpop.permute.xlu0 %799
    %v802 = vadd.f32 %v643, %v800
    %803 = vset.pattern.permute.xlu0 5
    %804 = vperm.xlu0 %803, %v797
    %v805 = vpop.permute.xlu0 %804
    %v807 = vmul.f32 %v805, %v535
    %809 = vrot.lane.b32.xlu0 %v807, 96
    %v810 = vpop.permute.xlu0 %809
    %v812 = vadd.f32 %v792, %v810
    %813 = vrot.lane.b32.xlu0 %v780, 2
    %v814 = vpop.permute.xlu0 %813
    %v816 = vmul.f32 %v758, %v814
    %818 = vrot.lane.b32.xlu0 %v816, 124
    %v819 = vpop.permute.xlu0 %818
    %v821 = vadd.f32 %v659, %v819
    %822 = vset.pattern.permute.xlu0 6
    %823 = vperm.xlu0 %822, %v816
    %v824 = vpop.permute.xlu0 %823
    %v826 = vmul.f32 %v824, %v535
    %828 = vrot.lane.b32.xlu0 %v826, 64
    %v829 = vpop.permute.xlu0 %828
    %v831 = vadd.f32 %v812, %v829
    %832 = vrot.lane.b32.xlu0 %v780, 3
    %v833 = vpop.permute.xlu0 %832
    %v835 = vmul.f32 %v764, %v833
    %837 = vrot.lane.b32.xlu0 %v835, 124
    %v838 = vpop.permute.xlu0 %837
    %v840 = vadd.f32 %v675, %v838
    %841 = vset.pattern.permute.xlu0 7
    %842 = vperm.xlu0 %841, %v835
    %v843 = vpop.permute.xlu0 %842
    %v845 = vmul.f32 %v843, %v535
    %847 = vrot.lane.b32.xlu0 %v845, 32
    %v848 = vpop.permute.xlu0 %847
    %v850 = vadd.f32 %v831, %v848
    %v851 = vpack.c.bf16 %v850, %v850
    %v852 = vld [vmem:[%s15 + $0x10] sm:$0xf]
    %v853 = vld [vmem:[%s15 + $0x14] sm:$0xf]
    %v854 = vld [vmem:[%s15 + $0x18] sm:$0xf]
    %v855 = vld [vmem:[%s15 + $0x1c] sm:$0xf]
    %v860 = vunpack.c.l.b16 %v852
    %v861 = vunpack.c.l.b16 %v853
    %v862 = vunpack.c.l.b16 %v854
    %v863 = vunpack.c.l.b16 %v855
    %v864 = vpack.c.b16 %v861, %v860
    %v865 = vpack.c.b16 %v863, %v862
    %v869 = vsel %vm542, %v851, 0
    %871 = vmatprep.subr.bf16.mxu0 0
    %872 = vmatpush1.bf16.msra.mxu0 %v864
    %873 = vmatprep.subr.bf16.mxu0 0
    %874 = vmatpush1.bf16.msra.mxu0 %v865
    %875 = vmatprep.subr.bf16.mxu0 0
    %876 = vmatpush1.bf16.msra.mxu0 0
    %877 = vmatprep.subr.bf16.mxu0 0
    %878 = vmatpush1.bf16.msra.mxu0 0
    %879 = vmatprep.subr.bf16.mxu0 0
    %880 = vmatpush1.bf16.msra.mxu0 0
    %881 = vmatprep.subr.bf16.mxu0 0
    %882 = vmatpush1.bf16.msra.mxu0 0
    %883 = vmatprep.subr.bf16.mxu0 0
    %884 = vmatpush1.bf16.msra.mxu0 0
    %885 = vmatprep.subr.bf16.mxu0 0
    %886 = vmatpush1.bf16.msra.mxu0 0
    %887 = vmatprep.subr.bf16.mxu0 0
    %888 = vmatpush1.bf16.msra.mxu0 0
    %889 = vmatprep.subr.bf16.mxu0 0
    %890 = vmatpush1.bf16.msra.mxu0 0
    %891 = vmatprep.subr.bf16.mxu0 0
    %892 = vmatpush1.bf16.msra.mxu0 0
    %893 = vmatprep.subr.bf16.mxu0 0
    %894 = vmatpush1.bf16.msra.mxu0 0
    %895 = vmatprep.subr.bf16.mxu0 0
    %896 = vmatpush1.bf16.msra.mxu0 0
    %897 = vmatprep.subr.bf16.mxu0 0
    %898 = vmatpush1.bf16.msra.mxu0 0
    %899 = vmatprep.subr.bf16.mxu0 0
    %900 = vmatpush1.bf16.msra.mxu0 0
    %901 = vmatprep.subr.bf16.mxu0 0
    %902 = vmatpush1.bf16.msra.mxu0 0
    %903 = vmatprep.mubr.bf16.mxu0 0
    %904 = vmatmul.mubr.bf16.gmra.mrb[0].mxu0 %v869
    %v905 = vpop.f32.mrb[0].mxu0
    %v906 = vadd.f32 0.0, %v905
    %v907 = vpop.f32.mrb[0].mxu0
    %v908 = vpop.f32.mrb[0].mxu0
    %v909 = vpop.f32.mrb[0].mxu0
    %910 = vdwg.mxu0
    %v915 = vunpack.c.l.b16 %v688
    %v916 = vunpack.c.l.b16 %v689
    %v917 = vunpack.c.l.b16 %v690
    %v918 = vunpack.c.l.b16 %v691
    %v919 = vpack.c.b16 %v916, %v915
    %v920 = vpack.c.b16 %v918, %v917
    %v924 = vsel %vm542, %v687, 0
    %926 = vmatprep.subr.bf16.mxu0 0
    %927 = vmatpush1.bf16.msra.mxu0 %v919
    %928 = vmatprep.subr.bf16.mxu0 0
    %929 = vmatpush1.bf16.msra.mxu0 %v920
    %930 = vmatprep.subr.bf16.mxu0 0
    %931 = vmatpush1.bf16.msra.mxu0 0
    %932 = vmatprep.subr.bf16.mxu0 0
    %933 = vmatpush1.bf16.msra.mxu0 0
    %934 = vmatprep.subr.bf16.mxu0 0
    %935 = vmatpush1.bf16.msra.mxu0 0
    %936 = vmatprep.subr.bf16.mxu0 0
    %937 = vmatpush1.bf16.msra.mxu0 0
    %938 = vmatprep.subr.bf16.mxu0 0
    %939 = vmatpush1.bf16.msra.mxu0 0
    %940 = vmatprep.subr.bf16.mxu0 0
    %941 = vmatpush1.bf16.msra.mxu0 0
    %942 = vmatprep.subr.bf16.mxu0 0
    %943 = vmatpush1.bf16.msra.mxu0 0
    %944 = vmatprep.subr.bf16.mxu0 0
    %945 = vmatpush1.bf16.msra.mxu0 0
    %946 = vmatprep.subr.bf16.mxu0 0
    %947 = vmatpush1.bf16.msra.mxu0 0
    %948 = vmatprep.subr.bf16.mxu0 0
    %949 = vmatpush1.bf16.msra.mxu0 0
    %950 = vmatprep.subr.bf16.mxu0 0
    %951 = vmatpush1.bf16.msra.mxu0 0
    %952 = vmatprep.subr.bf16.mxu0 0
    %953 = vmatpush1.bf16.msra.mxu0 0
    %954 = vmatprep.subr.bf16.mxu0 0
    %955 = vmatpush1.bf16.msra.mxu0 0
    %956 = vmatprep.subr.bf16.mxu0 0
    %957 = vmatpush1.bf16.msra.mxu0 0
    %958 = vmatprep.mubr.bf16.mxu0 0
    %959 = vmatmul.mubr.bf16.gmra.mrb[0].mxu0 %v924
    %v960 = vpop.f32.mrb[0].mxu0
    %v961 = vadd.f32 %v906, %v960
    %v962 = vpop.f32.mrb[0].mxu0
    %v963 = vpop.f32.mrb[0].mxu0
    %v964 = vpop.f32.mrb[0].mxu0
    %965 = vdwg.mxu0
    %966 = vrot.lane.b32.xlu0 %v561, 64
    %v967 = vpop.permute.xlu0 %966
    %v969 = vsel %vm542, %v967, 0.0
    %970 = vadd.xlane.f32.xlu0 %v969
    %v971 = vpop.xlane.xlu0 %970
    %v972 = vmul.f32 %v971, 0.35355338
    %v973 = vadd.f32 %v972, %v540
    %974 = vrot.lane.b32.xlu0 %v570, 64
    %v975 = vpop.permute.xlu0 %974
    %v977 = vsel %vm542, %v975, 0.0
    %978 = vadd.xlane.f32.xlu0 %v977
    %v979 = vpop.xlane.xlu0 %978
    %v980 = vmul.f32 %v979, 0.35355338
    %v981 = vadd.f32 %v980, %v540
    %982 = vrot.lane.b32.xlu0 %v541, 64
    %v983 = vpop.permute.xlu0 %982
    %v985 = vsel %vm542, %v983, 0.0
    %986 = vadd.xlane.f32.xlu0 %v985
    %v987 = vpop.xlane.xlu0 %986
    %v988 = vmul.f32 %v987, 0.35355338
    %v989 = vadd.f32 %v988, %v540
    %990 = vrot.lane.b32.xlu0 %v552, 64
    %v991 = vpop.permute.xlu0 %990
    %v993 = vsel %vm542, %v991, 0.0
    %994 = vadd.xlane.f32.xlu0 %v993
    %v995 = vpop.xlane.xlu0 %994
    %v996 = vmul.f32 %v995, 0.35355338
    %v997 = vadd.f32 %v996, %v540
    %999 = vrot.lane.b32.xlu0 %v981, 127
    %v1000 = vpop.permute.xlu0 %999
    %v1002 = vmax.f32 %v973, %v1000
    %1004 = vrot.lane.b32.xlu0 %v989, 126
    %v1005 = vpop.permute.xlu0 %1004
    %v1007 = vmax.f32 %v1002, %v1005
    %1009 = vrot.lane.b32.xlu0 %v997, 125
    %v1010 = vpop.permute.xlu0 %1009
    %v1012 = vmax.f32 %v1007, %v1010
    %v1013 = vsub.f32 %v973, %v1012
    %v1014 = vmul.f32 %v1013, 1.442695
    %v1015 = vpow.pop %v1014
    %1017 = vrot.lane.b32.xlu0 %v1012, 1
    %v1018 = vpop.permute.xlu0 %1017
    %v1020 = vsub.f32 %v981, %v1018
    %v1021 = vmul.f32 %v1020, 1.442695
    %v1022 = vpow.pop %v1021
    %1023 = vrot.lane.b32.xlu0 %v1012, 2
    %v1024 = vpop.permute.xlu0 %1023
    %v1026 = vsub.f32 %v989, %v1024
    %v1027 = vmul.f32 %v1026, 1.442695
    %v1028 = vpow.pop %v1027
    %1029 = vrot.lane.b32.xlu0 %v1012, 3
    %v1030 = vpop.permute.xlu0 %1029
    %v1032 = vsub.f32 %v997, %v1030
    %v1033 = vmul.f32 %v1032, 1.442695
    %v1034 = vpow.pop %v1033
    %1036 = vrot.lane.b32.xlu0 %v1022, 127
    %v1037 = vpop.permute.xlu0 %1036
    %v1039 = vadd.f32 %v1015, %v1037
    %1041 = vrot.lane.b32.xlu0 %v1028, 126
    %v1042 = vpop.permute.xlu0 %1041
    %v1044 = vadd.f32 %v1039, %v1042
    %1046 = vrot.lane.b32.xlu0 %v1034, 125
    %v1047 = vpop.permute.xlu0 %1046
    %v1049 = vadd.f32 %v1044, %v1047
    %v1050 = vrcp.pop %v1049
    %v1051 = vmul.f32 %v1015, %v1050
    %1053 = vrot.lane.b32.xlu0 %v1051, 120
    %v1054 = vpop.permute.xlu0 %1053
    %v1056 = vadd.f32 %v786, %v1054
    %1057 = vset.pattern.permute.xlu0 8
    %1058 = vperm.xlu0 %1057, %v1051
    %v1059 = vpop.permute.xlu0 %1058
    %v1061 = vmul.f32 %v1059, %v535
    %v1062 = vadd.f32 %v1061, 0.0
    %1064 = vrot.lane.b32.xlu0 %v1050, 1
    %v1065 = vpop.permute.xlu0 %1064
    %v1067 = vmul.f32 %v1022, %v1065
    %1069 = vrot.lane.b32.xlu0 %v1067, 120
    %v1070 = vpop.permute.xlu0 %1069
    %v1072 = vadd.f32 %v802, %v1070
    %1073 = vset.pattern.permute.xlu0 9
    %1074 = vperm.xlu0 %1073, %v1067
    %v1075 = vpop.permute.xlu0 %1074
    %v1077 = vmul.f32 %v1075, %v535
    %1079 = vrot.lane.b32.xlu0 %v1077, 96
    %v1080 = vpop.permute.xlu0 %1079
    %v1082 = vadd.f32 %v1062, %v1080
    %1083 = vrot.lane.b32.xlu0 %v1050, 2
    %v1084 = vpop.permute.xlu0 %1083
    %v1086 = vmul.f32 %v1028, %v1084
    %1088 = vrot.lane.b32.xlu0 %v1086, 120
    %v1089 = vpop.permute.xlu0 %1088
    %v1091 = vadd.f32 %v821, %v1089
    %1092 = vset.pattern.permute.xlu0 10
    %1093 = vperm.xlu0 %1092, %v1086
    %v1094 = vpop.permute.xlu0 %1093
    %v1096 = vmul.f32 %v1094, %v535
    %1098 = vrot.lane.b32.xlu0 %v1096, 64
    %v1099 = vpop.permute.xlu0 %1098
    %v1101 = vadd.f32 %v1082, %v1099
    %1102 = vrot.lane.b32.xlu0 %v1050, 3
    %v1103 = vpop.permute.xlu0 %1102
    %v1105 = vmul.f32 %v1034, %v1103
    %1107 = vrot.lane.b32.xlu0 %v1105, 120
    %v1108 = vpop.permute.xlu0 %1107
    %v1110 = vadd.f32 %v840, %v1108
    %1111 = vset.pattern.permute.xlu0 11
    %1112 = vperm.xlu0 %1111, %v1105
    %v1113 = vpop.permute.xlu0 %1112
    %v1115 = vmul.f32 %v1113, %v535
    %1117 = vrot.lane.b32.xlu0 %v1115, 32
    %v1118 = vpop.permute.xlu0 %1117
    %v1120 = vadd.f32 %v1101, %v1118
    %v1121 = vpack.c.bf16 %v1120, %v1120
    %v1122 = vld [vmem:[%s15 + $0x20] sm:$0xf]
    %v1123 = vld [vmem:[%s15 + $0x24] sm:$0xf]
    %v1124 = vld [vmem:[%s15 + $0x28] sm:$0xf]
    %v1125 = vld [vmem:[%s15 + $0x2c] sm:$0xf]
    %v1130 = vunpack.c.l.b16 %v1122
    %v1131 = vunpack.c.l.b16 %v1123
    %v1132 = vunpack.c.l.b16 %v1124
    %v1133 = vunpack.c.l.b16 %v1125
    %v1134 = vpack.c.b16 %v1131, %v1130
    %v1135 = vpack.c.b16 %v1133, %v1132
    %v1139 = vsel %vm542, %v1121, 0
    %1141 = vmatprep.subr.bf16.mxu0 0
    %1142 = vmatpush1.bf16.msra.mxu0 %v1134
    %1143 = vmatprep.subr.bf16.mxu0 0
    %1144 = vmatpush1.bf16.msra.mxu0 %v1135
    %1145 = vmatprep.subr.bf16.mxu0 0
    %1146 = vmatpush1.bf16.msra.mxu0 0
    %1147 = vmatprep.subr.bf16.mxu0 0
    %1148 = vmatpush1.bf16.msra.mxu0 0
    %1149 = vmatprep.subr.bf16.mxu0 0
    %1150 = vmatpush1.bf16.msra.mxu0 0
    %1151 = vmatprep.subr.bf16.mxu0 0
    %1152 = vmatpush1.bf16.msra.mxu0 0
    %1153 = vmatprep.subr.bf16.mxu0 0
    %1154 = vmatpush1.bf16.msra.mxu0 0
    %1155 = vmatprep.subr.bf16.mxu0 0
    %1156 = vmatpush1.bf16.msra.mxu0 0
    %1157 = vmatprep.subr.bf16.mxu0 0
    %1158 = vmatpush1.bf16.msra.mxu0 0
    %1159 = vmatprep.subr.bf16.mxu0 0
    %1160 = vmatpush1.bf16.msra.mxu0 0
    %1161 = vmatprep.subr.bf16.mxu0 0
    %1162 = vmatpush1.bf16.msra.mxu0 0
    %1163 = vmatprep.subr.bf16.mxu0 0
    %1164 = vmatpush1.bf16.msra.mxu0 0
    %1165 = vmatprep.subr.bf16.mxu0 0
    %1166 = vmatpush1.bf16.msra.mxu0 0
    %1167 = vmatprep.subr.bf16.mxu0 0
    %1168 = vmatpush1.bf16.msra.mxu0 0
    %1169 = vmatprep.subr.bf16.mxu0 0
    %1170 = vmatpush1.bf16.msra.mxu0 0
    %1171 = vmatprep.subr.bf16.mxu0 0
    %1172 = vmatpush1.bf16.msra.mxu0 0
    %1173 = vmatprep.mubr.bf16.mxu0 0
    %1174 = vmatmul.mubr.bf16.gmra.mrb[0].mxu0 %v1139
    %v1175 = vpop.f32.mrb[0].mxu0
    %v1176 = vadd.f32 0.0, %v1175
    %v1177 = vpop.f32.mrb[0].mxu0
    %v1178 = vpop.f32.mrb[0].mxu0
    %v1179 = vpop.f32.mrb[0].mxu0
    %1180 = vdwg.mxu0
    %v1181 = vadd.f32 %v961, %v1176
    %1182 = vrot.lane.b32.xlu0 %v552, 32
    %v1183 = vpop.permute.xlu0 %1182
    %v1185 = vsel %vm542, %v1183, 0.0
    %1186 = vadd.xlane.f32.xlu0 %v1185
    %v1187 = vpop.xlane.xlu0 %1186
    %v1188 = vmul.f32 %v1187, 0.35355338
    %v1189 = vadd.f32 %v1188, %v540
    %1190 = vrot.lane.b32.xlu0 %v561, 32
    %v1191 = vpop.permute.xlu0 %1190
    %v1193 = vsel %vm542, %v1191, 0.0
    %1194 = vadd.xlane.f32.xlu0 %v1193
    %v1195 = vpop.xlane.xlu0 %1194
    %v1196 = vmul.f32 %v1195, 0.35355338
    %v1197 = vadd.f32 %v1196, %v540
    %1198 = vrot.lane.b32.xlu0 %v570, 32
    %v1199 = vpop.permute.xlu0 %1198
    %v1201 = vsel %vm542, %v1199, 0.0
    %1202 = vadd.xlane.f32.xlu0 %v1201
    %v1203 = vpop.xlane.xlu0 %1202
    %v1204 = vmul.f32 %v1203, 0.35355338
    %v1205 = vadd.f32 %v1204, %v540
    %1206 = vrot.lane.b32.xlu0 %v541, 32
    %v1207 = vpop.permute.xlu0 %1206
    %v1209 = vsel %vm542, %v1207, 0.0
    %1210 = vadd.xlane.f32.xlu0 %v1209
    %v1211 = vpop.xlane.xlu0 %1210
    %v1212 = vmul.f32 %v1211, 0.35355338
    %v1213 = vadd.f32 %v1212, %v540
    %1215 = vrot.lane.b32.xlu0 %v1197, 127
    %v1216 = vpop.permute.xlu0 %1215
    %v1218 = vmax.f32 %v1189, %v1216
    %1220 = vrot.lane.b32.xlu0 %v1205, 126
    %v1221 = vpop.permute.xlu0 %1220
    %v1223 = vmax.f32 %v1218, %v1221
    %1225 = vrot.lane.b32.xlu0 %v1213, 125
    %v1226 = vpop.permute.xlu0 %1225
    %v1228 = vmax.f32 %v1223, %v1226
    %v1229 = vsub.f32 %v1189, %v1228
    %v1230 = vmul.f32 %v1229, 1.442695
    %v1231 = vpow.pop %v1230
    %1233 = vrot.lane.b32.xlu0 %v1228, 1
    %v1234 = vpop.permute.xlu0 %1233
    %v1236 = vsub.f32 %v1197, %v1234
    %v1237 = vmul.f32 %v1236, 1.442695
    %v1238 = vpow.pop %v1237
    %1239 = vrot.lane.b32.xlu0 %v1228, 2
    %v1240 = vpop.permute.xlu0 %1239
    %v1242 = vsub.f32 %v1205, %v1240
    %v1243 = vmul.f32 %v1242, 1.442695
    %v1244 = vpow.pop %v1243
    %1245 = vrot.lane.b32.xlu0 %v1228, 3
    %v1246 = vpop.permute.xlu0 %1245
    %v1248 = vsub.f32 %v1213, %v1246
    %v1249 = vmul.f32 %v1248, 1.442695
    %v1250 = vpow.pop %v1249
    %1252 = vrot.lane.b32.xlu0 %v1238, 127
    %v1253 = vpop.permute.xlu0 %1252
    %v1255 = vadd.f32 %v1231, %v1253
    %1257 = vrot.lane.b32.xlu0 %v1244, 126
    %v1258 = vpop.permute.xlu0 %1257
    %v1260 = vadd.f32 %v1255, %v1258
    %1262 = vrot.lane.b32.xlu0 %v1250, 125
    %v1263 = vpop.permute.xlu0 %1262
    %v1265 = vadd.f32 %v1260, %v1263
    %v1266 = vrcp.pop %v1265
    %v1267 = vmul.f32 %v1231, %v1266
    %1269 = vrot.lane.b32.xlu0 %v1267, 116
    %v1270 = vpop.permute.xlu0 %1269
    %v1272 = vadd.f32 %v1056, %v1270
    %1273 = vset.pattern.permute.xlu0 12
    %1274 = vperm.xlu0 %1273, %v1267
    %v1275 = vpop.permute.xlu0 %1274
    %v1277 = vmul.f32 %v1275, %v535
    %v1278 = vadd.f32 %v1277, 0.0
    %1280 = vrot.lane.b32.xlu0 %v1266, 1
    %v1281 = vpop.permute.xlu0 %1280
    %v1283 = vmul.f32 %v1238, %v1281
    %1285 = vrot.lane.b32.xlu0 %v1283, 116
    %v1286 = vpop.permute.xlu0 %1285
    %v1288 = vadd.f32 %v1072, %v1286
    %1289 = vset.pattern.permute.xlu0 13
    %1290 = vperm.xlu0 %1289, %v1283
    %v1291 = vpop.permute.xlu0 %1290
    %v1293 = vmul.f32 %v1291, %v535
    %1295 = vrot.lane.b32.xlu0 %v1293, 96
    %v1296 = vpop.permute.xlu0 %1295
    %v1298 = vadd.f32 %v1278, %v1296
    %1299 = vrot.lane.b32.xlu0 %v1266, 2
    %v1300 = vpop.permute.xlu0 %1299
    %v1302 = vmul.f32 %v1244, %v1300
    %1304 = vrot.lane.b32.xlu0 %v1302, 116
    %v1305 = vpop.permute.xlu0 %1304
    %v1307 = vadd.f32 %v1091, %v1305
    %1308 = vset.pattern.permute.xlu0 14
    %1309 = vperm.xlu0 %1308, %v1302
    %v1310 = vpop.permute.xlu0 %1309
    %v1312 = vmul.f32 %v1310, %v535
    %1314 = vrot.lane.b32.xlu0 %v1312, 64
    %v1315 = vpop.permute.xlu0 %1314
    %v1317 = vadd.f32 %v1298, %v1315
    %1318 = vrot.lane.b32.xlu0 %v1266, 3
    %v1319 = vpop.permute.xlu0 %1318
    %v1321 = vmul.f32 %v1250, %v1319
    %1323 = vrot.lane.b32.xlu0 %v1321, 116
    %v1324 = vpop.permute.xlu0 %1323
    %v1326 = vadd.f32 %v1110, %v1324
    %1327 = vset.pattern.permute.xlu0 15
    %1328 = vperm.xlu0 %1327, %v1321
    %v1329 = vpop.permute.xlu0 %1328
    %v1331 = vmul.f32 %v1329, %v535
    %1333 = vrot.lane.b32.xlu0 %v1331, 32
    %v1334 = vpop.permute.xlu0 %1333
    %v1336 = vadd.f32 %v1317, %v1334
    %v1337 = vpack.c.bf16 %v1336, %v1336
    %v1338 = vld [vmem:[%s15 + $0x30] sm:$0xf]
    %v1339 = vld [vmem:[%s15 + $0x34] sm:$0xf]
    %v1340 = vld [vmem:[%s15 + $0x38] sm:$0xf]
    %v1341 = vld [vmem:[%s15 + $0x3c] sm:$0xf]
    %v1346 = vunpack.c.l.b16 %v1338
    %v1347 = vunpack.c.l.b16 %v1339
    %v1348 = vunpack.c.l.b16 %v1340
    %v1349 = vunpack.c.l.b16 %v1341
    %v1350 = vpack.c.b16 %v1347, %v1346
    %v1351 = vpack.c.b16 %v1349, %v1348
    %v1355 = vsel %vm542, %v1337, 0
    %1357 = vmatprep.subr.bf16.mxu0 0
    %1358 = vmatpush1.bf16.msra.mxu0 %v1350
    %1359 = vmatprep.subr.bf16.mxu0 0
    %1360 = vmatpush1.bf16.msra.mxu0 %v1351
    %1361 = vmatprep.subr.bf16.mxu0 0
    %1362 = vmatpush1.bf16.msra.mxu0 0
    %1363 = vmatprep.subr.bf16.mxu0 0
    %1364 = vmatpush1.bf16.msra.mxu0 0
    %1365 = vmatprep.subr.bf16.mxu0 0
    %1366 = vmatpush1.bf16.msra.mxu0 0
    %1367 = vmatprep.subr.bf16.mxu0 0
    %1368 = vmatpush1.bf16.msra.mxu0 0
    %1369 = vmatprep.subr.bf16.mxu0 0
    %1370 = vmatpush1.bf16.msra.mxu0 0
    %1371 = vmatprep.subr.bf16.mxu0 0
    %1372 = vmatpush1.bf16.msra.mxu0 0
    %1373 = vmatprep.subr.bf16.mxu0 0
    %1374 = vmatpush1.bf16.msra.mxu0 0
    %1375 = vmatprep.subr.bf16.mxu0 0
    %1376 = vmatpush1.bf16.msra.mxu0 0
    %1377 = vmatprep.subr.bf16.mxu0 0
    %1378 = vmatpush1.bf16.msra.mxu0 0
    %1379 = vmatprep.subr.bf16.mxu0 0
    %1380 = vmatpush1.bf16.msra.mxu0 0
    %1381 = vmatprep.subr.bf16.mxu0 0
    %1382 = vmatpush1.bf16.msra.mxu0 0
    %1383 = vmatprep.subr.bf16.mxu0 0
    %1384 = vmatpush1.bf16.msra.mxu0 0
    %1385 = vmatprep.subr.bf16.mxu0 0
    %1386 = vmatpush1.bf16.msra.mxu0 0
    %1387 = vmatprep.subr.bf16.mxu0 0
    %1388 = vmatpush1.bf16.msra.mxu0 0
    %1389 = vmatprep.mubr.bf16.mxu0 0
    %1390 = vmatmul.mubr.bf16.gmra.mrb[0].mxu0 %v1355
    %v1391 = vpop.f32.mrb[0].mxu0
    %v1392 = vadd.f32 0.0, %v1391
    %v1393 = vpop.f32.mrb[0].mxu0
    %v1394 = vpop.f32.mrb[0].mxu0
    %v1395 = vpop.f32.mrb[0].mxu0
    %1396 = vdwg.mxu0
    %v1397 = vadd.f32 %v1181, %v1392
    %v1398 = vld [vmem:[%s16] sm:$0x1]
    %v1400 = vlaneseq
    %v1401 = vshrl.u32 %v1400, 7
    %v1402 = vsub.s32 0, %v1401
    %v1403 = vrot.slane %v1398, %v1402
    %v1405 = vadd.f32 %v1397, %v1403
    %v1406 = vadd.f32 %v205, %v1405
    %v1407 = vld [vmem:[%s17] sm:$0x1]
    %v1408 = vld [vmem:[%s18] sm:$0x1]
    %1409 = vadd.xlane.f32.xlu0 %v1406
    %v1410 = vpop.xlane.xlu0 %1409
    %v1411 = vrcp.pop 128.0
    %v1412 = vmul.f32 %v1410, %v1411
    %v1413 = vsub.f32 %v1406, %v1412
    %v1414 = vmul.f32 %v1413, %v1413
    %1415 = vadd.xlane.f32.xlu0 %v1414
    %v1416 = vpop.xlane.xlu0 %1415
    %v1417 = vmul.f32 %v1416, %v1411
    %v1418 = vadd.f32 %v1417, 1e-05
    %v1419 = vrsqrt.pop %v1418
    %v1420 = vmul.f32 %v1413, %v1419
    %v1422 = vlaneseq
    %v1423 = vshrl.u32 %v1422, 7
    %v1424 = vsub.s32 0, %v1423
    %v1425 = vrot.slane %v1407, %v1424
    %v1427 = vmul.f32 %v1420, %v1425
    %v1429 = vlaneseq
    %v1430 = vshrl.u32 %v1429, 7
    %v1431 = vsub.s32 0, %v1430
    %v1432 = vrot.slane %v1408, %v1431
    %v1434 = vadd.f32 %v1427, %v1432
    %v1435 = vpack.c.bf16 %v1434, %v1434
    %v1436 = vld [vmem:[%s19] sm:$0xff]
    %v1437 = vld [vmem:[%s19 + $0x8] sm:$0xff]
    %v1438 = vld [vmem:[%s19 + $0x10] sm:$0xff]
    %v1439 = vld [vmem:[%s19 + $0x18] sm:$0xff]
    %v1440 = vld [vmem:[%s19 + $0x20] sm:$0xff]
    %v1441 = vld [vmem:[%s19 + $0x28] sm:$0xff]
    %v1442 = vld [vmem:[%s19 + $0x30] sm:$0xff]
    %v1443 = vld [vmem:[%s19 + $0x38] sm:$0xff]
    %v1444 = vld [vmem:[%s19 + $0x40] sm:$0xff]
    %v1445 = vld [vmem:[%s19 + $0x48] sm:$0xff]
    %v1446 = vld [vmem:[%s19 + $0x50] sm:$0xff]
    %v1447 = vld [vmem:[%s19 + $0x58] sm:$0xff]
    %v1448 = vld [vmem:[%s19 + $0x60] sm:$0xff]
    %v1449 = vld [vmem:[%s19 + $0x68] sm:$0xff]
    %v1450 = vld [vmem:[%s19 + $0x70] sm:$0xff]
    %v1451 = vld [vmem:[%s19 + $0x78] sm:$0xff]
    %v1452 = vld [vmem:[%s19 + $0x80] sm:$0xff]
    %v1453 = vld [vmem:[%s19 + $0x88] sm:$0xff]
    %v1454 = vld [vmem:[%s19 + $0x90] sm:$0xff]
    %v1455 = vld [vmem:[%s19 + $0x98] sm:$0xff]
    %v1456 = vld [vmem:[%s19 + $0xa0] sm:$0xff]
    %v1457 = vld [vmem:[%s19 + $0xa8] sm:$0xff]
    %v1458 = vld [vmem:[%s19 + $0xb0] sm:$0xff]
    %v1459 = vld [vmem:[%s19 + $0xb8] sm:$0xff]
    %v1460 = vld [vmem:[%s19 + $0xc0] sm:$0xff]
    %v1461 = vld [vmem:[%s19 + $0xc8] sm:$0xff]
    %v1462 = vld [vmem:[%s19 + $0xd0] sm:$0xff]
    %v1463 = vld [vmem:[%s19 + $0xd8] sm:$0xff]
    %v1464 = vld [vmem:[%s19 + $0xe0] sm:$0xff]
    %v1465 = vld [vmem:[%s19 + $0xe8] sm:$0xff]
    %v1466 = vld [vmem:[%s19 + $0xf0] sm:$0xff]
    %v1467 = vld [vmem:[%s19 + $0xf8] sm:$0xff]
    %v1468 = vld [vmem:[%s19 + $0x100] sm:$0xff]
    %v1469 = vld [vmem:[%s19 + $0x108] sm:$0xff]
    %v1470 = vld [vmem:[%s19 + $0x110] sm:$0xff]
    %v1471 = vld [vmem:[%s19 + $0x118] sm:$0xff]
    %v1472 = vld [vmem:[%s19 + $0x120] sm:$0xff]
    %v1473 = vld [vmem:[%s19 + $0x128] sm:$0xff]
    %v1474 = vld [vmem:[%s19 + $0x130] sm:$0xff]
    %v1475 = vld [vmem:[%s19 + $0x138] sm:$0xff]
    %v1476 = vld [vmem:[%s19 + $0x140] sm:$0xff]
    %v1477 = vld [vmem:[%s19 + $0x148] sm:$0xff]
    %v1478 = vld [vmem:[%s19 + $0x150] sm:$0xff]
    %v1479 = vld [vmem:[%s19 + $0x158] sm:$0xff]
    %v1480 = vld [vmem:[%s19 + $0x160] sm:$0xff]
    %v1481 = vld [vmem:[%s19 + $0x168] sm:$0xff]
    %v1482 = vld [vmem:[%s19 + $0x170] sm:$0xff]
    %v1483 = vld [vmem:[%s19 + $0x178] sm:$0xff]
    %v1484 = vld [vmem:[%s19 + $0x180] sm:$0xff]
    %v1485 = vld [vmem:[%s19 + $0x188] sm:$0xff]
    %v1486 = vld [vmem:[%s19 + $0x190] sm:$0xff]
    %v1487 = vld [vmem:[%s19 + $0x198] sm:$0xff]
    %v1488 = vld [vmem:[%s19 + $0x1a0] sm:$0xff]
    %v1489 = vld [vmem:[%s19 + $0x1a8] sm:$0xff]
    %v1490 = vld [vmem:[%s19 + $0x1b0] sm:$0xff]
    %v1491 = vld [vmem:[%s19 + $0x1b8] sm:$0xff]
    %v1492 = vld [vmem:[%s19 + $0x1c0] sm:$0xff]
    %v1493 = vld [vmem:[%s19 + $0x1c8] sm:$0xff]
    %v1494 = vld [vmem:[%s19 + $0x1d0] sm:$0xff]
    %v1495 = vld [vmem:[%s19 + $0x1d8] sm:$0xff]
    %v1496 = vld [vmem:[%s19 + $0x1e0] sm:$0xff]
    %v1497 = vld [vmem:[%s19 + $0x1e8] sm:$0xff]
    %v1498 = vld [vmem:[%s19 + $0x1f0] sm:$0xff]
    %v1499 = vld [vmem:[%s19 + $0x1f8] sm:$0xff]
    %v1500 = vld [vmem:[%s20] sm:$0xff]
    %v1502 = vlaneseq
    %v1503 = vshrl.u32 %v1502, 7
    %v1504 = vsub.s32 0, %v1503
    %v1505 = vrot.slane %v1500, %v1504
    %v1506 = vlaneseq
    %v1507 = vshrl.u32 %v1506, 7
    %v1508 = vsub.s32 1, %v1507
    %v1509 = vrot.slane %v1500, %v1508
    %v1510 = vlaneseq
    %v1511 = vshrl.u32 %v1510, 7
    %v1512 = vsub.s32 2, %v1511
    %v1513 = vrot.slane %v1500, %v1512
    %v1514 = vlaneseq
    %v1515 = vshrl.u32 %v1514, 7
    %v1516 = vsub.s32 3, %v1515
    %v1517 = vrot.slane %v1500, %v1516
    %v1518 = vlaneseq
    %v1519 = vshrl.u32 %v1518, 7
    %v1520 = vsub.s32 4, %v1519
    %v1521 = vrot.slane %v1500, %v1520
    %v1522 = vlaneseq
    %v1523 = vshrl.u32 %v1522, 7
    %v1524 = vsub.s32 5, %v1523
    %v1525 = vrot.slane %v1500, %v1524
    %v1526 = vlaneseq
    %v1527 = vshrl.u32 %v1526, 7
    %v1528 = vsub.s32 6, %v1527
    %v1529 = vrot.slane %v1500, %v1528
    %v1530 = vlaneseq
    %v1531 = vshrl.u32 %v1530, 7
    %v1532 = vsub.s32 7, %v1531
    %v1533 = vrot.slane %v1500, %v1532
    %v1606 = vunpack.c.l.b16 %v1436
    %v1607 = vunpack.c.h.b16 %v1436
    %v1608 = vunpack.c.l.b16 %v1437
    %v1609 = vunpack.c.h.b16 %v1437
    %v1610 = vunpack.c.l.b16 %v1438
    %v1611 = vunpack.c.h.b16 %v1438
    %v1612 = vunpack.c.l.b16 %v1439
    %v1613 = vunpack.c.h.b16 %v1439
    %v1614 = vunpack.c.l.b16 %v1440
    %v1615 = vunpack.c.h.b16 %v1440
    %v1616 = vunpack.c.l.b16 %v1441
    %v1617 = vunpack.c.h.b16 %v1441
    %v1618 = vunpack.c.l.b16 %v1442
    %v1619 = vunpack.c.h.b16 %v1442
    %v1620 = vunpack.c.l.b16 %v1443
    %v1621 = vunpack.c.h.b16 %v1443
    %v1622 = vunpack.c.l.b16 %v1444
    %v1623 = vunpack.c.h.b16 %v1444
    %v1624 = vunpack.c.l.b16 %v1445
    %v1625 = vunpack.c.h.b16 %v1445
    %v1626 = vunpack.c.l.b16 %v1446
    %v1627 = vunpack.c.h.b16 %v1446
    %v1628 = vunpack.c.l.b16 %v1447
    %v1629 = vunpack.c.h.b16 %v1447
    %v1630 = vunpack.c.l.b16 %v1448
    %v1631 = vunpack.c.h.b16 %v1448
    %v1632 = vunpack.c.l.b16 %v1449
    %v1633 = vunpack.c.h.b16 %v1449
    %v1634 = vunpack.c.l.b16 %v1450
    %v1635 = vunpack.c.h.b16 %v1450
    %v1636 = vunpack.c.l.b16 %v1451
    %v1637 = vunpack.c.h.b16 %v1451
    %v1638 = vunpack.c.l.b16 %v1452
    %v1639 = vunpack.c.h.b16 %v1452
    %v1640 = vunpack.c.l.b16 %v1453
    %v1641 = vunpack.c.h.b16 %v1453
    %v1642 = vunpack.c.l.b16 %v1454
    %v1643 = vunpack.c.h.b16 %v1454
    %v1644 = vunpack.c.l.b16 %v1455
    %v1645 = vunpack.c.h.b16 %v1455
    %v1646 = vunpack.c.l.b16 %v1456
    %v1647 = vunpack.c.h.b16 %v1456
    %v1648 = vunpack.c.l.b16 %v1457
    %v1649 = vunpack.c.h.b16 %v1457
    %v1650 = vunpack.c.l.b16 %v1458
    %v1651 = vunpack.c.h.b16 %v1458
    %v1652 = vunpack.c.l.b16 %v1459
    %v1653 = vunpack.c.h.b16 %v1459
    %v1654 = vunpack.c.l.b16 %v1460
    %v1655 = vunpack.c.h.b16 %v1460
    %v1656 = vunpack.c.l.b16 %v1461
    %v1657 = vunpack.c.h.b16 %v1461
    %v1658 = vunpack.c.l.b16 %v1462
    %v1659 = vunpack.c.h.b16 %v1462
    %v1660 = vunpack.c.l.b16 %v1463
    %v1661 = vunpack.c.h.b16 %v1463
    %v1662 = vunpack.c.l.b16 %v1464
    %v1663 = vunpack.c.h.b16 %v1464
    %v1664 = vunpack.c.l.b16 %v1465
    %v1665 = vunpack.c.h.b16 %v1465
    %v1666 = vunpack.c.l.b16 %v1466
    %v1667 = vunpack.c.h.b16 %v1466
    %v1668 = vunpack.c.l.b16 %v1467
    %v1669 = vunpack.c.h.b16 %v1467
    %v1670 = vunpack.c.l.b16 %v1468
    %v1671 = vunpack.c.h.b16 %v1468
    %v1672 = vunpack.c.l.b16 %v1469
    %v1673 = vunpack.c.h.b16 %v1469
    %v1674 = vunpack.c.l.b16 %v1470
    %v1675 = vunpack.c.h.b16 %v1470
    %v1676 = vunpack.c.l.b16 %v1471
    %v1677 = vunpack.c.h.b16 %v1471
    %v1678 = vunpack.c.l.b16 %v1472
    %v1679 = vunpack.c.h.b16 %v1472
    %v1680 = vunpack.c.l.b16 %v1473
    %v1681 = vunpack.c.h.b16 %v1473
    %v1682 = vunpack.c.l.b16 %v1474
    %v1683 = vunpack.c.h.b16 %v1474
    %v1684 = vunpack.c.l.b16 %v1475
    %v1685 = vunpack.c.h.b16 %v1475
    %v1686 = vunpack.c.l.b16 %v1476
    %v1687 = vunpack.c.h.b16 %v1476
    %v1688 = vunpack.c.l.b16 %v1477
    %v1689 = vunpack.c.h.b16 %v1477
    %v1690 = vunpack.c.l.b16 %v1478
    %v1691 = vunpack.c.h.b16 %v1478
    %v1692 = vunpack.c.l.b16 %v1479
    %v1693 = vunpack.c.h.b16 %v1479
    %v1694 = vunpack.c.l.b16 %v1480
    %v1695 = vunpack.c.h.b16 %v1480
    %v1696 = vunpack.c.l.b16 %v1481
    %v1697 = vunpack.c.h.b16 %v1481
    %v1698 = vunpack.c.l.b16 %v1482
    %v1699 = vunpack.c.h.b16 %v1482
    %v1700 = vunpack.c.l.b16 %v1483
    %v1701 = vunpack.c.h.b16 %v1483
    %v1702 = vunpack.c.l.b16 %v1484
    %v1703 = vunpack.c.h.b16 %v1484
    %v1704 = vunpack.c.l.b16 %v1485
    %v1705 = vunpack.c.h.b16 %v1485
    %v1706 = vunpack.c.l.b16 %v1486
    %v1707 = vunpack.c.h.b16 %v1486
    %v1708 = vunpack.c.l.b16 %v1487
    %v1709 = vunpack.c.h.b16 %v1487
    %v1710 = vunpack.c.l.b16 %v1488
    %v1711 = vunpack.c.h.b16 %v1488
    %v1712 = vunpack.c.l.b16 %v1489
    %v1713 = vunpack.c.h.b16 %v1489
    %v1714 = vunpack.c.l.b16 %v1490
    %v1715 = vunpack.c.h.b16 %v1490
    %v1716 = vunpack.c.l.b16 %v1491
    %v1717 = vunpack.c.h.b16 %v1491
    %v1718 = vunpack.c.l.b16 %v1492
    %v1719 = vunpack.c.h.b16 %v1492
    %v1720 = vunpack.c.l.b16 %v1493
    %v1721 = vunpack.c.h.b16 %v1493
    %v1722 = vunpack.c.l.b16 %v1494
    %v1723 = vunpack.c.h.b16 %v1494
    %v1724 = vunpack.c.l.b16 %v1495
    %v1725 = vunpack.c.h.b16 %v1495
    %v1726 = vunpack.c.l.b16 %v1496
    %v1727 = vunpack.c.h.b16 %v1496
    %v1728 = vunpack.c.l.b16 %v1497
    %v1729 = vunpack.c.h.b16 %v1497
    %v1730 = vunpack.c.l.b16 %v1498
    %v1731 = vunpack.c.h.b16 %v1498
    %v1732 = vunpack.c.l.b16 %v1499
    %v1733 = vunpack.c.h.b16 %v1499
    %v1734 = vpack.c.b16 %v1614, %v1606
    %v1735 = vpack.c.b16 %v1615, %v1607
    %v1736 = vpack.c.b16 %v1616, %v1608
    %v1737 = vpack.c.b16 %v1617, %v1609
    %v1738 = vpack.c.b16 %v1618, %v1610
    %v1739 = vpack.c.b16 %v1619, %v1611
    %v1740 = vpack.c.b16 %v1620, %v1612
    %v1741 = vpack.c.b16 %v1621, %v1613
    %v1742 = vpack.c.b16 %v1630, %v1622
    %v1743 = vpack.c.b16 %v1631, %v1623
    %v1744 = vpack.c.b16 %v1632, %v1624
    %v1745 = vpack.c.b16 %v1633, %v1625
    %v1746 = vpack.c.b16 %v1634, %v1626
    %v1747 = vpack.c.b16 %v1635, %v1627
    %v1748 = vpack.c.b16 %v1636, %v1628
    %v1749 = vpack.c.b16 %v1637, %v1629
    %v1750 = vpack.c.b16 %v1646, %v1638
    %v1751 = vpack.c.b16 %v1647, %v1639
    %v1752 = vpack.c.b16 %v1648, %v1640
    %v1753 = vpack.c.b16 %v1649, %v1641
    %v1754 = vpack.c.b16 %v1650, %v1642
    %v1755 = vpack.c.b16 %v1651, %v1643
    %v1756 = vpack.c.b16 %v1652, %v1644
    %v1757 = vpack.c.b16 %v1653, %v1645
    %v1758 = vpack.c.b16 %v1662, %v1654
    %v1759 = vpack.c.b16 %v1663, %v1655
    %v1760 = vpack.c.b16 %v1664, %v1656
    %v1761 = vpack.c.b16 %v1665, %v1657
    %v1762 = vpack.c.b16 %v1666, %v1658
    %v1763 = vpack.c.b16 %v1667, %v1659
    %v1764 = vpack.c.b16 %v1668, %v1660
    %v1765 = vpack.c.b16 %v1669, %v1661
    %v1766 = vpack.c.b16 %v1678, %v1670
    %v1767 = vpack.c.b16 %v1679, %v1671
    %v1768 = vpack.c.b16 %v1680, %v1672
    %v1769 = vpack.c.b16 %v1681, %v1673
    %v1770 = vpack.c.b16 %v1682, %v1674
    %v1771 = vpack.c.b16 %v1683, %v1675
    %v1772 = vpack.c.b16 %v1684, %v1676
    %v1773 = vpack.c.b16 %v1685, %v1677
    %v1774 = vpack.c.b16 %v1694, %v1686
    %v1775 = vpack.c.b16 %v1695, %v1687
    %v1776 = vpack.c.b16 %v1696, %v1688
    %v1777 = vpack.c.b16 %v1697, %v1689
    %v1778 = vpack.c.b16 %v1698, %v1690
    %v1779 = vpack.c.b16 %v1699, %v1691
    %v1780 = vpack.c.b16 %v1700, %v1692
    %v1781 = vpack.c.b16 %v1701, %v1693
    %v1782 = vpack.c.b16 %v1710, %v1702
    %v1783 = vpack.c.b16 %v1711, %v1703
    %v1784 = vpack.c.b16 %v1712, %v1704
    %v1785 = vpack.c.b16 %v1713, %v1705
    %v1786 = vpack.c.b16 %v1714, %v1706
    %v1787 = vpack.c.b16 %v1715, %v1707
    %v1788 = vpack.c.b16 %v1716, %v1708
    %v1789 = vpack.c.b16 %v1717, %v1709
    %v1790 = vpack.c.b16 %v1726, %v1718
    %v1791 = vpack.c.b16 %v1727, %v1719
    %v1792 = vpack.c.b16 %v1728, %v1720
    %v1793 = vpack.c.b16 %v1729, %v1721
    %v1794 = vpack.c.b16 %v1730, %v1722
    %v1795 = vpack.c.b16 %v1731, %v1723
    %v1796 = vpack.c.b16 %v1732, %v1724
    %v1797 = vpack.c.b16 %v1733, %v1725
    %1862 = vmatprep.subr.bf16.mxu0 %v1735
    %1863 = vmatpush1.bf16.msra.mxu0 %v1734
    %1864 = vmatprep.subr.bf16.mxu0 %v1743
    %1865 = vmatpush1.bf16.msra.mxu0 %v1742
    %1866 = vmatprep.subr.bf16.mxu0 %v1751
    %1867 = vmatpush1.bf16.msra.mxu0 %v1750
    %1868 = vmatprep.subr.bf16.mxu0 %v1759
    %1869 = vmatpush1.bf16.msra.mxu0 %v1758
    %1870 = vmatprep.subr.bf16.mxu0 %v1767
    %1871 = vmatpush1.bf16.msra.mxu0 %v1766
    %1872 = vmatprep.subr.bf16.mxu0 %v1775
    %1873 = vmatpush1.bf16.msra.mxu0 %v1774
    %1874 = vmatprep.subr.bf16.mxu0 %v1783
    %1875 = vmatpush1.bf16.msra.mxu0 %v1782
    %1876 = vmatprep.subr.bf16.mxu0 %v1791
    %1877 = vmatpush1.bf16.msra.mxu0 %v1790
    %1878 = vmatprep.subr.bf16.mxu0 0
    %1879 = vmatpush1.bf16.msra.mxu0 0
    %1880 = vmatprep.subr.bf16.mxu0 0
    %1881 = vmatpush1.bf16.msra.mxu0 0
    %1882 = vmatprep.subr.bf16.mxu0 0
    %1883 = vmatpush1.bf16.msra.mxu0 0
    %1884 = vmatprep.subr.bf16.mxu0 0
    %1885 = vmatpush1.bf16.msra.mxu0 0
    %1886 = vmatprep.subr.bf16.mxu0 0
    %1887 = vmatpush1.bf16.msra.mxu0 0
    %1888 = vmatprep.subr.bf16.mxu0 0
    %1889 = vmatpush1.bf16.msra.mxu0 0
    %1890 = vmatprep.subr.bf16.mxu0 0
    %1891 = vmatpush1.bf16.msra.mxu0 0
    %1892 = vmatprep.subr.bf16.mxu0 0
    %1893 = vmatpush1.bf16.msra.mxu0 0
    %1894 = vmatprep.mubr.bf16.mxu0 0
    %1895 = vmatmul.mubr.bf16.gmra.mrb[0].mxu0 %v1435
    %v1896 = vpop.f32.mrb[0].mxu0
    %v1897 = vadd.f32 %v1505, %v1896
    %v1898 = vpop.f32.mrb[0].mxu0
    %v1899 = vadd.f32 %v1509, %v1898
    %v1900 = vpop.f32.mrb[0].mxu0
    %v1901 = vpop.f32.mrb[0].mxu0
    %1902 = vdwg.mxu0
    %1903 = vmatprep.subr.bf16.mxu0 %v1737
    %1904 = vmatpush1.bf16.msra.mxu0 %v1736
    %1905 = vmatprep.subr.bf16.mxu0 %v1745
    %1906 = vmatpush1.bf16.msra.mxu0 %v1744
    %1907 = vmatprep.subr.bf16.mxu0 %v1753
    %1908 = vmatpush1.bf16.msra.mxu0 %v1752
    %1909 = vmatprep.subr.bf16.mxu0 %v1761
    %1910 = vmatpush1.bf16.msra.mxu0 %v1760
    %1911 = vmatprep.subr.bf16.mxu0 %v1769
    %1912 = vmatpush1.bf16.msra.mxu0 %v1768
    %1913 = vmatprep.subr.bf16.mxu0 %v1777
    %1914 = vmatpush1.bf16.msra.mxu0 %v1776
    %1915 = vmatprep.subr.bf16.mxu0 %v1785
    %1916 = vmatpush1.bf16.msra.mxu0 %v1784
    %1917 = vmatprep.subr.bf16.mxu0 %v1793
    %1918 = vmatpush1.bf16.msra.mxu0 %v1792
    %1919 = vmatprep.subr.bf16.mxu0 0
    %1920 = vmatpush1.bf16.msra.mxu0 0
    %1921 = vmatprep.subr.bf16.mxu0 0
    %1922 = vmatpush1.bf16.msra.mxu0 0
    %1923 = vmatprep.subr.bf16.mxu0 0
    %1924 = vmatpush1.bf16.msra.mxu0 0
    %1925 = vmatprep.subr.bf16.mxu0 0
    %1926 = vmatpush1.bf16.msra.mxu0 0
    %1927 = vmatprep.subr.bf16.mxu0 0
    %1928 = vmatpush1.bf16.msra.mxu0 0
    %1929 = vmatprep.subr.bf16.mxu0 0
    %1930 = vmatpush1.bf16.msra.mxu0 0
    %1931 = vmatprep.subr.bf16.mxu0 0
    %1932 = vmatpush1.bf16.msra.mxu0 0
    %1933 = vmatprep.subr.bf16.mxu0 0
    %1934 = vmatpush1.bf16.msra.mxu0 0
    %1935 = vmatprep.mubr.bf16.mxu0 0
    %1936 = vmatmul.mubr.bf16.gmra.mrb[0].mxu0 %v1435
    %v1937 = vpop.f32.mrb[0].mxu0
    %v1938 = vadd.f32 %v1513, %v1937
    %v1939 = vpop.f32.mrb[0].mxu0
    %v1940 = vadd.f32 %v1517, %v1939
    %v1941 = vpop.f32.mrb[0].mxu0
    %v1942 = vpop.f32.mrb[0].mxu0
    %1943 = vdwg.mxu0
    %1944 = vmatprep.subr.bf16.mxu0 %v1739
    %1945 = vmatpush1.bf16.msra.mxu0 %v1738
    %1946 = vmatprep.subr.bf16.mxu0 %v1747
    %1947 = vmatpush1.bf16.msra.mxu0 %v1746
    %1948 = vmatprep.subr.bf16.mxu0 %v1755
    %1949 = vmatpush1.bf16.msra.mxu0 %v1754
    %1950 = vmatprep.subr.bf16.mxu0 %v1763
    %1951 = vmatpush1.bf16.msra.mxu0 %v1762
    %1952 = vmatprep.subr.bf16.mxu0 %v1771
    %1953 = vmatpush1.bf16.msra.mxu0 %v1770
    %1954 = vmatprep.subr.bf16.mxu0 %v1779
    %1955 = vmatpush1.bf16.msra.mxu0 %v1778
    %1956 = vmatprep.subr.bf16.mxu0 %v1787
    %1957 = vmatpush1.bf16.msra.mxu0 %v1786
    %1958 = vmatprep.subr.bf16.mxu0 %v1795
    %1959 = vmatpush1.bf16.msra.mxu0 %v1794
    %1960 = vmatprep.subr.bf16.mxu0 0
    %1961 = vmatpush1.bf16.msra.mxu0 0
    %1962 = vmatprep.subr.bf16.mxu0 0
    %1963 = vmatpush1.bf16.msra.mxu0 0
    %1964 = vmatprep.subr.bf16.mxu0 0
    %1965 = vmatpush1.bf16.msra.mxu0 0
    %1966 = vmatprep.subr.bf16.mxu0 0
    %1967 = vmatpush1.bf16.msra.mxu0 0
    %1968 = vmatprep.subr.bf16.mxu0 0
    %1969 = vmatpush1.bf16.msra.mxu0 0
    %1970 = vmatprep.subr.bf16.mxu0 0
    %1971 = vmatpush1.bf16.msra.mxu0 0
    %1972 = vmatprep.subr.bf16.mxu0 0
    %1973 = vmatpush1.bf16.msra.mxu0 0
    %1974 = vmatprep.subr.bf16.mxu0 0
    %1975 = vmatpush1.bf16.msra.mxu0 0
    %1976 = vmatprep.mubr.bf16.mxu0 0
    %1977 = vmatmul.mubr.bf16.gmra.mrb[0].mxu0 %v1435
    %v1978 = vpop.f32.mrb[0].mxu0
    %v1979 = vadd.f32 %v1521, %v1978
    %v1980 = vpop.f32.mrb[0].mxu0
    %v1981 = vadd.f32 %v1525, %v1980
    %v1982 = vpop.f32.mrb[0].mxu0
    %v1983 = vpop.f32.mrb[0].mxu0
    %1984 = vdwg.mxu0
    %1985 = vmatprep.subr.bf16.mxu0 %v1741
    %1986 = vmatpush1.bf16.msra.mxu0 %v1740
    %1987 = vmatprep.subr.bf16.mxu0 %v1749
    %1988 = vmatpush1.bf16.msra.mxu0 %v1748
    %1989 = vmatprep.subr.bf16.mxu0 %v1757
    %1990 = vmatpush1.bf16.msra.mxu0 %v1756
    %1991 = vmatprep.subr.bf16.mxu0 %v1765
    %1992 = vmatpush1.bf16.msra.mxu0 %v1764
    %1993 = vmatprep.subr.bf16.mxu0 %v1773
    %1994 = vmatpush1.bf16.msra.mxu0 %v1772
    %1995 = vmatprep.subr.bf16.mxu0 %v1781
    %1996 = vmatpush1.bf16.msra.mxu0 %v1780
    %1997 = vmatprep.subr.bf16.mxu0 %v1789
    %1998 = vmatpush1.bf16.msra.mxu0 %v1788
    %1999 = vmatprep.subr.bf16.mxu0 %v1797
    %2000 = vmatpush1.bf16.msra.mxu0 %v1796
    %2001 = vmatprep.subr.bf16.mxu0 0
    %2002 = vmatpush1.bf16.msra.mxu0 0
    %2003 = vmatprep.subr.bf16.mxu0 0
    %2004 = vmatpush1.bf16.msra.mxu0 0
    %2005 = vmatprep.subr.bf16.mxu0 0
    %2006 = vmatpush1.bf16.msra.mxu0 0
    %2007 = vmatprep.subr.bf16.mxu0 0
    %2008 = vmatpush1.bf16.msra.mxu0 0
    %2009 = vmatprep.subr.bf16.mxu0 0
    %2010 = vmatpush1.bf16.msra.mxu0 0
    %2011 = vmatprep.subr.bf16.mxu0 0
    %2012 = vmatpush1.bf16.msra.mxu0 0
    %2013 = vmatprep.subr.bf16.mxu0 0
    %2014 = vmatpush1.bf16.msra.mxu0 0
    %2015 = vmatprep.subr.bf16.mxu0 0
    %2016 = vmatpush1.bf16.msra.mxu0 0
    %2017 = vmatprep.mubr.bf16.mxu0 0
    %2018 = vmatmul.mubr.bf16.gmra.mrb[0].mxu0 %v1435
    %v2019 = vpop.f32.mrb[0].mxu0
    %v2020 = vadd.f32 %v1529, %v2019
    %v2021 = vpop.f32.mrb[0].mxu0
    %v2022 = vadd.f32 %v1533, %v2021
    %v2023 = vpop.f32.mrb[0].mxu0
    %v2024 = vpop.f32.mrb[0].mxu0
    %2025 = vdwg.mxu0
    %v2026 = vmax.f32 %v1897, 0.0
    %v2027 = vmax.f32 %v1899, 0.0
    %v2028 = vmax.f32 %v1938, 0.0
    %v2029 = vmax.f32 %v1940, 0.0
    %v2030 = vmax.f32 %v1979, 0.0
    %v2031 = vmax.f32 %v1981, 0.0
    %v2032 = vmax.f32 %v2020, 0.0
    %v2033 = vmax.f32 %v2022, 0.0
    %v2034 = vpack.c.bf16 %v2026, %v2026
    %v2035 = vpack.c.bf16 %v2027, %v2027
    %v2036 = vpack.c.bf16 %v2028, %v2028
    %v2037 = vpack.c.bf16 %v2029, %v2029
    %v2038 = vpack.c.bf16 %v2030, %v2030
    %v2039 = vpack.c.bf16 %v2031, %v2031
    %v2040 = vpack.c.bf16 %v2032, %v2032
    %v2041 = vpack.c.bf16 %v2033, %v2033
    %v2042 = vld [vmem:[%s21] sm:$0xf]
    %v2043 = vld [vmem:[%s21 + $0x4] sm:$0xf]
    %v2044 = vld [vmem:[%s21 + $0x8] sm:$0xf]
    %v2045 = vld [vmem:[%s21 + $0xc] sm:$0xf]
    %v2046 = vld [vmem:[%s21 + $0x10] sm:$0xf]
    %v2047 = vld [vmem:[%s21 + $0x14] sm:$0xf]
    %v2048 = vld [vmem:[%s21 + $0x18] sm:$0xf]
    %v2049 = vld [vmem:[%s21 + $0x1c] sm:$0xf]
    %v2050 = vld [vmem:[%s21 + $0x20] sm:$0xf]
    %v2051 = vld [vmem:[%s21 + $0x24] sm:$0xf]
    %v2052 = vld [vmem:[%s21 + $0x28] sm:$0xf]
    %v2053 = vld [vmem:[%s21 + $0x2c] sm:$0xf]
    %v2054 = vld [vmem:[%s21 + $0x30] sm:$0xf]
    %v2055 = vld [vmem:[%s21 + $0x34] sm:$0xf]
    %v2056 = vld [vmem:[%s21 + $0x38] sm:$0xf]
    %v2057 = vld [vmem:[%s21 + $0x3c] sm:$0xf]
    %v2058 = vld [vmem:[%s21 + $0x40] sm:$0xf]
    %v2059 = vld [vmem:[%s21 + $0x44] sm:$0xf]
    %v2060 = vld [vmem:[%s21 + $0x48] sm:$0xf]
    %v2061 = vld [vmem:[%s21 + $0x4c] sm:$0xf]
    %v2062 = vld [vmem:[%s21 + $0x50] sm:$0xf]
    %v2063 = vld [vmem:[%s21 + $0x54] sm:$0xf]
    %v2064 = vld [vmem:[%s21 + $0x58] sm:$0xf]
    %v2065 = vld [vmem:[%s21 + $0x5c] sm:$0xf]
    %v2066 = vld [vmem:[%s21 + $0x60] sm:$0xf]
    %v2067 = vld [vmem:[%s21 + $0x64] sm:$0xf]
    %v2068 = vld [vmem:[%s21 + $0x68] sm:$0xf]
    %v2069 = vld [vmem:[%s21 + $0x6c] sm:$0xf]
    %v2070 = vld [vmem:[%s21 + $0x70] sm:$0xf]
    %v2071 = vld [vmem:[%s21 + $0x74] sm:$0xf]
    %v2072 = vld [vmem:[%s21 + $0x78] sm:$0xf]
    %v2073 = vld [vmem:[%s21 + $0x7c] sm:$0xf]
    %v2074 = vld [vmem:[%s21 + $0x80] sm:$0xf]
    %v2075 = vld [vmem:[%s21 + $0x84] sm:$0xf]
    %v2076 = vld [vmem:[%s21 + $0x88] sm:$0xf]
    %v2077 = vld [vmem:[%s21 + $0x8c] sm:$0xf]
    %v2078 = vld [vmem:[%s21 + $0x90] sm:$0xf]
    %v2079 = vld [vmem:[%s21 + $0x94] sm:$0xf]
    %v2080 = vld [vmem:[%s21 + $0x98] sm:$0xf]
    %v2081 = vld [vmem:[%s21 + $0x9c] sm:$0xf]
    %v2082 = vld [vmem:[%s21 + $0xa0] sm:$0xf]
    %v2083 = vld [vmem:[%s21 + $0xa4] sm:$0xf]
    %v2084 = vld [vmem:[%s21 + $0xa8] sm:$0xf]
    %v2085 = vld [vmem:[%s21 + $0xac] sm:$0xf]
    %v2086 = vld [vmem:[%s21 + $0xb0] sm:$0xf]
    %v2087 = vld [vmem:[%s21 + $0xb4] sm:$0xf]
    %v2088 = vld [vmem:[%s21 + $0xb8] sm:$0xf]
    %v2089 = vld [vmem:[%s21 + $0xbc] sm:$0xf]
    %v2090 = vld [vmem:[%s21 + $0xc0] sm:$0xf]
    %v2091 = vld [vmem:[%s21 + $0xc4] sm:$0xf]
    %v2092 = vld [vmem:[%s21 + $0xc8] sm:$0xf]
    %v2093 = vld [vmem:[%s21 + $0xcc] sm:$0xf]
    %v2094 = vld [vmem:[%s21 + $0xd0] sm:$0xf]
    %v2095 = vld [vmem:[%s21 + $0xd4] sm:$0xf]
    %v2096 = vld [vmem:[%s21 + $0xd8] sm:$0xf]
    %v2097 = vld [vmem:[%s21 + $0xdc] sm:$0xf]
    %v2098 = vld [vmem:[%s21 + $0xe0] sm:$0xf]
    %v2099 = vld [vmem:[%s21 + $0xe4] sm:$0xf]
    %v2100 = vld [vmem:[%s21 + $0xe8] sm:$0xf]
    %v2101 = vld [vmem:[%s21 + $0xec] sm:$0xf]
    %v2102 = vld [vmem:[%s21 + $0xf0] sm:$0xf]
    %v2103 = vld [vmem:[%s21 + $0xf4] sm:$0xf]
    %v2104 = vld [vmem:[%s21 + $0xf8] sm:$0xf]
    %v2105 = vld [vmem:[%s21 + $0xfc] sm:$0xf]
    %v2106 = vld [vmem:[%s21 + $0x100] sm:$0xf]
    %v2107 = vld [vmem:[%s21 + $0x104] sm:$0xf]
    %v2108 = vld [vmem:[%s21 + $0x108] sm:$0xf]
    %v2109 = vld [vmem:[%s21 + $0x10c] sm:$0xf]
    %v2110 = vld [vmem:[%s21 + $0x110] sm:$0xf]
    %v2111 = vld [vmem:[%s21 + $0x114] sm:$0xf]
    %v2112 = vld [vmem:[%s21 + $0x118] sm:$0xf]
    %v2113 = vld [vmem:[%s21 + $0x11c] sm:$0xf]
    %v2114 = vld [vmem:[%s21 + $0x120] sm:$0xf]
    %v2115 = vld [vmem:[%s21 + $0x124] sm:$0xf]
    %v2116 = vld [vmem:[%s21 + $0x128] sm:$0xf]
    %v2117 = vld [vmem:[%s21 + $0x12c] sm:$0xf]
    %v2118 = vld [vmem:[%s21 + $0x130] sm:$0xf]
    %v2119 = vld [vmem:[%s21 + $0x134] sm:$0xf]
    %v2120 = vld [vmem:[%s21 + $0x138] sm:$0xf]
    %v2121 = vld [vmem:[%s21 + $0x13c] sm:$0xf]
    %v2122 = vld [vmem:[%s21 + $0x140] sm:$0xf]
    %v2123 = vld [vmem:[%s21 + $0x144] sm:$0xf]
    %v2124 = vld [vmem:[%s21 + $0x148] sm:$0xf]
    %v2125 = vld [vmem:[%s21 + $0x14c] sm:$0xf]
    %v2126 = vld [vmem:[%s21 + $0x150] sm:$0xf]
    %v2127 = vld [vmem:[%s21 + $0x154] sm:$0xf]
    %v2128 = vld [vmem:[%s21 + $0x158] sm:$0xf]
    %v2129 = vld [vmem:[%s21 + $0x15c] sm:$0xf]
    %v2130 = vld [vmem:[%s21 + $0x160] sm:$0xf]
    %v2131 = vld [vmem:[%s21 + $0x164] sm:$0xf]
    %v2132 = vld [vmem:[%s21 + $0x168] sm:$0xf]
    %v2133 = vld [vmem:[%s21 + $0x16c] sm:$0xf]
    %v2134 = vld [vmem:[%s21 + $0x170] sm:$0xf]
    %v2135 = vld [vmem:[%s21 + $0x174] sm:$0xf]
    %v2136 = vld [vmem:[%s21 + $0x178] sm:$0xf]
    %v2137 = vld [vmem:[%s21 + $0x17c] sm:$0xf]
    %v2138 = vld [vmem:[%s21 + $0x180] sm:$0xf]
    %v2139 = vld [vmem:[%s21 + $0x184] sm:$0xf]
    %v2140 = vld [vmem:[%s21 + $0x188] sm:$0xf]
    %v2141 = vld [vmem:[%s21 + $0x18c] sm:$0xf]
    %v2142 = vld [vmem:[%s21 + $0x190] sm:$0xf]
    %v2143 = vld [vmem:[%s21 + $0x194] sm:$0xf]
    %v2144 = vld [vmem:[%s21 + $0x198] sm:$0xf]
    %v2145 = vld [vmem:[%s21 + $0x19c] sm:$0xf]
    %v2146 = vld [vmem:[%s21 + $0x1a0] sm:$0xf]
    %v2147 = vld [vmem:[%s21 + $0x1a4] sm:$0xf]
    %v2148 = vld [vmem:[%s21 + $0x1a8] sm:$0xf]
    %v2149 = vld [vmem:[%s21 + $0x1ac] sm:$0xf]
    %v2150 = vld [vmem:[%s21 + $0x1b0] sm:$0xf]
    %v2151 = vld [vmem:[%s21 + $0x1b4] sm:$0xf]
    %v2152 = vld [vmem:[%s21 + $0x1b8] sm:$0xf]
    %v2153 = vld [vmem:[%s21 + $0x1bc] sm:$0xf]
    %v2154 = vld [vmem:[%s21 + $0x1c0] sm:$0xf]
    %v2155 = vld [vmem:[%s21 + $0x1c4] sm:$0xf]
    %v2156 = vld [vmem:[%s21 + $0x1c8] sm:$0xf]
    %v2157 = vld [vmem:[%s21 + $0x1cc] sm:$0xf]
    %v2158 = vld [vmem:[%s21 + $0x1d0] sm:$0xf]
    %v2159 = vld [vmem:[%s21 + $0x1d4] sm:$0xf]
    %v2160 = vld [vmem:[%s21 + $0x1d8] sm:$0xf]
    %v2161 = vld [vmem:[%s21 + $0x1dc] sm:$0xf]
    %v2162 = vld [vmem:[%s21 + $0x1e0] sm:$0xf]
    %v2163 = vld [vmem:[%s21 + $0x1e4] sm:$0xf]
    %v2164 = vld [vmem:[%s21 + $0x1e8] sm:$0xf]
    %v2165 = vld [vmem:[%s21 + $0x1ec] sm:$0xf]
    %v2166 = vld [vmem:[%s21 + $0x1f0] sm:$0xf]
    %v2167 = vld [vmem:[%s21 + $0x1f4] sm:$0xf]
    %v2168 = vld [vmem:[%s21 + $0x1f8] sm:$0xf]
    %v2169 = vld [vmem:[%s21 + $0x1fc] sm:$0xf]
    %v2170 = vld [vmem:[%s22] sm:$0x1]
    %v2172 = vlaneseq
    %v2173 = vshrl.u32 %v2172, 7
    %v2174 = vsub.s32 0, %v2173
    %v2175 = vrot.slane %v2170, %v2174
    %v2305 = vunpack.c.l.b16 %v2042
    %v2306 = vunpack.c.l.b16 %v2043
    %v2307 = vunpack.c.l.b16 %v2044
    %v2308 = vunpack.c.l.b16 %v2045
    %v2309 = vunpack.c.l.b16 %v2046
    %v2310 = vunpack.c.l.b16 %v2047
    %v2311 = vunpack.c.l.b16 %v2048
    %v2312 = vunpack.c.l.b16 %v2049
    %v2313 = vunpack.c.l.b16 %v2050
    %v2314 = vunpack.c.l.b16 %v2051
    %v2315 = vunpack.c.l.b16 %v2052
    %v2316 = vunpack.c.l.b16 %v2053
    %v2317 = vunpack.c.l.b16 %v2054
    %v2318 = vunpack.c.l.b16 %v2055
    %v2319 = vunpack.c.l.b16 %v2056
    %v2320 = vunpack.c.l.b16 %v2057
    %v2321 = vunpack.c.l.b16 %v2058
    %v2322 = vunpack.c.l.b16 %v2059
    %v2323 = vunpack.c.l.b16 %v2060
    %v2324 = vunpack.c.l.b16 %v2061
    %v2325 = vunpack.c.l.b16 %v2062
    %v2326 = vunpack.c.l.b16 %v2063
    %v2327 = vunpack.c.l.b16 %v2064
    %v2328 = vunpack.c.l.b16 %v2065
    %v2329 = vunpack.c.l.b16 %v2066
    %v2330 = vunpack.c.l.b16 %v2067
    %v2331 = vunpack.c.l.b16 %v2068
    %v2332 = vunpack.c.l.b16 %v2069
    %v2333 = vunpack.c.l.b16 %v2070
    %v2334 = vunpack.c.l.b16 %v2071
    %v2335 = vunpack.c.l.b16 %v2072
    %v2336 = vunpack.c.l.b16 %v2073
    %v2337 = vunpack.c.l.b16 %v2074
    %v2338 = vunpack.c.l.b16 %v2075
    %v2339 = vunpack.c.l.b16 %v2076
    %v2340 = vunpack.c.l.b16 %v2077
    %v2341 = vunpack.c.l.b16 %v2078
    %v2342 = vunpack.c.l.b16 %v2079
    %v2343 = vunpack.c.l.b16 %v2080
    %v2344 = vunpack.c.l.b16 %v2081
    %v2345 = vunpack.c.l.b16 %v2082
    %v2346 = vunpack.c.l.b16 %v2083
    %v2347 = vunpack.c.l.b16 %v2084
    %v2348 = vunpack.c.l.b16 %v2085
    %v2349 = vunpack.c.l.b16 %v2086
    %v2350 = vunpack.c.l.b16 %v2087
    %v2351 = vunpack.c.l.b16 %v2088
    %v2352 = vunpack.c.l.b16 %v2089
    %v2353 = vunpack.c.l.b16 %v2090
    %v2354 = vunpack.c.l.b16 %v2091
    %v2355 = vunpack.c.l.b16 %v2092
    %v2356 = vunpack.c.l.b16 %v2093
    %v2357 = vunpack.c.l.b16 %v2094
    %v2358 = vunpack.c.l.b16 %v2095
    %v2359 = vunpack.c.l.b16 %v2096
    %v2360 = vunpack.c.l.b16 %v2097
    %v2361 = vunpack.c.l.b16 %v2098
    %v2362 = vunpack.c.l.b16 %v2099
    %v2363 = vunpack.c.l.b16 %v2100
    %v2364 = vunpack.c.l.b16 %v2101
    %v2365 = vunpack.c.l.b16 %v2102
    %v2366 = vunpack.c.l.b16 %v2103
    %v2367 = vunpack.c.l.b16 %v2104
    %v2368 = vunpack.c.l.b16 %v2105
    %v2369 = vunpack.c.l.b16 %v2106
    %v2370 = vunpack.c.l.b16 %v2107
    %v2371 = vunpack.c.l.b16 %v2108
    %v2372 = vunpack.c.l.b16 %v2109
    %v2373 = vunpack.c.l.b16 %v2110
    %v2374 = vunpack.c.l.b16 %v2111
    %v2375 = vunpack.c.l.b16 %v2112
    %v2376 = vunpack.c.l.b16 %v2113
    %v2377 = vunpack.c.l.b16 %v2114
    %v2378 = vunpack.c.l.b16 %v2115
    %v2379 = vunpack.c.l.b16 %v2116
    %v2380 = vunpack.c.l.b16 %v2117
    %v2381 = vunpack.c.l.b16 %v2118
    %v2382 = vunpack.c.l.b16 %v2119
    %v2383 = vunpack.c.l.b16 %v2120
    %v2384 = vunpack.c.l.b16 %v2121
    %v2385 = vunpack.c.l.b16 %v2122
    %v2386 = vunpack.c.l.b16 %v2123
    %v2387 = vunpack.c.l.b16 %v2124
    %v2388 = vunpack.c.l.b16 %v2125
    %v2389 = vunpack.c.l.b16 %v2126
    %v2390 = vunpack.c.l.b16 %v2127
    %v2391 = vunpack.c.l.b16 %v2128
    %v2392 = vunpack.c.l.b16 %v2129
    %v2393 = vunpack.c.l.b16 %v2130
    %v2394 = vunpack.c.l.b16 %v2131
    %v2395 = vunpack.c.l.b16 %v2132
    %v2396 = vunpack.c.l.b16 %v2133
    %v2397 = vunpack.c.l.b16 %v2134
    %v2398 = vunpack.c.l.b16 %v2135
    %v2399 = vunpack.c.l.b16 %v2136
    %v2400 = vunpack.c.l.b16 %v2137
    %v2401 = vunpack.c.l.b16 %v2138
    %v2402 = vunpack.c.l.b16 %v2139
    %v2403 = vunpack.c.l.b16 %v2140
    %v2404 = vunpack.c.l.b16 %v2141
    %v2405 = vunpack.c.l.b16 %v2142
    %v2406 = vunpack.c.l.b16 %v2143
    %v2407 = vunpack.c.l.b16 %v2144
    %v2408 = vunpack.c.l.b16 %v2145
    %v2409 = vunpack.c.l.b16 %v2146
    %v2410 = vunpack.c.l.b16 %v2147
    %v2411 = vunpack.c.l.b16 %v2148
    %v2412 = vunpack.c.l.b16 %v2149
    %v2413 = vunpack.c.l.b16 %v2150
    %v2414 = vunpack.c.l.b16 %v2151
    %v2415 = vunpack.c.l.b16 %v2152
    %v2416 = vunpack.c.l.b16 %v2153
    %v2417 = vunpack.c.l.b16 %v2154
    %v2418 = vunpack.c.l.b16 %v2155
    %v2419 = vunpack.c.l.b16 %v2156
    %v2420 = vunpack.c.l.b16 %v2157
    %v2421 = vunpack.c.l.b16 %v2158
    %v2422 = vunpack.c.l.b16 %v2159
    %v2423 = vunpack.c.l.b16 %v2160
    %v2424 = vunpack.c.l.b16 %v2161
    %v2425 = vunpack.c.l.b16 %v2162
    %v2426 = vunpack.c.l.b16 %v2163
    %v2427 = vunpack.c.l.b16 %v2164
    %v2428 = vunpack.c.l.b16 %v2165
    %v2429 = vunpack.c.l.b16 %v2166
    %v2430 = vunpack.c.l.b16 %v2167
    %v2431 = vunpack.c.l.b16 %v2168
    %v2432 = vunpack.c.l.b16 %v2169
    %v2433 = vpack.c.b16 %v2306, %v2305
    %v2434 = vpack.c.b16 %v2308, %v2307
    %v2435 = vpack.c.b16 %v2310, %v2309
    %v2436 = vpack.c.b16 %v2312, %v2311
    %v2437 = vpack.c.b16 %v2314, %v2313
    %v2438 = vpack.c.b16 %v2316, %v2315
    %v2439 = vpack.c.b16 %v2318, %v2317
    %v2440 = vpack.c.b16 %v2320, %v2319
    %v2441 = vpack.c.b16 %v2322, %v2321
    %v2442 = vpack.c.b16 %v2324, %v2323
    %v2443 = vpack.c.b16 %v2326, %v2325
    %v2444 = vpack.c.b16 %v2328, %v2327
    %v2445 = vpack.c.b16 %v2330, %v2329
    %v2446 = vpack.c.b16 %v2332, %v2331
    %v2447 = vpack.c.b16 %v2334, %v2333
    %v2448 = vpack.c.b16 %v2336, %v2335
    %v2449 = vpack.c.b16 %v2338, %v2337
    %v2450 = vpack.c.b16 %v2340, %v2339
    %v2451 = vpack.c.b16 %v2342, %v2341
    %v2452 = vpack.c.b16 %v2344, %v2343
    %v2453 = vpack.c.b16 %v2346, %v2345
    %v2454 = vpack.c.b16 %v2348, %v2347
    %v2455 = vpack.c.b16 %v2350, %v2349
    %v2456 = vpack.c.b16 %v2352, %v2351
    %v2457 = vpack.c.b16 %v2354, %v2353
    %v2458 = vpack.c.b16 %v2356, %v2355
    %v2459 = vpack.c.b16 %v2358, %v2357
    %v2460 = vpack.c.b16 %v2360, %v2359
    %v2461 = vpack.c.b16 %v2362, %v2361
    %v2462 = vpack.c.b16 %v2364, %v2363
    %v2463 = vpack.c.b16 %v2366, %v2365
    %v2464 = vpack.c.b16 %v2368, %v2367
    %v2465 = vpack.c.b16 %v2370, %v2369
    %v2466 = vpack.c.b16 %v2372, %v2371
    %v2467 = vpack.c.b16 %v2374, %v2373
    %v2468 = vpack.c.b16 %v2376, %v2375
    %v2469 = vpack.c.b16 %v2378, %v2377
    %v2470 = vpack.c.b16 %v2380, %v2379
    %v2471 = vpack.c.b16 %v2382, %v2381
    %v2472 = vpack.c.b16 %v2384, %v2383
    %v2473 = vpack.c.b16 %v2386, %v2385
    %v2474 = vpack.c.b16 %v2388, %v2387
    %v2475 = vpack.c.b16 %v2390, %v2389
    %v2476 = vpack.c.b16 %v2392, %v2391
    %v2477 = vpack.c.b16 %v2394, %v2393
    %v2478 = vpack.c.b16 %v2396, %v2395
    %v2479 = vpack.c.b16 %v2398, %v2397
    %v2480 = vpack.c.b16 %v2400, %v2399
    %v2481 = vpack.c.b16 %v2402, %v2401
    %v2482 = vpack.c.b16 %v2404, %v2403
    %v2483 = vpack.c.b16 %v2406, %v2405
    %v2484 = vpack.c.b16 %v2408, %v2407
    %v2485 = vpack.c.b16 %v2410, %v2409
    %v2486 = vpack.c.b16 %v2412, %v2411
    %v2487 = vpack.c.b16 %v2414, %v2413
    %v2488 = vpack.c.b16 %v2416, %v2415
    %v2489 = vpack.c.b16 %v2418, %v2417
    %v2490 = vpack.c.b16 %v2420, %v2419
    %v2491 = vpack.c.b16 %v2422, %v2421
    %v2492 = vpack.c.b16 %v2424, %v2423
    %v2493 = vpack.c.b16 %v2426, %v2425
    %v2494 = vpack.c.b16 %v2428, %v2427
    %v2495 = vpack.c.b16 %v2430, %v2429
    %v2496 = vpack.c.b16 %v2432, %v2431
    %2561 = vmatprep.subr.bf16.mxu0 0
    %2562 = vmatpush1.bf16.msra.mxu0 %v2433
    %2563 = vmatprep.subr.bf16.mxu0 0
    %2564 = vmatpush1.bf16.msra.mxu0 %v2434
    %2565 = vmatprep.subr.bf16.mxu0 0
    %2566 = vmatpush1.bf16.msra.mxu0 %v2435
    %2567 = vmatprep.subr.bf16.mxu0 0
    %2568 = vmatpush1.bf16.msra.mxu0 %v2436
    %2569 = vmatprep.subr.bf16.mxu0 0
    %2570 = vmatpush1.bf16.msra.mxu0 %v2437
    %2571 = vmatprep.subr.bf16.mxu0 0
    %2572 = vmatpush1.bf16.msra.mxu0 %v2438
    %2573 = vmatprep.subr.bf16.mxu0 0
    %2574 = vmatpush1.bf16.msra.mxu0 %v2439
    %2575 = vmatprep.subr.bf16.mxu0 0
    %2576 = vmatpush1.bf16.msra.mxu0 %v2440
    %2577 = vmatprep.subr.bf16.mxu0 0
    %2578 = vmatpush1.bf16.msra.mxu0 %v2441
    %2579 = vmatprep.subr.bf16.mxu0 0
    %2580 = vmatpush1.bf16.msra.mxu0 %v2442
    %2581 = vmatprep.subr.bf16.mxu0 0
    %2582 = vmatpush1.bf16.msra.mxu0 %v2443
    %2583 = vmatprep.subr.bf16.mxu0 0
    %2584 = vmatpush1.bf16.msra.mxu0 %v2444
    %2585 = vmatprep.subr.bf16.mxu0 0
    %2586 = vmatpush1.bf16.msra.mxu0 %v2445
    %2587 = vmatprep.subr.bf16.mxu0 0
    %2588 = vmatpush1.bf16.msra.mxu0 %v2446
    %2589 = vmatprep.subr.bf16.mxu0 0
    %2590 = vmatpush1.bf16.msra.mxu0 %v2447
    %2591 = vmatprep.subr.bf16.mxu0 0
    %2592 = vmatpush1.bf16.msra.mxu0 %v2448
    %2593 = vmatprep.mubr.bf16.mxu0 %v2035
    %2594 = vmatmul.mubr.bf16.gmra.mrb[0].mxu0 %v2034
    %v2595 = vpop.f32.mrb[0].mxu0
    %v2596 = vadd.f32 %v2175, %v2595
    %v2597 = vpop.f32.mrb[0].mxu0
    %v2598 = vpop.f32.mrb[0].mxu0
    %v2599 = vpop.f32.mrb[0].mxu0
    %2600 = vdwg.mxu0
    %2601 = vmatprep.subr.bf16.mxu0 0
    %2602 = vmatpush1.bf16.msra.mxu0 %v2449
    %2603 = vmatprep.subr.bf16.mxu0 0
    %2604 = vmatpush1.bf16.msra.mxu0 %v2450
    %2605 = vmatprep.subr.bf16.mxu0 0
    %2606 = vmatpush1.bf16.msra.mxu0 %v2451
    %2607 = vmatprep.subr.bf16.mxu0 0
    %2608 = vmatpush1.bf16.msra.mxu0 %v2452
    %2609 = vmatprep.subr.bf16.mxu0 0
    %2610 = vmatpush1.bf16.msra.mxu0 %v2453
    %2611 = vmatprep.subr.bf16.mxu0 0
    %2612 = vmatpush1.bf16.msra.mxu0 %v2454
    %2613 = vmatprep.subr.bf16.mxu0 0
    %2614 = vmatpush1.bf16.msra.mxu0 %v2455
    %2615 = vmatprep.subr.bf16.mxu0 0
    %2616 = vmatpush1.bf16.msra.mxu0 %v2456
    %2617 = vmatprep.subr.bf16.mxu0 0
    %2618 = vmatpush1.bf16.msra.mxu0 %v2457
    %2619 = vmatprep.subr.bf16.mxu0 0
    %2620 = vmatpush1.bf16.msra.mxu0 %v2458
    %2621 = vmatprep.subr.bf16.mxu0 0
    %2622 = vmatpush1.bf16.msra.mxu0 %v2459
    %2623 = vmatprep.subr.bf16.mxu0 0
    %2624 = vmatpush1.bf16.msra.mxu0 %v2460
    %2625 = vmatprep.subr.bf16.mxu0 0
    %2626 = vmatpush1.bf16.msra.mxu0 %v2461
    %2627 = vmatprep.subr.bf16.mxu0 0
    %2628 = vmatpush1.bf16.msra.mxu0 %v2462
    %2629 = vmatprep.subr.bf16.mxu0 0
    %2630 = vmatpush1.bf16.msra.mxu0 %v2463
    %2631 = vmatprep.subr.bf16.mxu0 0
    %2632 = vmatpush1.bf16.msra.mxu0 %v2464
    %2633 = vmatprep.mubr.bf16.mxu0 %v2037
    %2634 = vmatmul.mubr.bf16.gmra.mrb[0].mxu0 %v2036
    %v2635 = vpop.f32.mrb[0].mxu0
    %v2636 = vadd.f32 %v2596, %v2635
    %v2637 = vpop.f32.mrb[0].mxu0
    %v2638 = vpop.f32.mrb[0].mxu0
    %v2639 = vpop.f32.mrb[0].mxu0
    %2640 = vdwg.mxu0
    %2641 = vmatprep.subr.bf16.mxu0 0
    %2642 = vmatpush1.bf16.msra.mxu0 %v2465
    %2643 = vmatprep.subr.bf16.mxu0 0
    %2644 = vmatpush1.bf16.msra.mxu0 %v2466
    %2645 = vmatprep.subr.bf16.mxu0 0
    %2646 = vmatpush1.bf16.msra.mxu0 %v2467
    %2647 = vmatprep.subr.bf16.mxu0 0
    %2648 = vmatpush1.bf16.msra.mxu0 %v2468
    %2649 = vmatprep.subr.bf16.mxu0 0
    %2650 = vmatpush1.bf16.msra.mxu0 %v2469
    %2651 = vmatprep.subr.bf16.mxu0 0
    %2652 = vmatpush1.bf16.msra.mxu0 %v2470
    %2653 = vmatprep.subr.bf16.mxu0 0
    %2654 = vmatpush1.bf16.msra.mxu0 %v2471
    %2655 = vmatprep.subr.bf16.mxu0 0
    %2656 = vmatpush1.bf16.msra.mxu0 %v2472
    %2657 = vmatprep.subr.bf16.mxu0 0
    %2658 = vmatpush1.bf16.msra.mxu0 %v2473
    %2659 = vmatprep.subr.bf16.mxu0 0
    %2660 = vmatpush1.bf16.msra.mxu0 %v2474
    %2661 = vmatprep.subr.bf16.mxu0 0
    %2662 = vmatpush1.bf16.msra.mxu0 %v2475
    %2663 = vmatprep.subr.bf16.mxu0 0
    %2664 = vmatpush1.bf16.msra.mxu0 %v2476
    %2665 = vmatprep.subr.bf16.mxu0 0
    %2666 = vmatpush1.bf16.msra.mxu0 %v2477
    %2667 = vmatprep.subr.bf16.mxu0 0
    %2668 = vmatpush1.bf16.msra.mxu0 %v2478
    %2669 = vmatprep.subr.bf16.mxu0 0
    %2670 = vmatpush1.bf16.msra.mxu0 %v2479
    %2671 = vmatprep.subr.bf16.mxu0 0
    %2672 = vmatpush1.bf16.msra.mxu0 %v2480
    %2673 = vmatprep.mubr.bf16.mxu0 %v2039
    %2674 = vmatmul.mubr.bf16.gmra.mrb[0].mxu0 %v2038
    %v2675 = vpop.f32.mrb[0].mxu0
    %v2676 = vadd.f32 %v2636, %v2675
    %v2677 = vpop.f32.mrb[0].mxu0
    %v2678 = vpop.f32.mrb[0].mxu0
    %v2679 = vpop.f32.mrb[0].mxu0
    %2680 = vdwg.mxu0
    %2681 = vmatprep.subr.bf16.mxu0 0
    %2682 = vmatpush1.bf16.msra.mxu0 %v2481
    %2683 = vmatprep.subr.bf16.mxu0 0
    %2684 = vmatpush1.bf16.msra.mxu0 %v2482
    %2685 = vmatprep.subr.bf16.mxu0 0
    %2686 = vmatpush1.bf16.msra.mxu0 %v2483
    %2687 = vmatprep.subr.bf16.mxu0 0
    %2688 = vmatpush1.bf16.msra.mxu0 %v2484
    %2689 = vmatprep.subr.bf16.mxu0 0
    %2690 = vmatpush1.bf16.msra.mxu0 %v2485
    %2691 = vmatprep.subr.bf16.mxu0 0
    %2692 = vmatpush1.bf16.msra.mxu0 %v2486
    %2693 = vmatprep.subr.bf16.mxu0 0
    %2694 = vmatpush1.bf16.msra.mxu0 %v2487
    %2695 = vmatprep.subr.bf16.mxu0 0
    %2696 = vmatpush1.bf16.msra.mxu0 %v2488
    %2697 = vmatprep.subr.bf16.mxu0 0
    %2698 = vmatpush1.bf16.msra.mxu0 %v2489
    %2699 = vmatprep.subr.bf16.mxu0 0
    %2700 = vmatpush1.bf16.msra.mxu0 %v2490
    %2701 = vmatprep.subr.bf16.mxu0 0
    %2702 = vmatpush1.bf16.msra.mxu0 %v2491
    %2703 = vmatprep.subr.bf16.mxu0 0
    %2704 = vmatpush1.bf16.msra.mxu0 %v2492
    %2705 = vmatprep.subr.bf16.mxu0 0
    %2706 = vmatpush1.bf16.msra.mxu0 %v2493
    %2707 = vmatprep.subr.bf16.mxu0 0
    %2708 = vmatpush1.bf16.msra.mxu0 %v2494
    %2709 = vmatprep.subr.bf16.mxu0 0
    %2710 = vmatpush1.bf16.msra.mxu0 %v2495
    %2711 = vmatprep.subr.bf16.mxu0 0
    %2712 = vmatpush1.bf16.msra.mxu0 %v2496
    %2713 = vmatprep.mubr.bf16.mxu0 %v2041
    %2714 = vmatmul.mubr.bf16.gmra.mrb[0].mxu0 %v2040
    %v2715 = vpop.f32.mrb[0].mxu0
    %v2716 = vadd.f32 %v2676, %v2715
    %v2717 = vpop.f32.mrb[0].mxu0
    %v2718 = vpop.f32.mrb[0].mxu0
    %v2719 = vpop.f32.mrb[0].mxu0
    %2720 = vdwg.mxu0
    %v2721 = vadd.f32 %v1434, %v2716
    %v2722 = vld [vmem:[%s23] sm:$0x1]
    %v2723 = vld [vmem:[%s24] sm:$0x1]
    %2724 = vadd.xlane.f32.xlu0 %v2721
    %v2725 = vpop.xlane.xlu0 %2724
    %v2726 = vmul.f32 %v2725, %v1411
    %v2727 = vsub.f32 %v2721, %v2726
    %v2728 = vmul.f32 %v2727, %v2727
    %2729 = vadd.xlane.f32.xlu0 %v2728
    %v2730 = vpop.xlane.xlu0 %2729
    %v2731 = vmul.f32 %v2730, %v1411
    %v2732 = vadd.f32 %v2731, 1e-05
    %v2733 = vrsqrt.pop %v2732
    %v2734 = vmul.f32 %v2727, %v2733
    %v2736 = vlaneseq
    %v2737 = vshrl.u32 %v2736, 7
    %v2738 = vsub.s32 0, %v2737
    %v2739 = vrot.slane %v2722, %v2738
    %v2741 = vmul.f32 %v2734, %v2739
    %v2743 = vlaneseq
    %v2744 = vshrl.u32 %v2743, 7
    %v2745 = vsub.s32 0, %v2744
    %v2746 = vrot.slane %v2723, %v2745
    %v2748 = vadd.f32 %v2741, %v2746
    %2749 = vst [vmem:[#allocation2] sm:$0xff] %v2748
    %vm2750 = vcmask 7168
    %2751 = vst.msk [vmem:[%s26] sm:$0xff] %vm2750, %v1272
    %vm2752 = vcmask 15368
    %2753 = vst.msk [vmem:[%s26] sm:$0xff] %vm2752, %v1288
    %vm2754 = vcmask 23568
    %2755 = vst.msk [vmem:[%s26] sm:$0xff] %vm2754, %v1307
    %vm2756 = vcmask 31768
    %2757 = vst.msk [vmem:[%s26] sm:$0xff] %vm2756, %v1326
    // Predicated region
    $region102: #{_encoder_hitanet_forward_jit.3} parent=1 // pred_check
      _
    $region103: #{_encoder_hitanet_forward_jit.3} parent=1 // pred_check_branch
      %2759 = sbr.rel (0) target = $region105
    $region104: #{_encoder_hitanet_forward_jit.3} parent=1 // pred_region
      %s2761 = ssub.s32 128, 128
      %2762 = vsyncadd [#allocation3], %s2761
      %s2764 = sshll.u32 [#allocation2], 4
      %s2765 = int_to_ptr.vmem [resolvable:$true] %s2764
      %2767 = dma.vmem_to_hbm [thread:$0]  %s2765, 128, %s25, [#allocation3]
    $region105: #{_encoder_hitanet_forward_jit.3} parent=1 // pred_fallthru
      _
    // Predicated region
    $region106: #{_encoder_hitanet_forward_jit.3} parent=1 // pred_check
      _
    $region107: #{_encoder_hitanet_forward_jit.3} parent=1 // pred_check_branch
      %2769 = sbr.rel (0) target = $region109
    $region108: #{_encoder_hitanet_forward_jit.3} parent=1 // pred_region
      _
    $region109: #{_encoder_hitanet_forward_jit.3} parent=1 // pred_fallthru
      _
    // Predicated region
    $region110: #{_encoder_hitanet_forward_jit.3} parent=1 // pred_check
      _
    $region111: #{_encoder_hitanet_forward_jit.3} parent=1 // pred_check_branch
      %2771 = sbr.rel (0) target = $region113
    $region112: #{_encoder_hitanet_forward_jit.3} parent=1 // pred_region
      %2772 = dma.done [#allocation3], 128
    $region113: #{_encoder_hitanet_forward_jit.3} parent=1 // pred_fallthru
      _
    // Predicated region
    $region114: #{_encoder_hitanet_forward_jit.3} parent=1 // pred_check
      _
    $region115: #{_encoder_hitanet_forward_jit.3} parent=1 // pred_check_branch
      %2774 = sbr.rel (0) target = $region117
    $region116: #{_encoder_hitanet_forward_jit.3} parent=1 // pred_region
      _
    $region117: #{_encoder_hitanet_forward_jit.3} parent=1 // pred_fallthru
      _
    %2775 = vsyncpa [#allocation3], 1

</llo_original>
